<compile_context>
chip_gen: v7x
topology: tpu7x:2x2x1
jax: 0.10.0
libtpu: 0.0.40
codegen_flags: <defaults>
</compile_context>

<pallas_src>
import jax
import jax.numpy as jnp
from jax.experimental import pallas as pl
from jax.experimental.pallas import tpu as pltpu

_EPS = 1e-5
_LANE = 128
# Set to jnp.bfloat16 on v6e/v7x for ~2x MXU throughput (accumulation stays f32).
# Default f32 so the strict 2e-3 accuracy check below holds on every chip.
_MXU_DTYPE = jnp.float32


def _round_up(x, m):
    return (x + m - 1) // m * m


# ----------------------------- kernels ------------------------------------- #

def _conv3x3_stats_kernel(xp_ref, w_ref, y_ref, st_ref):
    """3x3 conv (stride 1, pre-padded input) + fused per-tile BN statistics.

    xp_ref : (1, H+2, W+2, Ci)  spatially pre-padded input, one batch element
    w_ref  : (9, Ci, Co)        taps flattened as k = 3*dy + dx
    y_ref  : (1, H, W, Co)      raw conv output (pre-BN)
    st_ref : (1, 2, Co)         per-tile [sum, sum-of-squares]
    """
    _, hp2, wp2, ci = xp_ref.shape
    H, W = hp2 - 2, wp2 - 2
    co = y_ref.shape[-1]

    acc = jnp.zeros((H * W, co), jnp.float32)
    for k in range(9):
        dy, dx = k // 3, k % 3
        patch = xp_ref[0, dy:dy + H, dx:dx + W, :].reshape(H * W, ci)
        acc = acc + jnp.dot(patch.astype(_MXU_DTYPE),
                            w_ref[k].astype(_MXU_DTYPE),
                            preferred_element_type=jnp.float32)

    y_ref[...] = acc.reshape(1, H, W, co)
    s = jnp.sum(acc, axis=0, keepdims=True)
    s2 = jnp.sum(acc * acc, axis=0, keepdims=True)
    st_ref[...] = jnp.concatenate([s, s2], axis=0).reshape(1, 2, co)


def _bnrelu_conv3x3_stats_kernel(y1_ref, s1_ref, b1_ref, w_ref,
                                 y2_ref, st_ref, apad_ref):
    """Fused BN1(scale/shift) + ReLU + 3x3 conv + per-tile BN2 statistics.

    y1_ref : (1, H, W, Co)   raw conv1 output
    s1_ref : (1, 1, 1, Co)   fused BN1 scale  (gamma * rsqrt(var + eps))
    b1_ref : (1, 1, 1, Co)   fused BN1 shift  (beta - mean * scale)
    w_ref  : (9, Co, Co)
    y2_ref : (1, H, W, Co)   raw conv2 output (pre-BN)
    st_ref : (1, 2, Co)
    apad_ref : VMEM scratch (H+2, W+2, Co)
    """
    _, H, W, co = y1_ref.shape

    # BN1 + ReLU, written straight into the padded scratch's interior.
    a = jnp.maximum(y1_ref[...] * s1_ref[...] + b1_ref[...], 0.0)

    # Zero only the 1-pixel halo (4 thin stores), never the full buffer.
    zrow = jnp.zeros((1, W + 2, co), jnp.float32)
    zcol = jnp.zeros((H + 2, 1, co), jnp.float32)
    apad_ref[0:1, :, :] = zrow
    apad_ref[H + 1:H + 2, :, :] = zrow
    apad_ref[:, 0:1, :] = zcol
    apad_ref[:, W + 1:W + 2, :] = zcol
    apad_ref[1:H + 1, 1:W + 1, :] = a.reshape(H, W, co)

    acc = jnp.zeros((H * W, co), jnp.float32)
    for k in range(9):
        dy, dx = k // 3, k % 3
        patch = apad_ref[dy:dy + H, dx:dx + W, :].reshape(H * W, co)
        acc = acc + jnp.dot(patch.astype(_MXU_DTYPE),
                            w_ref[k].astype(_MXU_DTYPE),
                            preferred_element_type=jnp.float32)

    y2_ref[...] = acc.reshape(1, H, W, co)
    s = jnp.sum(acc, axis=0, keepdims=True)
    s2 = jnp.sum(acc * acc, axis=0, keepdims=True)
    st_ref[...] = jnp.concatenate([s, s2], axis=0).reshape(1, 2, co)


def _bnrelu_kernel(y_ref, s_ref, b_ref, o_ref):
    """Elementwise BN(scale/shift) + ReLU epilogue (lane-dense)."""
    o_ref[...] = jnp.maximum(y_ref[...] * s_ref[...] + b_ref[...], 0.0)


# ----------------------------- wrapper -------------------------------------- #

def _fused_bn_coeffs(stats, gamma, beta, count):
    """Reduce per-tile [sum, sumsq] partials into fused BN scale/shift (exact)."""
    s = jnp.sum(stats[:, 0, :], axis=0)
    ss = jnp.sum(stats[:, 1, :], axis=0)
    mean = s / count
    var = jnp.maximum(ss / count - mean * mean, 0.0)   # biased variance (f32)
    scale = gamma * jax.lax.rsqrt(var + jnp.float32(_EPS))
    shift = beta - mean * scale
    c = scale.shape[0]
    return scale.reshape(1, 1, 1, c), shift.reshape(1, 1, 1, c)


@jax.jit
def double_conv(x_nchw, w1_oihw, g1, b1, w2_oihw, g2, b2):
    """Fused DoubleConv. x_nchw: (N, Cin, H, W); returns (N, Cout, H, W)."""
    N, Cin, H, W = x_nchw.shape
    Cout = w1_oihw.shape[0]
    Cip = _round_up(Cin, _LANE)
    Cop = _round_up(Cout, _LANE)
    f32 = jnp.float32

    # Layout glue (plain JAX): NCHW -> NHWC, spatial halo pad for conv1,
    # channel pad to the 128-lane width, weights -> (tap, Cin, Cout).
    x = jnp.transpose(x_nchw, (0, 2, 3, 1)).astype(f32)
    x = jnp.pad(x, ((0, 0), (1, 1), (1, 1), (0, Cip - Cin)))
    w1 = jnp.transpose(w1_oihw, (2, 3, 1, 0)).astype(f32)            # (3,3,Cin,Cout)
    w1 = jnp.pad(w1, ((0, 0), (0, 0), (0, Cip - Cin), (0, Cop - Cout))).reshape(9, Cip, Cop)
    w2 = jnp.transpose(w2_oihw, (2, 3, 1, 0)).astype(f32)            # (3,3,Cout,Cout)
    w2 = jnp.pad(w2, ((0, 0), (0, 0), (0, Cop - Cout), (0, Cop - Cout))).reshape(9, Cop, Cop)
    g1p = jnp.pad(g1.astype(f32), (0, Cop - Cout))
    b1p = jnp.pad(b1.astype(f32), (0, Cop - Cout))
    g2p = jnp.pad(g2.astype(f32), (0, Cop - Cout))
    b2p = jnp.pad(b2.astype(f32), (0, Cop - Cout))

    parallel = pltpu.CompilerParams(dimension_semantics=("parallel",))

    # TODO(synk): for very large H*W (late U-Net stages won't hit this, early ones
    # might), additionally tile H with a manually-DMA'd 1-row halo so per-step
    # blocks fit v7x's 64 MiB VMEM; BN partials already compose across such tiles.

    # ---- conv1 + BN1-stat partials (grid over batch, auto-pipelined) ----
    y1, st1 = pl.pallas_call(
        _conv3x3_stats_kernel,
        grid=(N,),
        in_specs=[
            pl.BlockSpec((1, H + 2, W + 2, Cip), lambda n: (n, 0, 0, 0)),
            pl.BlockSpec((9, Cip, Cop), lambda n: (0, 0, 0)),
        ],
        out_specs=(
            pl.BlockSpec((1, H, W, Cop), lambda n: (n, 0, 0, 0)),
            pl.BlockSpec((1, 2, Cop), lambda n: (n, 0, 0)),
        ),
        out_shape=(
            jax.ShapeDtypeStruct((N, H, W, Cop), f32),
            jax.ShapeDtypeStruct((N, 2, Cop), f32),
        ),
        compiler_params=parallel,
    )(x, w1)

    count = jnp.float32(N * H * W)
    scale1, shift1 = _fused_bn_coeffs(st1, g1p, b1p, count)

    # ---- BN1 + ReLU + conv2 + BN2-stat partials ----
    y2, st2 = pl.pallas_call(
        _bnrelu_conv3x3_stats_kernel,
        grid=(N,),
        in_specs=[
            pl.BlockSpec((1, H, W, Cop), lambda n: (n, 0, 0, 0)),
            pl.BlockSpec((1, 1, 1, Cop), lambda n: (0, 0, 0, 0)),
            pl.BlockSpec((1, 1, 1, Cop), lambda n: (0, 0, 0, 0)),
            pl.BlockSpec((9, Cop, Cop), lambda n: (0, 0, 0)),
        ],
        out_specs=(
            pl.BlockSpec((1, H, W, Cop), lambda n: (n, 0, 0, 0)),
            pl.BlockSpec((1, 2, Cop), lambda n: (n, 0, 0)),
        ),
        out_shape=(
            jax.ShapeDtypeStruct((N, H, W, Cop), f32),
            jax.ShapeDtypeStruct((N, 2, Cop), f32),
        ),
        scratch_shapes=[pltpu.VMEM((H + 2, W + 2, Cop), f32)],
        compiler_params=parallel,
    )(y1, scale1, shift1, w2)

    scale2, shift2 = _fused_bn_coeffs(st2, g2p, b2p, count)

    # ---- BN2 + ReLU (lane-dense elementwise epilogue) ----
    out_nhwc = pl.pallas_call(
        _bnrelu_kernel,
        grid=(N,),
        in_specs=[
            pl.BlockSpec((1, H, W, Cop), lambda n: (n, 0, 0, 0)),
            pl.BlockSpec((1, 1, 1, Cop), lambda n: (0, 0, 0, 0)),
            pl.BlockSpec((1, 1, 1, Cop), lambda n: (0, 0, 0, 0)),
        ],
        out_specs=pl.BlockSpec((1, H, W, Cop), lambda n: (n, 0, 0, 0)),
        out_shape=jax.ShapeDtypeStruct((N, H, W, Cop), f32),
        compiler_params=parallel,
    )(y2, scale2, shift2)

    # Strip channel padding, back to NCHW.
    return jnp.transpose(out_nhwc[..., :Cout], (0, 3, 1, 2))


# ----------------------------- reference / test ----------------------------- #

def _reference(x, w1, g1, b1, w2, g2, b2):
    """Plain-JAX reference matching PyTorch DoubleConv (training-mode BN)."""
    def conv(x, w):
        return jax.lax.conv_general_dilated(
            x, w, window_strides=(1, 1), padding=((1, 1), (1, 1)),
            dimension_numbers=("NCHW", "OIHW", "NCHW"))

    def bn_relu(y, g, b):
        mean = jnp.mean(y, axis=(0, 2, 3), keepdims=True)
        var = jnp.mean((y - mean) ** 2, axis=(0, 2, 3), keepdims=True)
        yh = (y - mean) / jnp.sqrt(var + _EPS)
        return jnp.maximum(yh * g.reshape(1, -1, 1, 1) + b.reshape(1, -1, 1, 1), 0.0)

    y = bn_relu(conv(x, w1), g1, b1)
    return bn_relu(conv(y, w2), g2, b2)


if __name__ == "__main__":
    N, Cin, Cout, H, W = 2, 4, 8, 16, 16
    key = jax.random.PRNGKey(0)
    k1, k2, k3, k4, k5 = jax.random.split(key, 5)

    x = jax.random.normal(k1, (N, Cin, H, W), jnp.float32)
    # deterministic synthetic parameters (shapes match nn.Conv2d / nn.BatchNorm2d)
    w1 = jax.random.normal(k2, (Cout, Cin, 3, 3), jnp.float32) * 0.1
    w2 = jax.random.normal(k3, (Cout, Cout, 3, 3), jnp.float32) * 0.1
    g1 = 1.0 + 0.05 * jax.random.normal(k4, (Cout,), jnp.float32)
    b1 = 0.05 * jax.random.normal(k5, (Cout,), jnp.float32)
    g2 = jnp.ones((Cout,), jnp.float32)
    b2 = jnp.zeros((Cout,), jnp.float32)

    out = double_conv(x, w1, g1, b1, w2, g2, b2)
    out = jax.block_until_ready(out)
    assert out.shape == (N, Cout, H, W)

    ref = _reference(x, w1, g1, b1, w2, g2, b2)
    max_err = float(jnp.max(jnp.abs(out - ref)))
    if max_err > 2e-3:
        raise AssertionError(f"Pallas kernel mismatch vs reference: {max_err}")

    print("KERNEL_OK")
</pallas_src>

<mosaic_0001>
module attributes {stable_mosaic.version = 11 : i64} {
  func.func @_conv3x3_stats_kernel(%arg0: i32, %arg1: memref<1x18x18x128xf32, #tpu.memory_space<vmem>>, %arg2: memref<9x128x128xf32, #tpu.memory_space<vmem>>, %arg3: memref<1x16x16x128xf32, #tpu.memory_space<vmem>>, %arg4: memref<1x2x128xf32, #tpu.memory_space<vmem>>) attributes {dimension_semantics = [#tpu.dimension_semantics<parallel>], iteration_bounds = array<i64: 2>, scalar_prefetch = 0 : i64, scratch_operands = 0 : i64, tpu.core_type = #tpu.core_type<tc>, window_params = [{transform_indices = @transform_0, window_bounds = array<i64: 1, 18, 18, 128>}, {pipeline_mode = #tpu.pipeline_mode<synchronous>, transform_indices = @transform_1, window_bounds = array<i64: 9, 128, 128>}, {transform_indices = @transform_2, window_bounds = array<i64: 1, 16, 16, 128>}, {transform_indices = @transform_3, window_bounds = array<i64: 1, 2, 128>}]} {
    %cst = arith.constant 0.000000e+00 : f32
    %0 = vector.broadcast %cst : f32 to vector<256x128xf32>
    %c0 = arith.constant 0 : index
    %c0_0 = arith.constant 0 : index
    %c0_1 = arith.constant 0 : index
    %c0_2 = arith.constant 0 : index
    %1 = vector.load %arg1[%c0, %c0_0, %c0_1, %c0_2] : memref<1x18x18x128xf32, #tpu.memory_space<vmem>>, vector<1x16x16x128xf32>
    %2 = vector.shape_cast %1 : vector<1x16x16x128xf32> to vector<16x16x128xf32>
    %3 = vector.shape_cast %2 : vector<16x16x128xf32> to vector<256x128xf32>
    %c0_3 = arith.constant 0 : index
    %c0_4 = arith.constant 0 : index
    %c0_5 = arith.constant 0 : index
    %4 = vector.load %arg2[%c0_3, %c0_4, %c0_5] : memref<9x128x128xf32, #tpu.memory_space<vmem>>, vector<1x128x128xf32>
    %5 = vector.shape_cast %4 : vector<1x128x128xf32> to vector<128x128xf32>
    %cst_6 = arith.constant dense<0.000000e+00> : vector<256x128xf32>
    %6 = tpu.matmul %3, %5, %cst_6 {dimension_numbers = #tpu.dot_dimension_numbers<[1], [0], [0], [1], [0, 0, 1, 1], [], []>} : vector<256x128xf32>, vector<128x128xf32>, vector<256x128xf32> -> vector<256x128xf32>
    %7 = arith.addf %0, %6 : vector<256x128xf32>
    %c0_7 = arith.constant 0 : index
    %c0_8 = arith.constant 0 : index
    %c1 = arith.constant 1 : index
    %c0_9 = arith.constant 0 : index
    %8 = vector.load %arg1[%c0_7, %c0_8, %c1, %c0_9] : memref<1x18x18x128xf32, #tpu.memory_space<vmem>>, vector<1x16x16x128xf32>
    %9 = vector.shape_cast %8 : vector<1x16x16x128xf32> to vector<16x16x128xf32>
    %10 = vector.shape_cast %9 : vector<16x16x128xf32> to vector<256x128xf32>
    %c1_10 = arith.constant 1 : index
    %c0_11 = arith.constant 0 : index
    %c0_12 = arith.constant 0 : index
    %11 = vector.load %arg2[%c1_10, %c0_11, %c0_12] : memref<9x128x128xf32, #tpu.memory_space<vmem>>, vector<1x128x128xf32>
    %12 = vector.shape_cast %11 : vector<1x128x128xf32> to vector<128x128xf32>
    %cst_13 = arith.constant dense<0.000000e+00> : vector<256x128xf32>
    %13 = tpu.matmul %10, %12, %cst_13 {dimension_numbers = #tpu.dot_dimension_numbers<[1], [0], [0], [1], [0, 0, 1, 1], [], []>} : vector<256x128xf32>, vector<128x128xf32>, vector<256x128xf32> -> vector<256x128xf32>
    %14 = arith.addf %7, %13 : vector<256x128xf32>
    %c0_14 = arith.constant 0 : index
    %c0_15 = arith.constant 0 : index
    %c2 = arith.constant 2 : index
    %c0_16 = arith.constant 0 : index
    %15 = vector.load %arg1[%c0_14, %c0_15, %c2, %c0_16] : memref<1x18x18x128xf32, #tpu.memory_space<vmem>>, vector<1x16x16x128xf32>
    %16 = vector.shape_cast %15 : vector<1x16x16x128xf32> to vector<16x16x128xf32>
    %17 = vector.shape_cast %16 : vector<16x16x128xf32> to vector<256x128xf32>
    %c2_17 = arith.constant 2 : index
    %c0_18 = arith.constant 0 : index
    %c0_19 = arith.constant 0 : index
    %18 = vector.load %arg2[%c2_17, %c0_18, %c0_19] : memref<9x128x128xf32, #tpu.memory_space<vmem>>, vector<1x128x128xf32>
    %19 = vector.shape_cast %18 : vector<1x128x128xf32> to vector<128x128xf32>
    %cst_20 = arith.constant dense<0.000000e+00> : vector<256x128xf32>
    %20 = tpu.matmul %17, %19, %cst_20 {dimension_numbers = #tpu.dot_dimension_numbers<[1], [0], [0], [1], [0, 0, 1, 1], [], []>} : vector<256x128xf32>, vector<128x128xf32>, vector<256x128xf32> -> vector<256x128xf32>
    %21 = arith.addf %14, %20 : vector<256x128xf32>
    %c0_21 = arith.constant 0 : index
    %c1_22 = arith.constant 1 : index
    %c0_23 = arith.constant 0 : index
    %c0_24 = arith.constant 0 : index
    %22 = vector.load %arg1[%c0_21, %c1_22, %c0_23, %c0_24] : memref<1x18x18x128xf32, #tpu.memory_space<vmem>>, vector<1x16x16x128xf32>
    %23 = vector.shape_cast %22 : vector<1x16x16x128xf32> to vector<16x16x128xf32>
    %24 = vector.shape_cast %23 : vector<16x16x128xf32> to vector<256x128xf32>
    %c3 = arith.constant 3 : index
    %c0_25 = arith.constant 0 : index
    %c0_26 = arith.constant 0 : index
    %25 = vector.load %arg2[%c3, %c0_25, %c0_26] : memref<9x128x128xf32, #tpu.memory_space<vmem>>, vector<1x128x128xf32>
    %26 = vector.shape_cast %25 : vector<1x128x128xf32> to vector<128x128xf32>
    %cst_27 = arith.constant dense<0.000000e+00> : vector<256x128xf32>
    %27 = tpu.matmul %24, %26, %cst_27 {dimension_numbers = #tpu.dot_dimension_numbers<[1], [0], [0], [1], [0, 0, 1, 1], [], []>} : vector<256x128xf32>, vector<128x128xf32>, vector<256x128xf32> -> vector<256x128xf32>
    %28 = arith.addf %21, %27 : vector<256x128xf32>
    %c0_28 = arith.constant 0 : index
    %c1_29 = arith.constant 1 : index
    %c1_30 = arith.constant 1 : index
    %c0_31 = arith.constant 0 : index
    %29 = vector.load %arg1[%c0_28, %c1_29, %c1_30, %c0_31] : memref<1x18x18x128xf32, #tpu.memory_space<vmem>>, vector<1x16x16x128xf32>
    %30 = vector.shape_cast %29 : vector<1x16x16x128xf32> to vector<16x16x128xf32>
    %31 = vector.shape_cast %30 : vector<16x16x128xf32> to vector<256x128xf32>
    %c4 = arith.constant 4 : index
    %c0_32 = arith.constant 0 : index
    %c0_33 = arith.constant 0 : index
    %32 = vector.load %arg2[%c4, %c0_32, %c0_33] : memref<9x128x128xf32, #tpu.memory_space<vmem>>, vector<1x128x128xf32>
    %33 = vector.shape_cast %32 : vector<1x128x128xf32> to vector<128x128xf32>
    %cst_34 = arith.constant dense<0.000000e+00> : vector<256x128xf32>
    %34 = tpu.matmul %31, %33, %cst_34 {dimension_numbers = #tpu.dot_dimension_numbers<[1], [0], [0], [1], [0, 0, 1, 1], [], []>} : vector<256x128xf32>, vector<128x128xf32>, vector<256x128xf32> -> vector<256x128xf32>
    %35 = arith.addf %28, %34 : vector<256x128xf32>
    %c0_35 = arith.constant 0 : index
    %c1_36 = arith.constant 1 : index
    %c2_37 = arith.constant 2 : index
    %c0_38 = arith.constant 0 : index
    %36 = vector.load %arg1[%c0_35, %c1_36, %c2_37, %c0_38] : memref<1x18x18x128xf32, #tpu.memory_space<vmem>>, vector<1x16x16x128xf32>
    %37 = vector.shape_cast %36 : vector<1x16x16x128xf32> to vector<16x16x128xf32>
    %38 = vector.shape_cast %37 : vector<16x16x128xf32> to vector<256x128xf32>
    %c5 = arith.constant 5 : index
    %c0_39 = arith.constant 0 : index
    %c0_40 = arith.constant 0 : index
    %39 = vector.load %arg2[%c5, %c0_39, %c0_40] : memref<9x128x128xf32, #tpu.memory_space<vmem>>, vector<1x128x128xf32>
    %40 = vector.shape_cast %39 : vector<1x128x128xf32> to vector<128x128xf32>
    %cst_41 = arith.constant dense<0.000000e+00> : vector<256x128xf32>
    %41 = tpu.matmul %38, %40, %cst_41 {dimension_numbers = #tpu.dot_dimension_numbers<[1], [0], [0], [1], [0, 0, 1, 1], [], []>} : vector<256x128xf32>, vector<128x128xf32>, vector<256x128xf32> -> vector<256x128xf32>
    %42 = arith.addf %35, %41 : vector<256x128xf32>
    %c0_42 = arith.constant 0 : index
    %c2_43 = arith.constant 2 : index
    %c0_44 = arith.constant 0 : index
    %c0_45 = arith.constant 0 : index
    %43 = vector.load %arg1[%c0_42, %c2_43, %c0_44, %c0_45] : memref<1x18x18x128xf32, #tpu.memory_space<vmem>>, vector<1x16x16x128xf32>
    %44 = vector.shape_cast %43 : vector<1x16x16x128xf32> to vector<16x16x128xf32>
    %45 = vector.shape_cast %44 : vector<16x16x128xf32> to vector<256x128xf32>
    %c6 = arith.constant 6 : index
    %c0_46 = arith.constant 0 : index
    %c0_47 = arith.constant 0 : index
    %46 = vector.load %arg2[%c6, %c0_46, %c0_47] : memref<9x128x128xf32, #tpu.memory_space<vmem>>, vector<1x128x128xf32>
    %47 = vector.shape_cast %46 : vector<1x128x128xf32> to vector<128x128xf32>
    %cst_48 = arith.constant dense<0.000000e+00> : vector<256x128xf32>
    %48 = tpu.matmul %45, %47, %cst_48 {dimension_numbers = #tpu.dot_dimension_numbers<[1], [0], [0], [1], [0, 0, 1, 1], [], []>} : vector<256x128xf32>, vector<128x128xf32>, vector<256x128xf32> -> vector<256x128xf32>
    %49 = arith.addf %42, %48 : vector<256x128xf32>
    %c0_49 = arith.constant 0 : index
    %c2_50 = arith.constant 2 : index
    %c1_51 = arith.constant 1 : index
    %c0_52 = arith.constant 0 : index
    %50 = vector.load %arg1[%c0_49, %c2_50, %c1_51, %c0_52] : memref<1x18x18x128xf32, #tpu.memory_space<vmem>>, vector<1x16x16x128xf32>
    %51 = vector.shape_cast %50 : vector<1x16x16x128xf32> to vector<16x16x128xf32>
    %52 = vector.shape_cast %51 : vector<16x16x128xf32> to vector<256x128xf32>
    %c7 = arith.constant 7 : index
    %c0_53 = arith.constant 0 : index
    %c0_54 = arith.constant 0 : index
    %53 = vector.load %arg2[%c7, %c0_53, %c0_54] : memref<9x128x128xf32, #tpu.memory_space<vmem>>, vector<1x128x128xf32>
    %54 = vector.shape_cast %53 : vector<1x128x128xf32> to vector<128x128xf32>
    %cst_55 = arith.constant dense<0.000000e+00> : vector<256x128xf32>
    %55 = tpu.matmul %52, %54, %cst_55 {dimension_numbers = #tpu.dot_dimension_numbers<[1], [0], [0], [1], [0, 0, 1, 1], [], []>} : vector<256x128xf32>, vector<128x128xf32>, vector<256x128xf32> -> vector<256x128xf32>
    %56 = arith.addf %49, %55 : vector<256x128xf32>
    %c0_56 = arith.constant 0 : index
    %c2_57 = arith.constant 2 : index
    %c2_58 = arith.constant 2 : index
    %c0_59 = arith.constant 0 : index
    %57 = vector.load %arg1[%c0_56, %c2_57, %c2_58, %c0_59] : memref<1x18x18x128xf32, #tpu.memory_space<vmem>>, vector<1x16x16x128xf32>
    %58 = vector.shape_cast %57 : vector<1x16x16x128xf32> to vector<16x16x128xf32>
    %59 = vector.shape_cast %58 : vector<16x16x128xf32> to vector<256x128xf32>
    %c8 = arith.constant 8 : index
    %c0_60 = arith.constant 0 : index
    %c0_61 = arith.constant 0 : index
    %60 = vector.load %arg2[%c8, %c0_60, %c0_61] : memref<9x128x128xf32, #tpu.memory_space<vmem>>, vector<1x128x128xf32>
    %61 = vector.shape_cast %60 : vector<1x128x128xf32> to vector<128x128xf32>
    %cst_62 = arith.constant dense<0.000000e+00> : vector<256x128xf32>
    %62 = tpu.matmul %59, %61, %cst_62 {dimension_numbers = #tpu.dot_dimension_numbers<[1], [0], [0], [1], [0, 0, 1, 1], [], []>} : vector<256x128xf32>, vector<128x128xf32>, vector<256x128xf32> -> vector<256x128xf32>
    %63 = arith.addf %56, %62 : vector<256x128xf32>
    %64 = vector.shape_cast %63 : vector<256x128xf32> to vector<1x16x16x128xf32>
    %c0_63 = arith.constant 0 : index
    %c0_64 = arith.constant 0 : index
    %c0_65 = arith.constant 0 : index
    %c0_66 = arith.constant 0 : index
    %65 = vector.load %arg3[%c0_63, %c0_64, %c0_65, %c0_66] : memref<1x16x16x128xf32, #tpu.memory_space<vmem>>, vector<1x16x16x128xf32>
    tpu.vector_store %arg3[%c0_63, %c0_64, %c0_65, %c0_66], %64 {strides = array<i32>} : memref<1x16x16x128xf32, #tpu.memory_space<vmem>>, vector<1x16x16x128xf32>,
    %cst_67 = arith.constant dense<0.000000e+00> : vector<128xf32>
    %66 = vector.multi_reduction <add>, %63, %cst_67 [0] : vector<256x128xf32> to vector<128xf32>
    %67 = vector.shape_cast %66 : vector<128xf32> to vector<1x128xf32>
    %68 = arith.mulf %63, %63 : vector<256x128xf32>
    %cst_68 = arith.constant dense<0.000000e+00> : vector<128xf32>
    %69 = vector.multi_reduction <add>, %68, %cst_68 [0] : vector<256x128xf32> to vector<128xf32>
    %70 = vector.shape_cast %69 : vector<128xf32> to vector<1x128xf32>
    %71 = tpu.concatenate %67, %70 in 0 : vector<1x128xf32>, vector<1x128xf32> -> vector<2x128xf32>
    %72 = vector.shape_cast %71 : vector<2x128xf32> to vector<1x2x128xf32>
    %c0_69 = arith.constant 0 : index
    %c0_70 = arith.constant 0 : index
    %c0_71 = arith.constant 0 : index
    %73 = vector.load %arg4[%c0_69, %c0_70, %c0_71] : memref<1x2x128xf32, #tpu.memory_space<vmem>>, vector<1x2x128xf32>
    tpu.vector_store %arg4[%c0_69, %c0_70, %c0_71], %72 {strides = array<i32>} : memref<1x2x128xf32, #tpu.memory_space<vmem>>, vector<1x2x128xf32>,
    return
  }
  func.func @transform_0(%arg0: i32) -> (i32, i32, i32, i32) {
    %c0_i32 = arith.constant 0 : i32
    %c0_i32_0 = arith.constant 0 : i32
    %c0_i32_1 = arith.constant 0 : i32
    %c0_i32_2 = arith.constant 0 : i32
    return %arg0, %c0_i32, %c0_i32_0, %c0_i32_1 : i32, i32, i32, i32
  }
  func.func @transform_1(%arg0: i32) -> (i32, i32, i32) {
    %c0_i32 = arith.constant 0 : i32
    %c0_i32_0 = arith.constant 0 : i32
    %c0_i32_1 = arith.constant 0 : i32
    %c0_i32_2 = arith.constant 0 : i32
    return %c0_i32, %c0_i32_0, %c0_i32_1 : i32, i32, i32
  }
  func.func @transform_2(%arg0: i32) -> (i32, i32, i32, i32) {
    %c0_i32 = arith.constant 0 : i32
    %c0_i32_0 = arith.constant 0 : i32
    %c0_i32_1 = arith.constant 0 : i32
    %c0_i32_2 = arith.constant 0 : i32
    return %arg0, %c0_i32, %c0_i32_0, %c0_i32_1 : i32, i32, i32, i32
  }
  func.func @transform_3(%arg0: i32) -> (i32, i32, i32) {
    %c0_i32 = arith.constant 0 : i32
    %c0_i32_0 = arith.constant 0 : i32
    %c0_i32_1 = arith.constant 0 : i32
    return %arg0, %c0_i32, %c0_i32_0 : i32, i32, i32
  }
}

module attributes {stable_mosaic.version = 11 : i64} {
  func.func @_bnrelu_conv3x3_stats_kernel(%arg0: i32, %arg1: memref<1x16x16x128xf32, #tpu.memory_space<vmem>>, %arg2: memref<1x1x1x128xf32, #tpu.memory_space<vmem>>, %arg3: memref<1x1x1x128xf32, #tpu.memory_space<vmem>>, %arg4: memref<9x128x128xf32, #tpu.memory_space<vmem>>, %arg5: memref<1x16x16x128xf32, #tpu.memory_space<vmem>>, %arg6: memref<1x2x128xf32, #tpu.memory_space<vmem>>, %arg7: memref<18x18x128xf32, #tpu.memory_space<vmem>>) attributes {dimension_semantics = [#tpu.dimension_semantics<parallel>], iteration_bounds = array<i64: 2>, scalar_prefetch = 0 : i64, scratch_operands = 1 : i64, tpu.core_type = #tpu.core_type<tc>, window_params = [{transform_indices = @transform_0, window_bounds = array<i64: 1, 16, 16, 128>}, {pipeline_mode = #tpu.pipeline_mode<synchronous>, transform_indices = @transform_1, window_bounds = array<i64: 1, 1, 1, 128>}, {pipeline_mode = #tpu.pipeline_mode<synchronous>, transform_indices = @transform_2, window_bounds = array<i64: 1, 1, 1, 128>}, {pipeline_mode = #tpu.pipeline_mode<synchronous>, transform_indices = @transform_3, window_bounds = array<i64: 9, 128, 128>}, {transform_indices = @transform_4, window_bounds = array<i64: 1, 16, 16, 128>}, {transform_indices = @transform_5, window_bounds = array<i64: 1, 2, 128>}]} {
    %c0 = arith.constant 0 : index
    %c0_0 = arith.constant 0 : index
    %c0_1 = arith.constant 0 : index
    %c0_2 = arith.constant 0 : index
    %0 = vector.load %arg1[%c0, %c0_0, %c0_1, %c0_2] : memref<1x16x16x128xf32, #tpu.memory_space<vmem>>, vector<1x16x16x128xf32>
    %c0_3 = arith.constant 0 : index
    %c0_4 = arith.constant 0 : index
    %c0_5 = arith.constant 0 : index
    %c0_6 = arith.constant 0 : index
    %1 = vector.load %arg2[%c0_3, %c0_4, %c0_5, %c0_6] : memref<1x1x1x128xf32, #tpu.memory_space<vmem>>, vector<1x1x1x128xf32>
    %2 = vector.broadcast %1 : vector<1x1x1x128xf32> to vector<1x16x16x128xf32>
    %3 = arith.mulf %0, %2 : vector<1x16x16x128xf32>
    %c0_7 = arith.constant 0 : index
    %c0_8 = arith.constant 0 : index
    %c0_9 = arith.constant 0 : index
    %c0_10 = arith.constant 0 : index
    %4 = vector.load %arg3[%c0_7, %c0_8, %c0_9, %c0_10] : memref<1x1x1x128xf32, #tpu.memory_space<vmem>>, vector<1x1x1x128xf32>
    %5 = vector.broadcast %4 : vector<1x1x1x128xf32> to vector<1x16x16x128xf32>
    %6 = arith.addf %3, %5 : vector<1x16x16x128xf32>
    %cst = arith.constant 0.000000e+00 : f32
    %7 = vector.broadcast %cst : f32 to vector<1x16x16x128xf32>
    %8 = arith.maximumf %6, %7 : vector<1x16x16x128xf32>
    %cst_11 = arith.constant 0.000000e+00 : f32
    %9 = vector.broadcast %cst_11 : f32 to vector<1x18x128xf32>
    %cst_12 = arith.constant 0.000000e+00 : f32
    %10 = vector.broadcast %cst_12 : f32 to vector<18x1x128xf32>
    %c0_13 = arith.constant 0 : index
    %c0_14 = arith.constant 0 : index
    %c0_15 = arith.constant 0 : index
    %11 = vector.load %arg7[%c0_13, %c0_14, %c0_15] : memref<18x18x128xf32, #tpu.memory_space<vmem>>, vector<1x18x128xf32>
    tpu.vector_store %arg7[%c0_13, %c0_14, %c0_15], %9 {strides = array<i32>} : memref<18x18x128xf32, #tpu.memory_space<vmem>>, vector<1x18x128xf32>,
    %c17 = arith.constant 17 : index
    %c0_16 = arith.constant 0 : index
    %c0_17 = arith.constant 0 : index
    %12 = vector.load %arg7[%c17, %c0_16, %c0_17] : memref<18x18x128xf32, #tpu.memory_space<vmem>>, vector<1x18x128xf32>
    tpu.vector_store %arg7[%c17, %c0_16, %c0_17], %9 {strides = array<i32>} : memref<18x18x128xf32, #tpu.memory_space<vmem>>, vector<1x18x128xf32>,
    %c0_18 = arith.constant 0 : index
    %c0_19 = arith.constant 0 : index
    %c0_20 = arith.constant 0 : index
    %13 = vector.load %arg7[%c0_18, %c0_19, %c0_20] : memref<18x18x128xf32, #tpu.memory_space<vmem>>, vector<18x1x128xf32>
    tpu.vector_store %arg7[%c0_18, %c0_19, %c0_20], %10 {strides = array<i32>} : memref<18x18x128xf32, #tpu.memory_space<vmem>>, vector<18x1x128xf32>,
    %c0_21 = arith.constant 0 : index
    %c17_22 = arith.constant 17 : index
    %c0_23 = arith.constant 0 : index
    %14 = vector.load %arg7[%c0_21, %c17_22, %c0_23] : memref<18x18x128xf32, #tpu.memory_space<vmem>>, vector<18x1x128xf32>
    tpu.vector_store %arg7[%c0_21, %c17_22, %c0_23], %10 {strides = array<i32>} : memref<18x18x128xf32, #tpu.memory_space<vmem>>, vector<18x1x128xf32>,
    %15 = vector.shape_cast %8 : vector<1x16x16x128xf32> to vector<16x16x128xf32>
    %c1 = arith.constant 1 : index
    %c1_24 = arith.constant 1 : index
    %c0_25 = arith.constant 0 : index
    %16 = vector.load %arg7[%c1, %c1_24, %c0_25] : memref<18x18x128xf32, #tpu.memory_space<vmem>>, vector<16x16x128xf32>
    tpu.vector_store %arg7[%c1, %c1_24, %c0_25], %15 {strides = array<i32>} : memref<18x18x128xf32, #tpu.memory_space<vmem>>, vector<16x16x128xf32>,
    %cst_26 = arith.constant 0.000000e+00 : f32
    %17 = vector.broadcast %cst_26 : f32 to vector<256x128xf32>
    %c0_27 = arith.constant 0 : index
    %c0_28 = arith.constant 0 : index
    %c0_29 = arith.constant 0 : index
    %18 = vector.load %arg7[%c0_27, %c0_28, %c0_29] : memref<18x18x128xf32, #tpu.memory_space<vmem>>, vector<16x16x128xf32>
    %19 = vector.shape_cast %18 : vector<16x16x128xf32> to vector<256x128xf32>
    %c0_30 = arith.constant 0 : index
    %c0_31 = arith.constant 0 : index
    %c0_32 = arith.constant 0 : index
    %20 = vector.load %arg4[%c0_30, %c0_31, %c0_32] : memref<9x128x128xf32, #tpu.memory_space<vmem>>, vector<1x128x128xf32>
    %21 = vector.shape_cast %20 : vector<1x128x128xf32> to vector<128x128xf32>
    %cst_33 = arith.constant dense<0.000000e+00> : vector<256x128xf32>
    %22 = tpu.matmul %19, %21, %cst_33 {dimension_numbers = #tpu.dot_dimension_numbers<[1], [0], [0], [1], [0, 0, 1, 1], [], []>} : vector<256x128xf32>, vector<128x128xf32>, vector<256x128xf32> -> vector<256x128xf32>
    %23 = arith.addf %17, %22 : vector<256x128xf32>
    %c0_34 = arith.constant 0 : index
    %c1_35 = arith.constant 1 : index
    %c0_36 = arith.constant 0 : index
    %24 = vector.load %arg7[%c0_34, %c1_35, %c0_36] : memref<18x18x128xf32, #tpu.memory_space<vmem>>, vector<16x16x128xf32>
    %25 = vector.shape_cast %24 : vector<16x16x128xf32> to vector<256x128xf32>
    %c1_37 = arith.constant 1 : index
    %c0_38 = arith.constant 0 : index
    %c0_39 = arith.constant 0 : index
    %26 = vector.load %arg4[%c1_37, %c0_38, %c0_39] : memref<9x128x128xf32, #tpu.memory_space<vmem>>, vector<1x128x128xf32>
    %27 = vector.shape_cast %26 : vector<1x128x128xf32> to vector<128x128xf32>
    %cst_40 = arith.constant dense<0.000000e+00> : vector<256x128xf32>
    %28 = tpu.matmul %25, %27, %cst_40 {dimension_numbers = #tpu.dot_dimension_numbers<[1], [0], [0], [1], [0, 0, 1, 1], [], []>} : vector<256x128xf32>, vector<128x128xf32>, vector<256x128xf32> -> vector<256x128xf32>
    %29 = arith.addf %23, %28 : vector<256x128xf32>
    %c0_41 = arith.constant 0 : index
    %c2 = arith.constant 2 : index
    %c0_42 = arith.constant 0 : index
    %30 = vector.load %arg7[%c0_41, %c2, %c0_42] : memref<18x18x128xf32, #tpu.memory_space<vmem>>, vector<16x16x128xf32>
    %31 = vector.shape_cast %30 : vector<16x16x128xf32> to vector<256x128xf32>
    %c2_43 = arith.constant 2 : index
    %c0_44 = arith.constant 0 : index
    %c0_45 = arith.constant 0 : index
    %32 = vector.load %arg4[%c2_43, %c0_44, %c0_45] : memref<9x128x128xf32, #tpu.memory_space<vmem>>, vector<1x128x128xf32>
    %33 = vector.shape_cast %32 : vector<1x128x128xf32> to vector<128x128xf32>
    %cst_46 = arith.constant dense<0.000000e+00> : vector<256x128xf32>
    %34 = tpu.matmul %31, %33, %cst_46 {dimension_numbers = #tpu.dot_dimension_numbers<[1], [0], [0], [1], [0, 0, 1, 1], [], []>} : vector<256x128xf32>, vector<128x128xf32>, vector<256x128xf32> -> vector<256x128xf32>
    %35 = arith.addf %29, %34 : vector<256x128xf32>
    %c1_47 = arith.constant 1 : index
    %c0_48 = arith.constant 0 : index
    %c0_49 = arith.constant 0 : index
    %36 = vector.load %arg7[%c1_47, %c0_48, %c0_49] : memref<18x18x128xf32, #tpu.memory_space<vmem>>, vector<16x16x128xf32>
    %37 = vector.shape_cast %36 : vector<16x16x128xf32> to vector<256x128xf32>
    %c3 = arith.constant 3 : index
    %c0_50 = arith.constant 0 : index
    %c0_51 = arith.constant 0 : index
    %38 = vector.load %arg4[%c3, %c0_50, %c0_51] : memref<9x128x128xf32, #tpu.memory_space<vmem>>, vector<1x128x128xf32>
    %39 = vector.shape_cast %38 : vector<1x128x128xf32> to vector<128x128xf32>
    %cst_52 = arith.constant dense<0.000000e+00> : vector<256x128xf32>
    %40 = tpu.matmul %37, %39, %cst_52 {dimension_numbers = #tpu.dot_dimension_numbers<[1], [0], [0], [1], [0, 0, 1, 1], [], []>} : vector<256x128xf32>, vector<128x128xf32>, vector<256x128xf32> -> vector<256x128xf32>
    %41 = arith.addf %35, %40 : vector<256x128xf32>
    %c1_53 = arith.constant 1 : index
    %c1_54 = arith.constant 1 : index
    %c0_55 = arith.constant 0 : index
    %42 = vector.load %arg7[%c1_53, %c1_54, %c0_55] : memref<18x18x128xf32, #tpu.memory_space<vmem>>, vector<16x16x128xf32>
    %43 = vector.shape_cast %42 : vector<16x16x128xf32> to vector<256x128xf32>
    %c4 = arith.constant 4 : index
    %c0_56 = arith.constant 0 : index
    %c0_57 = arith.constant 0 : index
    %44 = vector.load %arg4[%c4, %c0_56, %c0_57] : memref<9x128x128xf32, #tpu.memory_space<vmem>>, vector<1x128x128xf32>
    %45 = vector.shape_cast %44 : vector<1x128x128xf32> to vector<128x128xf32>
    %cst_58 = arith.constant dense<0.000000e+00> : vector<256x128xf32>
    %46 = tpu.matmul %43, %45, %cst_58 {dimension_numbers = #tpu.dot_dimension_numbers<[1], [0], [0], [1], [0, 0, 1, 1], [], []>} : vector<256x128xf32>, vector<128x128xf32>, vector<256x128xf32> -> vector<256x128xf32>
    %47 = arith.addf %41, %46 : vector<256x128xf32>
    %c1_59 = arith.constant 1 : index
    %c2_60 = arith.constant 2 : index
    %c0_61 = arith.constant 0 : index
    %48 = vector.load %arg7[%c1_59, %c2_60, %c0_61] : memref<18x18x128xf32, #tpu.memory_space<vmem>>, vector<16x16x128xf32>
    %49 = vector.shape_cast %48 : vector<16x16x128xf32> to vector<256x128xf32>
    %c5 = arith.constant 5 : index
    %c0_62 = arith.constant 0 : index
    %c0_63 = arith.constant 0 : index
    %50 = vector.load %arg4[%c5, %c0_62, %c0_63] : memref<9x128x128xf32, #tpu.memory_space<vmem>>, vector<1x128x128xf32>
    %51 = vector.shape_cast %50 : vector<1x128x128xf32> to vector<128x128xf32>
    %cst_64 = arith.constant dense<0.000000e+00> : vector<256x128xf32>
    %52 = tpu.matmul %49, %51, %cst_64 {dimension_numbers = #tpu.dot_dimension_numbers<[1], [0], [0], [1], [0, 0, 1, 1], [], []>} : vector<256x128xf32>, vector<128x128xf32>, vector<256x128xf32> -> vector<256x128xf32>
    %53 = arith.addf %47, %52 : vector<256x128xf32>
    %c2_65 = arith.constant 2 : index
    %c0_66 = arith.constant 0 : index
    %c0_67 = arith.constant 0 : index
    %54 = vector.load %arg7[%c2_65, %c0_66, %c0_67] : memref<18x18x128xf32, #tpu.memory_space<vmem>>, vector<16x16x128xf32>
    %55 = vector.shape_cast %54 : vector<16x16x128xf32> to vector<256x128xf32>
    %c6 = arith.constant 6 : index
    %c0_68 = arith.constant 0 : index
    %c0_69 = arith.constant 0 : index
    %56 = vector.load %arg4[%c6, %c0_68, %c0_69] : memref<9x128x128xf32, #tpu.memory_space<vmem>>, vector<1x128x128xf32>
    %57 = vector.shape_cast %56 : vector<1x128x128xf32> to vector<128x128xf32>
    %cst_70 = arith.constant dense<0.000000e+00> : vector<256x128xf32>
    %58 = tpu.matmul %55, %57, %cst_70 {dimension_numbers = #tpu.dot_dimension_numbers<[1], [0], [0], [1], [0, 0, 1, 1], [], []>} : vector<256x128xf32>, vector<128x128xf32>, vector<256x128xf32> -> vector<256x128xf32>
    %59 = arith.addf %53, %58 : vector<256x128xf32>
    %c2_71 = arith.constant 2 : index
    %c1_72 = arith.constant 1 : index
    %c0_73 = arith.constant 0 : index
    %60 = vector.load %arg7[%c2_71, %c1_72, %c0_73] : memref<18x18x128xf32, #tpu.memory_space<vmem>>, vector<16x16x128xf32>
    %61 = vector.shape_cast %60 : vector<16x16x128xf32> to vector<256x128xf32>
    %c7 = arith.constant 7 : index
    %c0_74 = arith.constant 0 : index
    %c0_75 = arith.constant 0 : index
    %62 = vector.load %arg4[%c7, %c0_74, %c0_75] : memref<9x128x128xf32, #tpu.memory_space<vmem>>, vector<1x128x128xf32>
    %63 = vector.shape_cast %62 : vector<1x128x128xf32> to vector<128x128xf32>
    %cst_76 = arith.constant dense<0.000000e+00> : vector<256x128xf32>
    %64 = tpu.matmul %61, %63, %cst_76 {dimension_numbers = #tpu.dot_dimension_numbers<[1], [0], [0], [1], [0, 0, 1, 1], [], []>} : vector<256x128xf32>, vector<128x128xf32>, vector<256x128xf32> -> vector<256x128xf32>
    %65 = arith.addf %59, %64 : vector<256x128xf32>
    %c2_77 = arith.constant 2 : index
    %c2_78 = arith.constant 2 : index
    %c0_79 = arith.constant 0 : index
    %66 = vector.load %arg7[%c2_77, %c2_78, %c0_79] : memref<18x18x128xf32, #tpu.memory_space<vmem>>, vector<16x16x128xf32>
    %67 = vector.shape_cast %66 : vector<16x16x128xf32> to vector<256x128xf32>
    %c8 = arith.constant 8 : index
    %c0_80 = arith.constant 0 : index
    %c0_81 = arith.constant 0 : index
    %68 = vector.load %arg4[%c8, %c0_80, %c0_81] : memref<9x128x128xf32, #tpu.memory_space<vmem>>, vector<1x128x128xf32>
    %69 = vector.shape_cast %68 : vector<1x128x128xf32> to vector<128x128xf32>
    %cst_82 = arith.constant dense<0.000000e+00> : vector<256x128xf32>
    %70 = tpu.matmul %67, %69, %cst_82 {dimension_numbers = #tpu.dot_dimension_numbers<[1], [0], [0], [1], [0, 0, 1, 1], [], []>} : vector<256x128xf32>, vector<128x128xf32>, vector<256x128xf32> -> vector<256x128xf32>
    %71 = arith.addf %65, %70 : vector<256x128xf32>
    %72 = vector.shape_cast %71 : vector<256x128xf32> to vector<1x16x16x128xf32>
    %c0_83 = arith.constant 0 : index
    %c0_84 = arith.constant 0 : index
    %c0_85 = arith.constant 0 : index
    %c0_86 = arith.constant 0 : index
    %73 = vector.load %arg5[%c0_83, %c0_84, %c0_85, %c0_86] : memref<1x16x16x128xf32, #tpu.memory_space<vmem>>, vector<1x16x16x128xf32>
    tpu.vector_store %arg5[%c0_83, %c0_84, %c0_85, %c0_86], %72 {strides = array<i32>} : memref<1x16x16x128xf32, #tpu.memory_space<vmem>>, vector<1x16x16x128xf32>,
    %cst_87 = arith.constant dense<0.000000e+00> : vector<128xf32>
    %74 = vector.multi_reduction <add>, %71, %cst_87 [0] : vector<256x128xf32> to vector<128xf32>
    %75 = vector.shape_cast %74 : vector<128xf32> to vector<1x128xf32>
    %76 = arith.mulf %71, %71 : vector<256x128xf32>
    %cst_88 = arith.constant dense<0.000000e+00> : vector<128xf32>
    %77 = vector.multi_reduction <add>, %76, %cst_88 [0] : vector<256x128xf32> to vector<128xf32>
    %78 = vector.shape_cast %77 : vector<128xf32> to vector<1x128xf32>
    %79 = tpu.concatenate %75, %78 in 0 : vector<1x128xf32>, vector<1x128xf32> -> vector<2x128xf32>
    %80 = vector.shape_cast %79 : vector<2x128xf32> to vector<1x2x128xf32>
    %c0_89 = arith.constant 0 : index
    %c0_90 = arith.constant 0 : index
    %c0_91 = arith.constant 0 : index
    %81 = vector.load %arg6[%c0_89, %c0_90, %c0_91] : memref<1x2x128xf32, #tpu.memory_space<vmem>>, vector<1x2x128xf32>
    tpu.vector_store %arg6[%c0_89, %c0_90, %c0_91], %80 {strides = array<i32>} : memref<1x2x128xf32, #tpu.memory_space<vmem>>, vector<1x2x128xf32>,
    return
  }
  func.func @transform_0(%arg0: i32) -> (i32, i32, i32, i32) {
    %c0_i32 = arith.constant 0 : i32
    %c0_i32_0 = arith.constant 0 : i32
    %c0_i32_1 = arith.constant 0 : i32
    %c0_i32_2 = arith.constant 0 : i32
    return %arg0, %c0_i32, %c0_i32_0, %c0_i32_1 : i32, i32, i32, i32
  }
  func.func @transform_1(%arg0: i32) -> (i32, i32, i32, i32) {
    %c0_i32 = arith.constant 0 : i32
    %c0_i32_0 = arith.constant 0 : i32
    %c0_i32_1 = arith.constant 0 : i32
    %c0_i32_2 = arith.constant 0 : i32
    %c0_i32_3 = arith.constant 0 : i32
    return %c0_i32, %c0_i32_0, %c0_i32_1, %c0_i32_2 : i32, i32, i32, i32
  }
  func.func @transform_2(%arg0: i32) -> (i32, i32, i32, i32) {
    %c0_i32 = arith.constant 0 : i32
    %c0_i32_0 = arith.constant 0 : i32
    %c0_i32_1 = arith.constant 0 : i32
    %c0_i32_2 = arith.constant 0 : i32
    %c0_i32_3 = arith.constant 0 : i32
    return %c0_i32, %c0_i32_0, %c0_i32_1, %c0_i32_2 : i32, i32, i32, i32
  }
  func.func @transform_3(%arg0: i32) -> (i32, i32, i32) {
    %c0_i32 = arith.constant 0 : i32
    %c0_i32_0 = arith.constant 0 : i32
    %c0_i32_1 = arith.constant 0 : i32
    %c0_i32_2 = arith.constant 0 : i32
    return %c0_i32, %c0_i32_0, %c0_i32_1 : i32, i32, i32
  }
  func.func @transform_4(%arg0: i32) -> (i32, i32, i32, i32) {
    %c0_i32 = arith.constant 0 : i32
    %c0_i32_0 = arith.constant 0 : i32
    %c0_i32_1 = arith.constant 0 : i32
    %c0_i32_2 = arith.constant 0 : i32
    return %arg0, %c0_i32, %c0_i32_0, %c0_i32_1 : i32, i32, i32, i32
  }
  func.func @transform_5(%arg0: i32) -> (i32, i32, i32) {
    %c0_i32 = arith.constant 0 : i32
    %c0_i32_0 = arith.constant 0 : i32
    %c0_i32_1 = arith.constant 0 : i32
    return %arg0, %c0_i32, %c0_i32_0 : i32, i32, i32
  }
}

module attributes {stable_mosaic.version = 11 : i64} {
  func.func @_bnrelu_kernel(%arg0: i32, %arg1: memref<1x16x16x128xf32, #tpu.memory_space<vmem>>, %arg2: memref<1x1x1x128xf32, #tpu.memory_space<vmem>>, %arg3: memref<1x1x1x128xf32, #tpu.memory_space<vmem>>, %arg4: memref<1x16x16x128xf32, #tpu.memory_space<vmem>>) attributes {dimension_semantics = [#tpu.dimension_semantics<parallel>], iteration_bounds = array<i64: 2>, scalar_prefetch = 0 : i64, scratch_operands = 0 : i64, tpu.core_type = #tpu.core_type<tc>, window_params = [{transform_indices = @transform_0, window_bounds = array<i64: 1, 16, 16, 128>}, {pipeline_mode = #tpu.pipeline_mode<synchronous>, transform_indices = @transform_1, window_bounds = array<i64: 1, 1, 1, 128>}, {pipeline_mode = #tpu.pipeline_mode<synchronous>, transform_indices = @transform_2, window_bounds = array<i64: 1, 1, 1, 128>}, {transform_indices = @transform_3, window_bounds = array<i64: 1, 16, 16, 128>}]} {
    %c0 = arith.constant 0 : index
    %c0_0 = arith.constant 0 : index
    %c0_1 = arith.constant 0 : index
    %c0_2 = arith.constant 0 : index
    %0 = vector.load %arg1[%c0, %c0_0, %c0_1, %c0_2] : memref<1x16x16x128xf32, #tpu.memory_space<vmem>>, vector<1x16x16x128xf32>
    %c0_3 = arith.constant 0 : index
    %c0_4 = arith.constant 0 : index
    %c0_5 = arith.constant 0 : index
    %c0_6 = arith.constant 0 : index
    %1 = vector.load %arg2[%c0_3, %c0_4, %c0_5, %c0_6] : memref<1x1x1x128xf32, #tpu.memory_space<vmem>>, vector<1x1x1x128xf32>
    %2 = vector.broadcast %1 : vector<1x1x1x128xf32> to vector<1x16x16x128xf32>
    %3 = arith.mulf %0, %2 : vector<1x16x16x128xf32>
    %c0_7 = arith.constant 0 : index
    %c0_8 = arith.constant 0 : index
    %c0_9 = arith.constant 0 : index
    %c0_10 = arith.constant 0 : index
    %4 = vector.load %arg3[%c0_7, %c0_8, %c0_9, %c0_10] : memref<1x1x1x128xf32, #tpu.memory_space<vmem>>, vector<1x1x1x128xf32>
    %5 = vector.broadcast %4 : vector<1x1x1x128xf32> to vector<1x16x16x128xf32>
    %6 = arith.addf %3, %5 : vector<1x16x16x128xf32>
    %cst = arith.constant 0.000000e+00 : f32
    %7 = vector.broadcast %cst : f32 to vector<1x16x16x128xf32>
    %8 = arith.maximumf %6, %7 : vector<1x16x16x128xf32>
    %c0_11 = arith.constant 0 : index
    %c0_12 = arith.constant 0 : index
    %c0_13 = arith.constant 0 : index
    %c0_14 = arith.constant 0 : index
    %9 = vector.load %arg4[%c0_11, %c0_12, %c0_13, %c0_14] : memref<1x16x16x128xf32, #tpu.memory_space<vmem>>, vector<1x16x16x128xf32>
    tpu.vector_store %arg4[%c0_11, %c0_12, %c0_13, %c0_14], %8 {strides = array<i32>} : memref<1x16x16x128xf32, #tpu.memory_space<vmem>>, vector<1x16x16x128xf32>,
    return
  }
  func.func @transform_0(%arg0: i32) -> (i32, i32, i32, i32) {
    %c0_i32 = arith.constant 0 : i32
    %c0_i32_0 = arith.constant 0 : i32
    %c0_i32_1 = arith.constant 0 : i32
    %c0_i32_2 = arith.constant 0 : i32
    return %arg0, %c0_i32, %c0_i32_0, %c0_i32_1 : i32, i32, i32, i32
  }
  func.func @transform_1(%arg0: i32) -> (i32, i32, i32, i32) {
    %c0_i32 = arith.constant 0 : i32
    %c0_i32_0 = arith.constant 0 : i32
    %c0_i32_1 = arith.constant 0 : i32
    %c0_i32_2 = arith.constant 0 : i32
    %c0_i32_3 = arith.constant 0 : i32
    return %c0_i32, %c0_i32_0, %c0_i32_1, %c0_i32_2 : i32, i32, i32, i32
  }
  func.func @transform_2(%arg0: i32) -> (i32, i32, i32, i32) {
    %c0_i32 = arith.constant 0 : i32
    %c0_i32_0 = arith.constant 0 : i32
    %c0_i32_1 = arith.constant 0 : i32
    %c0_i32_2 = arith.constant 0 : i32
    %c0_i32_3 = arith.constant 0 : i32
    return %c0_i32, %c0_i32_0, %c0_i32_1, %c0_i32_2 : i32, i32, i32, i32
  }
  func.func @transform_3(%arg0: i32) -> (i32, i32, i32, i32) {
    %c0_i32 = arith.constant 0 : i32
    %c0_i32_0 = arith.constant 0 : i32
    %c0_i32_1 = arith.constant 0 : i32
    %c0_i32_2 = arith.constant 0 : i32
    return %arg0, %c0_i32, %c0_i32_0, %c0_i32_1 : i32, i32, i32, i32
  }
}

</mosaic_0001>

<llo_original>
// kernel: double_conv.5
$region0: #{double_conv.5}
  #allocation0 [shape = 'u32[]', space=smem, size = 0x4, offset = 0x4, fixed_abs, tag = 'smem constant byte address 0x4 - core index']
  #allocation1 [shape = 'u32[144,128]{1,0:T(1,128)}', space=vmem, size = 0x12000, scoped, tag = 'internal scratch']
  %s0 = inlined_call_operand.vmem [shape: f32[2,16,16,128], index: 0, kind: input, shape index: {}]
  %s1 = inlined_call_operand.vmem [shape: f32[1,1,1,128], index: 1, kind: input, shape index: {}]
  %s2 = inlined_call_operand.vmem [shape: f32[1,1,1,128], index: 2, kind: input, shape index: {}]
  %s3 = inlined_call_operand.vmem [shape: f32[2,16,16,128], index: 3, kind: output, shape index: {}]
  %s4 = sld [smem:[#allocation0]]
  $region45: #{double_conv.5} parent=0
    _
  %s6 = ssub.s32 1, %s4
  %s7 = scalar_select 0, %s6, %s4
  loop: start=0, step=1, limit=4
  $region2: #{double_conv.5} parent=0 // loop_pre_header
    _
  $region3: #{double_conv.5} parent=0 // loop_header
    %s9 = sphi 0, %s13
    %p10 = scmp.ge.s32.totalorder %s9, 4
    %s19 = sphi 0, %s21
    %s22 = sphi 0, %s19
    %s23 = sphi 0, %s22
    %s39 = sphi 0, %s23
    %s43 = sphi 0, %s43
    %s45 = sphi 0, %s43
    %s46 = sphi 0, %s45
    %s60 = sphi 0, %s46
    %s64 = sphi 0, %s64
    %s66 = sphi 0, %s64
    %s67 = sphi 0, %s66
    %s81 = sphi 0, %s67
    %s87 = sphi 0, %s89
    %s90 = sphi 0, %s87
    %s91 = sphi 0, %s90
    %s107 = sphi 0, %s91
  $region4: #{double_conv.5} parent=0 // loop_header_branch
    %12 = sbr.rel (%p10) target = $region8
  $region5: #{double_conv.5} parent=0 // loop_body
    %s14 = ssub.s32 %s9, 1
    %s15 = ssub.s32 %s9, 2
    %s16 = sadd.s32 %s9, 1
    %s17 = ssub.s32 %s9, %s16
    %p18 = scmp.eq.s32.totalorder %s17, 0
    %s20 = sadd.s32 %s19, 1
    %s21 = scalar_select %p18, %s19, %s20
    %p24 = pneg %p18
    %p25 = scmp.eq.s32.totalorder %s9, 1
    %p26 = por %p24, %p25
    %p27 = scmp.ne.s32.totalorder %s19, %s22
    %p28 = scmp.eq.s32.totalorder %s9, 0
    %p29 = por %p27, %p28
    %p30 = scmp.ne.s32.totalorder %s19, %s22
    %p31 = scmp.eq.s32.totalorder %s14, 1
    %p32 = por %p30, %p31
    %p33 = scmp.ne.s32.totalorder %s22, %s23
    %p34 = scmp.eq.s32.totalorder %s14, 0
    %p35 = por %p33, %p34
    %p36 = scmp.ne.s32.totalorder %s22, %s23
    %p37 = scmp.eq.s32.totalorder %s15, 1
    %p38 = por %p36, %p37
    %p40 = scmp.ne.s32.totalorder %s23, %s39
    %p41 = scmp.eq.s32.totalorder %s15, 0
    %p42 = por %p40, %p41
    %s44 = sadd.s32 %s43, 1
    %p47 = scmp.eq.s32.totalorder %s9, 1
    %p48 = scmp.ne.s32.totalorder %s43, %s45
    %p49 = scmp.eq.s32.totalorder %s9, 0
    %p50 = por %p48, %p49
    %p51 = scmp.ne.s32.totalorder %s43, %s45
    %p52 = scmp.eq.s32.totalorder %s14, 1
    %p53 = por %p51, %p52
    %p54 = scmp.ne.s32.totalorder %s45, %s46
    %p55 = scmp.eq.s32.totalorder %s14, 0
    %p56 = por %p54, %p55
    %p57 = scmp.ne.s32.totalorder %s45, %s46
    %p58 = scmp.eq.s32.totalorder %s15, 1
    %p59 = por %p57, %p58
    %p61 = scmp.ne.s32.totalorder %s46, %s60
    %p62 = scmp.eq.s32.totalorder %s15, 0
    %p63 = por %p61, %p62
    %s65 = sadd.s32 %s64, 1
    %p68 = scmp.eq.s32.totalorder %s9, 1
    %p69 = scmp.ne.s32.totalorder %s64, %s66
    %p70 = scmp.eq.s32.totalorder %s9, 0
    %p71 = por %p69, %p70
    %p72 = scmp.ne.s32.totalorder %s64, %s66
    %p73 = scmp.eq.s32.totalorder %s14, 1
    %p74 = por %p72, %p73
    %p75 = scmp.ne.s32.totalorder %s66, %s67
    %p76 = scmp.eq.s32.totalorder %s14, 0
    %p77 = por %p75, %p76
    %p78 = scmp.ne.s32.totalorder %s66, %s67
    %p79 = scmp.eq.s32.totalorder %s15, 1
    %p80 = por %p78, %p79
    %p82 = scmp.ne.s32.totalorder %s67, %s81
    %p83 = scmp.eq.s32.totalorder %s15, 0
    %p84 = por %p82, %p83
    %s85 = ssub.s32 %s9, %s16
    %p86 = scmp.eq.s32.totalorder %s85, 0
    %s88 = sadd.s32 %s87, 1
    %s89 = scalar_select %p86, %s87, %s88
    %p92 = pneg %p86
    %p93 = scmp.eq.s32.totalorder %s9, 1
    %p94 = por %p92, %p93
    %p95 = scmp.ne.s32.totalorder %s87, %s90
    %p96 = scmp.eq.s32.totalorder %s9, 0
    %p97 = por %p95, %p96
    %p98 = scmp.ne.s32.totalorder %s87, %s90
    %p99 = scmp.eq.s32.totalorder %s14, 1
    %p100 = por %p98, %p99
    %p101 = scmp.ne.s32.totalorder %s90, %s91
    %p102 = scmp.eq.s32.totalorder %s14, 0
    %p103 = por %p101, %p102
    %p104 = scmp.ne.s32.totalorder %s90, %s91
    %p105 = scmp.eq.s32.totalorder %s15, 1
    %p106 = por %p104, %p105
    %p108 = scmp.ne.s32.totalorder %s91, %s107
    %p109 = scmp.eq.s32.totalorder %s15, 0
    %p110 = por %p108, %p109
    %p111 = scmp.le.s32.totalorder 1, %s9
    %p112 = scmp.lt.s32.totalorder %s9, 3
    %p113 = pnand %p111, %p112
    %p114 = pneg %p113
    // Predicated region
    $region9: #{double_conv.5} parent=5 // pred_check
      _
    $region10: #{double_conv.5} parent=5 // pred_check_branch
      %116 = sbr.rel (%p113) target = $region12
    $region11: #{double_conv.5} parent=5 // pred_region
      %s117 = ssub.s32 %s9, 1
      // Predicated region
      $region13: #{double_conv.5} parent=11 // pred_check
        %p118 = pneg %p56
      $region14: #{double_conv.5} parent=11 // pred_check_branch
        %120 = sbr.rel (%p118) target = $region16
      $region15: #{double_conv.5} parent=11 // pred_region
        _
      $region16: #{double_conv.5} parent=11 // pred_fallthru
        _
      // Predicated region
      $region17: #{double_conv.5} parent=11 // pred_check
        %p121 = pneg %p77
      $region18: #{double_conv.5} parent=11 // pred_check_branch
        %123 = sbr.rel (%p121) target = $region20
      $region19: #{double_conv.5} parent=11 // pred_region
        _
      $region20: #{double_conv.5} parent=11 // pred_fallthru
        _
    $region12: #{double_conv.5} parent=5 // pred_fallthru
      _
    %p124 = scmp.lt.s32.totalorder %s9, 2
    // Predicated region
    $region21: #{double_conv.5} parent=5 // pred_check
      %p125 = pneg %p124
    $region22: #{double_conv.5} parent=5 // pred_check_branch
      %127 = sbr.rel (%p125) target = $region24
    $region23: #{double_conv.5} parent=5 // pred_region
      // Predicated region
      $region25: #{double_conv.5} parent=23 // pred_check
        %p128 = pneg %p29
      $region26: #{double_conv.5} parent=23 // pred_check_branch
        %130 = sbr.rel (%p128) target = $region28
      $region27: #{double_conv.5} parent=23 // pred_region
        %p131 = scmp.lt.s32.totalorder %s9, 1
        %s132 = scalar_select %p131, %s9, 1
        %s133 = smul.addr %s132, 32
        %s134 = smul.addr %s133, 8
        %s135 = scalar_lea.vmem %s0, %s134
      $region28: #{double_conv.5} parent=23 // pred_fallthru
        _
    $region24: #{double_conv.5} parent=5 // pred_fallthru
      _
    %p136 = scmp.le.s32.totalorder 1, %s9
    %p137 = scmp.lt.s32.totalorder %s9, 3
    %p138 = pnand %p136, %p137
    %p139 = pneg %p138
    // Predicated region
    $region29: #{double_conv.5} parent=5 // pred_check
      _
    $region30: #{double_conv.5} parent=5 // pred_check_branch
      %141 = sbr.rel (%p138) target = $region32
    $region31: #{double_conv.5} parent=5 // pred_region
      %s142 = ssub.s32 %s9, 1
      %p143 = scmp.lt.s32.totalorder %s14, 1
      %s144 = scalar_select %p143, %s14, 1
      %s145 = smul.addr %s144, 32
      %s146 = smul.addr %s145, 8
      %s147 = scalar_lea.vmem %s0, %s146
      %p148 = pneg %p35
      %p149 = pneg %p32
      %p150 = pneg %p56
      %p151 = pneg %p53
      %p152 = pneg %p77
      %p153 = pneg %p74
      %p154 = pneg %p103
      %p155 = pneg %p100
      %p156 = scmp.lt.s32.totalorder %s14, 1
      %s157 = scalar_select %p156, %s14, 1
      %s158 = smul.addr %s157, 32
      %s159 = smul.addr %s158, 8
      %s160 = scalar_lea.vmem %s3, %s159
      %p161 = scmp.lt.s32.totalorder %s14, 1
      %s162 = scalar_select %p161, %s14, 1
      %s163 = smul.addr %s162, 32
      %s164 = smul.addr %s163, 8
      %s165 = scalar_lea.vmem %s0, %s164
      %p166 = scmp.lt.s32.totalorder %s14, 1
      %s167 = scalar_select %p166, %s14, 1
      %s168 = smul.addr %s167, 32
      %s169 = smul.addr %s168, 8
      %s170 = scalar_lea.vmem %s3, %s169
      %v171 = vld [vmem:[%s165] sm:$0xff]
      %v172 = vld [vmem:[%s165 + $0x8] sm:$0xff]
      %v173 = vld [vmem:[%s165 + $0x10] sm:$0xff]
      %v174 = vld [vmem:[%s165 + $0x18] sm:$0xff]
      %v175 = vld [vmem:[%s165 + $0x20] sm:$0xff]
      %v176 = vld [vmem:[%s165 + $0x28] sm:$0xff]
      %v177 = vld [vmem:[%s165 + $0x30] sm:$0xff]
      %v178 = vld [vmem:[%s165 + $0x38] sm:$0xff]
      %v179 = vld [vmem:[%s165 + $0x40] sm:$0xff]
      %v180 = vld [vmem:[%s165 + $0x48] sm:$0xff]
      %v181 = vld [vmem:[%s165 + $0x50] sm:$0xff]
      %v182 = vld [vmem:[%s165 + $0x58] sm:$0xff]
      %v183 = vld [vmem:[%s165 + $0x60] sm:$0xff]
      %v184 = vld [vmem:[%s165 + $0x68] sm:$0xff]
      %v185 = vld [vmem:[%s165 + $0x70] sm:$0xff]
      %v186 = vld [vmem:[%s165 + $0x78] sm:$0xff]
      %v187 = vld [vmem:[%s165 + $0x80] sm:$0xff]
      %v188 = vld [vmem:[%s165 + $0x88] sm:$0xff]
      %v189 = vld [vmem:[%s165 + $0x90] sm:$0xff]
      %v190 = vld [vmem:[%s165 + $0x98] sm:$0xff]
      %v191 = vld [vmem:[%s165 + $0xa0] sm:$0xff]
      %v192 = vld [vmem:[%s165 + $0xa8] sm:$0xff]
      %v193 = vld [vmem:[%s165 + $0xb0] sm:$0xff]
      %v194 = vld [vmem:[%s165 + $0xb8] sm:$0xff]
      %v195 = vld [vmem:[%s165 + $0xc0] sm:$0xff]
      %v196 = vld [vmem:[%s165 + $0xc8] sm:$0xff]
      %v197 = vld [vmem:[%s165 + $0xd0] sm:$0xff]
      %v198 = vld [vmem:[%s165 + $0xd8] sm:$0xff]
      %v199 = vld [vmem:[%s165 + $0xe0] sm:$0xff]
      %v200 = vld [vmem:[%s165 + $0xe8] sm:$0xff]
      %v201 = vld [vmem:[%s165 + $0xf0] sm:$0xff]
      %v202 = vld [vmem:[%s165 + $0xf8] sm:$0xff]
      %v203 = vld [vmem:[%s1] sm:$0x1]
      %v205 = vlaneseq
      %v206 = vshrl.u32 %v205, 7
      %v207 = vsub.s32 0, %v206
      %v208 = vrot.slane %v203, %v207
      %v210 = vmul.f32 %v171, %v208
      %v211 = vmul.f32 %v172, %v208
      %v212 = vmul.f32 %v173, %v208
      %v213 = vmul.f32 %v174, %v208
      %v214 = vmul.f32 %v175, %v208
      %v215 = vmul.f32 %v176, %v208
      %v216 = vmul.f32 %v177, %v208
      %v217 = vmul.f32 %v178, %v208
      %v218 = vmul.f32 %v179, %v208
      %v219 = vmul.f32 %v180, %v208
      %v220 = vmul.f32 %v181, %v208
      %v221 = vmul.f32 %v182, %v208
      %v222 = vmul.f32 %v183, %v208
      %v223 = vmul.f32 %v184, %v208
      %v224 = vmul.f32 %v185, %v208
      %v225 = vmul.f32 %v186, %v208
      %v226 = vmul.f32 %v187, %v208
      %v227 = vmul.f32 %v188, %v208
      %v228 = vmul.f32 %v189, %v208
      %v229 = vmul.f32 %v190, %v208
      %v230 = vmul.f32 %v191, %v208
      %v231 = vmul.f32 %v192, %v208
      %v232 = vmul.f32 %v193, %v208
      %v233 = vmul.f32 %v194, %v208
      %v234 = vmul.f32 %v195, %v208
      %v235 = vmul.f32 %v196, %v208
      %v236 = vmul.f32 %v197, %v208
      %v237 = vmul.f32 %v198, %v208
      %v238 = vmul.f32 %v199, %v208
      %v239 = vmul.f32 %v200, %v208
      %v240 = vmul.f32 %v201, %v208
      %v241 = vmul.f32 %v202, %v208
      %v242 = vld [vmem:[%s2] sm:$0x1]
      %v244 = vlaneseq
      %v245 = vshrl.u32 %v244, 7
      %v246 = vsub.s32 0, %v245
      %v247 = vrot.slane %v242, %v246
      %v249 = vadd.f32 %v210, %v247
      %v250 = vadd.f32 %v211, %v247
      %v251 = vadd.f32 %v212, %v247
      %v252 = vadd.f32 %v213, %v247
      %v253 = vadd.f32 %v214, %v247
      %v254 = vadd.f32 %v215, %v247
      %v255 = vadd.f32 %v216, %v247
      %v256 = vadd.f32 %v217, %v247
      %v257 = vadd.f32 %v218, %v247
      %v258 = vadd.f32 %v219, %v247
      %v259 = vadd.f32 %v220, %v247
      %v260 = vadd.f32 %v221, %v247
      %v261 = vadd.f32 %v222, %v247
      %v262 = vadd.f32 %v223, %v247
      %v263 = vadd.f32 %v224, %v247
      %v264 = vadd.f32 %v225, %v247
      %v265 = vadd.f32 %v226, %v247
      %v266 = vadd.f32 %v227, %v247
      %v267 = vadd.f32 %v228, %v247
      %v268 = vadd.f32 %v229, %v247
      %v269 = vadd.f32 %v230, %v247
      %v270 = vadd.f32 %v231, %v247
      %v271 = vadd.f32 %v232, %v247
      %v272 = vadd.f32 %v233, %v247
      %v273 = vadd.f32 %v234, %v247
      %v274 = vadd.f32 %v235, %v247
      %v275 = vadd.f32 %v236, %v247
      %v276 = vadd.f32 %v237, %v247
      %v277 = vadd.f32 %v238, %v247
      %v278 = vadd.f32 %v239, %v247
      %v279 = vadd.f32 %v240, %v247
      %v280 = vadd.f32 %v241, %v247
      %v281 = vmax.f32 %v249, 0.0
      %v282 = vmax.f32 %v250, 0.0
      %v283 = vmax.f32 %v251, 0.0
      %v284 = vmax.f32 %v252, 0.0
      %v285 = vmax.f32 %v253, 0.0
      %v286 = vmax.f32 %v254, 0.0
      %v287 = vmax.f32 %v255, 0.0
      %v288 = vmax.f32 %v256, 0.0
      %v289 = vmax.f32 %v257, 0.0
      %v290 = vmax.f32 %v258, 0.0
      %v291 = vmax.f32 %v259, 0.0
      %v292 = vmax.f32 %v260, 0.0
      %v293 = vmax.f32 %v261, 0.0
      %v294 = vmax.f32 %v262, 0.0
      %v295 = vmax.f32 %v263, 0.0
      %v296 = vmax.f32 %v264, 0.0
      %v297 = vmax.f32 %v265, 0.0
      %v298 = vmax.f32 %v266, 0.0
      %v299 = vmax.f32 %v267, 0.0
      %v300 = vmax.f32 %v268, 0.0
      %v301 = vmax.f32 %v269, 0.0
      %v302 = vmax.f32 %v270, 0.0
      %v303 = vmax.f32 %v271, 0.0
      %v304 = vmax.f32 %v272, 0.0
      %v305 = vmax.f32 %v273, 0.0
      %v306 = vmax.f32 %v274, 0.0
      %v307 = vmax.f32 %v275, 0.0
      %v308 = vmax.f32 %v276, 0.0
      %v309 = vmax.f32 %v277, 0.0
      %v310 = vmax.f32 %v278, 0.0
      %v311 = vmax.f32 %v279, 0.0
      %v312 = vmax.f32 %v280, 0.0
      %313 = vst [vmem:[%s170] sm:$0xff] %v281
      %314 = vst [vmem:[%s170 + $0x8] sm:$0xff] %v282
      %315 = vst [vmem:[%s170 + $0x10] sm:$0xff] %v283
      %316 = vst [vmem:[%s170 + $0x18] sm:$0xff] %v284
      %317 = vst [vmem:[%s170 + $0x20] sm:$0xff] %v285
      %318 = vst [vmem:[%s170 + $0x28] sm:$0xff] %v286
      %319 = vst [vmem:[%s170 + $0x30] sm:$0xff] %v287
      %320 = vst [vmem:[%s170 + $0x38] sm:$0xff] %v288
      %321 = vst [vmem:[%s170 + $0x40] sm:$0xff] %v289
      %322 = vst [vmem:[%s170 + $0x48] sm:$0xff] %v290
      %323 = vst [vmem:[%s170 + $0x50] sm:$0xff] %v291
      %324 = vst [vmem:[%s170 + $0x58] sm:$0xff] %v292
      %325 = vst [vmem:[%s170 + $0x60] sm:$0xff] %v293
      %326 = vst [vmem:[%s170 + $0x68] sm:$0xff] %v294
      %327 = vst [vmem:[%s170 + $0x70] sm:$0xff] %v295
      %328 = vst [vmem:[%s170 + $0x78] sm:$0xff] %v296
      %329 = vst [vmem:[%s170 + $0x80] sm:$0xff] %v297
      %330 = vst [vmem:[%s170 + $0x88] sm:$0xff] %v298
      %331 = vst [vmem:[%s170 + $0x90] sm:$0xff] %v299
      %332 = vst [vmem:[%s170 + $0x98] sm:$0xff] %v300
      %333 = vst [vmem:[%s170 + $0xa0] sm:$0xff] %v301
      %334 = vst [vmem:[%s170 + $0xa8] sm:$0xff] %v302
      %335 = vst [vmem:[%s170 + $0xb0] sm:$0xff] %v303
      %336 = vst [vmem:[%s170 + $0xb8] sm:$0xff] %v304
      %337 = vst [vmem:[%s170 + $0xc0] sm:$0xff] %v305
      %338 = vst [vmem:[%s170 + $0xc8] sm:$0xff] %v306
      %339 = vst [vmem:[%s170 + $0xd0] sm:$0xff] %v307
      %340 = vst [vmem:[%s170 + $0xd8] sm:$0xff] %v308
      %341 = vst [vmem:[%s170 + $0xe0] sm:$0xff] %v309
      %342 = vst [vmem:[%s170 + $0xe8] sm:$0xff] %v310
      %343 = vst [vmem:[%s170 + $0xf0] sm:$0xff] %v311
      %344 = vst [vmem:[%s170 + $0xf8] sm:$0xff] %v312
      %p345 = scmp.lt.s32.totalorder %s14, 1
      %s346 = scalar_select %p345, %s14, 1
      %s347 = smul.addr %s346, 32
      %s348 = smul.addr %s347, 8
      %s349 = scalar_lea.vmem %s3, %s348
      // Predicated region
      $region33: #{double_conv.5} parent=31 // pred_check
        %p350 = pneg %p100
      $region34: #{double_conv.5} parent=31 // pred_check_branch
        %352 = sbr.rel (%p350) target = $region36
      $region35: #{double_conv.5} parent=31 // pred_region
        _
      $region36: #{double_conv.5} parent=31 // pred_fallthru
        _
    $region32: #{double_conv.5} parent=5 // pred_fallthru
      _
    %p353 = scmp.le.s32.totalorder 2, %s9
    // Predicated region
    $region37: #{double_conv.5} parent=5 // pred_check
      %p354 = pneg %p353
    $region38: #{double_conv.5} parent=5 // pred_check_branch
      %356 = sbr.rel (%p354) target = $region40
    $region39: #{double_conv.5} parent=5 // pred_region
      %s357 = ssub.s32 %s9, 2
      // Predicated region
      $region41: #{double_conv.5} parent=39 // pred_check
        %p358 = pneg %p106
      $region42: #{double_conv.5} parent=39 // pred_check_branch
        %360 = sbr.rel (%p358) target = $region44
      $region43: #{double_conv.5} parent=39 // pred_region
        %p361 = scmp.lt.s32.totalorder %s15, 1
        %s362 = scalar_select %p361, %s15, 1
        %s363 = smul.addr %s362, 32
        %s364 = smul.addr %s363, 8
        %s365 = scalar_lea.vmem %s3, %s364
      $region44: #{double_conv.5} parent=39 // pred_fallthru
        _
    $region40: #{double_conv.5} parent=5 // pred_fallthru
      _
  $region6: #{double_conv.5} parent=0 // loop_footer
    %s13 = sadd.s32 1, %s9
  $region7: #{double_conv.5} parent=0 // loop_footer_branch
    %8 = sbr.rel target = $region3
  $region8: #{double_conv.5} parent=0 // loop_exit
    _

// kernel: double_conv.3
$region0: #{double_conv.3}
  #allocation0 [shape = 'u32[]', space=smem, size = 0x4, offset = 0x4, fixed_abs, tag = 'smem constant byte address 0x4 - core index']
  #allocation1 [shape = 'u32[144,128]{1,0:T(1,128)}', space=vmem, size = 0x12000, scoped, tag = 'internal scratch']
  %s0 = inlined_call_operand.vmem [shape: f32[2,18,18,128], index: 0, kind: input, shape index: {}]
  %s1 = inlined_call_operand.vmem [shape: f32[9,128,128], index: 1, kind: input, shape index: {}]
  %s2 = inlined_call_operand.vmem [shape: f32[2,16,16,128], index: 2, kind: output, shape index: {0}]
  %s3 = inlined_call_operand.vmem [shape: f32[2,2,128], index: 3, kind: output, shape index: {1}]
  %4 = xla_tuple %s2, %s3
  %s5 = sld [smem:[#allocation0]]
  $region49: #{double_conv.3} parent=0
    _
  %s7 = ssub.s32 1, %s5
  %s8 = scalar_select 0, %s7, %s5
  loop: start=0, step=1, limit=4
  $region2: #{double_conv.3} parent=0 // loop_pre_header
    _
  $region3: #{double_conv.3} parent=0 // loop_header
    %s10 = sphi 0, %s14
    %p11 = scmp.ge.s32.totalorder %s10, 4
    %s20 = sphi 0, %s22
    %s23 = sphi 0, %s20
    %s24 = sphi 0, %s23
    %s40 = sphi 0, %s24
    %s44 = sphi 0, %s44
    %s46 = sphi 0, %s44
    %s47 = sphi 0, %s46
    %s61 = sphi 0, %s47
    %s67 = sphi 0, %s69
    %s70 = sphi 0, %s67
    %s71 = sphi 0, %s70
    %s87 = sphi 0, %s71
    %s93 = sphi 0, %s95
    %s96 = sphi 0, %s93
    %s97 = sphi 0, %s96
    %s113 = sphi 0, %s97
  $region4: #{double_conv.3} parent=0 // loop_header_branch
    %13 = sbr.rel (%p11) target = $region8
  $region5: #{double_conv.3} parent=0 // loop_body
    %s15 = ssub.s32 %s10, 1
    %s16 = ssub.s32 %s10, 2
    %s17 = sadd.s32 %s10, 1
    %s18 = ssub.s32 %s10, %s17
    %p19 = scmp.eq.s32.totalorder %s18, 0
    %s21 = sadd.s32 %s20, 1
    %s22 = scalar_select %p19, %s20, %s21
    %p25 = pneg %p19
    %p26 = scmp.eq.s32.totalorder %s10, 1
    %p27 = por %p25, %p26
    %p28 = scmp.ne.s32.totalorder %s20, %s23
    %p29 = scmp.eq.s32.totalorder %s10, 0
    %p30 = por %p28, %p29
    %p31 = scmp.ne.s32.totalorder %s20, %s23
    %p32 = scmp.eq.s32.totalorder %s15, 1
    %p33 = por %p31, %p32
    %p34 = scmp.ne.s32.totalorder %s23, %s24
    %p35 = scmp.eq.s32.totalorder %s15, 0
    %p36 = por %p34, %p35
    %p37 = scmp.ne.s32.totalorder %s23, %s24
    %p38 = scmp.eq.s32.totalorder %s16, 1
    %p39 = por %p37, %p38
    %p41 = scmp.ne.s32.totalorder %s24, %s40
    %p42 = scmp.eq.s32.totalorder %s16, 0
    %p43 = por %p41, %p42
    %s45 = sadd.s32 %s44, 1
    %p48 = scmp.eq.s32.totalorder %s10, 1
    %p49 = scmp.ne.s32.totalorder %s44, %s46
    %p50 = scmp.eq.s32.totalorder %s10, 0
    %p51 = por %p49, %p50
    %p52 = scmp.ne.s32.totalorder %s44, %s46
    %p53 = scmp.eq.s32.totalorder %s15, 1
    %p54 = por %p52, %p53
    %p55 = scmp.ne.s32.totalorder %s46, %s47
    %p56 = scmp.eq.s32.totalorder %s15, 0
    %p57 = por %p55, %p56
    %p58 = scmp.ne.s32.totalorder %s46, %s47
    %p59 = scmp.eq.s32.totalorder %s16, 1
    %p60 = por %p58, %p59
    %p62 = scmp.ne.s32.totalorder %s47, %s61
    %p63 = scmp.eq.s32.totalorder %s16, 0
    %p64 = por %p62, %p63
    %s65 = ssub.s32 %s10, %s17
    %p66 = scmp.eq.s32.totalorder %s65, 0
    %s68 = sadd.s32 %s67, 1
    %s69 = scalar_select %p66, %s67, %s68
    %p72 = pneg %p66
    %p73 = scmp.eq.s32.totalorder %s10, 1
    %p74 = por %p72, %p73
    %p75 = scmp.ne.s32.totalorder %s67, %s70
    %p76 = scmp.eq.s32.totalorder %s10, 0
    %p77 = por %p75, %p76
    %p78 = scmp.ne.s32.totalorder %s67, %s70
    %p79 = scmp.eq.s32.totalorder %s15, 1
    %p80 = por %p78, %p79
    %p81 = scmp.ne.s32.totalorder %s70, %s71
    %p82 = scmp.eq.s32.totalorder %s15, 0
    %p83 = por %p81, %p82
    %p84 = scmp.ne.s32.totalorder %s70, %s71
    %p85 = scmp.eq.s32.totalorder %s16, 1
    %p86 = por %p84, %p85
    %p88 = scmp.ne.s32.totalorder %s71, %s87
    %p89 = scmp.eq.s32.totalorder %s16, 0
    %p90 = por %p88, %p89
    %s91 = ssub.s32 %s10, %s17
    %p92 = scmp.eq.s32.totalorder %s91, 0
    %s94 = sadd.s32 %s93, 1
    %s95 = scalar_select %p92, %s93, %s94
    %p98 = pneg %p92
    %p99 = scmp.eq.s32.totalorder %s10, 1
    %p100 = por %p98, %p99
    %p101 = scmp.ne.s32.totalorder %s93, %s96
    %p102 = scmp.eq.s32.totalorder %s10, 0
    %p103 = por %p101, %p102
    %p104 = scmp.ne.s32.totalorder %s93, %s96
    %p105 = scmp.eq.s32.totalorder %s15, 1
    %p106 = por %p104, %p105
    %p107 = scmp.ne.s32.totalorder %s96, %s97
    %p108 = scmp.eq.s32.totalorder %s15, 0
    %p109 = por %p107, %p108
    %p110 = scmp.ne.s32.totalorder %s96, %s97
    %p111 = scmp.eq.s32.totalorder %s16, 1
    %p112 = por %p110, %p111
    %p114 = scmp.ne.s32.totalorder %s97, %s113
    %p115 = scmp.eq.s32.totalorder %s16, 0
    %p116 = por %p114, %p115
    %p117 = scmp.le.s32.totalorder 1, %s10
    %p118 = scmp.lt.s32.totalorder %s10, 3
    %p119 = pnand %p117, %p118
    %p120 = pneg %p119
    // Predicated region
    $region9: #{double_conv.3} parent=5 // pred_check
      _
    $region10: #{double_conv.3} parent=5 // pred_check_branch
      %122 = sbr.rel (%p119) target = $region12
    $region11: #{double_conv.3} parent=5 // pred_region
      %s123 = ssub.s32 %s10, 1
      // Predicated region
      $region13: #{double_conv.3} parent=11 // pred_check
        %p124 = pneg %p57
      $region14: #{double_conv.3} parent=11 // pred_check_branch
        %126 = sbr.rel (%p124) target = $region16
      $region15: #{double_conv.3} parent=11 // pred_region
        _
      $region16: #{double_conv.3} parent=11 // pred_fallthru
        _
    $region12: #{double_conv.3} parent=5 // pred_fallthru
      _
    %p127 = scmp.lt.s32.totalorder %s10, 2
    // Predicated region
    $region17: #{double_conv.3} parent=5 // pred_check
      %p128 = pneg %p127
    $region18: #{double_conv.3} parent=5 // pred_check_branch
      %130 = sbr.rel (%p128) target = $region20
    $region19: #{double_conv.3} parent=5 // pred_region
      // Predicated region
      $region21: #{double_conv.3} parent=19 // pred_check
        %p131 = pneg %p30
      $region22: #{double_conv.3} parent=19 // pred_check_branch
        %133 = sbr.rel (%p131) target = $region24
      $region23: #{double_conv.3} parent=19 // pred_region
        %p134 = scmp.lt.s32.totalorder %s10, 1
        %s135 = scalar_select %p134, %s10, 1
        %s136 = smul.addr %s135, 54
        %s137 = smul.addr %s136, 8
        %s138 = scalar_lea.vmem %s0, %s137
      $region24: #{double_conv.3} parent=19 // pred_fallthru
        _
    $region20: #{double_conv.3} parent=5 // pred_fallthru
      _
    %p139 = scmp.le.s32.totalorder 1, %s10
    %p140 = scmp.lt.s32.totalorder %s10, 3
    %p141 = pnand %p139, %p140
    %p142 = pneg %p141
    // Predicated region
    $region25: #{double_conv.3} parent=5 // pred_check
      _
    $region26: #{double_conv.3} parent=5 // pred_check_branch
      %144 = sbr.rel (%p141) target = $region28
    $region27: #{double_conv.3} parent=5 // pred_region
      %s145 = ssub.s32 %s10, 1
      %p146 = scmp.lt.s32.totalorder %s15, 1
      %s147 = scalar_select %p146, %s15, 1
      %s148 = smul.addr %s147, 54
      %s149 = smul.addr %s148, 8
      %s150 = scalar_lea.vmem %s0, %s149
      %p151 = pneg %p36
      %p152 = pneg %p33
      %p153 = pneg %p57
      %p154 = pneg %p54
      %p155 = pneg %p83
      %p156 = pneg %p80
      %p157 = scmp.lt.s32.totalorder %s15, 1
      %s158 = scalar_select %p157, %s15, 1
      %s159 = smul.addr %s158, 32
      %s160 = smul.addr %s159, 8
      %s161 = scalar_lea.vmem %s2, %s160
      %p162 = pneg %p109
      %p163 = pneg %p106
      %p164 = scmp.lt.s32.totalorder %s15, 1
      %s165 = scalar_select %p164, %s15, 1
      %s166 = smul.addr %s165, 2
      %s167 = scalar_lea.vmem %s3, %s166
      %p168 = scmp.lt.s32.totalorder %s15, 1
      %s169 = scalar_select %p168, %s15, 1
      %s170 = smul.addr %s169, 54
      %s171 = smul.addr %s170, 8
      %s172 = scalar_lea.vmem %s0, %s171
      %p173 = scmp.lt.s32.totalorder %s15, 1
      %s174 = scalar_select %p173, %s15, 1
      %s175 = smul.addr %s174, 32
      %s176 = smul.addr %s175, 8
      %s177 = scalar_lea.vmem %s2, %s176
      %p178 = scmp.lt.s32.totalorder %s15, 1
      %s179 = scalar_select %p178, %s15, 1
      %s180 = smul.addr %s179, 2
      %s181 = scalar_lea.vmem %s3, %s180
      %v182 = vld [vmem:[%s172] sm:$0xff]
      %v183 = vld [vmem:[%s172 + $0x8] sm:$0xff]
      %v184 = vld [vmem:[%s172 + $0x18] sm:$0xff]
      %v185 = vld [vmem:[%s172 + $0x20] sm:$0xff]
      %v186 = vld [vmem:[%s172 + $0x30] sm:$0xff]
      %v187 = vld [vmem:[%s172 + $0x38] sm:$0xff]
      %v188 = vld [vmem:[%s172 + $0x48] sm:$0xff]
      %v189 = vld [vmem:[%s172 + $0x50] sm:$0xff]
      %v190 = vld [vmem:[%s172 + $0x60] sm:$0xff]
      %v191 = vld [vmem:[%s172 + $0x68] sm:$0xff]
      %v192 = vld [vmem:[%s172 + $0x78] sm:$0xff]
      %v193 = vld [vmem:[%s172 + $0x80] sm:$0xff]
      %v194 = vld [vmem:[%s172 + $0x90] sm:$0xff]
      %v195 = vld [vmem:[%s172 + $0x98] sm:$0xff]
      %v196 = vld [vmem:[%s172 + $0xa8] sm:$0xff]
      %v197 = vld [vmem:[%s172 + $0xb0] sm:$0xff]
      %v198 = vld [vmem:[%s172 + $0xc0] sm:$0xff]
      %v199 = vld [vmem:[%s172 + $0xc8] sm:$0xff]
      %v200 = vld [vmem:[%s172 + $0xd8] sm:$0xff]
      %v201 = vld [vmem:[%s172 + $0xe0] sm:$0xff]
      %v202 = vld [vmem:[%s172 + $0xf0] sm:$0xff]
      %v203 = vld [vmem:[%s172 + $0xf8] sm:$0xff]
      %v204 = vld [vmem:[%s172 + $0x108] sm:$0xff]
      %v205 = vld [vmem:[%s172 + $0x110] sm:$0xff]
      %v206 = vld [vmem:[%s172 + $0x120] sm:$0xff]
      %v207 = vld [vmem:[%s172 + $0x128] sm:$0xff]
      %v208 = vld [vmem:[%s172 + $0x138] sm:$0xff]
      %v209 = vld [vmem:[%s172 + $0x140] sm:$0xff]
      %v210 = vld [vmem:[%s172 + $0x150] sm:$0xff]
      %v211 = vld [vmem:[%s172 + $0x158] sm:$0xff]
      %v212 = vld [vmem:[%s172 + $0x168] sm:$0xff]
      %v213 = vld [vmem:[%s172 + $0x170] sm:$0xff]
      %v214 = vld [vmem:[%s1] sm:$0xff]
      %v215 = vld [vmem:[%s1 + $0x8] sm:$0xff]
      %v216 = vld [vmem:[%s1 + $0x10] sm:$0xff]
      %v217 = vld [vmem:[%s1 + $0x18] sm:$0xff]
      %v218 = vld [vmem:[%s1 + $0x20] sm:$0xff]
      %v219 = vld [vmem:[%s1 + $0x28] sm:$0xff]
      %v220 = vld [vmem:[%s1 + $0x30] sm:$0xff]
      %v221 = vld [vmem:[%s1 + $0x38] sm:$0xff]
      %v222 = vld [vmem:[%s1 + $0x40] sm:$0xff]
      %v223 = vld [vmem:[%s1 + $0x48] sm:$0xff]
      %v224 = vld [vmem:[%s1 + $0x50] sm:$0xff]
      %v225 = vld [vmem:[%s1 + $0x58] sm:$0xff]
      %v226 = vld [vmem:[%s1 + $0x60] sm:$0xff]
      %v227 = vld [vmem:[%s1 + $0x68] sm:$0xff]
      %v228 = vld [vmem:[%s1 + $0x70] sm:$0xff]
      %v229 = vld [vmem:[%s1 + $0x78] sm:$0xff]
      %v230 = vld [vmem:[%s172 + $0x1] sm:$0xff]
      %v231 = vld [vmem:[%s172 + $0x9] sm:$0xff]
      %v232 = vld [vmem:[%s172 + $0x19] sm:$0xff]
      %v233 = vld [vmem:[%s172 + $0x21] sm:$0xff]
      %v234 = vld [vmem:[%s172 + $0x31] sm:$0xff]
      %v235 = vld [vmem:[%s172 + $0x39] sm:$0xff]
      %v236 = vld [vmem:[%s172 + $0x49] sm:$0xff]
      %v237 = vld [vmem:[%s172 + $0x51] sm:$0xff]
      %v238 = vld [vmem:[%s172 + $0x61] sm:$0xff]
      %v239 = vld [vmem:[%s172 + $0x69] sm:$0xff]
      %v240 = vld [vmem:[%s172 + $0x79] sm:$0xff]
      %v241 = vld [vmem:[%s172 + $0x81] sm:$0xff]
      %v242 = vld [vmem:[%s172 + $0x91] sm:$0xff]
      %v243 = vld [vmem:[%s172 + $0x99] sm:$0xff]
      %v244 = vld [vmem:[%s172 + $0xa9] sm:$0xff]
      %v245 = vld [vmem:[%s172 + $0xb1] sm:$0xff]
      %v246 = vld [vmem:[%s172 + $0xc1] sm:$0xff]
      %v247 = vld [vmem:[%s172 + $0xc9] sm:$0xff]
      %v248 = vld [vmem:[%s172 + $0xd9] sm:$0xff]
      %v249 = vld [vmem:[%s172 + $0xe1] sm:$0xff]
      %v250 = vld [vmem:[%s172 + $0xf1] sm:$0xff]
      %v251 = vld [vmem:[%s172 + $0xf9] sm:$0xff]
      %v252 = vld [vmem:[%s172 + $0x109] sm:$0xff]
      %v253 = vld [vmem:[%s172 + $0x111] sm:$0xff]
      %v254 = vld [vmem:[%s172 + $0x121] sm:$0xff]
      %v255 = vld [vmem:[%s172 + $0x129] sm:$0xff]
      %v256 = vld [vmem:[%s172 + $0x139] sm:$0xff]
      %v257 = vld [vmem:[%s172 + $0x141] sm:$0xff]
      %v258 = vld [vmem:[%s172 + $0x151] sm:$0xff]
      %v259 = vld [vmem:[%s172 + $0x159] sm:$0xff]
      %v260 = vld [vmem:[%s172 + $0x169] sm:$0xff]
      %v261 = vld [vmem:[%s172 + $0x171] sm:$0xff]
      %s262 = scalar_lea.vmem %s1, 128
      %v263 = vld [vmem:[%s262] sm:$0xff]
      %v264 = vld [vmem:[%s262 + $0x8] sm:$0xff]
      %v265 = vld [vmem:[%s262 + $0x10] sm:$0xff]
      %v266 = vld [vmem:[%s262 + $0x18] sm:$0xff]
      %v267 = vld [vmem:[%s262 + $0x20] sm:$0xff]
      %v268 = vld [vmem:[%s262 + $0x28] sm:$0xff]
      %v269 = vld [vmem:[%s262 + $0x30] sm:$0xff]
      %v270 = vld [vmem:[%s262 + $0x38] sm:$0xff]
      %v271 = vld [vmem:[%s262 + $0x40] sm:$0xff]
      %v272 = vld [vmem:[%s262 + $0x48] sm:$0xff]
      %v273 = vld [vmem:[%s262 + $0x50] sm:$0xff]
      %v274 = vld [vmem:[%s262 + $0x58] sm:$0xff]
      %v275 = vld [vmem:[%s262 + $0x60] sm:$0xff]
      %v276 = vld [vmem:[%s262 + $0x68] sm:$0xff]
      %v277 = vld [vmem:[%s262 + $0x70] sm:$0xff]
      %v278 = vld [vmem:[%s262 + $0x78] sm:$0xff]
      %279 = vmatprep.subr.mxu0 0.0
      %280 = vmatpush1.msra.mxu0 %v263
      %281 = vmatprep.subr.mxu0 0.0
      %282 = vmatpush1.msra.mxu0 %v264
      %283 = vmatprep.subr.mxu0 0.0
      %284 = vmatpush1.msra.mxu0 %v265
      %285 = vmatprep.subr.mxu0 0.0
      %286 = vmatpush1.msra.mxu0 %v266
      %287 = vmatprep.subr.mxu0 0.0
      %288 = vmatpush1.msra.mxu0 %v267
      %289 = vmatprep.subr.mxu0 0.0
      %290 = vmatpush1.msra.mxu0 %v268
      %291 = vmatprep.subr.mxu0 0.0
      %292 = vmatpush1.msra.mxu0 %v269
      %293 = vmatprep.subr.mxu0 0.0
      %294 = vmatpush1.msra.mxu0 %v270
      %295 = vmatprep.subr.mxu0 0.0
      %296 = vmatpush1.msra.mxu0 %v271
      %297 = vmatprep.subr.mxu0 0.0
      %298 = vmatpush1.msra.mxu0 %v272
      %299 = vmatprep.subr.mxu0 0.0
      %300 = vmatpush1.msra.mxu0 %v273
      %301 = vmatprep.subr.mxu0 0.0
      %302 = vmatpush1.msra.mxu0 %v274
      %303 = vmatprep.subr.mxu0 0.0
      %304 = vmatpush1.msra.mxu0 %v275
      %305 = vmatprep.subr.mxu0 0.0
      %306 = vmatpush1.msra.mxu0 %v276
      %307 = vmatprep.subr.mxu0 0.0
      %308 = vmatpush1.msra.mxu0 %v277
      %309 = vmatprep.subr.mxu0 0.0
      %310 = vmatpush1.msra.mxu0 %v278
      %311 = vmatprep.subr.mxu0 0.0
      %312 = vmatpush1.msra.mxu0 0.0
      %313 = vmatprep.subr.mxu0 0.0
      %314 = vmatpush1.msra.mxu0 0.0
      %315 = vmatprep.subr.mxu0 0.0
      %316 = vmatpush1.msra.mxu0 0.0
      %317 = vmatprep.subr.mxu0 0.0
      %318 = vmatpush1.msra.mxu0 0.0
      %319 = vmatprep.subr.mxu0 0.0
      %320 = vmatpush1.msra.mxu0 0.0
      %321 = vmatprep.subr.mxu0 0.0
      %322 = vmatpush1.msra.mxu0 0.0
      %323 = vmatprep.subr.mxu0 0.0
      %324 = vmatpush1.msra.mxu0 0.0
      %325 = vmatprep.subr.mxu0 0.0
      %326 = vmatpush1.msra.mxu0 0.0
      %327 = vmatprep.subr.mxu0 0.0
      %328 = vmatpush1.msra.mxu0 0.0
      %329 = vmatprep.subr.mxu0 0.0
      %330 = vmatpush1.msra.mxu0 0.0
      %331 = vmatprep.subr.mxu0 0.0
      %332 = vmatpush1.msra.mxu0 0.0
      %333 = vmatprep.subr.mxu0 0.0
      %334 = vmatpush1.msra.mxu0 0.0
      %335 = vmatprep.subr.mxu0 0.0
      %336 = vmatpush1.msra.mxu0 0.0
      %337 = vmatprep.subr.mxu0 0.0
      %338 = vmatpush1.msra.mxu0 0.0
      %339 = vmatprep.subr.mxu0 0.0
      %340 = vmatpush1.msra.mxu0 0.0
      %341 = vmatprep.subr.mxu0 0.0
      %342 = vmatpush1.msra.mxu0 0.0
      %343 = vmatprep.mubr.f32.mxu0 0.0
      %344 = vmatmul.mubr.f32.gmra.mrb[0].mxu0 %v230
      %v345 = vpop.f32.mrb[0].mxu0
      %v346 = vadd.f32 0.0, %v345
      %v347 = vpop.f32.mrb[0].mxu0
      %348 = vmatprep.mubr.f32.mxu0 0.0
      %349 = vmatmul.mubr.f32.gmra.mrb[0].mxu0 %v231
      %v350 = vpop.f32.mrb[0].mxu0
      %v351 = vadd.f32 0.0, %v350
      %v352 = vpop.f32.mrb[0].mxu0
      %353 = vmatprep.mubr.f32.mxu0 0.0
      %354 = vmatmul.mubr.f32.gmra.mrb[0].mxu0 %v232
      %v355 = vpop.f32.mrb[0].mxu0
      %v356 = vadd.f32 0.0, %v355
      %v357 = vpop.f32.mrb[0].mxu0
      %358 = vmatprep.mubr.f32.mxu0 0.0
      %359 = vmatmul.mubr.f32.gmra.mrb[0].mxu0 %v233
      %v360 = vpop.f32.mrb[0].mxu0
      %v361 = vadd.f32 0.0, %v360
      %v362 = vpop.f32.mrb[0].mxu0
      %363 = vmatprep.mubr.f32.mxu0 0.0
      %364 = vmatmul.mubr.f32.gmra.mrb[0].mxu0 %v234
      %v365 = vpop.f32.mrb[0].mxu0
      %v366 = vadd.f32 0.0, %v365
      %v367 = vpop.f32.mrb[0].mxu0
      %368 = vmatprep.mubr.f32.mxu0 0.0
      %369 = vmatmul.mubr.f32.gmra.mrb[0].mxu0 %v235
      %v370 = vpop.f32.mrb[0].mxu0
      %v371 = vadd.f32 0.0, %v370
      %v372 = vpop.f32.mrb[0].mxu0
      %373 = vmatprep.mubr.f32.mxu0 0.0
      %374 = vmatmul.mubr.f32.gmra.mrb[0].mxu0 %v236
      %v375 = vpop.f32.mrb[0].mxu0
      %v376 = vadd.f32 0.0, %v375
      %v377 = vpop.f32.mrb[0].mxu0
      %378 = vmatprep.mubr.f32.mxu0 0.0
      %379 = vmatmul.mubr.f32.gmra.mrb[0].mxu0 %v237
      %v380 = vpop.f32.mrb[0].mxu0
      %v381 = vadd.f32 0.0, %v380
      %v382 = vpop.f32.mrb[0].mxu0
      %383 = vmatprep.mubr.f32.mxu0 0.0
      %384 = vmatmul.mubr.f32.gmra.mrb[0].mxu0 %v238
      %v385 = vpop.f32.mrb[0].mxu0
      %v386 = vadd.f32 0.0, %v385
      %v387 = vpop.f32.mrb[0].mxu0
      %388 = vmatprep.mubr.f32.mxu0 0.0
      %389 = vmatmul.mubr.f32.gmra.mrb[0].mxu0 %v239
      %v390 = vpop.f32.mrb[0].mxu0
      %v391 = vadd.f32 0.0, %v390
      %v392 = vpop.f32.mrb[0].mxu0
      %393 = vmatprep.mubr.f32.mxu0 0.0
      %394 = vmatmul.mubr.f32.gmra.mrb[0].mxu0 %v240
      %v395 = vpop.f32.mrb[0].mxu0
      %v396 = vadd.f32 0.0, %v395
      %v397 = vpop.f32.mrb[0].mxu0
      %398 = vmatprep.mubr.f32.mxu0 0.0
      %399 = vmatmul.mubr.f32.gmra.mrb[0].mxu0 %v241
      %v400 = vpop.f32.mrb[0].mxu0
      %v401 = vadd.f32 0.0, %v400
      %v402 = vpop.f32.mrb[0].mxu0
      %403 = vmatprep.mubr.f32.mxu0 0.0
      %404 = vmatmul.mubr.f32.gmra.mrb[0].mxu0 %v242
      %v405 = vpop.f32.mrb[0].mxu0
      %v406 = vadd.f32 0.0, %v405
      %v407 = vpop.f32.mrb[0].mxu0
      %408 = vmatprep.mubr.f32.mxu0 0.0
      %409 = vmatmul.mubr.f32.gmra.mrb[0].mxu0 %v243
      %v410 = vpop.f32.mrb[0].mxu0
      %v411 = vadd.f32 0.0, %v410
      %v412 = vpop.f32.mrb[0].mxu0
      %413 = vmatprep.mubr.f32.mxu0 0.0
      %414 = vmatmul.mubr.f32.gmra.mrb[0].mxu0 %v244
      %v415 = vpop.f32.mrb[0].mxu0
      %v416 = vadd.f32 0.0, %v415
      %v417 = vpop.f32.mrb[0].mxu0
      %418 = vmatprep.mubr.f32.mxu0 0.0
      %419 = vmatmul.mubr.f32.gmra.mrb[0].mxu0 %v245
      %v420 = vpop.f32.mrb[0].mxu0
      %v421 = vadd.f32 0.0, %v420
      %v422 = vpop.f32.mrb[0].mxu0
      %423 = vmatprep.mubr.f32.mxu0 0.0
      %424 = vmatmul.mubr.f32.gmra.mrb[0].mxu0 %v246
      %v425 = vpop.f32.mrb[0].mxu0
      %v426 = vadd.f32 0.0, %v425
      %v427 = vpop.f32.mrb[0].mxu0
      %428 = vmatprep.mubr.f32.mxu0 0.0
      %429 = vmatmul.mubr.f32.gmra.mrb[0].mxu0 %v247
      %v430 = vpop.f32.mrb[0].mxu0
      %v431 = vadd.f32 0.0, %v430
      %v432 = vpop.f32.mrb[0].mxu0
      %433 = vmatprep.mubr.f32.mxu0 0.0
      %434 = vmatmul.mubr.f32.gmra.mrb[0].mxu0 %v248
      %v435 = vpop.f32.mrb[0].mxu0
      %v436 = vadd.f32 0.0, %v435
      %v437 = vpop.f32.mrb[0].mxu0
      %438 = vmatprep.mubr.f32.mxu0 0.0
      %439 = vmatmul.mubr.f32.gmra.mrb[0].mxu0 %v249
      %v440 = vpop.f32.mrb[0].mxu0
      %v441 = vadd.f32 0.0, %v440
      %v442 = vpop.f32.mrb[0].mxu0
      %443 = vmatprep.mubr.f32.mxu0 0.0
      %444 = vmatmul.mubr.f32.gmra.mrb[0].mxu0 %v250
      %v445 = vpop.f32.mrb[0].mxu0
      %v446 = vadd.f32 0.0, %v445
      %v447 = vpop.f32.mrb[0].mxu0
      %448 = vmatprep.mubr.f32.mxu0 0.0
      %449 = vmatmul.mubr.f32.gmra.mrb[0].mxu0 %v251
      %v450 = vpop.f32.mrb[0].mxu0
      %v451 = vadd.f32 0.0, %v450
      %v452 = vpop.f32.mrb[0].mxu0
      %453 = vmatprep.mubr.f32.mxu0 0.0
      %454 = vmatmul.mubr.f32.gmra.mrb[0].mxu0 %v252
      %v455 = vpop.f32.mrb[0].mxu0
      %v456 = vadd.f32 0.0, %v455
      %v457 = vpop.f32.mrb[0].mxu0
      %458 = vmatprep.mubr.f32.mxu0 0.0
      %459 = vmatmul.mubr.f32.gmra.mrb[0].mxu0 %v253
      %v460 = vpop.f32.mrb[0].mxu0
      %v461 = vadd.f32 0.0, %v460
      %v462 = vpop.f32.mrb[0].mxu0
      %463 = vmatprep.mubr.f32.mxu0 0.0
      %464 = vmatmul.mubr.f32.gmra.mrb[0].mxu0 %v254
      %v465 = vpop.f32.mrb[0].mxu0
      %v466 = vadd.f32 0.0, %v465
      %v467 = vpop.f32.mrb[0].mxu0
      %468 = vmatprep.mubr.f32.mxu0 0.0
      %469 = vmatmul.mubr.f32.gmra.mrb[0].mxu0 %v255
      %v470 = vpop.f32.mrb[0].mxu0
      %v471 = vadd.f32 0.0, %v470
      %v472 = vpop.f32.mrb[0].mxu0
      %473 = vmatprep.mubr.f32.mxu0 0.0
      %474 = vmatmul.mubr.f32.gmra.mrb[0].mxu0 %v256
      %v475 = vpop.f32.mrb[0].mxu0
      %v476 = vadd.f32 0.0, %v475
      %v477 = vpop.f32.mrb[0].mxu0
      %478 = vmatprep.mubr.f32.mxu0 0.0
      %479 = vmatmul.mubr.f32.gmra.mrb[0].mxu0 %v257
      %v480 = vpop.f32.mrb[0].mxu0
      %v481 = vadd.f32 0.0, %v480
      %v482 = vpop.f32.mrb[0].mxu0
      %483 = vmatprep.mubr.f32.mxu0 0.0
      %484 = vmatmul.mubr.f32.gmra.mrb[0].mxu0 %v258
      %v485 = vpop.f32.mrb[0].mxu0
      %v486 = vadd.f32 0.0, %v485
      %v487 = vpop.f32.mrb[0].mxu0
      %488 = vmatprep.mubr.f32.mxu0 0.0
      %489 = vmatmul.mubr.f32.gmra.mrb[0].mxu0 %v259
      %v490 = vpop.f32.mrb[0].mxu0
      %v491 = vadd.f32 0.0, %v490
      %v492 = vpop.f32.mrb[0].mxu0
      %493 = vmatprep.mubr.f32.mxu0 0.0
      %494 = vmatmul.mubr.f32.gmra.mrb[0].mxu0 %v260
      %v495 = vpop.f32.mrb[0].mxu0
      %v496 = vadd.f32 0.0, %v495
      %v497 = vpop.f32.mrb[0].mxu0
      %498 = vmatprep.mubr.f32.mxu0 0.0
      %499 = vmatmul.mubr.f32.gmra.mrb[0].mxu0 %v261
      %v500 = vpop.f32.mrb[0].mxu0
      %v501 = vadd.f32 0.0, %v500
      %v502 = vpop.f32.mrb[0].mxu0
      %503 = vdwg.mxu0
      %504 = vmatprep.subr.mxu0 0.0
      %505 = vmatpush1.msra.mxu0 %v214
      %506 = vmatprep.subr.mxu0 0.0
      %507 = vmatpush1.msra.mxu0 %v215
      %508 = vmatprep.subr.mxu0 0.0
      %509 = vmatpush1.msra.mxu0 %v216
      %510 = vmatprep.subr.mxu0 0.0
      %511 = vmatpush1.msra.mxu0 %v217
      %512 = vmatprep.subr.mxu0 0.0
      %513 = vmatpush1.msra.mxu0 %v218
      %514 = vmatprep.subr.mxu0 0.0
      %515 = vmatpush1.msra.mxu0 %v219
      %516 = vmatprep.subr.mxu0 0.0
      %517 = vmatpush1.msra.mxu0 %v220
      %518 = vmatprep.subr.mxu0 0.0
      %519 = vmatpush1.msra.mxu0 %v221
      %520 = vmatprep.subr.mxu0 0.0
      %521 = vmatpush1.msra.mxu0 %v222
      %522 = vmatprep.subr.mxu0 0.0
      %523 = vmatpush1.msra.mxu0 %v223
      %524 = vmatprep.subr.mxu0 0.0
      %525 = vmatpush1.msra.mxu0 %v224
      %526 = vmatprep.subr.mxu0 0.0
      %527 = vmatpush1.msra.mxu0 %v225
      %528 = vmatprep.subr.mxu0 0.0
      %529 = vmatpush1.msra.mxu0 %v226
      %530 = vmatprep.subr.mxu0 0.0
      %531 = vmatpush1.msra.mxu0 %v227
      %532 = vmatprep.subr.mxu0 0.0
      %533 = vmatpush1.msra.mxu0 %v228
      %534 = vmatprep.subr.mxu0 0.0
      %535 = vmatpush1.msra.mxu0 %v229
      %536 = vmatprep.subr.mxu0 0.0
      %537 = vmatpush1.msra.mxu0 0.0
      %538 = vmatprep.subr.mxu0 0.0
      %539 = vmatpush1.msra.mxu0 0.0
      %540 = vmatprep.subr.mxu0 0.0
      %541 = vmatpush1.msra.mxu0 0.0
      %542 = vmatprep.subr.mxu0 0.0
      %543 = vmatpush1.msra.mxu0 0.0
      %544 = vmatprep.subr.mxu0 0.0
      %545 = vmatpush1.msra.mxu0 0.0
      %546 = vmatprep.subr.mxu0 0.0
      %547 = vmatpush1.msra.mxu0 0.0
      %548 = vmatprep.subr.mxu0 0.0
      %549 = vmatpush1.msra.mxu0 0.0
      %550 = vmatprep.subr.mxu0 0.0
      %551 = vmatpush1.msra.mxu0 0.0
      %552 = vmatprep.subr.mxu0 0.0
      %553 = vmatpush1.msra.mxu0 0.0
      %554 = vmatprep.subr.mxu0 0.0
      %555 = vmatpush1.msra.mxu0 0.0
      %556 = vmatprep.subr.mxu0 0.0
      %557 = vmatpush1.msra.mxu0 0.0
      %558 = vmatprep.subr.mxu0 0.0
      %559 = vmatpush1.msra.mxu0 0.0
      %560 = vmatprep.subr.mxu0 0.0
      %561 = vmatpush1.msra.mxu0 0.0
      %562 = vmatprep.subr.mxu0 0.0
      %563 = vmatpush1.msra.mxu0 0.0
      %564 = vmatprep.subr.mxu0 0.0
      %565 = vmatpush1.msra.mxu0 0.0
      %566 = vmatprep.subr.mxu0 0.0
      %567 = vmatpush1.msra.mxu0 0.0
      %568 = vmatprep.mubr.f32.mxu0 0.0
      %569 = vmatmul.mubr.f32.gmra.mrb[0].mxu0 %v182
      %v570 = vpop.f32.mrb[0].mxu0
      %v571 = vadd.f32 %v346, %v570
      %v572 = vpop.f32.mrb[0].mxu0
      %573 = vmatprep.mubr.f32.mxu0 0.0
      %574 = vmatmul.mubr.f32.gmra.mrb[0].mxu0 %v183
      %v575 = vpop.f32.mrb[0].mxu0
      %v576 = vadd.f32 %v351, %v575
      %v577 = vpop.f32.mrb[0].mxu0
      %578 = vmatprep.mubr.f32.mxu0 0.0
      %579 = vmatmul.mubr.f32.gmra.mrb[0].mxu0 %v184
      %v580 = vpop.f32.mrb[0].mxu0
      %v581 = vadd.f32 %v356, %v580
      %v582 = vpop.f32.mrb[0].mxu0
      %583 = vmatprep.mubr.f32.mxu0 0.0
      %584 = vmatmul.mubr.f32.gmra.mrb[0].mxu0 %v185
      %v585 = vpop.f32.mrb[0].mxu0
      %v586 = vadd.f32 %v361, %v585
      %v587 = vpop.f32.mrb[0].mxu0
      %588 = vmatprep.mubr.f32.mxu0 0.0
      %589 = vmatmul.mubr.f32.gmra.mrb[0].mxu0 %v186
      %v590 = vpop.f32.mrb[0].mxu0
      %v591 = vadd.f32 %v366, %v590
      %v592 = vpop.f32.mrb[0].mxu0
      %593 = vmatprep.mubr.f32.mxu0 0.0
      %594 = vmatmul.mubr.f32.gmra.mrb[0].mxu0 %v187
      %v595 = vpop.f32.mrb[0].mxu0
      %v596 = vadd.f32 %v371, %v595
      %v597 = vpop.f32.mrb[0].mxu0
      %598 = vmatprep.mubr.f32.mxu0 0.0
      %599 = vmatmul.mubr.f32.gmra.mrb[0].mxu0 %v188
      %v600 = vpop.f32.mrb[0].mxu0
      %v601 = vadd.f32 %v376, %v600
      %v602 = vpop.f32.mrb[0].mxu0
      %603 = vmatprep.mubr.f32.mxu0 0.0
      %604 = vmatmul.mubr.f32.gmra.mrb[0].mxu0 %v189
      %v605 = vpop.f32.mrb[0].mxu0
      %v606 = vadd.f32 %v381, %v605
      %v607 = vpop.f32.mrb[0].mxu0
      %608 = vmatprep.mubr.f32.mxu0 0.0
      %609 = vmatmul.mubr.f32.gmra.mrb[0].mxu0 %v190
      %v610 = vpop.f32.mrb[0].mxu0
      %v611 = vadd.f32 %v386, %v610
      %v612 = vpop.f32.mrb[0].mxu0
      %613 = vmatprep.mubr.f32.mxu0 0.0
      %614 = vmatmul.mubr.f32.gmra.mrb[0].mxu0 %v191
      %v615 = vpop.f32.mrb[0].mxu0
      %v616 = vadd.f32 %v391, %v615
      %v617 = vpop.f32.mrb[0].mxu0
      %618 = vmatprep.mubr.f32.mxu0 0.0
      %619 = vmatmul.mubr.f32.gmra.mrb[0].mxu0 %v192
      %v620 = vpop.f32.mrb[0].mxu0
      %v621 = vadd.f32 %v396, %v620
      %v622 = vpop.f32.mrb[0].mxu0
      %623 = vmatprep.mubr.f32.mxu0 0.0
      %624 = vmatmul.mubr.f32.gmra.mrb[0].mxu0 %v193
      %v625 = vpop.f32.mrb[0].mxu0
      %v626 = vadd.f32 %v401, %v625
      %v627 = vpop.f32.mrb[0].mxu0
      %628 = vmatprep.mubr.f32.mxu0 0.0
      %629 = vmatmul.mubr.f32.gmra.mrb[0].mxu0 %v194
      %v630 = vpop.f32.mrb[0].mxu0
      %v631 = vadd.f32 %v406, %v630
      %v632 = vpop.f32.mrb[0].mxu0
      %633 = vmatprep.mubr.f32.mxu0 0.0
      %634 = vmatmul.mubr.f32.gmra.mrb[0].mxu0 %v195
      %v635 = vpop.f32.mrb[0].mxu0
      %v636 = vadd.f32 %v411, %v635
      %v637 = vpop.f32.mrb[0].mxu0
      %638 = vmatprep.mubr.f32.mxu0 0.0
      %639 = vmatmul.mubr.f32.gmra.mrb[0].mxu0 %v196
      %v640 = vpop.f32.mrb[0].mxu0
      %v641 = vadd.f32 %v416, %v640
      %v642 = vpop.f32.mrb[0].mxu0
      %643 = vmatprep.mubr.f32.mxu0 0.0
      %644 = vmatmul.mubr.f32.gmra.mrb[0].mxu0 %v197
      %v645 = vpop.f32.mrb[0].mxu0
      %v646 = vadd.f32 %v421, %v645
      %v647 = vpop.f32.mrb[0].mxu0
      %648 = vmatprep.mubr.f32.mxu0 0.0
      %649 = vmatmul.mubr.f32.gmra.mrb[0].mxu0 %v198
      %v650 = vpop.f32.mrb[0].mxu0
      %v651 = vadd.f32 %v426, %v650
      %v652 = vpop.f32.mrb[0].mxu0
      %653 = vmatprep.mubr.f32.mxu0 0.0
      %654 = vmatmul.mubr.f32.gmra.mrb[0].mxu0 %v199
      %v655 = vpop.f32.mrb[0].mxu0
      %v656 = vadd.f32 %v431, %v655
      %v657 = vpop.f32.mrb[0].mxu0
      %658 = vmatprep.mubr.f32.mxu0 0.0
      %659 = vmatmul.mubr.f32.gmra.mrb[0].mxu0 %v200
      %v660 = vpop.f32.mrb[0].mxu0
      %v661 = vadd.f32 %v436, %v660
      %v662 = vpop.f32.mrb[0].mxu0
      %663 = vmatprep.mubr.f32.mxu0 0.0
      %664 = vmatmul.mubr.f32.gmra.mrb[0].mxu0 %v201
      %v665 = vpop.f32.mrb[0].mxu0
      %v666 = vadd.f32 %v441, %v665
      %v667 = vpop.f32.mrb[0].mxu0
      %668 = vmatprep.mubr.f32.mxu0 0.0
      %669 = vmatmul.mubr.f32.gmra.mrb[0].mxu0 %v202
      %v670 = vpop.f32.mrb[0].mxu0
      %v671 = vadd.f32 %v446, %v670
      %v672 = vpop.f32.mrb[0].mxu0
      %673 = vmatprep.mubr.f32.mxu0 0.0
      %674 = vmatmul.mubr.f32.gmra.mrb[0].mxu0 %v203
      %v675 = vpop.f32.mrb[0].mxu0
      %v676 = vadd.f32 %v451, %v675
      %v677 = vpop.f32.mrb[0].mxu0
      %678 = vmatprep.mubr.f32.mxu0 0.0
      %679 = vmatmul.mubr.f32.gmra.mrb[0].mxu0 %v204
      %v680 = vpop.f32.mrb[0].mxu0
      %v681 = vadd.f32 %v456, %v680
      %v682 = vpop.f32.mrb[0].mxu0
      %683 = vmatprep.mubr.f32.mxu0 0.0
      %684 = vmatmul.mubr.f32.gmra.mrb[0].mxu0 %v205
      %v685 = vpop.f32.mrb[0].mxu0
      %v686 = vadd.f32 %v461, %v685
      %v687 = vpop.f32.mrb[0].mxu0
      %688 = vmatprep.mubr.f32.mxu0 0.0
      %689 = vmatmul.mubr.f32.gmra.mrb[0].mxu0 %v206
      %v690 = vpop.f32.mrb[0].mxu0
      %v691 = vadd.f32 %v466, %v690
      %v692 = vpop.f32.mrb[0].mxu0
      %693 = vmatprep.mubr.f32.mxu0 0.0
      %694 = vmatmul.mubr.f32.gmra.mrb[0].mxu0 %v207
      %v695 = vpop.f32.mrb[0].mxu0
      %v696 = vadd.f32 %v471, %v695
      %v697 = vpop.f32.mrb[0].mxu0
      %698 = vmatprep.mubr.f32.mxu0 0.0
      %699 = vmatmul.mubr.f32.gmra.mrb[0].mxu0 %v208
      %v700 = vpop.f32.mrb[0].mxu0
      %v701 = vadd.f32 %v476, %v700
      %v702 = vpop.f32.mrb[0].mxu0
      %703 = vmatprep.mubr.f32.mxu0 0.0
      %704 = vmatmul.mubr.f32.gmra.mrb[0].mxu0 %v209
      %v705 = vpop.f32.mrb[0].mxu0
      %v706 = vadd.f32 %v481, %v705
      %v707 = vpop.f32.mrb[0].mxu0
      %708 = vmatprep.mubr.f32.mxu0 0.0
      %709 = vmatmul.mubr.f32.gmra.mrb[0].mxu0 %v210
      %v710 = vpop.f32.mrb[0].mxu0
      %v711 = vadd.f32 %v486, %v710
      %v712 = vpop.f32.mrb[0].mxu0
      %713 = vmatprep.mubr.f32.mxu0 0.0
      %714 = vmatmul.mubr.f32.gmra.mrb[0].mxu0 %v211
      %v715 = vpop.f32.mrb[0].mxu0
      %v716 = vadd.f32 %v491, %v715
      %v717 = vpop.f32.mrb[0].mxu0
      %718 = vmatprep.mubr.f32.mxu0 0.0
      %719 = vmatmul.mubr.f32.gmra.mrb[0].mxu0 %v212
      %v720 = vpop.f32.mrb[0].mxu0
      %v721 = vadd.f32 %v496, %v720
      %v722 = vpop.f32.mrb[0].mxu0
      %723 = vmatprep.mubr.f32.mxu0 0.0
      %724 = vmatmul.mubr.f32.gmra.mrb[0].mxu0 %v213
      %v725 = vpop.f32.mrb[0].mxu0
      %v726 = vadd.f32 %v501, %v725
      %v727 = vpop.f32.mrb[0].mxu0
      %728 = vdwg.mxu0
      %v729 = vld [vmem:[%s172 + $0x2] sm:$0xff]
      %v730 = vld [vmem:[%s172 + $0xa] sm:$0xff]
      %v731 = vld [vmem:[%s172 + $0x1a] sm:$0xff]
      %v732 = vld [vmem:[%s172 + $0x22] sm:$0xff]
      %v733 = vld [vmem:[%s172 + $0x32] sm:$0xff]
      %v734 = vld [vmem:[%s172 + $0x3a] sm:$0xff]
      %v735 = vld [vmem:[%s172 + $0x4a] sm:$0xff]
      %v736 = vld [vmem:[%s172 + $0x52] sm:$0xff]
      %v737 = vld [vmem:[%s172 + $0x62] sm:$0xff]
      %v738 = vld [vmem:[%s172 + $0x6a] sm:$0xff]
      %v739 = vld [vmem:[%s172 + $0x7a] sm:$0xff]
      %v740 = vld [vmem:[%s172 + $0x82] sm:$0xff]
      %v741 = vld [vmem:[%s172 + $0x92] sm:$0xff]
      %v742 = vld [vmem:[%s172 + $0x9a] sm:$0xff]
      %v743 = vld [vmem:[%s172 + $0xaa] sm:$0xff]
      %v744 = vld [vmem:[%s172 + $0xb2] sm:$0xff]
      %v745 = vld [vmem:[%s172 + $0xc2] sm:$0xff]
      %v746 = vld [vmem:[%s172 + $0xca] sm:$0xff]
      %v747 = vld [vmem:[%s172 + $0xda] sm:$0xff]
      %v748 = vld [vmem:[%s172 + $0xe2] sm:$0xff]
      %v749 = vld [vmem:[%s172 + $0xf2] sm:$0xff]
      %v750 = vld [vmem:[%s172 + $0xfa] sm:$0xff]
      %v751 = vld [vmem:[%s172 + $0x10a] sm:$0xff]
      %v752 = vld [vmem:[%s172 + $0x112] sm:$0xff]
      %v753 = vld [vmem:[%s172 + $0x122] sm:$0xff]
      %v754 = vld [vmem:[%s172 + $0x12a] sm:$0xff]
      %v755 = vld [vmem:[%s172 + $0x13a] sm:$0xff]
      %v756 = vld [vmem:[%s172 + $0x142] sm:$0xff]
      %v757 = vld [vmem:[%s172 + $0x152] sm:$0xff]
      %v758 = vld [vmem:[%s172 + $0x15a] sm:$0xff]
      %v759 = vld [vmem:[%s172 + $0x16a] sm:$0xff]
      %v760 = vld [vmem:[%s172 + $0x172] sm:$0xff]
      %s761 = scalar_lea.vmem %s1, 256
      %v762 = vld [vmem:[%s761] sm:$0xff]
      %v763 = vld [vmem:[%s761 + $0x8] sm:$0xff]
      %v764 = vld [vmem:[%s761 + $0x10] sm:$0xff]
      %v765 = vld [vmem:[%s761 + $0x18] sm:$0xff]
      %v766 = vld [vmem:[%s761 + $0x20] sm:$0xff]
      %v767 = vld [vmem:[%s761 + $0x28] sm:$0xff]
      %v768 = vld [vmem:[%s761 + $0x30] sm:$0xff]
      %v769 = vld [vmem:[%s761 + $0x38] sm:$0xff]
      %v770 = vld [vmem:[%s761 + $0x40] sm:$0xff]
      %v771 = vld [vmem:[%s761 + $0x48] sm:$0xff]
      %v772 = vld [vmem:[%s761 + $0x50] sm:$0xff]
      %v773 = vld [vmem:[%s761 + $0x58] sm:$0xff]
      %v774 = vld [vmem:[%s761 + $0x60] sm:$0xff]
      %v775 = vld [vmem:[%s761 + $0x68] sm:$0xff]
      %v776 = vld [vmem:[%s761 + $0x70] sm:$0xff]
      %v777 = vld [vmem:[%s761 + $0x78] sm:$0xff]
      %778 = vmatprep.subr.mxu0 0.0
      %779 = vmatpush1.msra.mxu0 %v762
      %780 = vmatprep.subr.mxu0 0.0
      %781 = vmatpush1.msra.mxu0 %v763
      %782 = vmatprep.subr.mxu0 0.0
      %783 = vmatpush1.msra.mxu0 %v764
      %784 = vmatprep.subr.mxu0 0.0
      %785 = vmatpush1.msra.mxu0 %v765
      %786 = vmatprep.subr.mxu0 0.0
      %787 = vmatpush1.msra.mxu0 %v766
      %788 = vmatprep.subr.mxu0 0.0
      %789 = vmatpush1.msra.mxu0 %v767
      %790 = vmatprep.subr.mxu0 0.0
      %791 = vmatpush1.msra.mxu0 %v768
      %792 = vmatprep.subr.mxu0 0.0
      %793 = vmatpush1.msra.mxu0 %v769
      %794 = vmatprep.subr.mxu0 0.0
      %795 = vmatpush1.msra.mxu0 %v770
      %796 = vmatprep.subr.mxu0 0.0
      %797 = vmatpush1.msra.mxu0 %v771
      %798 = vmatprep.subr.mxu0 0.0
      %799 = vmatpush1.msra.mxu0 %v772
      %800 = vmatprep.subr.mxu0 0.0
      %801 = vmatpush1.msra.mxu0 %v773
      %802 = vmatprep.subr.mxu0 0.0
      %803 = vmatpush1.msra.mxu0 %v774
      %804 = vmatprep.subr.mxu0 0.0
      %805 = vmatpush1.msra.mxu0 %v775
      %806 = vmatprep.subr.mxu0 0.0
      %807 = vmatpush1.msra.mxu0 %v776
      %808 = vmatprep.subr.mxu0 0.0
      %809 = vmatpush1.msra.mxu0 %v777
      %810 = vmatprep.subr.mxu0 0.0
      %811 = vmatpush1.msra.mxu0 0.0
      %812 = vmatprep.subr.mxu0 0.0
      %813 = vmatpush1.msra.mxu0 0.0
      %814 = vmatprep.subr.mxu0 0.0
      %815 = vmatpush1.msra.mxu0 0.0
      %816 = vmatprep.subr.mxu0 0.0
      %817 = vmatpush1.msra.mxu0 0.0
      %818 = vmatprep.subr.mxu0 0.0
      %819 = vmatpush1.msra.mxu0 0.0
      %820 = vmatprep.subr.mxu0 0.0
      %821 = vmatpush1.msra.mxu0 0.0
      %822 = vmatprep.subr.mxu0 0.0
      %823 = vmatpush1.msra.mxu0 0.0
      %824 = vmatprep.subr.mxu0 0.0
      %825 = vmatpush1.msra.mxu0 0.0
      %826 = vmatprep.subr.mxu0 0.0
      %827 = vmatpush1.msra.mxu0 0.0
      %828 = vmatprep.subr.mxu0 0.0
      %829 = vmatpush1.msra.mxu0 0.0
      %830 = vmatprep.subr.mxu0 0.0
      %831 = vmatpush1.msra.mxu0 0.0
      %832 = vmatprep.subr.mxu0 0.0
      %833 = vmatpush1.msra.mxu0 0.0
      %834 = vmatprep.subr.mxu0 0.0
      %835 = vmatpush1.msra.mxu0 0.0
      %836 = vmatprep.subr.mxu0 0.0
      %837 = vmatpush1.msra.mxu0 0.0
      %838 = vmatprep.subr.mxu0 0.0
      %839 = vmatpush1.msra.mxu0 0.0
      %840 = vmatprep.subr.mxu0 0.0
      %841 = vmatpush1.msra.mxu0 0.0
      %842 = vmatprep.mubr.f32.mxu0 0.0
      %843 = vmatmul.mubr.f32.gmra.mrb[0].mxu0 %v729
      %v844 = vpop.f32.mrb[0].mxu0
      %v845 = vadd.f32 0.0, %v844
      %v846 = vpop.f32.mrb[0].mxu0
      %847 = vmatprep.mubr.f32.mxu0 0.0
      %848 = vmatmul.mubr.f32.gmra.mrb[0].mxu0 %v730
      %v849 = vpop.f32.mrb[0].mxu0
      %v850 = vadd.f32 0.0, %v849
      %v851 = vpop.f32.mrb[0].mxu0
      %852 = vmatprep.mubr.f32.mxu0 0.0
      %853 = vmatmul.mubr.f32.gmra.mrb[0].mxu0 %v731
      %v854 = vpop.f32.mrb[0].mxu0
      %v855 = vadd.f32 0.0, %v854
      %v856 = vpop.f32.mrb[0].mxu0
      %857 = vmatprep.mubr.f32.mxu0 0.0
      %858 = vmatmul.mubr.f32.gmra.mrb[0].mxu0 %v732
      %v859 = vpop.f32.mrb[0].mxu0
      %v860 = vadd.f32 0.0, %v859
      %v861 = vpop.f32.mrb[0].mxu0
      %862 = vmatprep.mubr.f32.mxu0 0.0
      %863 = vmatmul.mubr.f32.gmra.mrb[0].mxu0 %v733
      %v864 = vpop.f32.mrb[0].mxu0
      %v865 = vadd.f32 0.0, %v864
      %v866 = vpop.f32.mrb[0].mxu0
      %867 = vmatprep.mubr.f32.mxu0 0.0
      %868 = vmatmul.mubr.f32.gmra.mrb[0].mxu0 %v734
      %v869 = vpop.f32.mrb[0].mxu0
      %v870 = vadd.f32 0.0, %v869
      %v871 = vpop.f32.mrb[0].mxu0
      %872 = vmatprep.mubr.f32.mxu0 0.0
      %873 = vmatmul.mubr.f32.gmra.mrb[0].mxu0 %v735
      %v874 = vpop.f32.mrb[0].mxu0
      %v875 = vadd.f32 0.0, %v874
      %v876 = vpop.f32.mrb[0].mxu0
      %877 = vmatprep.mubr.f32.mxu0 0.0
      %878 = vmatmul.mubr.f32.gmra.mrb[0].mxu0 %v736
      %v879 = vpop.f32.mrb[0].mxu0
      %v880 = vadd.f32 0.0, %v879
      %v881 = vpop.f32.mrb[0].mxu0
      %882 = vmatprep.mubr.f32.mxu0 0.0
      %883 = vmatmul.mubr.f32.gmra.mrb[0].mxu0 %v737
      %v884 = vpop.f32.mrb[0].mxu0
      %v885 = vadd.f32 0.0, %v884
      %v886 = vpop.f32.mrb[0].mxu0
      %887 = vmatprep.mubr.f32.mxu0 0.0
      %888 = vmatmul.mubr.f32.gmra.mrb[0].mxu0 %v738
      %v889 = vpop.f32.mrb[0].mxu0
      %v890 = vadd.f32 0.0, %v889
      %v891 = vpop.f32.mrb[0].mxu0
      %892 = vmatprep.mubr.f32.mxu0 0.0
      %893 = vmatmul.mubr.f32.gmra.mrb[0].mxu0 %v739
      %v894 = vpop.f32.mrb[0].mxu0
      %v895 = vadd.f32 0.0, %v894
      %v896 = vpop.f32.mrb[0].mxu0
      %897 = vmatprep.mubr.f32.mxu0 0.0
      %898 = vmatmul.mubr.f32.gmra.mrb[0].mxu0 %v740
      %v899 = vpop.f32.mrb[0].mxu0
      %v900 = vadd.f32 0.0, %v899
      %v901 = vpop.f32.mrb[0].mxu0
      %902 = vmatprep.mubr.f32.mxu0 0.0
      %903 = vmatmul.mubr.f32.gmra.mrb[0].mxu0 %v741
      %v904 = vpop.f32.mrb[0].mxu0
      %v905 = vadd.f32 0.0, %v904
      %v906 = vpop.f32.mrb[0].mxu0
      %907 = vmatprep.mubr.f32.mxu0 0.0
      %908 = vmatmul.mubr.f32.gmra.mrb[0].mxu0 %v742
      %v909 = vpop.f32.mrb[0].mxu0
      %v910 = vadd.f32 0.0, %v909
      %v911 = vpop.f32.mrb[0].mxu0
      %912 = vmatprep.mubr.f32.mxu0 0.0
      %913 = vmatmul.mubr.f32.gmra.mrb[0].mxu0 %v743
      %v914 = vpop.f32.mrb[0].mxu0
      %v915 = vadd.f32 0.0, %v914
      %v916 = vpop.f32.mrb[0].mxu0
      %917 = vmatprep.mubr.f32.mxu0 0.0
      %918 = vmatmul.mubr.f32.gmra.mrb[0].mxu0 %v744
      %v919 = vpop.f32.mrb[0].mxu0
      %v920 = vadd.f32 0.0, %v919
      %v921 = vpop.f32.mrb[0].mxu0
      %922 = vmatprep.mubr.f32.mxu0 0.0
      %923 = vmatmul.mubr.f32.gmra.mrb[0].mxu0 %v745
      %v924 = vpop.f32.mrb[0].mxu0
      %v925 = vadd.f32 0.0, %v924
      %v926 = vpop.f32.mrb[0].mxu0
      %927 = vmatprep.mubr.f32.mxu0 0.0
      %928 = vmatmul.mubr.f32.gmra.mrb[0].mxu0 %v746
      %v929 = vpop.f32.mrb[0].mxu0
      %v930 = vadd.f32 0.0, %v929
      %v931 = vpop.f32.mrb[0].mxu0
      %932 = vmatprep.mubr.f32.mxu0 0.0
      %933 = vmatmul.mubr.f32.gmra.mrb[0].mxu0 %v747
      %v934 = vpop.f32.mrb[0].mxu0
      %v935 = vadd.f32 0.0, %v934
      %v936 = vpop.f32.mrb[0].mxu0
      %937 = vmatprep.mubr.f32.mxu0 0.0
      %938 = vmatmul.mubr.f32.gmra.mrb[0].mxu0 %v748
      %v939 = vpop.f32.mrb[0].mxu0
      %v940 = vadd.f32 0.0, %v939
      %v941 = vpop.f32.mrb[0].mxu0
      %942 = vmatprep.mubr.f32.mxu0 0.0
      %943 = vmatmul.mubr.f32.gmra.mrb[0].mxu0 %v749
      %v944 = vpop.f32.mrb[0].mxu0
      %v945 = vadd.f32 0.0, %v944
      %v946 = vpop.f32.mrb[0].mxu0
      %947 = vmatprep.mubr.f32.mxu0 0.0
      %948 = vmatmul.mubr.f32.gmra.mrb[0].mxu0 %v750
      %v949 = vpop.f32.mrb[0].mxu0
      %v950 = vadd.f32 0.0, %v949
      %v951 = vpop.f32.mrb[0].mxu0
      %952 = vmatprep.mubr.f32.mxu0 0.0
      %953 = vmatmul.mubr.f32.gmra.mrb[0].mxu0 %v751
      %v954 = vpop.f32.mrb[0].mxu0
      %v955 = vadd.f32 0.0, %v954
      %v956 = vpop.f32.mrb[0].mxu0
      %957 = vmatprep.mubr.f32.mxu0 0.0
      %958 = vmatmul.mubr.f32.gmra.mrb[0].mxu0 %v752
      %v959 = vpop.f32.mrb[0].mxu0
      %v960 = vadd.f32 0.0, %v959
      %v961 = vpop.f32.mrb[0].mxu0
      %962 = vmatprep.mubr.f32.mxu0 0.0
      %963 = vmatmul.mubr.f32.gmra.mrb[0].mxu0 %v753
      %v964 = vpop.f32.mrb[0].mxu0
      %v965 = vadd.f32 0.0, %v964
      %v966 = vpop.f32.mrb[0].mxu0
      %967 = vmatprep.mubr.f32.mxu0 0.0
      %968 = vmatmul.mubr.f32.gmra.mrb[0].mxu0 %v754
      %v969 = vpop.f32.mrb[0].mxu0
      %v970 = vadd.f32 0.0, %v969
      %v971 = vpop.f32.mrb[0].mxu0
      %972 = vmatprep.mubr.f32.mxu0 0.0
      %973 = vmatmul.mubr.f32.gmra.mrb[0].mxu0 %v755
      %v974 = vpop.f32.mrb[0].mxu0
      %v975 = vadd.f32 0.0, %v974
      %v976 = vpop.f32.mrb[0].mxu0
      %977 = vmatprep.mubr.f32.mxu0 0.0
      %978 = vmatmul.mubr.f32.gmra.mrb[0].mxu0 %v756
      %v979 = vpop.f32.mrb[0].mxu0
      %v980 = vadd.f32 0.0, %v979
      %v981 = vpop.f32.mrb[0].mxu0
      %982 = vmatprep.mubr.f32.mxu0 0.0
      %983 = vmatmul.mubr.f32.gmra.mrb[0].mxu0 %v757
      %v984 = vpop.f32.mrb[0].mxu0
      %v985 = vadd.f32 0.0, %v984
      %v986 = vpop.f32.mrb[0].mxu0
      %987 = vmatprep.mubr.f32.mxu0 0.0
      %988 = vmatmul.mubr.f32.gmra.mrb[0].mxu0 %v758
      %v989 = vpop.f32.mrb[0].mxu0
      %v990 = vadd.f32 0.0, %v989
      %v991 = vpop.f32.mrb[0].mxu0
      %992 = vmatprep.mubr.f32.mxu0 0.0
      %993 = vmatmul.mubr.f32.gmra.mrb[0].mxu0 %v759
      %v994 = vpop.f32.mrb[0].mxu0
      %v995 = vadd.f32 0.0, %v994
      %v996 = vpop.f32.mrb[0].mxu0
      %997 = vmatprep.mubr.f32.mxu0 0.0
      %998 = vmatmul.mubr.f32.gmra.mrb[0].mxu0 %v760
      %v999 = vpop.f32.mrb[0].mxu0
      %v1000 = vadd.f32 0.0, %v999
      %v1001 = vpop.f32.mrb[0].mxu0
      %1002 = vdwg.mxu0
      %v1003 = vadd.f32 %v571, %v845
      %v1004 = vadd.f32 %v576, %v850
      %v1005 = vadd.f32 %v581, %v855
      %v1006 = vadd.f32 %v586, %v860
      %v1007 = vadd.f32 %v591, %v865
      %v1008 = vadd.f32 %v596, %v870
      %v1009 = vadd.f32 %v601, %v875
      %v1010 = vadd.f32 %v606, %v880
      %v1011 = vadd.f32 %v611, %v885
      %v1012 = vadd.f32 %v616, %v890
      %v1013 = vadd.f32 %v621, %v895
      %v1014 = vadd.f32 %v626, %v900
      %v1015 = vadd.f32 %v631, %v905
      %v1016 = vadd.f32 %v636, %v910
      %v1017 = vadd.f32 %v641, %v915
      %v1018 = vadd.f32 %v646, %v920
      %v1019 = vadd.f32 %v651, %v925
      %v1020 = vadd.f32 %v656, %v930
      %v1021 = vadd.f32 %v661, %v935
      %v1022 = vadd.f32 %v666, %v940
      %v1023 = vadd.f32 %v671, %v945
      %v1024 = vadd.f32 %v676, %v950
      %v1025 = vadd.f32 %v681, %v955
      %v1026 = vadd.f32 %v686, %v960
      %v1027 = vadd.f32 %v691, %v965
      %v1028 = vadd.f32 %v696, %v970
      %v1029 = vadd.f32 %v701, %v975
      %v1030 = vadd.f32 %v706, %v980
      %v1031 = vadd.f32 %v711, %v985
      %v1032 = vadd.f32 %v716, %v990
      %v1033 = vadd.f32 %v721, %v995
      %v1034 = vadd.f32 %v726, %v1000
      %s1035 = scalar_lea.vmem %s172, 24
      %v1036 = vld [vmem:[%s1035] sm:$0xff]
      %v1037 = vld [vmem:[%s1035 + $0x8] sm:$0xff]
      %v1038 = vld [vmem:[%s1035 + $0x18] sm:$0xff]
      %v1039 = vld [vmem:[%s1035 + $0x20] sm:$0xff]
      %v1040 = vld [vmem:[%s1035 + $0x30] sm:$0xff]
      %v1041 = vld [vmem:[%s1035 + $0x38] sm:$0xff]
      %v1042 = vld [vmem:[%s1035 + $0x48] sm:$0xff]
      %v1043 = vld [vmem:[%s1035 + $0x50] sm:$0xff]
      %v1044 = vld [vmem:[%s1035 + $0x60] sm:$0xff]
      %v1045 = vld [vmem:[%s1035 + $0x68] sm:$0xff]
      %v1046 = vld [vmem:[%s1035 + $0x78] sm:$0xff]
      %v1047 = vld [vmem:[%s1035 + $0x80] sm:$0xff]
      %v1048 = vld [vmem:[%s1035 + $0x90] sm:$0xff]
      %v1049 = vld [vmem:[%s1035 + $0x98] sm:$0xff]
      %v1050 = vld [vmem:[%s1035 + $0xa8] sm:$0xff]
      %v1051 = vld [vmem:[%s1035 + $0xb0] sm:$0xff]
      %v1052 = vld [vmem:[%s1035 + $0xc0] sm:$0xff]
      %v1053 = vld [vmem:[%s1035 + $0xc8] sm:$0xff]
      %v1054 = vld [vmem:[%s1035 + $0xd8] sm:$0xff]
      %v1055 = vld [vmem:[%s1035 + $0xe0] sm:$0xff]
      %v1056 = vld [vmem:[%s1035 + $0xf0] sm:$0xff]
      %v1057 = vld [vmem:[%s1035 + $0xf8] sm:$0xff]
      %v1058 = vld [vmem:[%s1035 + $0x108] sm:$0xff]
      %v1059 = vld [vmem:[%s1035 + $0x110] sm:$0xff]
      %v1060 = vld [vmem:[%s1035 + $0x120] sm:$0xff]
      %v1061 = vld [vmem:[%s1035 + $0x128] sm:$0xff]
      %v1062 = vld [vmem:[%s1035 + $0x138] sm:$0xff]
      %v1063 = vld [vmem:[%s1035 + $0x140] sm:$0xff]
      %v1064 = vld [vmem:[%s1035 + $0x150] sm:$0xff]
      %v1065 = vld [vmem:[%s1035 + $0x158] sm:$0xff]
      %v1066 = vld [vmem:[%s1035 + $0x168] sm:$0xff]
      %v1067 = vld [vmem:[%s1035 + $0x170] sm:$0xff]
      %s1068 = scalar_lea.vmem %s1, 384
      %v1069 = vld [vmem:[%s1068] sm:$0xff]
      %v1070 = vld [vmem:[%s1068 + $0x8] sm:$0xff]
      %v1071 = vld [vmem:[%s1068 + $0x10] sm:$0xff]
      %v1072 = vld [vmem:[%s1068 + $0x18] sm:$0xff]
      %v1073 = vld [vmem:[%s1068 + $0x20] sm:$0xff]
      %v1074 = vld [vmem:[%s1068 + $0x28] sm:$0xff]
      %v1075 = vld [vmem:[%s1068 + $0x30] sm:$0xff]
      %v1076 = vld [vmem:[%s1068 + $0x38] sm:$0xff]
      %v1077 = vld [vmem:[%s1068 + $0x40] sm:$0xff]
      %v1078 = vld [vmem:[%s1068 + $0x48] sm:$0xff]
      %v1079 = vld [vmem:[%s1068 + $0x50] sm:$0xff]
      %v1080 = vld [vmem:[%s1068 + $0x58] sm:$0xff]
      %v1081 = vld [vmem:[%s1068 + $0x60] sm:$0xff]
      %v1082 = vld [vmem:[%s1068 + $0x68] sm:$0xff]
      %v1083 = vld [vmem:[%s1068 + $0x70] sm:$0xff]
      %v1084 = vld [vmem:[%s1068 + $0x78] sm:$0xff]
      %1085 = vmatprep.subr.mxu0 0.0
      %1086 = vmatpush1.msra.mxu0 %v1069
      %1087 = vmatprep.subr.mxu0 0.0
      %1088 = vmatpush1.msra.mxu0 %v1070
      %1089 = vmatprep.subr.mxu0 0.0
      %1090 = vmatpush1.msra.mxu0 %v1071
      %1091 = vmatprep.subr.mxu0 0.0
      %1092 = vmatpush1.msra.mxu0 %v1072
      %1093 = vmatprep.subr.mxu0 0.0
      %1094 = vmatpush1.msra.mxu0 %v1073
      %1095 = vmatprep.subr.mxu0 0.0
      %1096 = vmatpush1.msra.mxu0 %v1074
      %1097 = vmatprep.subr.mxu0 0.0
      %1098 = vmatpush1.msra.mxu0 %v1075
      %1099 = vmatprep.subr.mxu0 0.0
      %1100 = vmatpush1.msra.mxu0 %v1076
      %1101 = vmatprep.subr.mxu0 0.0
      %1102 = vmatpush1.msra.mxu0 %v1077
      %1103 = vmatprep.subr.mxu0 0.0
      %1104 = vmatpush1.msra.mxu0 %v1078
      %1105 = vmatprep.subr.mxu0 0.0
      %1106 = vmatpush1.msra.mxu0 %v1079
      %1107 = vmatprep.subr.mxu0 0.0
      %1108 = vmatpush1.msra.mxu0 %v1080
      %1109 = vmatprep.subr.mxu0 0.0
      %1110 = vmatpush1.msra.mxu0 %v1081
      %1111 = vmatprep.subr.mxu0 0.0
      %1112 = vmatpush1.msra.mxu0 %v1082
      %1113 = vmatprep.subr.mxu0 0.0
      %1114 = vmatpush1.msra.mxu0 %v1083
      %1115 = vmatprep.subr.mxu0 0.0
      %1116 = vmatpush1.msra.mxu0 %v1084
      %1117 = vmatprep.subr.mxu0 0.0
      %1118 = vmatpush1.msra.mxu0 0.0
      %1119 = vmatprep.subr.mxu0 0.0
      %1120 = vmatpush1.msra.mxu0 0.0
      %1121 = vmatprep.subr.mxu0 0.0
      %1122 = vmatpush1.msra.mxu0 0.0
      %1123 = vmatprep.subr.mxu0 0.0
      %1124 = vmatpush1.msra.mxu0 0.0
      %1125 = vmatprep.subr.mxu0 0.0
      %1126 = vmatpush1.msra.mxu0 0.0
      %1127 = vmatprep.subr.mxu0 0.0
      %1128 = vmatpush1.msra.mxu0 0.0
      %1129 = vmatprep.subr.mxu0 0.0
      %1130 = vmatpush1.msra.mxu0 0.0
      %1131 = vmatprep.subr.mxu0 0.0
      %1132 = vmatpush1.msra.mxu0 0.0
      %1133 = vmatprep.subr.mxu0 0.0
      %1134 = vmatpush1.msra.mxu0 0.0
      %1135 = vmatprep.subr.mxu0 0.0
      %1136 = vmatpush1.msra.mxu0 0.0
      %1137 = vmatprep.subr.mxu0 0.0
      %1138 = vmatpush1.msra.mxu0 0.0
      %1139 = vmatprep.subr.mxu0 0.0
      %1140 = vmatpush1.msra.mxu0 0.0
      %1141 = vmatprep.subr.mxu0 0.0
      %1142 = vmatpush1.msra.mxu0 0.0
      %1143 = vmatprep.subr.mxu0 0.0
      %1144 = vmatpush1.msra.mxu0 0.0
      %1145 = vmatprep.subr.mxu0 0.0
      %1146 = vmatpush1.msra.mxu0 0.0
      %1147 = vmatprep.subr.mxu0 0.0
      %1148 = vmatpush1.msra.mxu0 0.0
      %1149 = vmatprep.mubr.f32.mxu0 0.0
      %1150 = vmatmul.mubr.f32.gmra.mrb[0].mxu0 %v1036
      %v1151 = vpop.f32.mrb[0].mxu0
      %v1152 = vadd.f32 0.0, %v1151
      %v1153 = vpop.f32.mrb[0].mxu0
      %1154 = vmatprep.mubr.f32.mxu0 0.0
      %1155 = vmatmul.mubr.f32.gmra.mrb[0].mxu0 %v1037
      %v1156 = vpop.f32.mrb[0].mxu0
      %v1157 = vadd.f32 0.0, %v1156
      %v1158 = vpop.f32.mrb[0].mxu0
      %1159 = vmatprep.mubr.f32.mxu0 0.0
      %1160 = vmatmul.mubr.f32.gmra.mrb[0].mxu0 %v1038
      %v1161 = vpop.f32.mrb[0].mxu0
      %v1162 = vadd.f32 0.0, %v1161
      %v1163 = vpop.f32.mrb[0].mxu0
      %1164 = vmatprep.mubr.f32.mxu0 0.0
      %1165 = vmatmul.mubr.f32.gmra.mrb[0].mxu0 %v1039
      %v1166 = vpop.f32.mrb[0].mxu0
      %v1167 = vadd.f32 0.0, %v1166
      %v1168 = vpop.f32.mrb[0].mxu0
      %1169 = vmatprep.mubr.f32.mxu0 0.0
      %1170 = vmatmul.mubr.f32.gmra.mrb[0].mxu0 %v1040
      %v1171 = vpop.f32.mrb[0].mxu0
      %v1172 = vadd.f32 0.0, %v1171
      %v1173 = vpop.f32.mrb[0].mxu0
      %1174 = vmatprep.mubr.f32.mxu0 0.0
      %1175 = vmatmul.mubr.f32.gmra.mrb[0].mxu0 %v1041
      %v1176 = vpop.f32.mrb[0].mxu0
      %v1177 = vadd.f32 0.0, %v1176
      %v1178 = vpop.f32.mrb[0].mxu0
      %1179 = vmatprep.mubr.f32.mxu0 0.0
      %1180 = vmatmul.mubr.f32.gmra.mrb[0].mxu0 %v1042
      %v1181 = vpop.f32.mrb[0].mxu0
      %v1182 = vadd.f32 0.0, %v1181
      %v1183 = vpop.f32.mrb[0].mxu0
      %1184 = vmatprep.mubr.f32.mxu0 0.0
      %1185 = vmatmul.mubr.f32.gmra.mrb[0].mxu0 %v1043
      %v1186 = vpop.f32.mrb[0].mxu0
      %v1187 = vadd.f32 0.0, %v1186
      %v1188 = vpop.f32.mrb[0].mxu0
      %1189 = vmatprep.mubr.f32.mxu0 0.0
      %1190 = vmatmul.mubr.f32.gmra.mrb[0].mxu0 %v1044
      %v1191 = vpop.f32.mrb[0].mxu0
      %v1192 = vadd.f32 0.0, %v1191
      %v1193 = vpop.f32.mrb[0].mxu0
      %1194 = vmatprep.mubr.f32.mxu0 0.0
      %1195 = vmatmul.mubr.f32.gmra.mrb[0].mxu0 %v1045
      %v1196 = vpop.f32.mrb[0].mxu0
      %v1197 = vadd.f32 0.0, %v1196
      %v1198 = vpop.f32.mrb[0].mxu0
      %1199 = vmatprep.mubr.f32.mxu0 0.0
      %1200 = vmatmul.mubr.f32.gmra.mrb[0].mxu0 %v1046
      %v1201 = vpop.f32.mrb[0].mxu0
      %v1202 = vadd.f32 0.0, %v1201
      %v1203 = vpop.f32.mrb[0].mxu0
      %1204 = vmatprep.mubr.f32.mxu0 0.0
      %1205 = vmatmul.mubr.f32.gmra.mrb[0].mxu0 %v1047
      %v1206 = vpop.f32.mrb[0].mxu0
      %v1207 = vadd.f32 0.0, %v1206
      %v1208 = vpop.f32.mrb[0].mxu0
      %1209 = vmatprep.mubr.f32.mxu0 0.0
      %1210 = vmatmul.mubr.f32.gmra.mrb[0].mxu0 %v1048
      %v1211 = vpop.f32.mrb[0].mxu0
      %v1212 = vadd.f32 0.0, %v1211
      %v1213 = vpop.f32.mrb[0].mxu0
      %1214 = vmatprep.mubr.f32.mxu0 0.0
      %1215 = vmatmul.mubr.f32.gmra.mrb[0].mxu0 %v1049
      %v1216 = vpop.f32.mrb[0].mxu0
      %v1217 = vadd.f32 0.0, %v1216
      %v1218 = vpop.f32.mrb[0].mxu0
      %1219 = vmatprep.mubr.f32.mxu0 0.0
      %1220 = vmatmul.mubr.f32.gmra.mrb[0].mxu0 %v1050
      %v1221 = vpop.f32.mrb[0].mxu0
      %v1222 = vadd.f32 0.0, %v1221
      %v1223 = vpop.f32.mrb[0].mxu0
      %1224 = vmatprep.mubr.f32.mxu0 0.0
      %1225 = vmatmul.mubr.f32.gmra.mrb[0].mxu0 %v1051
      %v1226 = vpop.f32.mrb[0].mxu0
      %v1227 = vadd.f32 0.0, %v1226
      %v1228 = vpop.f32.mrb[0].mxu0
      %1229 = vmatprep.mubr.f32.mxu0 0.0
      %1230 = vmatmul.mubr.f32.gmra.mrb[0].mxu0 %v1052
      %v1231 = vpop.f32.mrb[0].mxu0
      %v1232 = vadd.f32 0.0, %v1231
      %v1233 = vpop.f32.mrb[0].mxu0
      %1234 = vmatprep.mubr.f32.mxu0 0.0
      %1235 = vmatmul.mubr.f32.gmra.mrb[0].mxu0 %v1053
      %v1236 = vpop.f32.mrb[0].mxu0
      %v1237 = vadd.f32 0.0, %v1236
      %v1238 = vpop.f32.mrb[0].mxu0
      %1239 = vmatprep.mubr.f32.mxu0 0.0
      %1240 = vmatmul.mubr.f32.gmra.mrb[0].mxu0 %v1054
      %v1241 = vpop.f32.mrb[0].mxu0
      %v1242 = vadd.f32 0.0, %v1241
      %v1243 = vpop.f32.mrb[0].mxu0
      %1244 = vmatprep.mubr.f32.mxu0 0.0
      %1245 = vmatmul.mubr.f32.gmra.mrb[0].mxu0 %v1055
      %v1246 = vpop.f32.mrb[0].mxu0
      %v1247 = vadd.f32 0.0, %v1246
      %v1248 = vpop.f32.mrb[0].mxu0
      %1249 = vmatprep.mubr.f32.mxu0 0.0
      %1250 = vmatmul.mubr.f32.gmra.mrb[0].mxu0 %v1056
      %v1251 = vpop.f32.mrb[0].mxu0
      %v1252 = vadd.f32 0.0, %v1251
      %v1253 = vpop.f32.mrb[0].mxu0
      %1254 = vmatprep.mubr.f32.mxu0 0.0
      %1255 = vmatmul.mubr.f32.gmra.mrb[0].mxu0 %v1057
      %v1256 = vpop.f32.mrb[0].mxu0
      %v1257 = vadd.f32 0.0, %v1256
      %v1258 = vpop.f32.mrb[0].mxu0
      %1259 = vmatprep.mubr.f32.mxu0 0.0
      %1260 = vmatmul.mubr.f32.gmra.mrb[0].mxu0 %v1058
      %v1261 = vpop.f32.mrb[0].mxu0
      %v1262 = vadd.f32 0.0, %v1261
      %v1263 = vpop.f32.mrb[0].mxu0
      %1264 = vmatprep.mubr.f32.mxu0 0.0
      %1265 = vmatmul.mubr.f32.gmra.mrb[0].mxu0 %v1059
      %v1266 = vpop.f32.mrb[0].mxu0
      %v1267 = vadd.f32 0.0, %v1266
      %v1268 = vpop.f32.mrb[0].mxu0
      %1269 = vmatprep.mubr.f32.mxu0 0.0
      %1270 = vmatmul.mubr.f32.gmra.mrb[0].mxu0 %v1060
      %v1271 = vpop.f32.mrb[0].mxu0
      %v1272 = vadd.f32 0.0, %v1271
      %v1273 = vpop.f32.mrb[0].mxu0
      %1274 = vmatprep.mubr.f32.mxu0 0.0
      %1275 = vmatmul.mubr.f32.gmra.mrb[0].mxu0 %v1061
      %v1276 = vpop.f32.mrb[0].mxu0
      %v1277 = vadd.f32 0.0, %v1276
      %v1278 = vpop.f32.mrb[0].mxu0
      %1279 = vmatprep.mubr.f32.mxu0 0.0
      %1280 = vmatmul.mubr.f32.gmra.mrb[0].mxu0 %v1062
      %v1281 = vpop.f32.mrb[0].mxu0
      %v1282 = vadd.f32 0.0, %v1281
      %v1283 = vpop.f32.mrb[0].mxu0
      %1284 = vmatprep.mubr.f32.mxu0 0.0
      %1285 = vmatmul.mubr.f32.gmra.mrb[0].mxu0 %v1063
      %v1286 = vpop.f32.mrb[0].mxu0
      %v1287 = vadd.f32 0.0, %v1286
      %v1288 = vpop.f32.mrb[0].mxu0
      %1289 = vmatprep.mubr.f32.mxu0 0.0
      %1290 = vmatmul.mubr.f32.gmra.mrb[0].mxu0 %v1064
      %v1291 = vpop.f32.mrb[0].mxu0
      %v1292 = vadd.f32 0.0, %v1291
      %v1293 = vpop.f32.mrb[0].mxu0
      %1294 = vmatprep.mubr.f32.mxu0 0.0
      %1295 = vmatmul.mubr.f32.gmra.mrb[0].mxu0 %v1065
      %v1296 = vpop.f32.mrb[0].mxu0
      %v1297 = vadd.f32 0.0, %v1296
      %v1298 = vpop.f32.mrb[0].mxu0
      %1299 = vmatprep.mubr.f32.mxu0 0.0
      %1300 = vmatmul.mubr.f32.gmra.mrb[0].mxu0 %v1066
      %v1301 = vpop.f32.mrb[0].mxu0
      %v1302 = vadd.f32 0.0, %v1301
      %v1303 = vpop.f32.mrb[0].mxu0
      %1304 = vmatprep.mubr.f32.mxu0 0.0
      %1305 = vmatmul.mubr.f32.gmra.mrb[0].mxu0 %v1067
      %v1306 = vpop.f32.mrb[0].mxu0
      %v1307 = vadd.f32 0.0, %v1306
      %v1308 = vpop.f32.mrb[0].mxu0
      %1309 = vdwg.mxu0
      %v1310 = vadd.f32 %v1003, %v1152
      %v1311 = vadd.f32 %v1004, %v1157
      %v1312 = vadd.f32 %v1005, %v1162
      %v1313 = vadd.f32 %v1006, %v1167
      %v1314 = vadd.f32 %v1007, %v1172
      %v1315 = vadd.f32 %v1008, %v1177
      %v1316 = vadd.f32 %v1009, %v1182
      %v1317 = vadd.f32 %v1010, %v1187
      %v1318 = vadd.f32 %v1011, %v1192
      %v1319 = vadd.f32 %v1012, %v1197
      %v1320 = vadd.f32 %v1013, %v1202
      %v1321 = vadd.f32 %v1014, %v1207
      %v1322 = vadd.f32 %v1015, %v1212
      %v1323 = vadd.f32 %v1016, %v1217
      %v1324 = vadd.f32 %v1017, %v1222
      %v1325 = vadd.f32 %v1018, %v1227
      %v1326 = vadd.f32 %v1019, %v1232
      %v1327 = vadd.f32 %v1020, %v1237
      %v1328 = vadd.f32 %v1021, %v1242
      %v1329 = vadd.f32 %v1022, %v1247
      %v1330 = vadd.f32 %v1023, %v1252
      %v1331 = vadd.f32 %v1024, %v1257
      %v1332 = vadd.f32 %v1025, %v1262
      %v1333 = vadd.f32 %v1026, %v1267
      %v1334 = vadd.f32 %v1027, %v1272
      %v1335 = vadd.f32 %v1028, %v1277
      %v1336 = vadd.f32 %v1029, %v1282
      %v1337 = vadd.f32 %v1030, %v1287
      %v1338 = vadd.f32 %v1031, %v1292
      %v1339 = vadd.f32 %v1032, %v1297
      %v1340 = vadd.f32 %v1033, %v1302
      %v1341 = vadd.f32 %v1034, %v1307
      %v1342 = vld [vmem:[%s1035 + $0x1] sm:$0xff]
      %v1343 = vld [vmem:[%s1035 + $0x9] sm:$0xff]
      %v1344 = vld [vmem:[%s1035 + $0x19] sm:$0xff]
      %v1345 = vld [vmem:[%s1035 + $0x21] sm:$0xff]
      %v1346 = vld [vmem:[%s1035 + $0x31] sm:$0xff]
      %v1347 = vld [vmem:[%s1035 + $0x39] sm:$0xff]
      %v1348 = vld [vmem:[%s1035 + $0x49] sm:$0xff]
      %v1349 = vld [vmem:[%s1035 + $0x51] sm:$0xff]
      %v1350 = vld [vmem:[%s1035 + $0x61] sm:$0xff]
      %v1351 = vld [vmem:[%s1035 + $0x69] sm:$0xff]
      %v1352 = vld [vmem:[%s1035 + $0x79] sm:$0xff]
      %v1353 = vld [vmem:[%s1035 + $0x81] sm:$0xff]
      %v1354 = vld [vmem:[%s1035 + $0x91] sm:$0xff]
      %v1355 = vld [vmem:[%s1035 + $0x99] sm:$0xff]
      %v1356 = vld [vmem:[%s1035 + $0xa9] sm:$0xff]
      %v1357 = vld [vmem:[%s1035 + $0xb1] sm:$0xff]
      %v1358 = vld [vmem:[%s1035 + $0xc1] sm:$0xff]
      %v1359 = vld [vmem:[%s1035 + $0xc9] sm:$0xff]
      %v1360 = vld [vmem:[%s1035 + $0xd9] sm:$0xff]
      %v1361 = vld [vmem:[%s1035 + $0xe1] sm:$0xff]
      %v1362 = vld [vmem:[%s1035 + $0xf1] sm:$0xff]
      %v1363 = vld [vmem:[%s1035 + $0xf9] sm:$0xff]
      %v1364 = vld [vmem:[%s1035 + $0x109] sm:$0xff]
      %v1365 = vld [vmem:[%s1035 + $0x111] sm:$0xff]
      %v1366 = vld [vmem:[%s1035 + $0x121] sm:$0xff]
      %v1367 = vld [vmem:[%s1035 + $0x129] sm:$0xff]
      %v1368 = vld [vmem:[%s1035 + $0x139] sm:$0xff]
      %v1369 = vld [vmem:[%s1035 + $0x141] sm:$0xff]
      %v1370 = vld [vmem:[%s1035 + $0x151] sm:$0xff]
      %v1371 = vld [vmem:[%s1035 + $0x159] sm:$0xff]
      %v1372 = vld [vmem:[%s1035 + $0x169] sm:$0xff]
      %v1373 = vld [vmem:[%s1035 + $0x171] sm:$0xff]
      %s1374 = scalar_lea.vmem %s1, 512
      %v1375 = vld [vmem:[%s1374] sm:$0xff]
      %v1376 = vld [vmem:[%s1374 + $0x8] sm:$0xff]
      %v1377 = vld [vmem:[%s1374 + $0x10] sm:$0xff]
      %v1378 = vld [vmem:[%s1374 + $0x18] sm:$0xff]
      %v1379 = vld [vmem:[%s1374 + $0x20] sm:$0xff]
      %v1380 = vld [vmem:[%s1374 + $0x28] sm:$0xff]
      %v1381 = vld [vmem:[%s1374 + $0x30] sm:$0xff]
      %v1382 = vld [vmem:[%s1374 + $0x38] sm:$0xff]
      %v1383 = vld [vmem:[%s1374 + $0x40] sm:$0xff]
      %v1384 = vld [vmem:[%s1374 + $0x48] sm:$0xff]
      %v1385 = vld [vmem:[%s1374 + $0x50] sm:$0xff]
      %v1386 = vld [vmem:[%s1374 + $0x58] sm:$0xff]
      %v1387 = vld [vmem:[%s1374 + $0x60] sm:$0xff]
      %v1388 = vld [vmem:[%s1374 + $0x68] sm:$0xff]
      %v1389 = vld [vmem:[%s1374 + $0x70] sm:$0xff]
      %v1390 = vld [vmem:[%s1374 + $0x78] sm:$0xff]
      %1391 = vmatprep.subr.mxu0 0.0
      %1392 = vmatpush1.msra.mxu0 %v1375
      %1393 = vmatprep.subr.mxu0 0.0
      %1394 = vmatpush1.msra.mxu0 %v1376
      %1395 = vmatprep.subr.mxu0 0.0
      %1396 = vmatpush1.msra.mxu0 %v1377
      %1397 = vmatprep.subr.mxu0 0.0
      %1398 = vmatpush1.msra.mxu0 %v1378
      %1399 = vmatprep.subr.mxu0 0.0
      %1400 = vmatpush1.msra.mxu0 %v1379
      %1401 = vmatprep.subr.mxu0 0.0
      %1402 = vmatpush1.msra.mxu0 %v1380
      %1403 = vmatprep.subr.mxu0 0.0
      %1404 = vmatpush1.msra.mxu0 %v1381
      %1405 = vmatprep.subr.mxu0 0.0
      %1406 = vmatpush1.msra.mxu0 %v1382
      %1407 = vmatprep.subr.mxu0 0.0
      %1408 = vmatpush1.msra.mxu0 %v1383
      %1409 = vmatprep.subr.mxu0 0.0
      %1410 = vmatpush1.msra.mxu0 %v1384
      %1411 = vmatprep.subr.mxu0 0.0
      %1412 = vmatpush1.msra.mxu0 %v1385
      %1413 = vmatprep.subr.mxu0 0.0
      %1414 = vmatpush1.msra.mxu0 %v1386
      %1415 = vmatprep.subr.mxu0 0.0
      %1416 = vmatpush1.msra.mxu0 %v1387
      %1417 = vmatprep.subr.mxu0 0.0
      %1418 = vmatpush1.msra.mxu0 %v1388
      %1419 = vmatprep.subr.mxu0 0.0
      %1420 = vmatpush1.msra.mxu0 %v1389
      %1421 = vmatprep.subr.mxu0 0.0
      %1422 = vmatpush1.msra.mxu0 %v1390
      %1423 = vmatprep.subr.mxu0 0.0
      %1424 = vmatpush1.msra.mxu0 0.0
      %1425 = vmatprep.subr.mxu0 0.0
      %1426 = vmatpush1.msra.mxu0 0.0
      %1427 = vmatprep.subr.mxu0 0.0
      %1428 = vmatpush1.msra.mxu0 0.0
      %1429 = vmatprep.subr.mxu0 0.0
      %1430 = vmatpush1.msra.mxu0 0.0
      %1431 = vmatprep.subr.mxu0 0.0
      %1432 = vmatpush1.msra.mxu0 0.0
      %1433 = vmatprep.subr.mxu0 0.0
      %1434 = vmatpush1.msra.mxu0 0.0
      %1435 = vmatprep.subr.mxu0 0.0
      %1436 = vmatpush1.msra.mxu0 0.0
      %1437 = vmatprep.subr.mxu0 0.0
      %1438 = vmatpush1.msra.mxu0 0.0
      %1439 = vmatprep.subr.mxu0 0.0
      %1440 = vmatpush1.msra.mxu0 0.0
      %1441 = vmatprep.subr.mxu0 0.0
      %1442 = vmatpush1.msra.mxu0 0.0
      %1443 = vmatprep.subr.mxu0 0.0
      %1444 = vmatpush1.msra.mxu0 0.0
      %1445 = vmatprep.subr.mxu0 0.0
      %1446 = vmatpush1.msra.mxu0 0.0
      %1447 = vmatprep.subr.mxu0 0.0
      %1448 = vmatpush1.msra.mxu0 0.0
      %1449 = vmatprep.subr.mxu0 0.0
      %1450 = vmatpush1.msra.mxu0 0.0
      %1451 = vmatprep.subr.mxu0 0.0
      %1452 = vmatpush1.msra.mxu0 0.0
      %1453 = vmatprep.subr.mxu0 0.0
      %1454 = vmatpush1.msra.mxu0 0.0
      %1455 = vmatprep.mubr.f32.mxu0 0.0
      %1456 = vmatmul.mubr.f32.gmra.mrb[0].mxu0 %v1342
      %v1457 = vpop.f32.mrb[0].mxu0
      %v1458 = vadd.f32 0.0, %v1457
      %v1459 = vpop.f32.mrb[0].mxu0
      %1460 = vmatprep.mubr.f32.mxu0 0.0
      %1461 = vmatmul.mubr.f32.gmra.mrb[0].mxu0 %v1343
      %v1462 = vpop.f32.mrb[0].mxu0
      %v1463 = vadd.f32 0.0, %v1462
      %v1464 = vpop.f32.mrb[0].mxu0
      %1465 = vmatprep.mubr.f32.mxu0 0.0
      %1466 = vmatmul.mubr.f32.gmra.mrb[0].mxu0 %v1344
      %v1467 = vpop.f32.mrb[0].mxu0
      %v1468 = vadd.f32 0.0, %v1467
      %v1469 = vpop.f32.mrb[0].mxu0
      %1470 = vmatprep.mubr.f32.mxu0 0.0
      %1471 = vmatmul.mubr.f32.gmra.mrb[0].mxu0 %v1345
      %v1472 = vpop.f32.mrb[0].mxu0
      %v1473 = vadd.f32 0.0, %v1472
      %v1474 = vpop.f32.mrb[0].mxu0
      %1475 = vmatprep.mubr.f32.mxu0 0.0
      %1476 = vmatmul.mubr.f32.gmra.mrb[0].mxu0 %v1346
      %v1477 = vpop.f32.mrb[0].mxu0
      %v1478 = vadd.f32 0.0, %v1477
      %v1479 = vpop.f32.mrb[0].mxu0
      %1480 = vmatprep.mubr.f32.mxu0 0.0
      %1481 = vmatmul.mubr.f32.gmra.mrb[0].mxu0 %v1347
      %v1482 = vpop.f32.mrb[0].mxu0
      %v1483 = vadd.f32 0.0, %v1482
      %v1484 = vpop.f32.mrb[0].mxu0
      %1485 = vmatprep.mubr.f32.mxu0 0.0
      %1486 = vmatmul.mubr.f32.gmra.mrb[0].mxu0 %v1348
      %v1487 = vpop.f32.mrb[0].mxu0
      %v1488 = vadd.f32 0.0, %v1487
      %v1489 = vpop.f32.mrb[0].mxu0
      %1490 = vmatprep.mubr.f32.mxu0 0.0
      %1491 = vmatmul.mubr.f32.gmra.mrb[0].mxu0 %v1349
      %v1492 = vpop.f32.mrb[0].mxu0
      %v1493 = vadd.f32 0.0, %v1492
      %v1494 = vpop.f32.mrb[0].mxu0
      %1495 = vmatprep.mubr.f32.mxu0 0.0
      %1496 = vmatmul.mubr.f32.gmra.mrb[0].mxu0 %v1350
      %v1497 = vpop.f32.mrb[0].mxu0
      %v1498 = vadd.f32 0.0, %v1497
      %v1499 = vpop.f32.mrb[0].mxu0
      %1500 = vmatprep.mubr.f32.mxu0 0.0
      %1501 = vmatmul.mubr.f32.gmra.mrb[0].mxu0 %v1351
      %v1502 = vpop.f32.mrb[0].mxu0
      %v1503 = vadd.f32 0.0, %v1502
      %v1504 = vpop.f32.mrb[0].mxu0
      %1505 = vmatprep.mubr.f32.mxu0 0.0
      %1506 = vmatmul.mubr.f32.gmra.mrb[0].mxu0 %v1352
      %v1507 = vpop.f32.mrb[0].mxu0
      %v1508 = vadd.f32 0.0, %v1507
      %v1509 = vpop.f32.mrb[0].mxu0
      %1510 = vmatprep.mubr.f32.mxu0 0.0
      %1511 = vmatmul.mubr.f32.gmra.mrb[0].mxu0 %v1353
      %v1512 = vpop.f32.mrb[0].mxu0
      %v1513 = vadd.f32 0.0, %v1512
      %v1514 = vpop.f32.mrb[0].mxu0
      %1515 = vmatprep.mubr.f32.mxu0 0.0
      %1516 = vmatmul.mubr.f32.gmra.mrb[0].mxu0 %v1354
      %v1517 = vpop.f32.mrb[0].mxu0
      %v1518 = vadd.f32 0.0, %v1517
      %v1519 = vpop.f32.mrb[0].mxu0
      %1520 = vmatprep.mubr.f32.mxu0 0.0
      %1521 = vmatmul.mubr.f32.gmra.mrb[0].mxu0 %v1355
      %v1522 = vpop.f32.mrb[0].mxu0
      %v1523 = vadd.f32 0.0, %v1522
      %v1524 = vpop.f32.mrb[0].mxu0
      %1525 = vmatprep.mubr.f32.mxu0 0.0
      %1526 = vmatmul.mubr.f32.gmra.mrb[0].mxu0 %v1356
      %v1527 = vpop.f32.mrb[0].mxu0
      %v1528 = vadd.f32 0.0, %v1527
      %v1529 = vpop.f32.mrb[0].mxu0
      %1530 = vmatprep.mubr.f32.mxu0 0.0
      %1531 = vmatmul.mubr.f32.gmra.mrb[0].mxu0 %v1357
      %v1532 = vpop.f32.mrb[0].mxu0
      %v1533 = vadd.f32 0.0, %v1532
      %v1534 = vpop.f32.mrb[0].mxu0
      %1535 = vmatprep.mubr.f32.mxu0 0.0
      %1536 = vmatmul.mubr.f32.gmra.mrb[0].mxu0 %v1358
      %v1537 = vpop.f32.mrb[0].mxu0
      %v1538 = vadd.f32 0.0, %v1537
      %v1539 = vpop.f32.mrb[0].mxu0
      %1540 = vmatprep.mubr.f32.mxu0 0.0
      %1541 = vmatmul.mubr.f32.gmra.mrb[0].mxu0 %v1359
      %v1542 = vpop.f32.mrb[0].mxu0
      %v1543 = vadd.f32 0.0, %v1542
      %v1544 = vpop.f32.mrb[0].mxu0
      %1545 = vmatprep.mubr.f32.mxu0 0.0
      %1546 = vmatmul.mubr.f32.gmra.mrb[0].mxu0 %v1360
      %v1547 = vpop.f32.mrb[0].mxu0
      %v1548 = vadd.f32 0.0, %v1547
      %v1549 = vpop.f32.mrb[0].mxu0
      %1550 = vmatprep.mubr.f32.mxu0 0.0
      %1551 = vmatmul.mubr.f32.gmra.mrb[0].mxu0 %v1361
      %v1552 = vpop.f32.mrb[0].mxu0
      %v1553 = vadd.f32 0.0, %v1552
      %v1554 = vpop.f32.mrb[0].mxu0
      %1555 = vmatprep.mubr.f32.mxu0 0.0
      %1556 = vmatmul.mubr.f32.gmra.mrb[0].mxu0 %v1362
      %v1557 = vpop.f32.mrb[0].mxu0
      %v1558 = vadd.f32 0.0, %v1557
      %v1559 = vpop.f32.mrb[0].mxu0
      %1560 = vmatprep.mubr.f32.mxu0 0.0
      %1561 = vmatmul.mubr.f32.gmra.mrb[0].mxu0 %v1363
      %v1562 = vpop.f32.mrb[0].mxu0
      %v1563 = vadd.f32 0.0, %v1562
      %v1564 = vpop.f32.mrb[0].mxu0
      %1565 = vmatprep.mubr.f32.mxu0 0.0
      %1566 = vmatmul.mubr.f32.gmra.mrb[0].mxu0 %v1364
      %v1567 = vpop.f32.mrb[0].mxu0
      %v1568 = vadd.f32 0.0, %v1567
      %v1569 = vpop.f32.mrb[0].mxu0
      %1570 = vmatprep.mubr.f32.mxu0 0.0
      %1571 = vmatmul.mubr.f32.gmra.mrb[0].mxu0 %v1365
      %v1572 = vpop.f32.mrb[0].mxu0
      %v1573 = vadd.f32 0.0, %v1572
      %v1574 = vpop.f32.mrb[0].mxu0
      %1575 = vmatprep.mubr.f32.mxu0 0.0
      %1576 = vmatmul.mubr.f32.gmra.mrb[0].mxu0 %v1366
      %v1577 = vpop.f32.mrb[0].mxu0
      %v1578 = vadd.f32 0.0, %v1577
      %v1579 = vpop.f32.mrb[0].mxu0
      %1580 = vmatprep.mubr.f32.mxu0 0.0
      %1581 = vmatmul.mubr.f32.gmra.mrb[0].mxu0 %v1367
      %v1582 = vpop.f32.mrb[0].mxu0
      %v1583 = vadd.f32 0.0, %v1582
      %v1584 = vpop.f32.mrb[0].mxu0
      %1585 = vmatprep.mubr.f32.mxu0 0.0
      %1586 = vmatmul.mubr.f32.gmra.mrb[0].mxu0 %v1368
      %v1587 = vpop.f32.mrb[0].mxu0
      %v1588 = vadd.f32 0.0, %v1587
      %v1589 = vpop.f32.mrb[0].mxu0
      %1590 = vmatprep.mubr.f32.mxu0 0.0
      %1591 = vmatmul.mubr.f32.gmra.mrb[0].mxu0 %v1369
      %v1592 = vpop.f32.mrb[0].mxu0
      %v1593 = vadd.f32 0.0, %v1592
      %v1594 = vpop.f32.mrb[0].mxu0
      %1595 = vmatprep.mubr.f32.mxu0 0.0
      %1596 = vmatmul.mubr.f32.gmra.mrb[0].mxu0 %v1370
      %v1597 = vpop.f32.mrb[0].mxu0
      %v1598 = vadd.f32 0.0, %v1597
      %v1599 = vpop.f32.mrb[0].mxu0
      %1600 = vmatprep.mubr.f32.mxu0 0.0
      %1601 = vmatmul.mubr.f32.gmra.mrb[0].mxu0 %v1371
      %v1602 = vpop.f32.mrb[0].mxu0
      %v1603 = vadd.f32 0.0, %v1602
      %v1604 = vpop.f32.mrb[0].mxu0
      %1605 = vmatprep.mubr.f32.mxu0 0.0
      %1606 = vmatmul.mubr.f32.gmra.mrb[0].mxu0 %v1372
      %v1607 = vpop.f32.mrb[0].mxu0
      %v1608 = vadd.f32 0.0, %v1607
      %v1609 = vpop.f32.mrb[0].mxu0
      %1610 = vmatprep.mubr.f32.mxu0 0.0
      %1611 = vmatmul.mubr.f32.gmra.mrb[0].mxu0 %v1373
      %v1612 = vpop.f32.mrb[0].mxu0
      %v1613 = vadd.f32 0.0, %v1612
      %v1614 = vpop.f32.mrb[0].mxu0
      %1615 = vdwg.mxu0
      %v1616 = vadd.f32 %v1310, %v1458
      %v1617 = vadd.f32 %v1311, %v1463
      %v1618 = vadd.f32 %v1312, %v1468
      %v1619 = vadd.f32 %v1313, %v1473
      %v1620 = vadd.f32 %v1314, %v1478
      %v1621 = vadd.f32 %v1315, %v1483
      %v1622 = vadd.f32 %v1316, %v1488
      %v1623 = vadd.f32 %v1317, %v1493
      %v1624 = vadd.f32 %v1318, %v1498
      %v1625 = vadd.f32 %v1319, %v1503
      %v1626 = vadd.f32 %v1320, %v1508
      %v1627 = vadd.f32 %v1321, %v1513
      %v1628 = vadd.f32 %v1322, %v1518
      %v1629 = vadd.f32 %v1323, %v1523
      %v1630 = vadd.f32 %v1324, %v1528
      %v1631 = vadd.f32 %v1325, %v1533
      %v1632 = vadd.f32 %v1326, %v1538
      %v1633 = vadd.f32 %v1327, %v1543
      %v1634 = vadd.f32 %v1328, %v1548
      %v1635 = vadd.f32 %v1329, %v1553
      %v1636 = vadd.f32 %v1330, %v1558
      %v1637 = vadd.f32 %v1331, %v1563
      %v1638 = vadd.f32 %v1332, %v1568
      %v1639 = vadd.f32 %v1333, %v1573
      %v1640 = vadd.f32 %v1334, %v1578
      %v1641 = vadd.f32 %v1335, %v1583
      %v1642 = vadd.f32 %v1336, %v1588
      %v1643 = vadd.f32 %v1337, %v1593
      %v1644 = vadd.f32 %v1338, %v1598
      %v1645 = vadd.f32 %v1339, %v1603
      %v1646 = vadd.f32 %v1340, %v1608
      %v1647 = vadd.f32 %v1341, %v1613
      %v1648 = vld [vmem:[%s1035 + $0x2] sm:$0xff]
      %v1649 = vld [vmem:[%s1035 + $0xa] sm:$0xff]
      %v1650 = vld [vmem:[%s1035 + $0x1a] sm:$0xff]
      %v1651 = vld [vmem:[%s1035 + $0x22] sm:$0xff]
      %v1652 = vld [vmem:[%s1035 + $0x32] sm:$0xff]
      %v1653 = vld [vmem:[%s1035 + $0x3a] sm:$0xff]
      %v1654 = vld [vmem:[%s1035 + $0x4a] sm:$0xff]
      %v1655 = vld [vmem:[%s1035 + $0x52] sm:$0xff]
      %v1656 = vld [vmem:[%s1035 + $0x62] sm:$0xff]
      %v1657 = vld [vmem:[%s1035 + $0x6a] sm:$0xff]
      %v1658 = vld [vmem:[%s1035 + $0x7a] sm:$0xff]
      %v1659 = vld [vmem:[%s1035 + $0x82] sm:$0xff]
      %v1660 = vld [vmem:[%s1035 + $0x92] sm:$0xff]
      %v1661 = vld [vmem:[%s1035 + $0x9a] sm:$0xff]
      %v1662 = vld [vmem:[%s1035 + $0xaa] sm:$0xff]
      %v1663 = vld [vmem:[%s1035 + $0xb2] sm:$0xff]
      %v1664 = vld [vmem:[%s1035 + $0xc2] sm:$0xff]
      %v1665 = vld [vmem:[%s1035 + $0xca] sm:$0xff]
      %v1666 = vld [vmem:[%s1035 + $0xda] sm:$0xff]
      %v1667 = vld [vmem:[%s1035 + $0xe2] sm:$0xff]
      %v1668 = vld [vmem:[%s1035 + $0xf2] sm:$0xff]
      %v1669 = vld [vmem:[%s1035 + $0xfa] sm:$0xff]
      %v1670 = vld [vmem:[%s1035 + $0x10a] sm:$0xff]
      %v1671 = vld [vmem:[%s1035 + $0x112] sm:$0xff]
      %v1672 = vld [vmem:[%s1035 + $0x122] sm:$0xff]
      %v1673 = vld [vmem:[%s1035 + $0x12a] sm:$0xff]
      %v1674 = vld [vmem:[%s1035 + $0x13a] sm:$0xff]
      %v1675 = vld [vmem:[%s1035 + $0x142] sm:$0xff]
      %v1676 = vld [vmem:[%s1035 + $0x152] sm:$0xff]
      %v1677 = vld [vmem:[%s1035 + $0x15a] sm:$0xff]
      %v1678 = vld [vmem:[%s1035 + $0x16a] sm:$0xff]
      %v1679 = vld [vmem:[%s1035 + $0x172] sm:$0xff]
      %s1680 = scalar_lea.vmem %s1, 640
      %v1681 = vld [vmem:[%s1680] sm:$0xff]
      %v1682 = vld [vmem:[%s1680 + $0x8] sm:$0xff]
      %v1683 = vld [vmem:[%s1680 + $0x10] sm:$0xff]
      %v1684 = vld [vmem:[%s1680 + $0x18] sm:$0xff]
      %v1685 = vld [vmem:[%s1680 + $0x20] sm:$0xff]
      %v1686 = vld [vmem:[%s1680 + $0x28] sm:$0xff]
      %v1687 = vld [vmem:[%s1680 + $0x30] sm:$0xff]
      %v1688 = vld [vmem:[%s1680 + $0x38] sm:$0xff]
      %v1689 = vld [vmem:[%s1680 + $0x40] sm:$0xff]
      %v1690 = vld [vmem:[%s1680 + $0x48] sm:$0xff]
      %v1691 = vld [vmem:[%s1680 + $0x50] sm:$0xff]
      %v1692 = vld [vmem:[%s1680 + $0x58] sm:$0xff]
      %v1693 = vld [vmem:[%s1680 + $0x60] sm:$0xff]
      %v1694 = vld [vmem:[%s1680 + $0x68] sm:$0xff]
      %v1695 = vld [vmem:[%s1680 + $0x70] sm:$0xff]
      %v1696 = vld [vmem:[%s1680 + $0x78] sm:$0xff]
      %1697 = vmatprep.subr.mxu0 0.0
      %1698 = vmatpush1.msra.mxu0 %v1681
      %1699 = vmatprep.subr.mxu0 0.0
      %1700 = vmatpush1.msra.mxu0 %v1682
      %1701 = vmatprep.subr.mxu0 0.0
      %1702 = vmatpush1.msra.mxu0 %v1683
      %1703 = vmatprep.subr.mxu0 0.0
      %1704 = vmatpush1.msra.mxu0 %v1684
      %1705 = vmatprep.subr.mxu0 0.0
      %1706 = vmatpush1.msra.mxu0 %v1685
      %1707 = vmatprep.subr.mxu0 0.0
      %1708 = vmatpush1.msra.mxu0 %v1686
      %1709 = vmatprep.subr.mxu0 0.0
      %1710 = vmatpush1.msra.mxu0 %v1687
      %1711 = vmatprep.subr.mxu0 0.0
      %1712 = vmatpush1.msra.mxu0 %v1688
      %1713 = vmatprep.subr.mxu0 0.0
      %1714 = vmatpush1.msra.mxu0 %v1689
      %1715 = vmatprep.subr.mxu0 0.0
      %1716 = vmatpush1.msra.mxu0 %v1690
      %1717 = vmatprep.subr.mxu0 0.0
      %1718 = vmatpush1.msra.mxu0 %v1691
      %1719 = vmatprep.subr.mxu0 0.0
      %1720 = vmatpush1.msra.mxu0 %v1692
      %1721 = vmatprep.subr.mxu0 0.0
      %1722 = vmatpush1.msra.mxu0 %v1693
      %1723 = vmatprep.subr.mxu0 0.0
      %1724 = vmatpush1.msra.mxu0 %v1694
      %1725 = vmatprep.subr.mxu0 0.0
      %1726 = vmatpush1.msra.mxu0 %v1695
      %1727 = vmatprep.subr.mxu0 0.0
      %1728 = vmatpush1.msra.mxu0 %v1696
      %1729 = vmatprep.subr.mxu0 0.0
      %1730 = vmatpush1.msra.mxu0 0.0
      %1731 = vmatprep.subr.mxu0 0.0
      %1732 = vmatpush1.msra.mxu0 0.0
      %1733 = vmatprep.subr.mxu0 0.0
      %1734 = vmatpush1.msra.mxu0 0.0
      %1735 = vmatprep.subr.mxu0 0.0
      %1736 = vmatpush1.msra.mxu0 0.0
      %1737 = vmatprep.subr.mxu0 0.0
      %1738 = vmatpush1.msra.mxu0 0.0
      %1739 = vmatprep.subr.mxu0 0.0
      %1740 = vmatpush1.msra.mxu0 0.0
      %1741 = vmatprep.subr.mxu0 0.0
      %1742 = vmatpush1.msra.mxu0 0.0
      %1743 = vmatprep.subr.mxu0 0.0
      %1744 = vmatpush1.msra.mxu0 0.0
      %1745 = vmatprep.subr.mxu0 0.0
      %1746 = vmatpush1.msra.mxu0 0.0
      %1747 = vmatprep.subr.mxu0 0.0
      %1748 = vmatpush1.msra.mxu0 0.0
      %1749 = vmatprep.subr.mxu0 0.0
      %1750 = vmatpush1.msra.mxu0 0.0
      %1751 = vmatprep.subr.mxu0 0.0
      %1752 = vmatpush1.msra.mxu0 0.0
      %1753 = vmatprep.subr.mxu0 0.0
      %1754 = vmatpush1.msra.mxu0 0.0
      %1755 = vmatprep.subr.mxu0 0.0
      %1756 = vmatpush1.msra.mxu0 0.0
      %1757 = vmatprep.subr.mxu0 0.0
      %1758 = vmatpush1.msra.mxu0 0.0
      %1759 = vmatprep.subr.mxu0 0.0
      %1760 = vmatpush1.msra.mxu0 0.0
      %1761 = vmatprep.mubr.f32.mxu0 0.0
      %1762 = vmatmul.mubr.f32.gmra.mrb[0].mxu0 %v1648
      %v1763 = vpop.f32.mrb[0].mxu0
      %v1764 = vadd.f32 0.0, %v1763
      %v1765 = vpop.f32.mrb[0].mxu0
      %1766 = vmatprep.mubr.f32.mxu0 0.0
      %1767 = vmatmul.mubr.f32.gmra.mrb[0].mxu0 %v1649
      %v1768 = vpop.f32.mrb[0].mxu0
      %v1769 = vadd.f32 0.0, %v1768
      %v1770 = vpop.f32.mrb[0].mxu0
      %1771 = vmatprep.mubr.f32.mxu0 0.0
      %1772 = vmatmul.mubr.f32.gmra.mrb[0].mxu0 %v1650
      %v1773 = vpop.f32.mrb[0].mxu0
      %v1774 = vadd.f32 0.0, %v1773
      %v1775 = vpop.f32.mrb[0].mxu0
      %1776 = vmatprep.mubr.f32.mxu0 0.0
      %1777 = vmatmul.mubr.f32.gmra.mrb[0].mxu0 %v1651
      %v1778 = vpop.f32.mrb[0].mxu0
      %v1779 = vadd.f32 0.0, %v1778
      %v1780 = vpop.f32.mrb[0].mxu0
      %1781 = vmatprep.mubr.f32.mxu0 0.0
      %1782 = vmatmul.mubr.f32.gmra.mrb[0].mxu0 %v1652
      %v1783 = vpop.f32.mrb[0].mxu0
      %v1784 = vadd.f32 0.0, %v1783
      %v1785 = vpop.f32.mrb[0].mxu0
      %1786 = vmatprep.mubr.f32.mxu0 0.0
      %1787 = vmatmul.mubr.f32.gmra.mrb[0].mxu0 %v1653
      %v1788 = vpop.f32.mrb[0].mxu0
      %v1789 = vadd.f32 0.0, %v1788
      %v1790 = vpop.f32.mrb[0].mxu0
      %1791 = vmatprep.mubr.f32.mxu0 0.0
      %1792 = vmatmul.mubr.f32.gmra.mrb[0].mxu0 %v1654
      %v1793 = vpop.f32.mrb[0].mxu0
      %v1794 = vadd.f32 0.0, %v1793
      %v1795 = vpop.f32.mrb[0].mxu0
      %1796 = vmatprep.mubr.f32.mxu0 0.0
      %1797 = vmatmul.mubr.f32.gmra.mrb[0].mxu0 %v1655
      %v1798 = vpop.f32.mrb[0].mxu0
      %v1799 = vadd.f32 0.0, %v1798
      %v1800 = vpop.f32.mrb[0].mxu0
      %1801 = vmatprep.mubr.f32.mxu0 0.0
      %1802 = vmatmul.mubr.f32.gmra.mrb[0].mxu0 %v1656
      %v1803 = vpop.f32.mrb[0].mxu0
      %v1804 = vadd.f32 0.0, %v1803
      %v1805 = vpop.f32.mrb[0].mxu0
      %1806 = vmatprep.mubr.f32.mxu0 0.0
      %1807 = vmatmul.mubr.f32.gmra.mrb[0].mxu0 %v1657
      %v1808 = vpop.f32.mrb[0].mxu0
      %v1809 = vadd.f32 0.0, %v1808
      %v1810 = vpop.f32.mrb[0].mxu0
      %1811 = vmatprep.mubr.f32.mxu0 0.0
      %1812 = vmatmul.mubr.f32.gmra.mrb[0].mxu0 %v1658
      %v1813 = vpop.f32.mrb[0].mxu0
      %v1814 = vadd.f32 0.0, %v1813
      %v1815 = vpop.f32.mrb[0].mxu0
      %1816 = vmatprep.mubr.f32.mxu0 0.0
      %1817 = vmatmul.mubr.f32.gmra.mrb[0].mxu0 %v1659
      %v1818 = vpop.f32.mrb[0].mxu0
      %v1819 = vadd.f32 0.0, %v1818
      %v1820 = vpop.f32.mrb[0].mxu0
      %1821 = vmatprep.mubr.f32.mxu0 0.0
      %1822 = vmatmul.mubr.f32.gmra.mrb[0].mxu0 %v1660
      %v1823 = vpop.f32.mrb[0].mxu0
      %v1824 = vadd.f32 0.0, %v1823
      %v1825 = vpop.f32.mrb[0].mxu0
      %1826 = vmatprep.mubr.f32.mxu0 0.0
      %1827 = vmatmul.mubr.f32.gmra.mrb[0].mxu0 %v1661
      %v1828 = vpop.f32.mrb[0].mxu0
      %v1829 = vadd.f32 0.0, %v1828
      %v1830 = vpop.f32.mrb[0].mxu0
      %1831 = vmatprep.mubr.f32.mxu0 0.0
      %1832 = vmatmul.mubr.f32.gmra.mrb[0].mxu0 %v1662
      %v1833 = vpop.f32.mrb[0].mxu0
      %v1834 = vadd.f32 0.0, %v1833
      %v1835 = vpop.f32.mrb[0].mxu0
      %1836 = vmatprep.mubr.f32.mxu0 0.0
      %1837 = vmatmul.mubr.f32.gmra.mrb[0].mxu0 %v1663
      %v1838 = vpop.f32.mrb[0].mxu0
      %v1839 = vadd.f32 0.0, %v1838
      %v1840 = vpop.f32.mrb[0].mxu0
      %1841 = vmatprep.mubr.f32.mxu0 0.0
      %1842 = vmatmul.mubr.f32.gmra.mrb[0].mxu0 %v1664
      %v1843 = vpop.f32.mrb[0].mxu0
      %v1844 = vadd.f32 0.0, %v1843
      %v1845 = vpop.f32.mrb[0].mxu0
      %1846 = vmatprep.mubr.f32.mxu0 0.0
      %1847 = vmatmul.mubr.f32.gmra.mrb[0].mxu0 %v1665
      %v1848 = vpop.f32.mrb[0].mxu0
      %v1849 = vadd.f32 0.0, %v1848
      %v1850 = vpop.f32.mrb[0].mxu0
      %1851 = vmatprep.mubr.f32.mxu0 0.0
      %1852 = vmatmul.mubr.f32.gmra.mrb[0].mxu0 %v1666
      %v1853 = vpop.f32.mrb[0].mxu0
      %v1854 = vadd.f32 0.0, %v1853
      %v1855 = vpop.f32.mrb[0].mxu0
      %1856 = vmatprep.mubr.f32.mxu0 0.0
      %1857 = vmatmul.mubr.f32.gmra.mrb[0].mxu0 %v1667
      %v1858 = vpop.f32.mrb[0].mxu0
      %v1859 = vadd.f32 0.0, %v1858
      %v1860 = vpop.f32.mrb[0].mxu0
      %1861 = vmatprep.mubr.f32.mxu0 0.0
      %1862 = vmatmul.mubr.f32.gmra.mrb[0].mxu0 %v1668
      %v1863 = vpop.f32.mrb[0].mxu0
      %v1864 = vadd.f32 0.0, %v1863
      %v1865 = vpop.f32.mrb[0].mxu0
      %1866 = vmatprep.mubr.f32.mxu0 0.0
      %1867 = vmatmul.mubr.f32.gmra.mrb[0].mxu0 %v1669
      %v1868 = vpop.f32.mrb[0].mxu0
      %v1869 = vadd.f32 0.0, %v1868
      %v1870 = vpop.f32.mrb[0].mxu0
      %1871 = vmatprep.mubr.f32.mxu0 0.0
      %1872 = vmatmul.mubr.f32.gmra.mrb[0].mxu0 %v1670
      %v1873 = vpop.f32.mrb[0].mxu0
      %v1874 = vadd.f32 0.0, %v1873
      %v1875 = vpop.f32.mrb[0].mxu0
      %1876 = vmatprep.mubr.f32.mxu0 0.0
      %1877 = vmatmul.mubr.f32.gmra.mrb[0].mxu0 %v1671
      %v1878 = vpop.f32.mrb[0].mxu0
      %v1879 = vadd.f32 0.0, %v1878
      %v1880 = vpop.f32.mrb[0].mxu0
      %1881 = vmatprep.mubr.f32.mxu0 0.0
      %1882 = vmatmul.mubr.f32.gmra.mrb[0].mxu0 %v1672
      %v1883 = vpop.f32.mrb[0].mxu0
      %v1884 = vadd.f32 0.0, %v1883
      %v1885 = vpop.f32.mrb[0].mxu0
      %1886 = vmatprep.mubr.f32.mxu0 0.0
      %1887 = vmatmul.mubr.f32.gmra.mrb[0].mxu0 %v1673
      %v1888 = vpop.f32.mrb[0].mxu0
      %v1889 = vadd.f32 0.0, %v1888
      %v1890 = vpop.f32.mrb[0].mxu0
      %1891 = vmatprep.mubr.f32.mxu0 0.0
      %1892 = vmatmul.mubr.f32.gmra.mrb[0].mxu0 %v1674
      %v1893 = vpop.f32.mrb[0].mxu0
      %v1894 = vadd.f32 0.0, %v1893
      %v1895 = vpop.f32.mrb[0].mxu0
      %1896 = vmatprep.mubr.f32.mxu0 0.0
      %1897 = vmatmul.mubr.f32.gmra.mrb[0].mxu0 %v1675
      %v1898 = vpop.f32.mrb[0].mxu0
      %v1899 = vadd.f32 0.0, %v1898
      %v1900 = vpop.f32.mrb[0].mxu0
      %1901 = vmatprep.mubr.f32.mxu0 0.0
      %1902 = vmatmul.mubr.f32.gmra.mrb[0].mxu0 %v1676
      %v1903 = vpop.f32.mrb[0].mxu0
      %v1904 = vadd.f32 0.0, %v1903
      %v1905 = vpop.f32.mrb[0].mxu0
      %1906 = vmatprep.mubr.f32.mxu0 0.0
      %1907 = vmatmul.mubr.f32.gmra.mrb[0].mxu0 %v1677
      %v1908 = vpop.f32.mrb[0].mxu0
      %v1909 = vadd.f32 0.0, %v1908
      %v1910 = vpop.f32.mrb[0].mxu0
      %1911 = vmatprep.mubr.f32.mxu0 0.0
      %1912 = vmatmul.mubr.f32.gmra.mrb[0].mxu0 %v1678
      %v1913 = vpop.f32.mrb[0].mxu0
      %v1914 = vadd.f32 0.0, %v1913
      %v1915 = vpop.f32.mrb[0].mxu0
      %1916 = vmatprep.mubr.f32.mxu0 0.0
      %1917 = vmatmul.mubr.f32.gmra.mrb[0].mxu0 %v1679
      %v1918 = vpop.f32.mrb[0].mxu0
      %v1919 = vadd.f32 0.0, %v1918
      %v1920 = vpop.f32.mrb[0].mxu0
      %1921 = vdwg.mxu0
      %v1922 = vadd.f32 %v1616, %v1764
      %v1923 = vadd.f32 %v1617, %v1769
      %v1924 = vadd.f32 %v1618, %v1774
      %v1925 = vadd.f32 %v1619, %v1779
      %v1926 = vadd.f32 %v1620, %v1784
      %v1927 = vadd.f32 %v1621, %v1789
      %v1928 = vadd.f32 %v1622, %v1794
      %v1929 = vadd.f32 %v1623, %v1799
      %v1930 = vadd.f32 %v1624, %v1804
      %v1931 = vadd.f32 %v1625, %v1809
      %v1932 = vadd.f32 %v1626, %v1814
      %v1933 = vadd.f32 %v1627, %v1819
      %v1934 = vadd.f32 %v1628, %v1824
      %v1935 = vadd.f32 %v1629, %v1829
      %v1936 = vadd.f32 %v1630, %v1834
      %v1937 = vadd.f32 %v1631, %v1839
      %v1938 = vadd.f32 %v1632, %v1844
      %v1939 = vadd.f32 %v1633, %v1849
      %v1940 = vadd.f32 %v1634, %v1854
      %v1941 = vadd.f32 %v1635, %v1859
      %v1942 = vadd.f32 %v1636, %v1864
      %v1943 = vadd.f32 %v1637, %v1869
      %v1944 = vadd.f32 %v1638, %v1874
      %v1945 = vadd.f32 %v1639, %v1879
      %v1946 = vadd.f32 %v1640, %v1884
      %v1947 = vadd.f32 %v1641, %v1889
      %v1948 = vadd.f32 %v1642, %v1894
      %v1949 = vadd.f32 %v1643, %v1899
      %v1950 = vadd.f32 %v1644, %v1904
      %v1951 = vadd.f32 %v1645, %v1909
      %v1952 = vadd.f32 %v1646, %v1914
      %v1953 = vadd.f32 %v1647, %v1919
      %s1954 = scalar_lea.vmem %s172, 48
      %v1955 = vld [vmem:[%s1954] sm:$0xff]
      %v1956 = vld [vmem:[%s1954 + $0x8] sm:$0xff]
      %v1957 = vld [vmem:[%s1954 + $0x18] sm:$0xff]
      %v1958 = vld [vmem:[%s1954 + $0x20] sm:$0xff]
      %v1959 = vld [vmem:[%s1954 + $0x30] sm:$0xff]
      %v1960 = vld [vmem:[%s1954 + $0x38] sm:$0xff]
      %v1961 = vld [vmem:[%s1954 + $0x48] sm:$0xff]
      %v1962 = vld [vmem:[%s1954 + $0x50] sm:$0xff]
      %v1963 = vld [vmem:[%s1954 + $0x60] sm:$0xff]
      %v1964 = vld [vmem:[%s1954 + $0x68] sm:$0xff]
      %v1965 = vld [vmem:[%s1954 + $0x78] sm:$0xff]
      %v1966 = vld [vmem:[%s1954 + $0x80] sm:$0xff]
      %v1967 = vld [vmem:[%s1954 + $0x90] sm:$0xff]
      %v1968 = vld [vmem:[%s1954 + $0x98] sm:$0xff]
      %v1969 = vld [vmem:[%s1954 + $0xa8] sm:$0xff]
      %v1970 = vld [vmem:[%s1954 + $0xb0] sm:$0xff]
      %v1971 = vld [vmem:[%s1954 + $0xc0] sm:$0xff]
      %v1972 = vld [vmem:[%s1954 + $0xc8] sm:$0xff]
      %v1973 = vld [vmem:[%s1954 + $0xd8] sm:$0xff]
      %v1974 = vld [vmem:[%s1954 + $0xe0] sm:$0xff]
      %v1975 = vld [vmem:[%s1954 + $0xf0] sm:$0xff]
      %v1976 = vld [vmem:[%s1954 + $0xf8] sm:$0xff]
      %v1977 = vld [vmem:[%s1954 + $0x108] sm:$0xff]
      %v1978 = vld [vmem:[%s1954 + $0x110] sm:$0xff]
      %v1979 = vld [vmem:[%s1954 + $0x120] sm:$0xff]
      %v1980 = vld [vmem:[%s1954 + $0x128] sm:$0xff]
      %v1981 = vld [vmem:[%s1954 + $0x138] sm:$0xff]
      %v1982 = vld [vmem:[%s1954 + $0x140] sm:$0xff]
      %v1983 = vld [vmem:[%s1954 + $0x150] sm:$0xff]
      %v1984 = vld [vmem:[%s1954 + $0x158] sm:$0xff]
      %v1985 = vld [vmem:[%s1954 + $0x168] sm:$0xff]
      %v1986 = vld [vmem:[%s1954 + $0x170] sm:$0xff]
      %s1987 = scalar_lea.vmem %s1, 768
      %v1988 = vld [vmem:[%s1987] sm:$0xff]
      %v1989 = vld [vmem:[%s1987 + $0x8] sm:$0xff]
      %v1990 = vld [vmem:[%s1987 + $0x10] sm:$0xff]
      %v1991 = vld [vmem:[%s1987 + $0x18] sm:$0xff]
      %v1992 = vld [vmem:[%s1987 + $0x20] sm:$0xff]
      %v1993 = vld [vmem:[%s1987 + $0x28] sm:$0xff]
      %v1994 = vld [vmem:[%s1987 + $0x30] sm:$0xff]
      %v1995 = vld [vmem:[%s1987 + $0x38] sm:$0xff]
      %v1996 = vld [vmem:[%s1987 + $0x40] sm:$0xff]
      %v1997 = vld [vmem:[%s1987 + $0x48] sm:$0xff]
      %v1998 = vld [vmem:[%s1987 + $0x50] sm:$0xff]
      %v1999 = vld [vmem:[%s1987 + $0x58] sm:$0xff]
      %v2000 = vld [vmem:[%s1987 + $0x60] sm:$0xff]
      %v2001 = vld [vmem:[%s1987 + $0x68] sm:$0xff]
      %v2002 = vld [vmem:[%s1987 + $0x70] sm:$0xff]
      %v2003 = vld [vmem:[%s1987 + $0x78] sm:$0xff]
      %2004 = vmatprep.subr.mxu0 0.0
      %2005 = vmatpush1.msra.mxu0 %v1988
      %2006 = vmatprep.subr.mxu0 0.0
      %2007 = vmatpush1.msra.mxu0 %v1989
      %2008 = vmatprep.subr.mxu0 0.0
      %2009 = vmatpush1.msra.mxu0 %v1990
      %2010 = vmatprep.subr.mxu0 0.0
      %2011 = vmatpush1.msra.mxu0 %v1991
      %2012 = vmatprep.subr.mxu0 0.0
      %2013 = vmatpush1.msra.mxu0 %v1992
      %2014 = vmatprep.subr.mxu0 0.0
      %2015 = vmatpush1.msra.mxu0 %v1993
      %2016 = vmatprep.subr.mxu0 0.0
      %2017 = vmatpush1.msra.mxu0 %v1994
      %2018 = vmatprep.subr.mxu0 0.0
      %2019 = vmatpush1.msra.mxu0 %v1995
      %2020 = vmatprep.subr.mxu0 0.0
      %2021 = vmatpush1.msra.mxu0 %v1996
      %2022 = vmatprep.subr.mxu0 0.0
      %2023 = vmatpush1.msra.mxu0 %v1997
      %2024 = vmatprep.subr.mxu0 0.0
      %2025 = vmatpush1.msra.mxu0 %v1998
      %2026 = vmatprep.subr.mxu0 0.0
      %2027 = vmatpush1.msra.mxu0 %v1999
      %2028 = vmatprep.subr.mxu0 0.0
      %2029 = vmatpush1.msra.mxu0 %v2000
      %2030 = vmatprep.subr.mxu0 0.0
      %2031 = vmatpush1.msra.mxu0 %v2001
      %2032 = vmatprep.subr.mxu0 0.0
      %2033 = vmatpush1.msra.mxu0 %v2002
      %2034 = vmatprep.subr.mxu0 0.0
      %2035 = vmatpush1.msra.mxu0 %v2003
      %2036 = vmatprep.subr.mxu0 0.0
      %2037 = vmatpush1.msra.mxu0 0.0
      %2038 = vmatprep.subr.mxu0 0.0
      %2039 = vmatpush1.msra.mxu0 0.0
      %2040 = vmatprep.subr.mxu0 0.0
      %2041 = vmatpush1.msra.mxu0 0.0
      %2042 = vmatprep.subr.mxu0 0.0
      %2043 = vmatpush1.msra.mxu0 0.0
      %2044 = vmatprep.subr.mxu0 0.0
      %2045 = vmatpush1.msra.mxu0 0.0
      %2046 = vmatprep.subr.mxu0 0.0
      %2047 = vmatpush1.msra.mxu0 0.0
      %2048 = vmatprep.subr.mxu0 0.0
      %2049 = vmatpush1.msra.mxu0 0.0
      %2050 = vmatprep.subr.mxu0 0.0
      %2051 = vmatpush1.msra.mxu0 0.0
      %2052 = vmatprep.subr.mxu0 0.0
      %2053 = vmatpush1.msra.mxu0 0.0
      %2054 = vmatprep.subr.mxu0 0.0
      %2055 = vmatpush1.msra.mxu0 0.0
      %2056 = vmatprep.subr.mxu0 0.0
      %2057 = vmatpush1.msra.mxu0 0.0
      %2058 = vmatprep.subr.mxu0 0.0
      %2059 = vmatpush1.msra.mxu0 0.0
      %2060 = vmatprep.subr.mxu0 0.0
      %2061 = vmatpush1.msra.mxu0 0.0
      %2062 = vmatprep.subr.mxu0 0.0
      %2063 = vmatpush1.msra.mxu0 0.0
      %2064 = vmatprep.subr.mxu0 0.0
      %2065 = vmatpush1.msra.mxu0 0.0
      %2066 = vmatprep.subr.mxu0 0.0
      %2067 = vmatpush1.msra.mxu0 0.0
      %2068 = vmatprep.mubr.f32.mxu0 0.0
      %2069 = vmatmul.mubr.f32.gmra.mrb[0].mxu0 %v1955
      %v2070 = vpop.f32.mrb[0].mxu0
      %v2071 = vadd.f32 0.0, %v2070
      %v2072 = vpop.f32.mrb[0].mxu0
      %2073 = vmatprep.mubr.f32.mxu0 0.0
      %2074 = vmatmul.mubr.f32.gmra.mrb[0].mxu0 %v1956
      %v2075 = vpop.f32.mrb[0].mxu0
      %v2076 = vadd.f32 0.0, %v2075
      %v2077 = vpop.f32.mrb[0].mxu0
      %2078 = vmatprep.mubr.f32.mxu0 0.0
      %2079 = vmatmul.mubr.f32.gmra.mrb[0].mxu0 %v1957
      %v2080 = vpop.f32.mrb[0].mxu0
      %v2081 = vadd.f32 0.0, %v2080
      %v2082 = vpop.f32.mrb[0].mxu0
      %2083 = vmatprep.mubr.f32.mxu0 0.0
      %2084 = vmatmul.mubr.f32.gmra.mrb[0].mxu0 %v1958
      %v2085 = vpop.f32.mrb[0].mxu0
      %v2086 = vadd.f32 0.0, %v2085
      %v2087 = vpop.f32.mrb[0].mxu0
      %2088 = vmatprep.mubr.f32.mxu0 0.0
      %2089 = vmatmul.mubr.f32.gmra.mrb[0].mxu0 %v1959
      %v2090 = vpop.f32.mrb[0].mxu0
      %v2091 = vadd.f32 0.0, %v2090
      %v2092 = vpop.f32.mrb[0].mxu0
      %2093 = vmatprep.mubr.f32.mxu0 0.0
      %2094 = vmatmul.mubr.f32.gmra.mrb[0].mxu0 %v1960
      %v2095 = vpop.f32.mrb[0].mxu0
      %v2096 = vadd.f32 0.0, %v2095
      %v2097 = vpop.f32.mrb[0].mxu0
      %2098 = vmatprep.mubr.f32.mxu0 0.0
      %2099 = vmatmul.mubr.f32.gmra.mrb[0].mxu0 %v1961
      %v2100 = vpop.f32.mrb[0].mxu0
      %v2101 = vadd.f32 0.0, %v2100
      %v2102 = vpop.f32.mrb[0].mxu0
      %2103 = vmatprep.mubr.f32.mxu0 0.0
      %2104 = vmatmul.mubr.f32.gmra.mrb[0].mxu0 %v1962
      %v2105 = vpop.f32.mrb[0].mxu0
      %v2106 = vadd.f32 0.0, %v2105
      %v2107 = vpop.f32.mrb[0].mxu0
      %2108 = vmatprep.mubr.f32.mxu0 0.0
      %2109 = vmatmul.mubr.f32.gmra.mrb[0].mxu0 %v1963
      %v2110 = vpop.f32.mrb[0].mxu0
      %v2111 = vadd.f32 0.0, %v2110
      %v2112 = vpop.f32.mrb[0].mxu0
      %2113 = vmatprep.mubr.f32.mxu0 0.0
      %2114 = vmatmul.mubr.f32.gmra.mrb[0].mxu0 %v1964
      %v2115 = vpop.f32.mrb[0].mxu0
      %v2116 = vadd.f32 0.0, %v2115
      %v2117 = vpop.f32.mrb[0].mxu0
      %2118 = vmatprep.mubr.f32.mxu0 0.0
      %2119 = vmatmul.mubr.f32.gmra.mrb[0].mxu0 %v1965
      %v2120 = vpop.f32.mrb[0].mxu0
      %v2121 = vadd.f32 0.0, %v2120
      %v2122 = vpop.f32.mrb[0].mxu0
      %2123 = vmatprep.mubr.f32.mxu0 0.0
      %2124 = vmatmul.mubr.f32.gmra.mrb[0].mxu0 %v1966
      %v2125 = vpop.f32.mrb[0].mxu0
      %v2126 = vadd.f32 0.0, %v2125
      %v2127 = vpop.f32.mrb[0].mxu0
      %2128 = vmatprep.mubr.f32.mxu0 0.0
      %2129 = vmatmul.mubr.f32.gmra.mrb[0].mxu0 %v1967
      %v2130 = vpop.f32.mrb[0].mxu0
      %v2131 = vadd.f32 0.0, %v2130
      %v2132 = vpop.f32.mrb[0].mxu0
      %2133 = vmatprep.mubr.f32.mxu0 0.0
      %2134 = vmatmul.mubr.f32.gmra.mrb[0].mxu0 %v1968
      %v2135 = vpop.f32.mrb[0].mxu0
      %v2136 = vadd.f32 0.0, %v2135
      %v2137 = vpop.f32.mrb[0].mxu0
      %2138 = vmatprep.mubr.f32.mxu0 0.0
      %2139 = vmatmul.mubr.f32.gmra.mrb[0].mxu0 %v1969
      %v2140 = vpop.f32.mrb[0].mxu0
      %v2141 = vadd.f32 0.0, %v2140
      %v2142 = vpop.f32.mrb[0].mxu0
      %2143 = vmatprep.mubr.f32.mxu0 0.0
      %2144 = vmatmul.mubr.f32.gmra.mrb[0].mxu0 %v1970
      %v2145 = vpop.f32.mrb[0].mxu0
      %v2146 = vadd.f32 0.0, %v2145
      %v2147 = vpop.f32.mrb[0].mxu0
      %2148 = vmatprep.mubr.f32.mxu0 0.0
      %2149 = vmatmul.mubr.f32.gmra.mrb[0].mxu0 %v1971
      %v2150 = vpop.f32.mrb[0].mxu0
      %v2151 = vadd.f32 0.0, %v2150
      %v2152 = vpop.f32.mrb[0].mxu0
      %2153 = vmatprep.mubr.f32.mxu0 0.0
      %2154 = vmatmul.mubr.f32.gmra.mrb[0].mxu0 %v1972
      %v2155 = vpop.f32.mrb[0].mxu0
      %v2156 = vadd.f32 0.0, %v2155
      %v2157 = vpop.f32.mrb[0].mxu0
      %2158 = vmatprep.mubr.f32.mxu0 0.0
      %2159 = vmatmul.mubr.f32.gmra.mrb[0].mxu0 %v1973
      %v2160 = vpop.f32.mrb[0].mxu0
      %v2161 = vadd.f32 0.0, %v2160
      %v2162 = vpop.f32.mrb[0].mxu0
      %2163 = vmatprep.mubr.f32.mxu0 0.0
      %2164 = vmatmul.mubr.f32.gmra.mrb[0].mxu0 %v1974
      %v2165 = vpop.f32.mrb[0].mxu0
      %v2166 = vadd.f32 0.0, %v2165
      %v2167 = vpop.f32.mrb[0].mxu0
      %2168 = vmatprep.mubr.f32.mxu0 0.0
      %2169 = vmatmul.mubr.f32.gmra.mrb[0].mxu0 %v1975
      %v2170 = vpop.f32.mrb[0].mxu0
      %v2171 = vadd.f32 0.0, %v2170
      %v2172 = vpop.f32.mrb[0].mxu0
      %2173 = vmatprep.mubr.f32.mxu0 0.0
      %2174 = vmatmul.mubr.f32.gmra.mrb[0].mxu0 %v1976
      %v2175 = vpop.f32.mrb[0].mxu0
      %v2176 = vadd.f32 0.0, %v2175
      %v2177 = vpop.f32.mrb[0].mxu0
      %2178 = vmatprep.mubr.f32.mxu0 0.0
      %2179 = vmatmul.mubr.f32.gmra.mrb[0].mxu0 %v1977
      %v2180 = vpop.f32.mrb[0].mxu0
      %v2181 = vadd.f32 0.0, %v2180
      %v2182 = vpop.f32.mrb[0].mxu0
      %2183 = vmatprep.mubr.f32.mxu0 0.0
      %2184 = vmatmul.mubr.f32.gmra.mrb[0].mxu0 %v1978
      %v2185 = vpop.f32.mrb[0].mxu0
      %v2186 = vadd.f32 0.0, %v2185
      %v2187 = vpop.f32.mrb[0].mxu0
      %2188 = vmatprep.mubr.f32.mxu0 0.0
      %2189 = vmatmul.mubr.f32.gmra.mrb[0].mxu0 %v1979
      %v2190 = vpop.f32.mrb[0].mxu0
      %v2191 = vadd.f32 0.0, %v2190
      %v2192 = vpop.f32.mrb[0].mxu0
      %2193 = vmatprep.mubr.f32.mxu0 0.0
      %2194 = vmatmul.mubr.f32.gmra.mrb[0].mxu0 %v1980
      %v2195 = vpop.f32.mrb[0].mxu0
      %v2196 = vadd.f32 0.0, %v2195
      %v2197 = vpop.f32.mrb[0].mxu0
      %2198 = vmatprep.mubr.f32.mxu0 0.0
      %2199 = vmatmul.mubr.f32.gmra.mrb[0].mxu0 %v1981
      %v2200 = vpop.f32.mrb[0].mxu0
      %v2201 = vadd.f32 0.0, %v2200
      %v2202 = vpop.f32.mrb[0].mxu0
      %2203 = vmatprep.mubr.f32.mxu0 0.0
      %2204 = vmatmul.mubr.f32.gmra.mrb[0].mxu0 %v1982
      %v2205 = vpop.f32.mrb[0].mxu0
      %v2206 = vadd.f32 0.0, %v2205
      %v2207 = vpop.f32.mrb[0].mxu0
      %2208 = vmatprep.mubr.f32.mxu0 0.0
      %2209 = vmatmul.mubr.f32.gmra.mrb[0].mxu0 %v1983
      %v2210 = vpop.f32.mrb[0].mxu0
      %v2211 = vadd.f32 0.0, %v2210
      %v2212 = vpop.f32.mrb[0].mxu0
      %2213 = vmatprep.mubr.f32.mxu0 0.0
      %2214 = vmatmul.mubr.f32.gmra.mrb[0].mxu0 %v1984
      %v2215 = vpop.f32.mrb[0].mxu0
      %v2216 = vadd.f32 0.0, %v2215
      %v2217 = vpop.f32.mrb[0].mxu0
      %2218 = vmatprep.mubr.f32.mxu0 0.0
      %2219 = vmatmul.mubr.f32.gmra.mrb[0].mxu0 %v1985
      %v2220 = vpop.f32.mrb[0].mxu0
      %v2221 = vadd.f32 0.0, %v2220
      %v2222 = vpop.f32.mrb[0].mxu0
      %2223 = vmatprep.mubr.f32.mxu0 0.0
      %2224 = vmatmul.mubr.f32.gmra.mrb[0].mxu0 %v1986
      %v2225 = vpop.f32.mrb[0].mxu0
      %v2226 = vadd.f32 0.0, %v2225
      %v2227 = vpop.f32.mrb[0].mxu0
      %2228 = vdwg.mxu0
      %v2229 = vadd.f32 %v1922, %v2071
      %v2230 = vadd.f32 %v1923, %v2076
      %v2231 = vadd.f32 %v1924, %v2081
      %v2232 = vadd.f32 %v1925, %v2086
      %v2233 = vadd.f32 %v1926, %v2091
      %v2234 = vadd.f32 %v1927, %v2096
      %v2235 = vadd.f32 %v1928, %v2101
      %v2236 = vadd.f32 %v1929, %v2106
      %v2237 = vadd.f32 %v1930, %v2111
      %v2238 = vadd.f32 %v1931, %v2116
      %v2239 = vadd.f32 %v1932, %v2121
      %v2240 = vadd.f32 %v1933, %v2126
      %v2241 = vadd.f32 %v1934, %v2131
      %v2242 = vadd.f32 %v1935, %v2136
      %v2243 = vadd.f32 %v1936, %v2141
      %v2244 = vadd.f32 %v1937, %v2146
      %v2245 = vadd.f32 %v1938, %v2151
      %v2246 = vadd.f32 %v1939, %v2156
      %v2247 = vadd.f32 %v1940, %v2161
      %v2248 = vadd.f32 %v1941, %v2166
      %v2249 = vadd.f32 %v1942, %v2171
      %v2250 = vadd.f32 %v1943, %v2176
      %v2251 = vadd.f32 %v1944, %v2181
      %v2252 = vadd.f32 %v1945, %v2186
      %v2253 = vadd.f32 %v1946, %v2191
      %v2254 = vadd.f32 %v1947, %v2196
      %v2255 = vadd.f32 %v1948, %v2201
      %v2256 = vadd.f32 %v1949, %v2206
      %v2257 = vadd.f32 %v1950, %v2211
      %v2258 = vadd.f32 %v1951, %v2216
      %v2259 = vadd.f32 %v1952, %v2221
      %v2260 = vadd.f32 %v1953, %v2226
      %v2261 = vld [vmem:[%s1954 + $0x1] sm:$0xff]
      %v2262 = vld [vmem:[%s1954 + $0x9] sm:$0xff]
      %v2263 = vld [vmem:[%s1954 + $0x19] sm:$0xff]
      %v2264 = vld [vmem:[%s1954 + $0x21] sm:$0xff]
      %v2265 = vld [vmem:[%s1954 + $0x31] sm:$0xff]
      %v2266 = vld [vmem:[%s1954 + $0x39] sm:$0xff]
      %v2267 = vld [vmem:[%s1954 + $0x49] sm:$0xff]
      %v2268 = vld [vmem:[%s1954 + $0x51] sm:$0xff]
      %v2269 = vld [vmem:[%s1954 + $0x61] sm:$0xff]
      %v2270 = vld [vmem:[%s1954 + $0x69] sm:$0xff]
      %v2271 = vld [vmem:[%s1954 + $0x79] sm:$0xff]
      %v2272 = vld [vmem:[%s1954 + $0x81] sm:$0xff]
      %v2273 = vld [vmem:[%s1954 + $0x91] sm:$0xff]
      %v2274 = vld [vmem:[%s1954 + $0x99] sm:$0xff]
      %v2275 = vld [vmem:[%s1954 + $0xa9] sm:$0xff]
      %v2276 = vld [vmem:[%s1954 + $0xb1] sm:$0xff]
      %v2277 = vld [vmem:[%s1954 + $0xc1] sm:$0xff]
      %v2278 = vld [vmem:[%s1954 + $0xc9] sm:$0xff]
      %v2279 = vld [vmem:[%s1954 + $0xd9] sm:$0xff]
      %v2280 = vld [vmem:[%s1954 + $0xe1] sm:$0xff]
      %v2281 = vld [vmem:[%s1954 + $0xf1] sm:$0xff]
      %v2282 = vld [vmem:[%s1954 + $0xf9] sm:$0xff]
      %v2283 = vld [vmem:[%s1954 + $0x109] sm:$0xff]
      %v2284 = vld [vmem:[%s1954 + $0x111] sm:$0xff]
      %v2285 = vld [vmem:[%s1954 + $0x121] sm:$0xff]
      %v2286 = vld [vmem:[%s1954 + $0x129] sm:$0xff]
      %v2287 = vld [vmem:[%s1954 + $0x139] sm:$0xff]
      %v2288 = vld [vmem:[%s1954 + $0x141] sm:$0xff]
      %v2289 = vld [vmem:[%s1954 + $0x151] sm:$0xff]
      %v2290 = vld [vmem:[%s1954 + $0x159] sm:$0xff]
      %v2291 = vld [vmem:[%s1954 + $0x169] sm:$0xff]
      %v2292 = vld [vmem:[%s1954 + $0x171] sm:$0xff]
      %s2293 = scalar_lea.vmem %s1, 896
      %v2294 = vld [vmem:[%s2293] sm:$0xff]
      %v2295 = vld [vmem:[%s2293 + $0x8] sm:$0xff]
      %v2296 = vld [vmem:[%s2293 + $0x10] sm:$0xff]
      %v2297 = vld [vmem:[%s2293 + $0x18] sm:$0xff]
      %v2298 = vld [vmem:[%s2293 + $0x20] sm:$0xff]
      %v2299 = vld [vmem:[%s2293 + $0x28] sm:$0xff]
      %v2300 = vld [vmem:[%s2293 + $0x30] sm:$0xff]
      %v2301 = vld [vmem:[%s2293 + $0x38] sm:$0xff]
      %v2302 = vld [vmem:[%s2293 + $0x40] sm:$0xff]
      %v2303 = vld [vmem:[%s2293 + $0x48] sm:$0xff]
      %v2304 = vld [vmem:[%s2293 + $0x50] sm:$0xff]
      %v2305 = vld [vmem:[%s2293 + $0x58] sm:$0xff]
      %v2306 = vld [vmem:[%s2293 + $0x60] sm:$0xff]
      %v2307 = vld [vmem:[%s2293 + $0x68] sm:$0xff]
      %v2308 = vld [vmem:[%s2293 + $0x70] sm:$0xff]
      %v2309 = vld [vmem:[%s2293 + $0x78] sm:$0xff]
      %2310 = vmatprep.subr.mxu0 0.0
      %2311 = vmatpush1.msra.mxu0 %v2294
      %2312 = vmatprep.subr.mxu0 0.0
      %2313 = vmatpush1.msra.mxu0 %v2295
      %2314 = vmatprep.subr.mxu0 0.0
      %2315 = vmatpush1.msra.mxu0 %v2296
      %2316 = vmatprep.subr.mxu0 0.0
      %2317 = vmatpush1.msra.mxu0 %v2297
      %2318 = vmatprep.subr.mxu0 0.0
      %2319 = vmatpush1.msra.mxu0 %v2298
      %2320 = vmatprep.subr.mxu0 0.0
      %2321 = vmatpush1.msra.mxu0 %v2299
      %2322 = vmatprep.subr.mxu0 0.0
      %2323 = vmatpush1.msra.mxu0 %v2300
      %2324 = vmatprep.subr.mxu0 0.0
      %2325 = vmatpush1.msra.mxu0 %v2301
      %2326 = vmatprep.subr.mxu0 0.0
      %2327 = vmatpush1.msra.mxu0 %v2302
      %2328 = vmatprep.subr.mxu0 0.0
      %2329 = vmatpush1.msra.mxu0 %v2303
      %2330 = vmatprep.subr.mxu0 0.0
      %2331 = vmatpush1.msra.mxu0 %v2304
      %2332 = vmatprep.subr.mxu0 0.0
      %2333 = vmatpush1.msra.mxu0 %v2305
      %2334 = vmatprep.subr.mxu0 0.0
      %2335 = vmatpush1.msra.mxu0 %v2306
      %2336 = vmatprep.subr.mxu0 0.0
      %2337 = vmatpush1.msra.mxu0 %v2307
      %2338 = vmatprep.subr.mxu0 0.0
      %2339 = vmatpush1.msra.mxu0 %v2308
      %2340 = vmatprep.subr.mxu0 0.0
      %2341 = vmatpush1.msra.mxu0 %v2309
      %2342 = vmatprep.subr.mxu0 0.0
      %2343 = vmatpush1.msra.mxu0 0.0
      %2344 = vmatprep.subr.mxu0 0.0
      %2345 = vmatpush1.msra.mxu0 0.0
      %2346 = vmatprep.subr.mxu0 0.0
      %2347 = vmatpush1.msra.mxu0 0.0
      %2348 = vmatprep.subr.mxu0 0.0
      %2349 = vmatpush1.msra.mxu0 0.0
      %2350 = vmatprep.subr.mxu0 0.0
      %2351 = vmatpush1.msra.mxu0 0.0
      %2352 = vmatprep.subr.mxu0 0.0
      %2353 = vmatpush1.msra.mxu0 0.0
      %2354 = vmatprep.subr.mxu0 0.0
      %2355 = vmatpush1.msra.mxu0 0.0
      %2356 = vmatprep.subr.mxu0 0.0
      %2357 = vmatpush1.msra.mxu0 0.0
      %2358 = vmatprep.subr.mxu0 0.0
      %2359 = vmatpush1.msra.mxu0 0.0
      %2360 = vmatprep.subr.mxu0 0.0
      %2361 = vmatpush1.msra.mxu0 0.0
      %2362 = vmatprep.subr.mxu0 0.0
      %2363 = vmatpush1.msra.mxu0 0.0
      %2364 = vmatprep.subr.mxu0 0.0
      %2365 = vmatpush1.msra.mxu0 0.0
      %2366 = vmatprep.subr.mxu0 0.0
      %2367 = vmatpush1.msra.mxu0 0.0
      %2368 = vmatprep.subr.mxu0 0.0
      %2369 = vmatpush1.msra.mxu0 0.0
      %2370 = vmatprep.subr.mxu0 0.0
      %2371 = vmatpush1.msra.mxu0 0.0
      %2372 = vmatprep.subr.mxu0 0.0
      %2373 = vmatpush1.msra.mxu0 0.0
      %2374 = vmatprep.mubr.f32.mxu0 0.0
      %2375 = vmatmul.mubr.f32.gmra.mrb[0].mxu0 %v2261
      %v2376 = vpop.f32.mrb[0].mxu0
      %v2377 = vadd.f32 0.0, %v2376
      %v2378 = vpop.f32.mrb[0].mxu0
      %2379 = vmatprep.mubr.f32.mxu0 0.0
      %2380 = vmatmul.mubr.f32.gmra.mrb[0].mxu0 %v2262
      %v2381 = vpop.f32.mrb[0].mxu0
      %v2382 = vadd.f32 0.0, %v2381
      %v2383 = vpop.f32.mrb[0].mxu0
      %2384 = vmatprep.mubr.f32.mxu0 0.0
      %2385 = vmatmul.mubr.f32.gmra.mrb[0].mxu0 %v2263
      %v2386 = vpop.f32.mrb[0].mxu0
      %v2387 = vadd.f32 0.0, %v2386
      %v2388 = vpop.f32.mrb[0].mxu0
      %2389 = vmatprep.mubr.f32.mxu0 0.0
      %2390 = vmatmul.mubr.f32.gmra.mrb[0].mxu0 %v2264
      %v2391 = vpop.f32.mrb[0].mxu0
      %v2392 = vadd.f32 0.0, %v2391
      %v2393 = vpop.f32.mrb[0].mxu0
      %2394 = vmatprep.mubr.f32.mxu0 0.0
      %2395 = vmatmul.mubr.f32.gmra.mrb[0].mxu0 %v2265
      %v2396 = vpop.f32.mrb[0].mxu0
      %v2397 = vadd.f32 0.0, %v2396
      %v2398 = vpop.f32.mrb[0].mxu0
      %2399 = vmatprep.mubr.f32.mxu0 0.0
      %2400 = vmatmul.mubr.f32.gmra.mrb[0].mxu0 %v2266
      %v2401 = vpop.f32.mrb[0].mxu0
      %v2402 = vadd.f32 0.0, %v2401
      %v2403 = vpop.f32.mrb[0].mxu0
      %2404 = vmatprep.mubr.f32.mxu0 0.0
      %2405 = vmatmul.mubr.f32.gmra.mrb[0].mxu0 %v2267
      %v2406 = vpop.f32.mrb[0].mxu0
      %v2407 = vadd.f32 0.0, %v2406
      %v2408 = vpop.f32.mrb[0].mxu0
      %2409 = vmatprep.mubr.f32.mxu0 0.0
      %2410 = vmatmul.mubr.f32.gmra.mrb[0].mxu0 %v2268
      %v2411 = vpop.f32.mrb[0].mxu0
      %v2412 = vadd.f32 0.0, %v2411
      %v2413 = vpop.f32.mrb[0].mxu0
      %2414 = vmatprep.mubr.f32.mxu0 0.0
      %2415 = vmatmul.mubr.f32.gmra.mrb[0].mxu0 %v2269
      %v2416 = vpop.f32.mrb[0].mxu0
      %v2417 = vadd.f32 0.0, %v2416
      %v2418 = vpop.f32.mrb[0].mxu0
      %2419 = vmatprep.mubr.f32.mxu0 0.0
      %2420 = vmatmul.mubr.f32.gmra.mrb[0].mxu0 %v2270
      %v2421 = vpop.f32.mrb[0].mxu0
      %v2422 = vadd.f32 0.0, %v2421
      %v2423 = vpop.f32.mrb[0].mxu0
      %2424 = vmatprep.mubr.f32.mxu0 0.0
      %2425 = vmatmul.mubr.f32.gmra.mrb[0].mxu0 %v2271
      %v2426 = vpop.f32.mrb[0].mxu0
      %v2427 = vadd.f32 0.0, %v2426
      %v2428 = vpop.f32.mrb[0].mxu0
      %2429 = vmatprep.mubr.f32.mxu0 0.0
      %2430 = vmatmul.mubr.f32.gmra.mrb[0].mxu0 %v2272
      %v2431 = vpop.f32.mrb[0].mxu0
      %v2432 = vadd.f32 0.0, %v2431
      %v2433 = vpop.f32.mrb[0].mxu0
      %2434 = vmatprep.mubr.f32.mxu0 0.0
      %2435 = vmatmul.mubr.f32.gmra.mrb[0].mxu0 %v2273
      %v2436 = vpop.f32.mrb[0].mxu0
      %v2437 = vadd.f32 0.0, %v2436
      %v2438 = vpop.f32.mrb[0].mxu0
      %2439 = vmatprep.mubr.f32.mxu0 0.0
      %2440 = vmatmul.mubr.f32.gmra.mrb[0].mxu0 %v2274
      %v2441 = vpop.f32.mrb[0].mxu0
      %v2442 = vadd.f32 0.0, %v2441
      %v2443 = vpop.f32.mrb[0].mxu0
      %2444 = vmatprep.mubr.f32.mxu0 0.0
      %2445 = vmatmul.mubr.f32.gmra.mrb[0].mxu0 %v2275
      %v2446 = vpop.f32.mrb[0].mxu0
      %v2447 = vadd.f32 0.0, %v2446
      %v2448 = vpop.f32.mrb[0].mxu0
      %2449 = vmatprep.mubr.f32.mxu0 0.0
      %2450 = vmatmul.mubr.f32.gmra.mrb[0].mxu0 %v2276
      %v2451 = vpop.f32.mrb[0].mxu0
      %v2452 = vadd.f32 0.0, %v2451
      %v2453 = vpop.f32.mrb[0].mxu0
      %2454 = vmatprep.mubr.f32.mxu0 0.0
      %2455 = vmatmul.mubr.f32.gmra.mrb[0].mxu0 %v2277
      %v2456 = vpop.f32.mrb[0].mxu0
      %v2457 = vadd.f32 0.0, %v2456
      %v2458 = vpop.f32.mrb[0].mxu0
      %2459 = vmatprep.mubr.f32.mxu0 0.0
      %2460 = vmatmul.mubr.f32.gmra.mrb[0].mxu0 %v2278
      %v2461 = vpop.f32.mrb[0].mxu0
      %v2462 = vadd.f32 0.0, %v2461
      %v2463 = vpop.f32.mrb[0].mxu0
      %2464 = vmatprep.mubr.f32.mxu0 0.0
      %2465 = vmatmul.mubr.f32.gmra.mrb[0].mxu0 %v2279
      %v2466 = vpop.f32.mrb[0].mxu0
      %v2467 = vadd.f32 0.0, %v2466
      %v2468 = vpop.f32.mrb[0].mxu0
      %2469 = vmatprep.mubr.f32.mxu0 0.0
      %2470 = vmatmul.mubr.f32.gmra.mrb[0].mxu0 %v2280
      %v2471 = vpop.f32.mrb[0].mxu0
      %v2472 = vadd.f32 0.0, %v2471
      %v2473 = vpop.f32.mrb[0].mxu0
      %2474 = vmatprep.mubr.f32.mxu0 0.0
      %2475 = vmatmul.mubr.f32.gmra.mrb[0].mxu0 %v2281
      %v2476 = vpop.f32.mrb[0].mxu0
      %v2477 = vadd.f32 0.0, %v2476
      %v2478 = vpop.f32.mrb[0].mxu0
      %2479 = vmatprep.mubr.f32.mxu0 0.0
      %2480 = vmatmul.mubr.f32.gmra.mrb[0].mxu0 %v2282
      %v2481 = vpop.f32.mrb[0].mxu0
      %v2482 = vadd.f32 0.0, %v2481
      %v2483 = vpop.f32.mrb[0].mxu0
      %2484 = vmatprep.mubr.f32.mxu0 0.0
      %2485 = vmatmul.mubr.f32.gmra.mrb[0].mxu0 %v2283
      %v2486 = vpop.f32.mrb[0].mxu0
      %v2487 = vadd.f32 0.0, %v2486
      %v2488 = vpop.f32.mrb[0].mxu0
      %2489 = vmatprep.mubr.f32.mxu0 0.0
      %2490 = vmatmul.mubr.f32.gmra.mrb[0].mxu0 %v2284
      %v2491 = vpop.f32.mrb[0].mxu0
      %v2492 = vadd.f32 0.0, %v2491
      %v2493 = vpop.f32.mrb[0].mxu0
      %2494 = vmatprep.mubr.f32.mxu0 0.0
      %2495 = vmatmul.mubr.f32.gmra.mrb[0].mxu0 %v2285
      %v2496 = vpop.f32.mrb[0].mxu0
      %v2497 = vadd.f32 0.0, %v2496
      %v2498 = vpop.f32.mrb[0].mxu0
      %2499 = vmatprep.mubr.f32.mxu0 0.0
      %2500 = vmatmul.mubr.f32.gmra.mrb[0].mxu0 %v2286
      %v2501 = vpop.f32.mrb[0].mxu0
      %v2502 = vadd.f32 0.0, %v2501
      %v2503 = vpop.f32.mrb[0].mxu0
      %2504 = vmatprep.mubr.f32.mxu0 0.0
      %2505 = vmatmul.mubr.f32.gmra.mrb[0].mxu0 %v2287
      %v2506 = vpop.f32.mrb[0].mxu0
      %v2507 = vadd.f32 0.0, %v2506
      %v2508 = vpop.f32.mrb[0].mxu0
      %2509 = vmatprep.mubr.f32.mxu0 0.0
      %2510 = vmatmul.mubr.f32.gmra.mrb[0].mxu0 %v2288
      %v2511 = vpop.f32.mrb[0].mxu0
      %v2512 = vadd.f32 0.0, %v2511
      %v2513 = vpop.f32.mrb[0].mxu0
      %2514 = vmatprep.mubr.f32.mxu0 0.0
      %2515 = vmatmul.mubr.f32.gmra.mrb[0].mxu0 %v2289
      %v2516 = vpop.f32.mrb[0].mxu0
      %v2517 = vadd.f32 0.0, %v2516
      %v2518 = vpop.f32.mrb[0].mxu0
      %2519 = vmatprep.mubr.f32.mxu0 0.0
      %2520 = vmatmul.mubr.f32.gmra.mrb[0].mxu0 %v2290
      %v2521 = vpop.f32.mrb[0].mxu0
      %v2522 = vadd.f32 0.0, %v2521
      %v2523 = vpop.f32.mrb[0].mxu0
      %2524 = vmatprep.mubr.f32.mxu0 0.0
      %2525 = vmatmul.mubr.f32.gmra.mrb[0].mxu0 %v2291
      %v2526 = vpop.f32.mrb[0].mxu0
      %v2527 = vadd.f32 0.0, %v2526
      %v2528 = vpop.f32.mrb[0].mxu0
      %2529 = vmatprep.mubr.f32.mxu0 0.0
      %2530 = vmatmul.mubr.f32.gmra.mrb[0].mxu0 %v2292
      %v2531 = vpop.f32.mrb[0].mxu0
      %v2532 = vadd.f32 0.0, %v2531
      %v2533 = vpop.f32.mrb[0].mxu0
      %2534 = vdwg.mxu0
      %v2535 = vadd.f32 %v2229, %v2377
      %v2536 = vadd.f32 %v2230, %v2382
      %v2537 = vadd.f32 %v2231, %v2387
      %v2538 = vadd.f32 %v2232, %v2392
      %v2539 = vadd.f32 %v2233, %v2397
      %v2540 = vadd.f32 %v2234, %v2402
      %v2541 = vadd.f32 %v2235, %v2407
      %v2542 = vadd.f32 %v2236, %v2412
      %v2543 = vadd.f32 %v2237, %v2417
      %v2544 = vadd.f32 %v2238, %v2422
      %v2545 = vadd.f32 %v2239, %v2427
      %v2546 = vadd.f32 %v2240, %v2432
      %v2547 = vadd.f32 %v2241, %v2437
      %v2548 = vadd.f32 %v2242, %v2442
      %v2549 = vadd.f32 %v2243, %v2447
      %v2550 = vadd.f32 %v2244, %v2452
      %v2551 = vadd.f32 %v2245, %v2457
      %v2552 = vadd.f32 %v2246, %v2462
      %v2553 = vadd.f32 %v2247, %v2467
      %v2554 = vadd.f32 %v2248, %v2472
      %v2555 = vadd.f32 %v2249, %v2477
      %v2556 = vadd.f32 %v2250, %v2482
      %v2557 = vadd.f32 %v2251, %v2487
      %v2558 = vadd.f32 %v2252, %v2492
      %v2559 = vadd.f32 %v2253, %v2497
      %v2560 = vadd.f32 %v2254, %v2502
      %v2561 = vadd.f32 %v2255, %v2507
      %v2562 = vadd.f32 %v2256, %v2512
      %v2563 = vadd.f32 %v2257, %v2517
      %v2564 = vadd.f32 %v2258, %v2522
      %v2565 = vadd.f32 %v2259, %v2527
      %v2566 = vadd.f32 %v2260, %v2532
      %v2567 = vld [vmem:[%s1954 + $0x2] sm:$0xff]
      %v2568 = vld [vmem:[%s1954 + $0xa] sm:$0xff]
      %v2569 = vld [vmem:[%s1954 + $0x1a] sm:$0xff]
      %v2570 = vld [vmem:[%s1954 + $0x22] sm:$0xff]
      %v2571 = vld [vmem:[%s1954 + $0x32] sm:$0xff]
      %v2572 = vld [vmem:[%s1954 + $0x3a] sm:$0xff]
      %v2573 = vld [vmem:[%s1954 + $0x4a] sm:$0xff]
      %v2574 = vld [vmem:[%s1954 + $0x52] sm:$0xff]
      %v2575 = vld [vmem:[%s1954 + $0x62] sm:$0xff]
      %v2576 = vld [vmem:[%s1954 + $0x6a] sm:$0xff]
      %v2577 = vld [vmem:[%s1954 + $0x7a] sm:$0xff]
      %v2578 = vld [vmem:[%s1954 + $0x82] sm:$0xff]
      %v2579 = vld [vmem:[%s1954 + $0x92] sm:$0xff]
      %v2580 = vld [vmem:[%s1954 + $0x9a] sm:$0xff]
      %v2581 = vld [vmem:[%s1954 + $0xaa] sm:$0xff]
      %v2582 = vld [vmem:[%s1954 + $0xb2] sm:$0xff]
      %v2583 = vld [vmem:[%s1954 + $0xc2] sm:$0xff]
      %v2584 = vld [vmem:[%s1954 + $0xca] sm:$0xff]
      %v2585 = vld [vmem:[%s1954 + $0xda] sm:$0xff]
      %v2586 = vld [vmem:[%s1954 + $0xe2] sm:$0xff]
      %v2587 = vld [vmem:[%s1954 + $0xf2] sm:$0xff]
      %v2588 = vld [vmem:[%s1954 + $0xfa] sm:$0xff]
      %v2589 = vld [vmem:[%s1954 + $0x10a] sm:$0xff]
      %v2590 = vld [vmem:[%s1954 + $0x112] sm:$0xff]
      %v2591 = vld [vmem:[%s1954 + $0x122] sm:$0xff]
      %v2592 = vld [vmem:[%s1954 + $0x12a] sm:$0xff]
      %v2593 = vld [vmem:[%s1954 + $0x13a] sm:$0xff]
      %v2594 = vld [vmem:[%s1954 + $0x142] sm:$0xff]
      %v2595 = vld [vmem:[%s1954 + $0x152] sm:$0xff]
      %v2596 = vld [vmem:[%s1954 + $0x15a] sm:$0xff]
      %v2597 = vld [vmem:[%s1954 + $0x16a] sm:$0xff]
      %v2598 = vld [vmem:[%s1954 + $0x172] sm:$0xff]
      %s2599 = scalar_lea.vmem %s1, 1024
      %v2600 = vld [vmem:[%s2599] sm:$0xff]
      %v2601 = vld [vmem:[%s2599 + $0x8] sm:$0xff]
      %v2602 = vld [vmem:[%s2599 + $0x10] sm:$0xff]
      %v2603 = vld [vmem:[%s2599 + $0x18] sm:$0xff]
      %v2604 = vld [vmem:[%s2599 + $0x20] sm:$0xff]
      %v2605 = vld [vmem:[%s2599 + $0x28] sm:$0xff]
      %v2606 = vld [vmem:[%s2599 + $0x30] sm:$0xff]
      %v2607 = vld [vmem:[%s2599 + $0x38] sm:$0xff]
      %v2608 = vld [vmem:[%s2599 + $0x40] sm:$0xff]
      %v2609 = vld [vmem:[%s2599 + $0x48] sm:$0xff]
      %v2610 = vld [vmem:[%s2599 + $0x50] sm:$0xff]
      %v2611 = vld [vmem:[%s2599 + $0x58] sm:$0xff]
      %v2612 = vld [vmem:[%s2599 + $0x60] sm:$0xff]
      %v2613 = vld [vmem:[%s2599 + $0x68] sm:$0xff]
      %v2614 = vld [vmem:[%s2599 + $0x70] sm:$0xff]
      %v2615 = vld [vmem:[%s2599 + $0x78] sm:$0xff]
      %2616 = vmatprep.subr.mxu0 0.0
      %2617 = vmatpush1.msra.mxu0 %v2600
      %2618 = vmatprep.subr.mxu0 0.0
      %2619 = vmatpush1.msra.mxu0 %v2601
      %2620 = vmatprep.subr.mxu0 0.0
      %2621 = vmatpush1.msra.mxu0 %v2602
      %2622 = vmatprep.subr.mxu0 0.0
      %2623 = vmatpush1.msra.mxu0 %v2603
      %2624 = vmatprep.subr.mxu0 0.0
      %2625 = vmatpush1.msra.mxu0 %v2604
      %2626 = vmatprep.subr.mxu0 0.0
      %2627 = vmatpush1.msra.mxu0 %v2605
      %2628 = vmatprep.subr.mxu0 0.0
      %2629 = vmatpush1.msra.mxu0 %v2606
      %2630 = vmatprep.subr.mxu0 0.0
      %2631 = vmatpush1.msra.mxu0 %v2607
      %2632 = vmatprep.subr.mxu0 0.0
      %2633 = vmatpush1.msra.mxu0 %v2608
      %2634 = vmatprep.subr.mxu0 0.0
      %2635 = vmatpush1.msra.mxu0 %v2609
      %2636 = vmatprep.subr.mxu0 0.0
      %2637 = vmatpush1.msra.mxu0 %v2610
      %2638 = vmatprep.subr.mxu0 0.0
      %2639 = vmatpush1.msra.mxu0 %v2611
      %2640 = vmatprep.subr.mxu0 0.0
      %2641 = vmatpush1.msra.mxu0 %v2612
      %2642 = vmatprep.subr.mxu0 0.0
      %2643 = vmatpush1.msra.mxu0 %v2613
      %2644 = vmatprep.subr.mxu0 0.0
      %2645 = vmatpush1.msra.mxu0 %v2614
      %2646 = vmatprep.subr.mxu0 0.0
      %2647 = vmatpush1.msra.mxu0 %v2615
      %2648 = vmatprep.subr.mxu0 0.0
      %2649 = vmatpush1.msra.mxu0 0.0
      %2650 = vmatprep.subr.mxu0 0.0
      %2651 = vmatpush1.msra.mxu0 0.0
      %2652 = vmatprep.subr.mxu0 0.0
      %2653 = vmatpush1.msra.mxu0 0.0
      %2654 = vmatprep.subr.mxu0 0.0
      %2655 = vmatpush1.msra.mxu0 0.0
      %2656 = vmatprep.subr.mxu0 0.0
      %2657 = vmatpush1.msra.mxu0 0.0
      %2658 = vmatprep.subr.mxu0 0.0
      %2659 = vmatpush1.msra.mxu0 0.0
      %2660 = vmatprep.subr.mxu0 0.0
      %2661 = vmatpush1.msra.mxu0 0.0
      %2662 = vmatprep.subr.mxu0 0.0
      %2663 = vmatpush1.msra.mxu0 0.0
      %2664 = vmatprep.subr.mxu0 0.0
      %2665 = vmatpush1.msra.mxu0 0.0
      %2666 = vmatprep.subr.mxu0 0.0
      %2667 = vmatpush1.msra.mxu0 0.0
      %2668 = vmatprep.subr.mxu0 0.0
      %2669 = vmatpush1.msra.mxu0 0.0
      %2670 = vmatprep.subr.mxu0 0.0
      %2671 = vmatpush1.msra.mxu0 0.0
      %2672 = vmatprep.subr.mxu0 0.0
      %2673 = vmatpush1.msra.mxu0 0.0
      %2674 = vmatprep.subr.mxu0 0.0
      %2675 = vmatpush1.msra.mxu0 0.0
      %2676 = vmatprep.subr.mxu0 0.0
      %2677 = vmatpush1.msra.mxu0 0.0
      %2678 = vmatprep.subr.mxu0 0.0
      %2679 = vmatpush1.msra.mxu0 0.0
      %2680 = vmatprep.mubr.f32.mxu0 0.0
      %2681 = vmatmul.mubr.f32.gmra.mrb[0].mxu0 %v2567
      %v2682 = vpop.f32.mrb[0].mxu0
      %v2683 = vadd.f32 0.0, %v2682
      %v2684 = vpop.f32.mrb[0].mxu0
      %2685 = vmatprep.mubr.f32.mxu0 0.0
      %2686 = vmatmul.mubr.f32.gmra.mrb[0].mxu0 %v2568
      %v2687 = vpop.f32.mrb[0].mxu0
      %v2688 = vadd.f32 0.0, %v2687
      %v2689 = vpop.f32.mrb[0].mxu0
      %2690 = vmatprep.mubr.f32.mxu0 0.0
      %2691 = vmatmul.mubr.f32.gmra.mrb[0].mxu0 %v2569
      %v2692 = vpop.f32.mrb[0].mxu0
      %v2693 = vadd.f32 0.0, %v2692
      %v2694 = vpop.f32.mrb[0].mxu0
      %2695 = vmatprep.mubr.f32.mxu0 0.0
      %2696 = vmatmul.mubr.f32.gmra.mrb[0].mxu0 %v2570
      %v2697 = vpop.f32.mrb[0].mxu0
      %v2698 = vadd.f32 0.0, %v2697
      %v2699 = vpop.f32.mrb[0].mxu0
      %2700 = vmatprep.mubr.f32.mxu0 0.0
      %2701 = vmatmul.mubr.f32.gmra.mrb[0].mxu0 %v2571
      %v2702 = vpop.f32.mrb[0].mxu0
      %v2703 = vadd.f32 0.0, %v2702
      %v2704 = vpop.f32.mrb[0].mxu0
      %2705 = vmatprep.mubr.f32.mxu0 0.0
      %2706 = vmatmul.mubr.f32.gmra.mrb[0].mxu0 %v2572
      %v2707 = vpop.f32.mrb[0].mxu0
      %v2708 = vadd.f32 0.0, %v2707
      %v2709 = vpop.f32.mrb[0].mxu0
      %2710 = vmatprep.mubr.f32.mxu0 0.0
      %2711 = vmatmul.mubr.f32.gmra.mrb[0].mxu0 %v2573
      %v2712 = vpop.f32.mrb[0].mxu0
      %v2713 = vadd.f32 0.0, %v2712
      %v2714 = vpop.f32.mrb[0].mxu0
      %2715 = vmatprep.mubr.f32.mxu0 0.0
      %2716 = vmatmul.mubr.f32.gmra.mrb[0].mxu0 %v2574
      %v2717 = vpop.f32.mrb[0].mxu0
      %v2718 = vadd.f32 0.0, %v2717
      %v2719 = vpop.f32.mrb[0].mxu0
      %2720 = vmatprep.mubr.f32.mxu0 0.0
      %2721 = vmatmul.mubr.f32.gmra.mrb[0].mxu0 %v2575
      %v2722 = vpop.f32.mrb[0].mxu0
      %v2723 = vadd.f32 0.0, %v2722
      %v2724 = vpop.f32.mrb[0].mxu0
      %2725 = vmatprep.mubr.f32.mxu0 0.0
      %2726 = vmatmul.mubr.f32.gmra.mrb[0].mxu0 %v2576
      %v2727 = vpop.f32.mrb[0].mxu0
      %v2728 = vadd.f32 0.0, %v2727
      %v2729 = vpop.f32.mrb[0].mxu0
      %2730 = vmatprep.mubr.f32.mxu0 0.0
      %2731 = vmatmul.mubr.f32.gmra.mrb[0].mxu0 %v2577
      %v2732 = vpop.f32.mrb[0].mxu0
      %v2733 = vadd.f32 0.0, %v2732
      %v2734 = vpop.f32.mrb[0].mxu0
      %2735 = vmatprep.mubr.f32.mxu0 0.0
      %2736 = vmatmul.mubr.f32.gmra.mrb[0].mxu0 %v2578
      %v2737 = vpop.f32.mrb[0].mxu0
      %v2738 = vadd.f32 0.0, %v2737
      %v2739 = vpop.f32.mrb[0].mxu0
      %2740 = vmatprep.mubr.f32.mxu0 0.0
      %2741 = vmatmul.mubr.f32.gmra.mrb[0].mxu0 %v2579
      %v2742 = vpop.f32.mrb[0].mxu0
      %v2743 = vadd.f32 0.0, %v2742
      %v2744 = vpop.f32.mrb[0].mxu0
      %2745 = vmatprep.mubr.f32.mxu0 0.0
      %2746 = vmatmul.mubr.f32.gmra.mrb[0].mxu0 %v2580
      %v2747 = vpop.f32.mrb[0].mxu0
      %v2748 = vadd.f32 0.0, %v2747
      %v2749 = vpop.f32.mrb[0].mxu0
      %2750 = vmatprep.mubr.f32.mxu0 0.0
      %2751 = vmatmul.mubr.f32.gmra.mrb[0].mxu0 %v2581
      %v2752 = vpop.f32.mrb[0].mxu0
      %v2753 = vadd.f32 0.0, %v2752
      %v2754 = vpop.f32.mrb[0].mxu0
      %2755 = vmatprep.mubr.f32.mxu0 0.0
      %2756 = vmatmul.mubr.f32.gmra.mrb[0].mxu0 %v2582
      %v2757 = vpop.f32.mrb[0].mxu0
      %v2758 = vadd.f32 0.0, %v2757
      %v2759 = vpop.f32.mrb[0].mxu0
      %2760 = vmatprep.mubr.f32.mxu0 0.0
      %2761 = vmatmul.mubr.f32.gmra.mrb[0].mxu0 %v2583
      %v2762 = vpop.f32.mrb[0].mxu0
      %v2763 = vadd.f32 0.0, %v2762
      %v2764 = vpop.f32.mrb[0].mxu0
      %2765 = vmatprep.mubr.f32.mxu0 0.0
      %2766 = vmatmul.mubr.f32.gmra.mrb[0].mxu0 %v2584
      %v2767 = vpop.f32.mrb[0].mxu0
      %v2768 = vadd.f32 0.0, %v2767
      %v2769 = vpop.f32.mrb[0].mxu0
      %2770 = vmatprep.mubr.f32.mxu0 0.0
      %2771 = vmatmul.mubr.f32.gmra.mrb[0].mxu0 %v2585
      %v2772 = vpop.f32.mrb[0].mxu0
      %v2773 = vadd.f32 0.0, %v2772
      %v2774 = vpop.f32.mrb[0].mxu0
      %2775 = vmatprep.mubr.f32.mxu0 0.0
      %2776 = vmatmul.mubr.f32.gmra.mrb[0].mxu0 %v2586
      %v2777 = vpop.f32.mrb[0].mxu0
      %v2778 = vadd.f32 0.0, %v2777
      %v2779 = vpop.f32.mrb[0].mxu0
      %2780 = vmatprep.mubr.f32.mxu0 0.0
      %2781 = vmatmul.mubr.f32.gmra.mrb[0].mxu0 %v2587
      %v2782 = vpop.f32.mrb[0].mxu0
      %v2783 = vadd.f32 0.0, %v2782
      %v2784 = vpop.f32.mrb[0].mxu0
      %2785 = vmatprep.mubr.f32.mxu0 0.0
      %2786 = vmatmul.mubr.f32.gmra.mrb[0].mxu0 %v2588
      %v2787 = vpop.f32.mrb[0].mxu0
      %v2788 = vadd.f32 0.0, %v2787
      %v2789 = vpop.f32.mrb[0].mxu0
      %2790 = vmatprep.mubr.f32.mxu0 0.0
      %2791 = vmatmul.mubr.f32.gmra.mrb[0].mxu0 %v2589
      %v2792 = vpop.f32.mrb[0].mxu0
      %v2793 = vadd.f32 0.0, %v2792
      %v2794 = vpop.f32.mrb[0].mxu0
      %2795 = vmatprep.mubr.f32.mxu0 0.0
      %2796 = vmatmul.mubr.f32.gmra.mrb[0].mxu0 %v2590
      %v2797 = vpop.f32.mrb[0].mxu0
      %v2798 = vadd.f32 0.0, %v2797
      %v2799 = vpop.f32.mrb[0].mxu0
      %2800 = vmatprep.mubr.f32.mxu0 0.0
      %2801 = vmatmul.mubr.f32.gmra.mrb[0].mxu0 %v2591
      %v2802 = vpop.f32.mrb[0].mxu0
      %v2803 = vadd.f32 0.0, %v2802
      %v2804 = vpop.f32.mrb[0].mxu0
      %2805 = vmatprep.mubr.f32.mxu0 0.0
      %2806 = vmatmul.mubr.f32.gmra.mrb[0].mxu0 %v2592
      %v2807 = vpop.f32.mrb[0].mxu0
      %v2808 = vadd.f32 0.0, %v2807
      %v2809 = vpop.f32.mrb[0].mxu0
      %2810 = vmatprep.mubr.f32.mxu0 0.0
      %2811 = vmatmul.mubr.f32.gmra.mrb[0].mxu0 %v2593
      %v2812 = vpop.f32.mrb[0].mxu0
      %v2813 = vadd.f32 0.0, %v2812
      %v2814 = vpop.f32.mrb[0].mxu0
      %2815 = vmatprep.mubr.f32.mxu0 0.0
      %2816 = vmatmul.mubr.f32.gmra.mrb[0].mxu0 %v2594
      %v2817 = vpop.f32.mrb[0].mxu0
      %v2818 = vadd.f32 0.0, %v2817
      %v2819 = vpop.f32.mrb[0].mxu0
      %2820 = vmatprep.mubr.f32.mxu0 0.0
      %2821 = vmatmul.mubr.f32.gmra.mrb[0].mxu0 %v2595
      %v2822 = vpop.f32.mrb[0].mxu0
      %v2823 = vadd.f32 0.0, %v2822
      %v2824 = vpop.f32.mrb[0].mxu0
      %2825 = vmatprep.mubr.f32.mxu0 0.0
      %2826 = vmatmul.mubr.f32.gmra.mrb[0].mxu0 %v2596
      %v2827 = vpop.f32.mrb[0].mxu0
      %v2828 = vadd.f32 0.0, %v2827
      %v2829 = vpop.f32.mrb[0].mxu0
      %2830 = vmatprep.mubr.f32.mxu0 0.0
      %2831 = vmatmul.mubr.f32.gmra.mrb[0].mxu0 %v2597
      %v2832 = vpop.f32.mrb[0].mxu0
      %v2833 = vadd.f32 0.0, %v2832
      %v2834 = vpop.f32.mrb[0].mxu0
      %2835 = vmatprep.mubr.f32.mxu0 0.0
      %2836 = vmatmul.mubr.f32.gmra.mrb[0].mxu0 %v2598
      %v2837 = vpop.f32.mrb[0].mxu0
      %v2838 = vadd.f32 0.0, %v2837
      %v2839 = vpop.f32.mrb[0].mxu0
      %2840 = vdwg.mxu0
      %v2841 = vadd.f32 %v2535, %v2683
      %v2842 = vadd.f32 %v2536, %v2688
      %v2843 = vadd.f32 %v2537, %v2693
      %v2844 = vadd.f32 %v2538, %v2698
      %v2845 = vadd.f32 %v2539, %v2703
      %v2846 = vadd.f32 %v2540, %v2708
      %v2847 = vadd.f32 %v2541, %v2713
      %v2848 = vadd.f32 %v2542, %v2718
      %v2849 = vadd.f32 %v2543, %v2723
      %v2850 = vadd.f32 %v2544, %v2728
      %v2851 = vadd.f32 %v2545, %v2733
      %v2852 = vadd.f32 %v2546, %v2738
      %v2853 = vadd.f32 %v2547, %v2743
      %v2854 = vadd.f32 %v2548, %v2748
      %v2855 = vadd.f32 %v2549, %v2753
      %v2856 = vadd.f32 %v2550, %v2758
      %v2857 = vadd.f32 %v2551, %v2763
      %v2858 = vadd.f32 %v2552, %v2768
      %v2859 = vadd.f32 %v2553, %v2773
      %v2860 = vadd.f32 %v2554, %v2778
      %v2861 = vadd.f32 %v2555, %v2783
      %v2862 = vadd.f32 %v2556, %v2788
      %v2863 = vadd.f32 %v2557, %v2793
      %v2864 = vadd.f32 %v2558, %v2798
      %v2865 = vadd.f32 %v2559, %v2803
      %v2866 = vadd.f32 %v2560, %v2808
      %v2867 = vadd.f32 %v2561, %v2813
      %v2868 = vadd.f32 %v2562, %v2818
      %v2869 = vadd.f32 %v2563, %v2823
      %v2870 = vadd.f32 %v2564, %v2828
      %v2871 = vadd.f32 %v2565, %v2833
      %v2872 = vadd.f32 %v2566, %v2838
      %2873 = vst [vmem:[%s177] sm:$0xff] %v2841
      %2874 = vst [vmem:[%s177 + $0x8] sm:$0xff] %v2842
      %2875 = vst [vmem:[%s177 + $0x10] sm:$0xff] %v2843
      %2876 = vst [vmem:[%s177 + $0x18] sm:$0xff] %v2844
      %2877 = vst [vmem:[%s177 + $0x20] sm:$0xff] %v2845
      %2878 = vst [vmem:[%s177 + $0x28] sm:$0xff] %v2846
      %2879 = vst [vmem:[%s177 + $0x30] sm:$0xff] %v2847
      %2880 = vst [vmem:[%s177 + $0x38] sm:$0xff] %v2848
      %2881 = vst [vmem:[%s177 + $0x40] sm:$0xff] %v2849
      %2882 = vst [vmem:[%s177 + $0x48] sm:$0xff] %v2850
      %2883 = vst [vmem:[%s177 + $0x50] sm:$0xff] %v2851
      %2884 = vst [vmem:[%s177 + $0x58] sm:$0xff] %v2852
      %2885 = vst [vmem:[%s177 + $0x60] sm:$0xff] %v2853
      %2886 = vst [vmem:[%s177 + $0x68] sm:$0xff] %v2854
      %2887 = vst [vmem:[%s177 + $0x70] sm:$0xff] %v2855
      %2888 = vst [vmem:[%s177 + $0x78] sm:$0xff] %v2856
      %2889 = vst [vmem:[%s177 + $0x80] sm:$0xff] %v2857
      %2890 = vst [vmem:[%s177 + $0x88] sm:$0xff] %v2858
      %2891 = vst [vmem:[%s177 + $0x90] sm:$0xff] %v2859
      %2892 = vst [vmem:[%s177 + $0x98] sm:$0xff] %v2860
      %2893 = vst [vmem:[%s177 + $0xa0] sm:$0xff] %v2861
      %2894 = vst [vmem:[%s177 + $0xa8] sm:$0xff] %v2862
      %2895 = vst [vmem:[%s177 + $0xb0] sm:$0xff] %v2863
      %2896 = vst [vmem:[%s177 + $0xb8] sm:$0xff] %v2864
      %2897 = vst [vmem:[%s177 + $0xc0] sm:$0xff] %v2865
      %2898 = vst [vmem:[%s177 + $0xc8] sm:$0xff] %v2866
      %2899 = vst [vmem:[%s177 + $0xd0] sm:$0xff] %v2867
      %2900 = vst [vmem:[%s177 + $0xd8] sm:$0xff] %v2868
      %2901 = vst [vmem:[%s177 + $0xe0] sm:$0xff] %v2869
      %2902 = vst [vmem:[%s177 + $0xe8] sm:$0xff] %v2870
      %2903 = vst [vmem:[%s177 + $0xf0] sm:$0xff] %v2871
      %2904 = vst [vmem:[%s177 + $0xf8] sm:$0xff] %v2872
      %v2905 = vadd.f32 %v2841, %v2842
      %v2906 = vadd.f32 %v2905, %v2843
      %v2907 = vadd.f32 %v2906, %v2844
      %v2908 = vadd.f32 %v2907, %v2845
      %v2909 = vadd.f32 %v2908, %v2846
      %v2910 = vadd.f32 %v2909, %v2847
      %v2911 = vadd.f32 %v2910, %v2848
      %v2912 = vadd.f32 %v2911, %v2849
      %v2913 = vadd.f32 %v2912, %v2850
      %v2914 = vadd.f32 %v2913, %v2851
      %v2915 = vadd.f32 %v2914, %v2852
      %v2916 = vadd.f32 %v2915, %v2853
      %v2917 = vadd.f32 %v2916, %v2854
      %v2918 = vadd.f32 %v2917, %v2855
      %v2919 = vadd.f32 %v2918, %v2856
      %v2920 = vadd.f32 %v2919, %v2857
      %v2921 = vadd.f32 %v2920, %v2858
      %v2922 = vadd.f32 %v2921, %v2859
      %v2923 = vadd.f32 %v2922, %v2860
      %v2924 = vadd.f32 %v2923, %v2861
      %v2925 = vadd.f32 %v2924, %v2862
      %v2926 = vadd.f32 %v2925, %v2863
      %v2927 = vadd.f32 %v2926, %v2864
      %v2928 = vadd.f32 %v2927, %v2865
      %v2929 = vadd.f32 %v2928, %v2866
      %v2930 = vadd.f32 %v2929, %v2867
      %v2931 = vadd.f32 %v2930, %v2868
      %v2932 = vadd.f32 %v2931, %v2869
      %v2933 = vadd.f32 %v2932, %v2870
      %v2934 = vadd.f32 %v2933, %v2871
      %v2935 = vadd.f32 %v2934, %v2872
      %v2936 = vrot.slane %v2935, 4
      %v2937 = vadd.f32 %v2935, %v2936
      %v2938 = vrot.slane %v2937, 2
      %v2939 = vadd.f32 %v2937, %v2938
      %v2940 = vrot.slane %v2939, 1
      %v2941 = vadd.f32 %v2939, %v2940
      %v2942 = vmul.f32 %v2841, %v2841
      %v2943 = vmul.f32 %v2842, %v2842
      %v2944 = vmul.f32 %v2843, %v2843
      %v2945 = vmul.f32 %v2844, %v2844
      %v2946 = vmul.f32 %v2845, %v2845
      %v2947 = vmul.f32 %v2846, %v2846
      %v2948 = vmul.f32 %v2847, %v2847
      %v2949 = vmul.f32 %v2848, %v2848
      %v2950 = vmul.f32 %v2849, %v2849
      %v2951 = vmul.f32 %v2850, %v2850
      %v2952 = vmul.f32 %v2851, %v2851
      %v2953 = vmul.f32 %v2852, %v2852
      %v2954 = vmul.f32 %v2853, %v2853
      %v2955 = vmul.f32 %v2854, %v2854
      %v2956 = vmul.f32 %v2855, %v2855
      %v2957 = vmul.f32 %v2856, %v2856
      %v2958 = vmul.f32 %v2857, %v2857
      %v2959 = vmul.f32 %v2858, %v2858
      %v2960 = vmul.f32 %v2859, %v2859
      %v2961 = vmul.f32 %v2860, %v2860
      %v2962 = vmul.f32 %v2861, %v2861
      %v2963 = vmul.f32 %v2862, %v2862
      %v2964 = vmul.f32 %v2863, %v2863
      %v2965 = vmul.f32 %v2864, %v2864
      %v2966 = vmul.f32 %v2865, %v2865
      %v2967 = vmul.f32 %v2866, %v2866
      %v2968 = vmul.f32 %v2867, %v2867
      %v2969 = vmul.f32 %v2868, %v2868
      %v2970 = vmul.f32 %v2869, %v2869
      %v2971 = vmul.f32 %v2870, %v2870
      %v2972 = vmul.f32 %v2871, %v2871
      %v2973 = vmul.f32 %v2872, %v2872
      %v2974 = vadd.f32 %v2942, %v2943
      %v2975 = vadd.f32 %v2974, %v2944
      %v2976 = vadd.f32 %v2975, %v2945
      %v2977 = vadd.f32 %v2976, %v2946
      %v2978 = vadd.f32 %v2977, %v2947
      %v2979 = vadd.f32 %v2978, %v2948
      %v2980 = vadd.f32 %v2979, %v2949
      %v2981 = vadd.f32 %v2980, %v2950
      %v2982 = vadd.f32 %v2981, %v2951
      %v2983 = vadd.f32 %v2982, %v2952
      %v2984 = vadd.f32 %v2983, %v2953
      %v2985 = vadd.f32 %v2984, %v2954
      %v2986 = vadd.f32 %v2985, %v2955
      %v2987 = vadd.f32 %v2986, %v2956
      %v2988 = vadd.f32 %v2987, %v2957
      %v2989 = vadd.f32 %v2988, %v2958
      %v2990 = vadd.f32 %v2989, %v2959
      %v2991 = vadd.f32 %v2990, %v2960
      %v2992 = vadd.f32 %v2991, %v2961
      %v2993 = vadd.f32 %v2992, %v2962
      %v2994 = vadd.f32 %v2993, %v2963
      %v2995 = vadd.f32 %v2994, %v2964
      %v2996 = vadd.f32 %v2995, %v2965
      %v2997 = vadd.f32 %v2996, %v2966
      %v2998 = vadd.f32 %v2997, %v2967
      %v2999 = vadd.f32 %v2998, %v2968
      %v3000 = vadd.f32 %v2999, %v2969
      %v3001 = vadd.f32 %v3000, %v2970
      %v3002 = vadd.f32 %v3001, %v2971
      %v3003 = vadd.f32 %v3002, %v2972
      %v3004 = vadd.f32 %v3003, %v2973
      %v3005 = vrot.slane %v3004, 4
      %v3006 = vadd.f32 %v3004, %v3005
      %v3007 = vrot.slane %v3006, 2
      %v3008 = vadd.f32 %v3006, %v3007
      %v3009 = vrot.slane %v3008, 1
      %v3010 = vadd.f32 %v3008, %v3009
      %vm3011 = vcmask 1040384
      %v3012 = vsel %vm3011, %v2941, %v3010
      %3013 = vst [vmem:[%s181] sm:$0x3] %v3012
      %p3014 = scmp.lt.s32.totalorder %s15, 1
      %s3015 = scalar_select %p3014, %s15, 1
      %s3016 = smul.addr %s3015, 32
      %s3017 = smul.addr %s3016, 8
      %s3018 = scalar_lea.vmem %s2, %s3017
      %p3019 = scmp.lt.s32.totalorder %s15, 1
      %s3020 = scalar_select %p3019, %s15, 1
      %s3021 = smul.addr %s3020, 2
      %s3022 = scalar_lea.vmem %s3, %s3021
      // Predicated region
      $region29: #{double_conv.3} parent=27 // pred_check
        %p3023 = pneg %p80
      $region30: #{double_conv.3} parent=27 // pred_check_branch
        %3025 = sbr.rel (%p3023) target = $region32
      $region31: #{double_conv.3} parent=27 // pred_region
        _
      $region32: #{double_conv.3} parent=27 // pred_fallthru
        _
      // Predicated region
      $region33: #{double_conv.3} parent=27 // pred_check
        %p3026 = pneg %p106
      $region34: #{double_conv.3} parent=27 // pred_check_branch
        %3028 = sbr.rel (%p3026) target = $region36
      $region35: #{double_conv.3} parent=27 // pred_region
        _
      $region36: #{double_conv.3} parent=27 // pred_fallthru
        _
    $region28: #{double_conv.3} parent=5 // pred_fallthru
      _
    %p3029 = scmp.le.s32.totalorder 2, %s10
    // Predicated region
    $region37: #{double_conv.3} parent=5 // pred_check
      %p3030 = pneg %p3029
    $region38: #{double_conv.3} parent=5 // pred_check_branch
      %3032 = sbr.rel (%p3030) target = $region40
    $region39: #{double_conv.3} parent=5 // pred_region
      %s3033 = ssub.s32 %s10, 2
      // Predicated region
      $region41: #{double_conv.3} parent=39 // pred_check
        %p3034 = pneg %p86
      $region42: #{double_conv.3} parent=39 // pred_check_branch
        %3036 = sbr.rel (%p3034) target = $region44
      $region43: #{double_conv.3} parent=39 // pred_region
        %p3037 = scmp.lt.s32.totalorder %s16, 1
        %s3038 = scalar_select %p3037, %s16, 1
        %s3039 = smul.addr %s3038, 32
        %s3040 = smul.addr %s3039, 8
        %s3041 = scalar_lea.vmem %s2, %s3040
      $region44: #{double_conv.3} parent=39 // pred_fallthru
        _
      // Predicated region
      $region45: #{double_conv.3} parent=39 // pred_check
        %p3042 = pneg %p112
      $region46: #{double_conv.3} parent=39 // pred_check_branch
        %3044 = sbr.rel (%p3042) target = $region48
      $region47: #{double_conv.3} parent=39 // pred_region
        %p3045 = scmp.lt.s32.totalorder %s16, 1
        %s3046 = scalar_select %p3045, %s16, 1
        %s3047 = smul.addr %s3046, 2
        %s3048 = scalar_lea.vmem %s3, %s3047
      $region48: #{double_conv.3} parent=39 // pred_fallthru
        _
    $region40: #{double_conv.3} parent=5 // pred_fallthru
      _
  $region6: #{double_conv.3} parent=0 // loop_footer
    %s14 = sadd.s32 1, %s10
  $region7: #{double_conv.3} parent=0 // loop_footer_branch
    %9 = sbr.rel target = $region3
  $region8: #{double_conv.3} parent=0 // loop_exit
    _

// kernel: double_conv.4
$region0: #{double_conv.4}
  #allocation0 [shape = 'u32[]', space=smem, size = 0x4, offset = 0x4, fixed_abs, tag = 'smem constant byte address 0x4 - core index']
  #allocation1 [shape = 'u32[144,128]{1,0:T(1,128)}', space=vmem, size = 0x12000, scoped, tag = 'internal scratch']
  #allocation2 [shape = 'f32[18,18,128]{2,1,0:T(8,128)}', space=vmem, size = 0x36000, scoped, tag = 'scratch operand']
  %s0 = inlined_call_operand.vmem [shape: f32[2,16,16,128], index: 0, kind: input, shape index: {}]
  %s1 = inlined_call_operand.vmem [shape: f32[1,1,1,128], index: 1, kind: input, shape index: {}]
  %s2 = inlined_call_operand.vmem [shape: f32[1,1,1,128], index: 2, kind: input, shape index: {}]
  %s3 = inlined_call_operand.vmem [shape: f32[9,128,128], index: 3, kind: input, shape index: {}]
  %s4 = inlined_call_operand.vmem [shape: f32[2,16,16,128], index: 4, kind: output, shape index: {0}]
  %s5 = inlined_call_operand.vmem [shape: f32[2,2,128], index: 5, kind: output, shape index: {1}]
  %6 = xla_tuple %s4, %s5
  %s7 = sld [smem:[#allocation0]]
  $region57: #{double_conv.4} parent=0
    _
  %s9 = ssub.s32 1, %s7
  %s10 = scalar_select 0, %s9, %s7
  loop: start=0, step=1, limit=4
  $region2: #{double_conv.4} parent=0 // loop_pre_header
    _
  $region3: #{double_conv.4} parent=0 // loop_header
    %s12 = sphi 0, %s16
    %p13 = scmp.ge.s32.totalorder %s12, 4
    %s22 = sphi 0, %s24
    %s25 = sphi 0, %s22
    %s26 = sphi 0, %s25
    %s42 = sphi 0, %s26
    %s46 = sphi 0, %s46
    %s48 = sphi 0, %s46
    %s49 = sphi 0, %s48
    %s63 = sphi 0, %s49
    %s67 = sphi 0, %s67
    %s69 = sphi 0, %s67
    %s70 = sphi 0, %s69
    %s84 = sphi 0, %s70
    %s88 = sphi 0, %s88
    %s90 = sphi 0, %s88
    %s91 = sphi 0, %s90
    %s105 = sphi 0, %s91
    %s111 = sphi 0, %s113
    %s114 = sphi 0, %s111
    %s115 = sphi 0, %s114
    %s131 = sphi 0, %s115
    %s137 = sphi 0, %s139
    %s140 = sphi 0, %s137
    %s141 = sphi 0, %s140
    %s157 = sphi 0, %s141
  $region4: #{double_conv.4} parent=0 // loop_header_branch
    %15 = sbr.rel (%p13) target = $region8
  $region5: #{double_conv.4} parent=0 // loop_body
    %s17 = ssub.s32 %s12, 1
    %s18 = ssub.s32 %s12, 2
    %s19 = sadd.s32 %s12, 1
    %s20 = ssub.s32 %s12, %s19
    %p21 = scmp.eq.s32.totalorder %s20, 0
    %s23 = sadd.s32 %s22, 1
    %s24 = scalar_select %p21, %s22, %s23
    %p27 = pneg %p21
    %p28 = scmp.eq.s32.totalorder %s12, 1
    %p29 = por %p27, %p28
    %p30 = scmp.ne.s32.totalorder %s22, %s25
    %p31 = scmp.eq.s32.totalorder %s12, 0
    %p32 = por %p30, %p31
    %p33 = scmp.ne.s32.totalorder %s22, %s25
    %p34 = scmp.eq.s32.totalorder %s17, 1
    %p35 = por %p33, %p34
    %p36 = scmp.ne.s32.totalorder %s25, %s26
    %p37 = scmp.eq.s32.totalorder %s17, 0
    %p38 = por %p36, %p37
    %p39 = scmp.ne.s32.totalorder %s25, %s26
    %p40 = scmp.eq.s32.totalorder %s18, 1
    %p41 = por %p39, %p40
    %p43 = scmp.ne.s32.totalorder %s26, %s42
    %p44 = scmp.eq.s32.totalorder %s18, 0
    %p45 = por %p43, %p44
    %s47 = sadd.s32 %s46, 1
    %p50 = scmp.eq.s32.totalorder %s12, 1
    %p51 = scmp.ne.s32.totalorder %s46, %s48
    %p52 = scmp.eq.s32.totalorder %s12, 0
    %p53 = por %p51, %p52
    %p54 = scmp.ne.s32.totalorder %s46, %s48
    %p55 = scmp.eq.s32.totalorder %s17, 1
    %p56 = por %p54, %p55
    %p57 = scmp.ne.s32.totalorder %s48, %s49
    %p58 = scmp.eq.s32.totalorder %s17, 0
    %p59 = por %p57, %p58
    %p60 = scmp.ne.s32.totalorder %s48, %s49
    %p61 = scmp.eq.s32.totalorder %s18, 1
    %p62 = por %p60, %p61
    %p64 = scmp.ne.s32.totalorder %s49, %s63
    %p65 = scmp.eq.s32.totalorder %s18, 0
    %p66 = por %p64, %p65
    %s68 = sadd.s32 %s67, 1
    %p71 = scmp.eq.s32.totalorder %s12, 1
    %p72 = scmp.ne.s32.totalorder %s67, %s69
    %p73 = scmp.eq.s32.totalorder %s12, 0
    %p74 = por %p72, %p73
    %p75 = scmp.ne.s32.totalorder %s67, %s69
    %p76 = scmp.eq.s32.totalorder %s17, 1
    %p77 = por %p75, %p76
    %p78 = scmp.ne.s32.totalorder %s69, %s70
    %p79 = scmp.eq.s32.totalorder %s17, 0
    %p80 = por %p78, %p79
    %p81 = scmp.ne.s32.totalorder %s69, %s70
    %p82 = scmp.eq.s32.totalorder %s18, 1
    %p83 = por %p81, %p82
    %p85 = scmp.ne.s32.totalorder %s70, %s84
    %p86 = scmp.eq.s32.totalorder %s18, 0
    %p87 = por %p85, %p86
    %s89 = sadd.s32 %s88, 1
    %p92 = scmp.eq.s32.totalorder %s12, 1
    %p93 = scmp.ne.s32.totalorder %s88, %s90
    %p94 = scmp.eq.s32.totalorder %s12, 0
    %p95 = por %p93, %p94
    %p96 = scmp.ne.s32.totalorder %s88, %s90
    %p97 = scmp.eq.s32.totalorder %s17, 1
    %p98 = por %p96, %p97
    %p99 = scmp.ne.s32.totalorder %s90, %s91
    %p100 = scmp.eq.s32.totalorder %s17, 0
    %p101 = por %p99, %p100
    %p102 = scmp.ne.s32.totalorder %s90, %s91
    %p103 = scmp.eq.s32.totalorder %s18, 1
    %p104 = por %p102, %p103
    %p106 = scmp.ne.s32.totalorder %s91, %s105
    %p107 = scmp.eq.s32.totalorder %s18, 0
    %p108 = por %p106, %p107
    %s109 = ssub.s32 %s12, %s19
    %p110 = scmp.eq.s32.totalorder %s109, 0
    %s112 = sadd.s32 %s111, 1
    %s113 = scalar_select %p110, %s111, %s112
    %p116 = pneg %p110
    %p117 = scmp.eq.s32.totalorder %s12, 1
    %p118 = por %p116, %p117
    %p119 = scmp.ne.s32.totalorder %s111, %s114
    %p120 = scmp.eq.s32.totalorder %s12, 0
    %p121 = por %p119, %p120
    %p122 = scmp.ne.s32.totalorder %s111, %s114
    %p123 = scmp.eq.s32.totalorder %s17, 1
    %p124 = por %p122, %p123
    %p125 = scmp.ne.s32.totalorder %s114, %s115
    %p126 = scmp.eq.s32.totalorder %s17, 0
    %p127 = por %p125, %p126
    %p128 = scmp.ne.s32.totalorder %s114, %s115
    %p129 = scmp.eq.s32.totalorder %s18, 1
    %p130 = por %p128, %p129
    %p132 = scmp.ne.s32.totalorder %s115, %s131
    %p133 = scmp.eq.s32.totalorder %s18, 0
    %p134 = por %p132, %p133
    %s135 = ssub.s32 %s12, %s19
    %p136 = scmp.eq.s32.totalorder %s135, 0
    %s138 = sadd.s32 %s137, 1
    %s139 = scalar_select %p136, %s137, %s138
    %p142 = pneg %p136
    %p143 = scmp.eq.s32.totalorder %s12, 1
    %p144 = por %p142, %p143
    %p145 = scmp.ne.s32.totalorder %s137, %s140
    %p146 = scmp.eq.s32.totalorder %s12, 0
    %p147 = por %p145, %p146
    %p148 = scmp.ne.s32.totalorder %s137, %s140
    %p149 = scmp.eq.s32.totalorder %s17, 1
    %p150 = por %p148, %p149
    %p151 = scmp.ne.s32.totalorder %s140, %s141
    %p152 = scmp.eq.s32.totalorder %s17, 0
    %p153 = por %p151, %p152
    %p154 = scmp.ne.s32.totalorder %s140, %s141
    %p155 = scmp.eq.s32.totalorder %s18, 1
    %p156 = por %p154, %p155
    %p158 = scmp.ne.s32.totalorder %s141, %s157
    %p159 = scmp.eq.s32.totalorder %s18, 0
    %p160 = por %p158, %p159
    %p161 = scmp.le.s32.totalorder 1, %s12
    %p162 = scmp.lt.s32.totalorder %s12, 3
    %p163 = pnand %p161, %p162
    %p164 = pneg %p163
    // Predicated region
    $region9: #{double_conv.4} parent=5 // pred_check
      _
    $region10: #{double_conv.4} parent=5 // pred_check_branch
      %166 = sbr.rel (%p163) target = $region12
    $region11: #{double_conv.4} parent=5 // pred_region
      %s167 = ssub.s32 %s12, 1
      // Predicated region
      $region13: #{double_conv.4} parent=11 // pred_check
        %p168 = pneg %p59
      $region14: #{double_conv.4} parent=11 // pred_check_branch
        %170 = sbr.rel (%p168) target = $region16
      $region15: #{double_conv.4} parent=11 // pred_region
        _
      $region16: #{double_conv.4} parent=11 // pred_fallthru
        _
      // Predicated region
      $region17: #{double_conv.4} parent=11 // pred_check
        %p171 = pneg %p80
      $region18: #{double_conv.4} parent=11 // pred_check_branch
        %173 = sbr.rel (%p171) target = $region20
      $region19: #{double_conv.4} parent=11 // pred_region
        _
      $region20: #{double_conv.4} parent=11 // pred_fallthru
        _
      // Predicated region
      $region21: #{double_conv.4} parent=11 // pred_check
        %p174 = pneg %p101
      $region22: #{double_conv.4} parent=11 // pred_check_branch
        %176 = sbr.rel (%p174) target = $region24
      $region23: #{double_conv.4} parent=11 // pred_region
        _
      $region24: #{double_conv.4} parent=11 // pred_fallthru
        _
    $region12: #{double_conv.4} parent=5 // pred_fallthru
      _
    %p177 = scmp.lt.s32.totalorder %s12, 2
    // Predicated region
    $region25: #{double_conv.4} parent=5 // pred_check
      %p178 = pneg %p177
    $region26: #{double_conv.4} parent=5 // pred_check_branch
      %180 = sbr.rel (%p178) target = $region28
    $region27: #{double_conv.4} parent=5 // pred_region
      // Predicated region
      $region29: #{double_conv.4} parent=27 // pred_check
        %p181 = pneg %p32
      $region30: #{double_conv.4} parent=27 // pred_check_branch
        %183 = sbr.rel (%p181) target = $region32
      $region31: #{double_conv.4} parent=27 // pred_region
        %p184 = scmp.lt.s32.totalorder %s12, 1
        %s185 = scalar_select %p184, %s12, 1
        %s186 = smul.addr %s185, 32
        %s187 = smul.addr %s186, 8
        %s188 = scalar_lea.vmem %s0, %s187
      $region32: #{double_conv.4} parent=27 // pred_fallthru
        _
    $region28: #{double_conv.4} parent=5 // pred_fallthru
      _
    %p189 = scmp.le.s32.totalorder 1, %s12
    %p190 = scmp.lt.s32.totalorder %s12, 3
    %p191 = pnand %p189, %p190
    %p192 = pneg %p191
    // Predicated region
    $region33: #{double_conv.4} parent=5 // pred_check
      _
    $region34: #{double_conv.4} parent=5 // pred_check_branch
      %194 = sbr.rel (%p191) target = $region36
    $region35: #{double_conv.4} parent=5 // pred_region
      %s195 = ssub.s32 %s12, 1
      %p196 = scmp.lt.s32.totalorder %s17, 1
      %s197 = scalar_select %p196, %s17, 1
      %s198 = smul.addr %s197, 32
      %s199 = smul.addr %s198, 8
      %s200 = scalar_lea.vmem %s0, %s199
      %p201 = pneg %p38
      %p202 = pneg %p35
      %p203 = pneg %p59
      %p204 = pneg %p56
      %p205 = pneg %p80
      %p206 = pneg %p77
      %p207 = pneg %p101
      %p208 = pneg %p98
      %p209 = pneg %p127
      %p210 = pneg %p124
      %p211 = scmp.lt.s32.totalorder %s17, 1
      %s212 = scalar_select %p211, %s17, 1
      %s213 = smul.addr %s212, 32
      %s214 = smul.addr %s213, 8
      %s215 = scalar_lea.vmem %s4, %s214
      %p216 = pneg %p153
      %p217 = pneg %p150
      %p218 = scmp.lt.s32.totalorder %s17, 1
      %s219 = scalar_select %p218, %s17, 1
      %s220 = smul.addr %s219, 2
      %s221 = scalar_lea.vmem %s5, %s220
      %p222 = scmp.lt.s32.totalorder %s17, 1
      %s223 = scalar_select %p222, %s17, 1
      %s224 = smul.addr %s223, 32
      %s225 = smul.addr %s224, 8
      %s226 = scalar_lea.vmem %s0, %s225
      %p227 = scmp.lt.s32.totalorder %s17, 1
      %s228 = scalar_select %p227, %s17, 1
      %s229 = smul.addr %s228, 32
      %s230 = smul.addr %s229, 8
      %s231 = scalar_lea.vmem %s4, %s230
      %p232 = scmp.lt.s32.totalorder %s17, 1
      %s233 = scalar_select %p232, %s17, 1
      %s234 = smul.addr %s233, 2
      %s235 = scalar_lea.vmem %s5, %s234
      %v236 = vld [vmem:[%s226] sm:$0xff]
      %v237 = vld [vmem:[%s226 + $0x8] sm:$0xff]
      %v238 = vld [vmem:[%s226 + $0x10] sm:$0xff]
      %v239 = vld [vmem:[%s226 + $0x18] sm:$0xff]
      %v240 = vld [vmem:[%s226 + $0x20] sm:$0xff]
      %v241 = vld [vmem:[%s226 + $0x28] sm:$0xff]
      %v242 = vld [vmem:[%s226 + $0x30] sm:$0xff]
      %v243 = vld [vmem:[%s226 + $0x38] sm:$0xff]
      %v244 = vld [vmem:[%s226 + $0x40] sm:$0xff]
      %v245 = vld [vmem:[%s226 + $0x48] sm:$0xff]
      %v246 = vld [vmem:[%s226 + $0x50] sm:$0xff]
      %v247 = vld [vmem:[%s226 + $0x58] sm:$0xff]
      %v248 = vld [vmem:[%s226 + $0x60] sm:$0xff]
      %v249 = vld [vmem:[%s226 + $0x68] sm:$0xff]
      %v250 = vld [vmem:[%s226 + $0x70] sm:$0xff]
      %v251 = vld [vmem:[%s226 + $0x78] sm:$0xff]
      %v252 = vld [vmem:[%s226 + $0x80] sm:$0xff]
      %v253 = vld [vmem:[%s226 + $0x88] sm:$0xff]
      %v254 = vld [vmem:[%s226 + $0x90] sm:$0xff]
      %v255 = vld [vmem:[%s226 + $0x98] sm:$0xff]
      %v256 = vld [vmem:[%s226 + $0xa0] sm:$0xff]
      %v257 = vld [vmem:[%s226 + $0xa8] sm:$0xff]
      %v258 = vld [vmem:[%s226 + $0xb0] sm:$0xff]
      %v259 = vld [vmem:[%s226 + $0xb8] sm:$0xff]
      %v260 = vld [vmem:[%s226 + $0xc0] sm:$0xff]
      %v261 = vld [vmem:[%s226 + $0xc8] sm:$0xff]
      %v262 = vld [vmem:[%s226 + $0xd0] sm:$0xff]
      %v263 = vld [vmem:[%s226 + $0xd8] sm:$0xff]
      %v264 = vld [vmem:[%s226 + $0xe0] sm:$0xff]
      %v265 = vld [vmem:[%s226 + $0xe8] sm:$0xff]
      %v266 = vld [vmem:[%s226 + $0xf0] sm:$0xff]
      %v267 = vld [vmem:[%s226 + $0xf8] sm:$0xff]
      %v268 = vld [vmem:[%s1] sm:$0x1]
      %v270 = vlaneseq
      %v271 = vshrl.u32 %v270, 7
      %v272 = vsub.s32 0, %v271
      %v273 = vrot.slane %v268, %v272
      %v275 = vmul.f32 %v236, %v273
      %v276 = vmul.f32 %v237, %v273
      %v277 = vmul.f32 %v238, %v273
      %v278 = vmul.f32 %v239, %v273
      %v279 = vmul.f32 %v240, %v273
      %v280 = vmul.f32 %v241, %v273
      %v281 = vmul.f32 %v242, %v273
      %v282 = vmul.f32 %v243, %v273
      %v283 = vmul.f32 %v244, %v273
      %v284 = vmul.f32 %v245, %v273
      %v285 = vmul.f32 %v246, %v273
      %v286 = vmul.f32 %v247, %v273
      %v287 = vmul.f32 %v248, %v273
      %v288 = vmul.f32 %v249, %v273
      %v289 = vmul.f32 %v250, %v273
      %v290 = vmul.f32 %v251, %v273
      %v291 = vmul.f32 %v252, %v273
      %v292 = vmul.f32 %v253, %v273
      %v293 = vmul.f32 %v254, %v273
      %v294 = vmul.f32 %v255, %v273
      %v295 = vmul.f32 %v256, %v273
      %v296 = vmul.f32 %v257, %v273
      %v297 = vmul.f32 %v258, %v273
      %v298 = vmul.f32 %v259, %v273
      %v299 = vmul.f32 %v260, %v273
      %v300 = vmul.f32 %v261, %v273
      %v301 = vmul.f32 %v262, %v273
      %v302 = vmul.f32 %v263, %v273
      %v303 = vmul.f32 %v264, %v273
      %v304 = vmul.f32 %v265, %v273
      %v305 = vmul.f32 %v266, %v273
      %v306 = vmul.f32 %v267, %v273
      %v307 = vld [vmem:[%s2] sm:$0x1]
      %v309 = vlaneseq
      %v310 = vshrl.u32 %v309, 7
      %v311 = vsub.s32 0, %v310
      %v312 = vrot.slane %v307, %v311
      %v314 = vadd.f32 %v275, %v312
      %v315 = vadd.f32 %v276, %v312
      %v316 = vadd.f32 %v277, %v312
      %v317 = vadd.f32 %v278, %v312
      %v318 = vadd.f32 %v279, %v312
      %v319 = vadd.f32 %v280, %v312
      %v320 = vadd.f32 %v281, %v312
      %v321 = vadd.f32 %v282, %v312
      %v322 = vadd.f32 %v283, %v312
      %v323 = vadd.f32 %v284, %v312
      %v324 = vadd.f32 %v285, %v312
      %v325 = vadd.f32 %v286, %v312
      %v326 = vadd.f32 %v287, %v312
      %v327 = vadd.f32 %v288, %v312
      %v328 = vadd.f32 %v289, %v312
      %v329 = vadd.f32 %v290, %v312
      %v330 = vadd.f32 %v291, %v312
      %v331 = vadd.f32 %v292, %v312
      %v332 = vadd.f32 %v293, %v312
      %v333 = vadd.f32 %v294, %v312
      %v334 = vadd.f32 %v295, %v312
      %v335 = vadd.f32 %v296, %v312
      %v336 = vadd.f32 %v297, %v312
      %v337 = vadd.f32 %v298, %v312
      %v338 = vadd.f32 %v299, %v312
      %v339 = vadd.f32 %v300, %v312
      %v340 = vadd.f32 %v301, %v312
      %v341 = vadd.f32 %v302, %v312
      %v342 = vadd.f32 %v303, %v312
      %v343 = vadd.f32 %v304, %v312
      %v344 = vadd.f32 %v305, %v312
      %v345 = vadd.f32 %v306, %v312
      %v346 = vmax.f32 %v314, 0.0
      %v347 = vmax.f32 %v315, 0.0
      %v348 = vmax.f32 %v316, 0.0
      %v349 = vmax.f32 %v317, 0.0
      %v350 = vmax.f32 %v318, 0.0
      %v351 = vmax.f32 %v319, 0.0
      %v352 = vmax.f32 %v320, 0.0
      %v353 = vmax.f32 %v321, 0.0
      %v354 = vmax.f32 %v322, 0.0
      %v355 = vmax.f32 %v323, 0.0
      %v356 = vmax.f32 %v324, 0.0
      %v357 = vmax.f32 %v325, 0.0
      %v358 = vmax.f32 %v326, 0.0
      %v359 = vmax.f32 %v327, 0.0
      %v360 = vmax.f32 %v328, 0.0
      %v361 = vmax.f32 %v329, 0.0
      %v362 = vmax.f32 %v330, 0.0
      %v363 = vmax.f32 %v331, 0.0
      %v364 = vmax.f32 %v332, 0.0
      %v365 = vmax.f32 %v333, 0.0
      %v366 = vmax.f32 %v334, 0.0
      %v367 = vmax.f32 %v335, 0.0
      %v368 = vmax.f32 %v336, 0.0
      %v369 = vmax.f32 %v337, 0.0
      %v370 = vmax.f32 %v338, 0.0
      %v371 = vmax.f32 %v339, 0.0
      %v372 = vmax.f32 %v340, 0.0
      %v373 = vmax.f32 %v341, 0.0
      %v374 = vmax.f32 %v342, 0.0
      %v375 = vmax.f32 %v343, 0.0
      %v376 = vmax.f32 %v344, 0.0
      %v377 = vmax.f32 %v345, 0.0
      %378 = vst [vmem:[#allocation2] sm:$0xff] 0.0
      %379 = vst [vmem:[#allocation2 + $0x8] sm:$0xff] 0.0
      %380 = vst [vmem:[#allocation2 + $0x10] sm:$0x3] 0.0
      %s381 = scalar_lea.vmem [#allocation2], 408
      %382 = vst [vmem:[%s381] sm:$0xff] 0.0
      %383 = vst [vmem:[%s381 + $0x8] sm:$0xff] 0.0
      %384 = vst [vmem:[%s381 + $0x10] sm:$0x3] 0.0
      %385 = vst [vmem:[#allocation2] sm:$0x1] 0.0
      %386 = vst [vmem:[#allocation2 + $0x18] sm:$0x1] 0.0
      %387 = vst [vmem:[#allocation2 + $0x30] sm:$0x1] 0.0
      %388 = vst [vmem:[#allocation2 + $0x48] sm:$0x1] 0.0
      %389 = vst [vmem:[#allocation2 + $0x60] sm:$0x1] 0.0
      %390 = vst [vmem:[#allocation2 + $0x78] sm:$0x1] 0.0
      %391 = vst [vmem:[#allocation2 + $0x90] sm:$0x1] 0.0
      %392 = vst [vmem:[#allocation2 + $0xa8] sm:$0x1] 0.0
      %393 = vst [vmem:[#allocation2 + $0xc0] sm:$0x1] 0.0
      %394 = vst [vmem:[#allocation2 + $0xd8] sm:$0x1] 0.0
      %395 = vst [vmem:[#allocation2 + $0xf0] sm:$0x1] 0.0
      %396 = vst [vmem:[#allocation2 + $0x108] sm:$0x1] 0.0
      %397 = vst [vmem:[#allocation2 + $0x120] sm:$0x1] 0.0
      %398 = vst [vmem:[#allocation2 + $0x138] sm:$0x1] 0.0
      %399 = vst [vmem:[#allocation2 + $0x150] sm:$0x1] 0.0
      %400 = vst [vmem:[#allocation2 + $0x168] sm:$0x1] 0.0
      %401 = vst [vmem:[#allocation2 + $0x180] sm:$0x1] 0.0
      %402 = vst [vmem:[#allocation2 + $0x198] sm:$0x1] 0.0
      %403 = vst [vmem:[#allocation2 + $0x11] sm:$0x1] 0.0
      %404 = vst [vmem:[#allocation2 + $0x29] sm:$0x1] 0.0
      %405 = vst [vmem:[#allocation2 + $0x41] sm:$0x1] 0.0
      %406 = vst [vmem:[#allocation2 + $0x59] sm:$0x1] 0.0
      %407 = vst [vmem:[#allocation2 + $0x71] sm:$0x1] 0.0
      %408 = vst [vmem:[#allocation2 + $0x89] sm:$0x1] 0.0
      %409 = vst [vmem:[#allocation2 + $0xa1] sm:$0x1] 0.0
      %410 = vst [vmem:[#allocation2 + $0xb9] sm:$0x1] 0.0
      %411 = vst [vmem:[#allocation2 + $0xd1] sm:$0x1] 0.0
      %412 = vst [vmem:[#allocation2 + $0xe9] sm:$0x1] 0.0
      %413 = vst [vmem:[#allocation2 + $0x101] sm:$0x1] 0.0
      %414 = vst [vmem:[#allocation2 + $0x119] sm:$0x1] 0.0
      %415 = vst [vmem:[#allocation2 + $0x131] sm:$0x1] 0.0
      %416 = vst [vmem:[#allocation2 + $0x149] sm:$0x1] 0.0
      %417 = vst [vmem:[#allocation2 + $0x161] sm:$0x1] 0.0
      %418 = vst [vmem:[#allocation2 + $0x179] sm:$0x1] 0.0
      %419 = vst [vmem:[#allocation2 + $0x191] sm:$0x1] 0.0
      %420 = vst [vmem:[#allocation2 + $0x1a9] sm:$0x1] 0.0
      %s421 = scalar_lea.vmem [#allocation2], 24
      %422 = vst [vmem:[%s421 + $0x1] sm:$0xff] %v346
      %423 = vst [vmem:[%s421 + $0x9] sm:$0xff] %v347
      %424 = vst [vmem:[%s421 + $0x19] sm:$0xff] %v348
      %425 = vst [vmem:[%s421 + $0x21] sm:$0xff] %v349
      %426 = vst [vmem:[%s421 + $0x31] sm:$0xff] %v350
      %427 = vst [vmem:[%s421 + $0x39] sm:$0xff] %v351
      %428 = vst [vmem:[%s421 + $0x49] sm:$0xff] %v352
      %429 = vst [vmem:[%s421 + $0x51] sm:$0xff] %v353
      %430 = vst [vmem:[%s421 + $0x61] sm:$0xff] %v354
      %431 = vst [vmem:[%s421 + $0x69] sm:$0xff] %v355
      %432 = vst [vmem:[%s421 + $0x79] sm:$0xff] %v356
      %433 = vst [vmem:[%s421 + $0x81] sm:$0xff] %v357
      %434 = vst [vmem:[%s421 + $0x91] sm:$0xff] %v358
      %435 = vst [vmem:[%s421 + $0x99] sm:$0xff] %v359
      %436 = vst [vmem:[%s421 + $0xa9] sm:$0xff] %v360
      %437 = vst [vmem:[%s421 + $0xb1] sm:$0xff] %v361
      %438 = vst [vmem:[%s421 + $0xc1] sm:$0xff] %v362
      %439 = vst [vmem:[%s421 + $0xc9] sm:$0xff] %v363
      %440 = vst [vmem:[%s421 + $0xd9] sm:$0xff] %v364
      %441 = vst [vmem:[%s421 + $0xe1] sm:$0xff] %v365
      %442 = vst [vmem:[%s421 + $0xf1] sm:$0xff] %v366
      %443 = vst [vmem:[%s421 + $0xf9] sm:$0xff] %v367
      %444 = vst [vmem:[%s421 + $0x109] sm:$0xff] %v368
      %445 = vst [vmem:[%s421 + $0x111] sm:$0xff] %v369
      %446 = vst [vmem:[%s421 + $0x121] sm:$0xff] %v370
      %447 = vst [vmem:[%s421 + $0x129] sm:$0xff] %v371
      %448 = vst [vmem:[%s421 + $0x139] sm:$0xff] %v372
      %449 = vst [vmem:[%s421 + $0x141] sm:$0xff] %v373
      %450 = vst [vmem:[%s421 + $0x151] sm:$0xff] %v374
      %451 = vst [vmem:[%s421 + $0x159] sm:$0xff] %v375
      %452 = vst [vmem:[%s421 + $0x169] sm:$0xff] %v376
      %453 = vst [vmem:[%s421 + $0x171] sm:$0xff] %v377
      %v454 = vld [vmem:[#allocation2] sm:$0xff]
      %v455 = vld [vmem:[#allocation2 + $0x8] sm:$0xff]
      %v456 = vld [vmem:[#allocation2 + $0x18] sm:$0xff]
      %v457 = vld [vmem:[#allocation2 + $0x20] sm:$0xff]
      %v458 = vld [vmem:[#allocation2 + $0x30] sm:$0xff]
      %v459 = vld [vmem:[#allocation2 + $0x38] sm:$0xff]
      %v460 = vld [vmem:[#allocation2 + $0x48] sm:$0xff]
      %v461 = vld [vmem:[#allocation2 + $0x50] sm:$0xff]
      %v462 = vld [vmem:[#allocation2 + $0x60] sm:$0xff]
      %v463 = vld [vmem:[#allocation2 + $0x68] sm:$0xff]
      %v464 = vld [vmem:[#allocation2 + $0x78] sm:$0xff]
      %v465 = vld [vmem:[#allocation2 + $0x80] sm:$0xff]
      %v466 = vld [vmem:[#allocation2 + $0x90] sm:$0xff]
      %v467 = vld [vmem:[#allocation2 + $0x98] sm:$0xff]
      %v468 = vld [vmem:[#allocation2 + $0xa8] sm:$0xff]
      %v469 = vld [vmem:[#allocation2 + $0xb0] sm:$0xff]
      %v470 = vld [vmem:[#allocation2 + $0xc0] sm:$0xff]
      %v471 = vld [vmem:[#allocation2 + $0xc8] sm:$0xff]
      %v472 = vld [vmem:[#allocation2 + $0xd8] sm:$0xff]
      %v473 = vld [vmem:[#allocation2 + $0xe0] sm:$0xff]
      %v474 = vld [vmem:[#allocation2 + $0xf0] sm:$0xff]
      %v475 = vld [vmem:[#allocation2 + $0xf8] sm:$0xff]
      %v476 = vld [vmem:[#allocation2 + $0x108] sm:$0xff]
      %v477 = vld [vmem:[#allocation2 + $0x110] sm:$0xff]
      %v478 = vld [vmem:[#allocation2 + $0x120] sm:$0xff]
      %v479 = vld [vmem:[#allocation2 + $0x128] sm:$0xff]
      %v480 = vld [vmem:[#allocation2 + $0x138] sm:$0xff]
      %v481 = vld [vmem:[#allocation2 + $0x140] sm:$0xff]
      %v482 = vld [vmem:[#allocation2 + $0x150] sm:$0xff]
      %v483 = vld [vmem:[#allocation2 + $0x158] sm:$0xff]
      %v484 = vld [vmem:[#allocation2 + $0x168] sm:$0xff]
      %v485 = vld [vmem:[#allocation2 + $0x170] sm:$0xff]
      %v486 = vld [vmem:[%s3] sm:$0xff]
      %v487 = vld [vmem:[%s3 + $0x8] sm:$0xff]
      %v488 = vld [vmem:[%s3 + $0x10] sm:$0xff]
      %v489 = vld [vmem:[%s3 + $0x18] sm:$0xff]
      %v490 = vld [vmem:[%s3 + $0x20] sm:$0xff]
      %v491 = vld [vmem:[%s3 + $0x28] sm:$0xff]
      %v492 = vld [vmem:[%s3 + $0x30] sm:$0xff]
      %v493 = vld [vmem:[%s3 + $0x38] sm:$0xff]
      %v494 = vld [vmem:[%s3 + $0x40] sm:$0xff]
      %v495 = vld [vmem:[%s3 + $0x48] sm:$0xff]
      %v496 = vld [vmem:[%s3 + $0x50] sm:$0xff]
      %v497 = vld [vmem:[%s3 + $0x58] sm:$0xff]
      %v498 = vld [vmem:[%s3 + $0x60] sm:$0xff]
      %v499 = vld [vmem:[%s3 + $0x68] sm:$0xff]
      %v500 = vld [vmem:[%s3 + $0x70] sm:$0xff]
      %v501 = vld [vmem:[%s3 + $0x78] sm:$0xff]
      %v502 = vld [vmem:[#allocation2 + $0x1] sm:$0xff]
      %v503 = vld [vmem:[#allocation2 + $0x9] sm:$0xff]
      %v504 = vld [vmem:[#allocation2 + $0x19] sm:$0xff]
      %v505 = vld [vmem:[#allocation2 + $0x21] sm:$0xff]
      %v506 = vld [vmem:[#allocation2 + $0x31] sm:$0xff]
      %v507 = vld [vmem:[#allocation2 + $0x39] sm:$0xff]
      %v508 = vld [vmem:[#allocation2 + $0x49] sm:$0xff]
      %v509 = vld [vmem:[#allocation2 + $0x51] sm:$0xff]
      %v510 = vld [vmem:[#allocation2 + $0x61] sm:$0xff]
      %v511 = vld [vmem:[#allocation2 + $0x69] sm:$0xff]
      %v512 = vld [vmem:[#allocation2 + $0x79] sm:$0xff]
      %v513 = vld [vmem:[#allocation2 + $0x81] sm:$0xff]
      %v514 = vld [vmem:[#allocation2 + $0x91] sm:$0xff]
      %v515 = vld [vmem:[#allocation2 + $0x99] sm:$0xff]
      %v516 = vld [vmem:[#allocation2 + $0xa9] sm:$0xff]
      %v517 = vld [vmem:[#allocation2 + $0xb1] sm:$0xff]
      %v518 = vld [vmem:[#allocation2 + $0xc1] sm:$0xff]
      %v519 = vld [vmem:[#allocation2 + $0xc9] sm:$0xff]
      %v520 = vld [vmem:[#allocation2 + $0xd9] sm:$0xff]
      %v521 = vld [vmem:[#allocation2 + $0xe1] sm:$0xff]
      %v522 = vld [vmem:[#allocation2 + $0xf1] sm:$0xff]
      %v523 = vld [vmem:[#allocation2 + $0xf9] sm:$0xff]
      %v524 = vld [vmem:[#allocation2 + $0x109] sm:$0xff]
      %v525 = vld [vmem:[#allocation2 + $0x111] sm:$0xff]
      %v526 = vld [vmem:[#allocation2 + $0x121] sm:$0xff]
      %v527 = vld [vmem:[#allocation2 + $0x129] sm:$0xff]
      %v528 = vld [vmem:[#allocation2 + $0x139] sm:$0xff]
      %v529 = vld [vmem:[#allocation2 + $0x141] sm:$0xff]
      %v530 = vld [vmem:[#allocation2 + $0x151] sm:$0xff]
      %v531 = vld [vmem:[#allocation2 + $0x159] sm:$0xff]
      %v532 = vld [vmem:[#allocation2 + $0x169] sm:$0xff]
      %v533 = vld [vmem:[#allocation2 + $0x171] sm:$0xff]
      %s534 = scalar_lea.vmem %s3, 128
      %v535 = vld [vmem:[%s534] sm:$0xff]
      %v536 = vld [vmem:[%s534 + $0x8] sm:$0xff]
      %v537 = vld [vmem:[%s534 + $0x10] sm:$0xff]
      %v538 = vld [vmem:[%s534 + $0x18] sm:$0xff]
      %v539 = vld [vmem:[%s534 + $0x20] sm:$0xff]
      %v540 = vld [vmem:[%s534 + $0x28] sm:$0xff]
      %v541 = vld [vmem:[%s534 + $0x30] sm:$0xff]
      %v542 = vld [vmem:[%s534 + $0x38] sm:$0xff]
      %v543 = vld [vmem:[%s534 + $0x40] sm:$0xff]
      %v544 = vld [vmem:[%s534 + $0x48] sm:$0xff]
      %v545 = vld [vmem:[%s534 + $0x50] sm:$0xff]
      %v546 = vld [vmem:[%s534 + $0x58] sm:$0xff]
      %v547 = vld [vmem:[%s534 + $0x60] sm:$0xff]
      %v548 = vld [vmem:[%s534 + $0x68] sm:$0xff]
      %v549 = vld [vmem:[%s534 + $0x70] sm:$0xff]
      %v550 = vld [vmem:[%s534 + $0x78] sm:$0xff]
      %551 = vmatprep.subr.mxu0 0.0
      %552 = vmatpush1.msra.mxu0 %v535
      %553 = vmatprep.subr.mxu0 0.0
      %554 = vmatpush1.msra.mxu0 %v536
      %555 = vmatprep.subr.mxu0 0.0
      %556 = vmatpush1.msra.mxu0 %v537
      %557 = vmatprep.subr.mxu0 0.0
      %558 = vmatpush1.msra.mxu0 %v538
      %559 = vmatprep.subr.mxu0 0.0
      %560 = vmatpush1.msra.mxu0 %v539
      %561 = vmatprep.subr.mxu0 0.0
      %562 = vmatpush1.msra.mxu0 %v540
      %563 = vmatprep.subr.mxu0 0.0
      %564 = vmatpush1.msra.mxu0 %v541
      %565 = vmatprep.subr.mxu0 0.0
      %566 = vmatpush1.msra.mxu0 %v542
      %567 = vmatprep.subr.mxu0 0.0
      %568 = vmatpush1.msra.mxu0 %v543
      %569 = vmatprep.subr.mxu0 0.0
      %570 = vmatpush1.msra.mxu0 %v544
      %571 = vmatprep.subr.mxu0 0.0
      %572 = vmatpush1.msra.mxu0 %v545
      %573 = vmatprep.subr.mxu0 0.0
      %574 = vmatpush1.msra.mxu0 %v546
      %575 = vmatprep.subr.mxu0 0.0
      %576 = vmatpush1.msra.mxu0 %v547
      %577 = vmatprep.subr.mxu0 0.0
      %578 = vmatpush1.msra.mxu0 %v548
      %579 = vmatprep.subr.mxu0 0.0
      %580 = vmatpush1.msra.mxu0 %v549
      %581 = vmatprep.subr.mxu0 0.0
      %582 = vmatpush1.msra.mxu0 %v550
      %583 = vmatprep.subr.mxu0 0.0
      %584 = vmatpush1.msra.mxu0 0.0
      %585 = vmatprep.subr.mxu0 0.0
      %586 = vmatpush1.msra.mxu0 0.0
      %587 = vmatprep.subr.mxu0 0.0
      %588 = vmatpush1.msra.mxu0 0.0
      %589 = vmatprep.subr.mxu0 0.0
      %590 = vmatpush1.msra.mxu0 0.0
      %591 = vmatprep.subr.mxu0 0.0
      %592 = vmatpush1.msra.mxu0 0.0
      %593 = vmatprep.subr.mxu0 0.0
      %594 = vmatpush1.msra.mxu0 0.0
      %595 = vmatprep.subr.mxu0 0.0
      %596 = vmatpush1.msra.mxu0 0.0
      %597 = vmatprep.subr.mxu0 0.0
      %598 = vmatpush1.msra.mxu0 0.0
      %599 = vmatprep.subr.mxu0 0.0
      %600 = vmatpush1.msra.mxu0 0.0
      %601 = vmatprep.subr.mxu0 0.0
      %602 = vmatpush1.msra.mxu0 0.0
      %603 = vmatprep.subr.mxu0 0.0
      %604 = vmatpush1.msra.mxu0 0.0
      %605 = vmatprep.subr.mxu0 0.0
      %606 = vmatpush1.msra.mxu0 0.0
      %607 = vmatprep.subr.mxu0 0.0
      %608 = vmatpush1.msra.mxu0 0.0
      %609 = vmatprep.subr.mxu0 0.0
      %610 = vmatpush1.msra.mxu0 0.0
      %611 = vmatprep.subr.mxu0 0.0
      %612 = vmatpush1.msra.mxu0 0.0
      %613 = vmatprep.subr.mxu0 0.0
      %614 = vmatpush1.msra.mxu0 0.0
      %615 = vmatprep.mubr.f32.mxu0 0.0
      %616 = vmatmul.mubr.f32.gmra.mrb[0].mxu0 %v502
      %v617 = vpop.f32.mrb[0].mxu0
      %v618 = vadd.f32 0.0, %v617
      %v619 = vpop.f32.mrb[0].mxu0
      %620 = vmatprep.mubr.f32.mxu0 0.0
      %621 = vmatmul.mubr.f32.gmra.mrb[0].mxu0 %v503
      %v622 = vpop.f32.mrb[0].mxu0
      %v623 = vadd.f32 0.0, %v622
      %v624 = vpop.f32.mrb[0].mxu0
      %625 = vmatprep.mubr.f32.mxu0 0.0
      %626 = vmatmul.mubr.f32.gmra.mrb[0].mxu0 %v504
      %v627 = vpop.f32.mrb[0].mxu0
      %v628 = vadd.f32 0.0, %v627
      %v629 = vpop.f32.mrb[0].mxu0
      %630 = vmatprep.mubr.f32.mxu0 0.0
      %631 = vmatmul.mubr.f32.gmra.mrb[0].mxu0 %v505
      %v632 = vpop.f32.mrb[0].mxu0
      %v633 = vadd.f32 0.0, %v632
      %v634 = vpop.f32.mrb[0].mxu0
      %635 = vmatprep.mubr.f32.mxu0 0.0
      %636 = vmatmul.mubr.f32.gmra.mrb[0].mxu0 %v506
      %v637 = vpop.f32.mrb[0].mxu0
      %v638 = vadd.f32 0.0, %v637
      %v639 = vpop.f32.mrb[0].mxu0
      %640 = vmatprep.mubr.f32.mxu0 0.0
      %641 = vmatmul.mubr.f32.gmra.mrb[0].mxu0 %v507
      %v642 = vpop.f32.mrb[0].mxu0
      %v643 = vadd.f32 0.0, %v642
      %v644 = vpop.f32.mrb[0].mxu0
      %645 = vmatprep.mubr.f32.mxu0 0.0
      %646 = vmatmul.mubr.f32.gmra.mrb[0].mxu0 %v508
      %v647 = vpop.f32.mrb[0].mxu0
      %v648 = vadd.f32 0.0, %v647
      %v649 = vpop.f32.mrb[0].mxu0
      %650 = vmatprep.mubr.f32.mxu0 0.0
      %651 = vmatmul.mubr.f32.gmra.mrb[0].mxu0 %v509
      %v652 = vpop.f32.mrb[0].mxu0
      %v653 = vadd.f32 0.0, %v652
      %v654 = vpop.f32.mrb[0].mxu0
      %655 = vmatprep.mubr.f32.mxu0 0.0
      %656 = vmatmul.mubr.f32.gmra.mrb[0].mxu0 %v510
      %v657 = vpop.f32.mrb[0].mxu0
      %v658 = vadd.f32 0.0, %v657
      %v659 = vpop.f32.mrb[0].mxu0
      %660 = vmatprep.mubr.f32.mxu0 0.0
      %661 = vmatmul.mubr.f32.gmra.mrb[0].mxu0 %v511
      %v662 = vpop.f32.mrb[0].mxu0
      %v663 = vadd.f32 0.0, %v662
      %v664 = vpop.f32.mrb[0].mxu0
      %665 = vmatprep.mubr.f32.mxu0 0.0
      %666 = vmatmul.mubr.f32.gmra.mrb[0].mxu0 %v512
      %v667 = vpop.f32.mrb[0].mxu0
      %v668 = vadd.f32 0.0, %v667
      %v669 = vpop.f32.mrb[0].mxu0
      %670 = vmatprep.mubr.f32.mxu0 0.0
      %671 = vmatmul.mubr.f32.gmra.mrb[0].mxu0 %v513
      %v672 = vpop.f32.mrb[0].mxu0
      %v673 = vadd.f32 0.0, %v672
      %v674 = vpop.f32.mrb[0].mxu0
      %675 = vmatprep.mubr.f32.mxu0 0.0
      %676 = vmatmul.mubr.f32.gmra.mrb[0].mxu0 %v514
      %v677 = vpop.f32.mrb[0].mxu0
      %v678 = vadd.f32 0.0, %v677
      %v679 = vpop.f32.mrb[0].mxu0
      %680 = vmatprep.mubr.f32.mxu0 0.0
      %681 = vmatmul.mubr.f32.gmra.mrb[0].mxu0 %v515
      %v682 = vpop.f32.mrb[0].mxu0
      %v683 = vadd.f32 0.0, %v682
      %v684 = vpop.f32.mrb[0].mxu0
      %685 = vmatprep.mubr.f32.mxu0 0.0
      %686 = vmatmul.mubr.f32.gmra.mrb[0].mxu0 %v516
      %v687 = vpop.f32.mrb[0].mxu0
      %v688 = vadd.f32 0.0, %v687
      %v689 = vpop.f32.mrb[0].mxu0
      %690 = vmatprep.mubr.f32.mxu0 0.0
      %691 = vmatmul.mubr.f32.gmra.mrb[0].mxu0 %v517
      %v692 = vpop.f32.mrb[0].mxu0
      %v693 = vadd.f32 0.0, %v692
      %v694 = vpop.f32.mrb[0].mxu0
      %695 = vmatprep.mubr.f32.mxu0 0.0
      %696 = vmatmul.mubr.f32.gmra.mrb[0].mxu0 %v518
      %v697 = vpop.f32.mrb[0].mxu0
      %v698 = vadd.f32 0.0, %v697
      %v699 = vpop.f32.mrb[0].mxu0
      %700 = vmatprep.mubr.f32.mxu0 0.0
      %701 = vmatmul.mubr.f32.gmra.mrb[0].mxu0 %v519
      %v702 = vpop.f32.mrb[0].mxu0
      %v703 = vadd.f32 0.0, %v702
      %v704 = vpop.f32.mrb[0].mxu0
      %705 = vmatprep.mubr.f32.mxu0 0.0
      %706 = vmatmul.mubr.f32.gmra.mrb[0].mxu0 %v520
      %v707 = vpop.f32.mrb[0].mxu0
      %v708 = vadd.f32 0.0, %v707
      %v709 = vpop.f32.mrb[0].mxu0
      %710 = vmatprep.mubr.f32.mxu0 0.0
      %711 = vmatmul.mubr.f32.gmra.mrb[0].mxu0 %v521
      %v712 = vpop.f32.mrb[0].mxu0
      %v713 = vadd.f32 0.0, %v712
      %v714 = vpop.f32.mrb[0].mxu0
      %715 = vmatprep.mubr.f32.mxu0 0.0
      %716 = vmatmul.mubr.f32.gmra.mrb[0].mxu0 %v522
      %v717 = vpop.f32.mrb[0].mxu0
      %v718 = vadd.f32 0.0, %v717
      %v719 = vpop.f32.mrb[0].mxu0
      %720 = vmatprep.mubr.f32.mxu0 0.0
      %721 = vmatmul.mubr.f32.gmra.mrb[0].mxu0 %v523
      %v722 = vpop.f32.mrb[0].mxu0
      %v723 = vadd.f32 0.0, %v722
      %v724 = vpop.f32.mrb[0].mxu0
      %725 = vmatprep.mubr.f32.mxu0 0.0
      %726 = vmatmul.mubr.f32.gmra.mrb[0].mxu0 %v524
      %v727 = vpop.f32.mrb[0].mxu0
      %v728 = vadd.f32 0.0, %v727
      %v729 = vpop.f32.mrb[0].mxu0
      %730 = vmatprep.mubr.f32.mxu0 0.0
      %731 = vmatmul.mubr.f32.gmra.mrb[0].mxu0 %v525
      %v732 = vpop.f32.mrb[0].mxu0
      %v733 = vadd.f32 0.0, %v732
      %v734 = vpop.f32.mrb[0].mxu0
      %735 = vmatprep.mubr.f32.mxu0 0.0
      %736 = vmatmul.mubr.f32.gmra.mrb[0].mxu0 %v526
      %v737 = vpop.f32.mrb[0].mxu0
      %v738 = vadd.f32 0.0, %v737
      %v739 = vpop.f32.mrb[0].mxu0
      %740 = vmatprep.mubr.f32.mxu0 0.0
      %741 = vmatmul.mubr.f32.gmra.mrb[0].mxu0 %v527
      %v742 = vpop.f32.mrb[0].mxu0
      %v743 = vadd.f32 0.0, %v742
      %v744 = vpop.f32.mrb[0].mxu0
      %745 = vmatprep.mubr.f32.mxu0 0.0
      %746 = vmatmul.mubr.f32.gmra.mrb[0].mxu0 %v528
      %v747 = vpop.f32.mrb[0].mxu0
      %v748 = vadd.f32 0.0, %v747
      %v749 = vpop.f32.mrb[0].mxu0
      %750 = vmatprep.mubr.f32.mxu0 0.0
      %751 = vmatmul.mubr.f32.gmra.mrb[0].mxu0 %v529
      %v752 = vpop.f32.mrb[0].mxu0
      %v753 = vadd.f32 0.0, %v752
      %v754 = vpop.f32.mrb[0].mxu0
      %755 = vmatprep.mubr.f32.mxu0 0.0
      %756 = vmatmul.mubr.f32.gmra.mrb[0].mxu0 %v530
      %v757 = vpop.f32.mrb[0].mxu0
      %v758 = vadd.f32 0.0, %v757
      %v759 = vpop.f32.mrb[0].mxu0
      %760 = vmatprep.mubr.f32.mxu0 0.0
      %761 = vmatmul.mubr.f32.gmra.mrb[0].mxu0 %v531
      %v762 = vpop.f32.mrb[0].mxu0
      %v763 = vadd.f32 0.0, %v762
      %v764 = vpop.f32.mrb[0].mxu0
      %765 = vmatprep.mubr.f32.mxu0 0.0
      %766 = vmatmul.mubr.f32.gmra.mrb[0].mxu0 %v532
      %v767 = vpop.f32.mrb[0].mxu0
      %v768 = vadd.f32 0.0, %v767
      %v769 = vpop.f32.mrb[0].mxu0
      %770 = vmatprep.mubr.f32.mxu0 0.0
      %771 = vmatmul.mubr.f32.gmra.mrb[0].mxu0 %v533
      %v772 = vpop.f32.mrb[0].mxu0
      %v773 = vadd.f32 0.0, %v772
      %v774 = vpop.f32.mrb[0].mxu0
      %775 = vdwg.mxu0
      %776 = vmatprep.subr.mxu0 0.0
      %777 = vmatpush1.msra.mxu0 %v486
      %778 = vmatprep.subr.mxu0 0.0
      %779 = vmatpush1.msra.mxu0 %v487
      %780 = vmatprep.subr.mxu0 0.0
      %781 = vmatpush1.msra.mxu0 %v488
      %782 = vmatprep.subr.mxu0 0.0
      %783 = vmatpush1.msra.mxu0 %v489
      %784 = vmatprep.subr.mxu0 0.0
      %785 = vmatpush1.msra.mxu0 %v490
      %786 = vmatprep.subr.mxu0 0.0
      %787 = vmatpush1.msra.mxu0 %v491
      %788 = vmatprep.subr.mxu0 0.0
      %789 = vmatpush1.msra.mxu0 %v492
      %790 = vmatprep.subr.mxu0 0.0
      %791 = vmatpush1.msra.mxu0 %v493
      %792 = vmatprep.subr.mxu0 0.0
      %793 = vmatpush1.msra.mxu0 %v494
      %794 = vmatprep.subr.mxu0 0.0
      %795 = vmatpush1.msra.mxu0 %v495
      %796 = vmatprep.subr.mxu0 0.0
      %797 = vmatpush1.msra.mxu0 %v496
      %798 = vmatprep.subr.mxu0 0.0
      %799 = vmatpush1.msra.mxu0 %v497
      %800 = vmatprep.subr.mxu0 0.0
      %801 = vmatpush1.msra.mxu0 %v498
      %802 = vmatprep.subr.mxu0 0.0
      %803 = vmatpush1.msra.mxu0 %v499
      %804 = vmatprep.subr.mxu0 0.0
      %805 = vmatpush1.msra.mxu0 %v500
      %806 = vmatprep.subr.mxu0 0.0
      %807 = vmatpush1.msra.mxu0 %v501
      %808 = vmatprep.subr.mxu0 0.0
      %809 = vmatpush1.msra.mxu0 0.0
      %810 = vmatprep.subr.mxu0 0.0
      %811 = vmatpush1.msra.mxu0 0.0
      %812 = vmatprep.subr.mxu0 0.0
      %813 = vmatpush1.msra.mxu0 0.0
      %814 = vmatprep.subr.mxu0 0.0
      %815 = vmatpush1.msra.mxu0 0.0
      %816 = vmatprep.subr.mxu0 0.0
      %817 = vmatpush1.msra.mxu0 0.0
      %818 = vmatprep.subr.mxu0 0.0
      %819 = vmatpush1.msra.mxu0 0.0
      %820 = vmatprep.subr.mxu0 0.0
      %821 = vmatpush1.msra.mxu0 0.0
      %822 = vmatprep.subr.mxu0 0.0
      %823 = vmatpush1.msra.mxu0 0.0
      %824 = vmatprep.subr.mxu0 0.0
      %825 = vmatpush1.msra.mxu0 0.0
      %826 = vmatprep.subr.mxu0 0.0
      %827 = vmatpush1.msra.mxu0 0.0
      %828 = vmatprep.subr.mxu0 0.0
      %829 = vmatpush1.msra.mxu0 0.0
      %830 = vmatprep.subr.mxu0 0.0
      %831 = vmatpush1.msra.mxu0 0.0
      %832 = vmatprep.subr.mxu0 0.0
      %833 = vmatpush1.msra.mxu0 0.0
      %834 = vmatprep.subr.mxu0 0.0
      %835 = vmatpush1.msra.mxu0 0.0
      %836 = vmatprep.subr.mxu0 0.0
      %837 = vmatpush1.msra.mxu0 0.0
      %838 = vmatprep.subr.mxu0 0.0
      %839 = vmatpush1.msra.mxu0 0.0
      %840 = vmatprep.mubr.f32.mxu0 0.0
      %841 = vmatmul.mubr.f32.gmra.mrb[0].mxu0 %v454
      %v842 = vpop.f32.mrb[0].mxu0
      %v843 = vadd.f32 %v618, %v842
      %v844 = vpop.f32.mrb[0].mxu0
      %845 = vmatprep.mubr.f32.mxu0 0.0
      %846 = vmatmul.mubr.f32.gmra.mrb[0].mxu0 %v455
      %v847 = vpop.f32.mrb[0].mxu0
      %v848 = vadd.f32 %v623, %v847
      %v849 = vpop.f32.mrb[0].mxu0
      %850 = vmatprep.mubr.f32.mxu0 0.0
      %851 = vmatmul.mubr.f32.gmra.mrb[0].mxu0 %v456
      %v852 = vpop.f32.mrb[0].mxu0
      %v853 = vadd.f32 %v628, %v852
      %v854 = vpop.f32.mrb[0].mxu0
      %855 = vmatprep.mubr.f32.mxu0 0.0
      %856 = vmatmul.mubr.f32.gmra.mrb[0].mxu0 %v457
      %v857 = vpop.f32.mrb[0].mxu0
      %v858 = vadd.f32 %v633, %v857
      %v859 = vpop.f32.mrb[0].mxu0
      %860 = vmatprep.mubr.f32.mxu0 0.0
      %861 = vmatmul.mubr.f32.gmra.mrb[0].mxu0 %v458
      %v862 = vpop.f32.mrb[0].mxu0
      %v863 = vadd.f32 %v638, %v862
      %v864 = vpop.f32.mrb[0].mxu0
      %865 = vmatprep.mubr.f32.mxu0 0.0
      %866 = vmatmul.mubr.f32.gmra.mrb[0].mxu0 %v459
      %v867 = vpop.f32.mrb[0].mxu0
      %v868 = vadd.f32 %v643, %v867
      %v869 = vpop.f32.mrb[0].mxu0
      %870 = vmatprep.mubr.f32.mxu0 0.0
      %871 = vmatmul.mubr.f32.gmra.mrb[0].mxu0 %v460
      %v872 = vpop.f32.mrb[0].mxu0
      %v873 = vadd.f32 %v648, %v872
      %v874 = vpop.f32.mrb[0].mxu0
      %875 = vmatprep.mubr.f32.mxu0 0.0
      %876 = vmatmul.mubr.f32.gmra.mrb[0].mxu0 %v461
      %v877 = vpop.f32.mrb[0].mxu0
      %v878 = vadd.f32 %v653, %v877
      %v879 = vpop.f32.mrb[0].mxu0
      %880 = vmatprep.mubr.f32.mxu0 0.0
      %881 = vmatmul.mubr.f32.gmra.mrb[0].mxu0 %v462
      %v882 = vpop.f32.mrb[0].mxu0
      %v883 = vadd.f32 %v658, %v882
      %v884 = vpop.f32.mrb[0].mxu0
      %885 = vmatprep.mubr.f32.mxu0 0.0
      %886 = vmatmul.mubr.f32.gmra.mrb[0].mxu0 %v463
      %v887 = vpop.f32.mrb[0].mxu0
      %v888 = vadd.f32 %v663, %v887
      %v889 = vpop.f32.mrb[0].mxu0
      %890 = vmatprep.mubr.f32.mxu0 0.0
      %891 = vmatmul.mubr.f32.gmra.mrb[0].mxu0 %v464
      %v892 = vpop.f32.mrb[0].mxu0
      %v893 = vadd.f32 %v668, %v892
      %v894 = vpop.f32.mrb[0].mxu0
      %895 = vmatprep.mubr.f32.mxu0 0.0
      %896 = vmatmul.mubr.f32.gmra.mrb[0].mxu0 %v465
      %v897 = vpop.f32.mrb[0].mxu0
      %v898 = vadd.f32 %v673, %v897
      %v899 = vpop.f32.mrb[0].mxu0
      %900 = vmatprep.mubr.f32.mxu0 0.0
      %901 = vmatmul.mubr.f32.gmra.mrb[0].mxu0 %v466
      %v902 = vpop.f32.mrb[0].mxu0
      %v903 = vadd.f32 %v678, %v902
      %v904 = vpop.f32.mrb[0].mxu0
      %905 = vmatprep.mubr.f32.mxu0 0.0
      %906 = vmatmul.mubr.f32.gmra.mrb[0].mxu0 %v467
      %v907 = vpop.f32.mrb[0].mxu0
      %v908 = vadd.f32 %v683, %v907
      %v909 = vpop.f32.mrb[0].mxu0
      %910 = vmatprep.mubr.f32.mxu0 0.0
      %911 = vmatmul.mubr.f32.gmra.mrb[0].mxu0 %v468
      %v912 = vpop.f32.mrb[0].mxu0
      %v913 = vadd.f32 %v688, %v912
      %v914 = vpop.f32.mrb[0].mxu0
      %915 = vmatprep.mubr.f32.mxu0 0.0
      %916 = vmatmul.mubr.f32.gmra.mrb[0].mxu0 %v469
      %v917 = vpop.f32.mrb[0].mxu0
      %v918 = vadd.f32 %v693, %v917
      %v919 = vpop.f32.mrb[0].mxu0
      %920 = vmatprep.mubr.f32.mxu0 0.0
      %921 = vmatmul.mubr.f32.gmra.mrb[0].mxu0 %v470
      %v922 = vpop.f32.mrb[0].mxu0
      %v923 = vadd.f32 %v698, %v922
      %v924 = vpop.f32.mrb[0].mxu0
      %925 = vmatprep.mubr.f32.mxu0 0.0
      %926 = vmatmul.mubr.f32.gmra.mrb[0].mxu0 %v471
      %v927 = vpop.f32.mrb[0].mxu0
      %v928 = vadd.f32 %v703, %v927
      %v929 = vpop.f32.mrb[0].mxu0
      %930 = vmatprep.mubr.f32.mxu0 0.0
      %931 = vmatmul.mubr.f32.gmra.mrb[0].mxu0 %v472
      %v932 = vpop.f32.mrb[0].mxu0
      %v933 = vadd.f32 %v708, %v932
      %v934 = vpop.f32.mrb[0].mxu0
      %935 = vmatprep.mubr.f32.mxu0 0.0
      %936 = vmatmul.mubr.f32.gmra.mrb[0].mxu0 %v473
      %v937 = vpop.f32.mrb[0].mxu0
      %v938 = vadd.f32 %v713, %v937
      %v939 = vpop.f32.mrb[0].mxu0
      %940 = vmatprep.mubr.f32.mxu0 0.0
      %941 = vmatmul.mubr.f32.gmra.mrb[0].mxu0 %v474
      %v942 = vpop.f32.mrb[0].mxu0
      %v943 = vadd.f32 %v718, %v942
      %v944 = vpop.f32.mrb[0].mxu0
      %945 = vmatprep.mubr.f32.mxu0 0.0
      %946 = vmatmul.mubr.f32.gmra.mrb[0].mxu0 %v475
      %v947 = vpop.f32.mrb[0].mxu0
      %v948 = vadd.f32 %v723, %v947
      %v949 = vpop.f32.mrb[0].mxu0
      %950 = vmatprep.mubr.f32.mxu0 0.0
      %951 = vmatmul.mubr.f32.gmra.mrb[0].mxu0 %v476
      %v952 = vpop.f32.mrb[0].mxu0
      %v953 = vadd.f32 %v728, %v952
      %v954 = vpop.f32.mrb[0].mxu0
      %955 = vmatprep.mubr.f32.mxu0 0.0
      %956 = vmatmul.mubr.f32.gmra.mrb[0].mxu0 %v477
      %v957 = vpop.f32.mrb[0].mxu0
      %v958 = vadd.f32 %v733, %v957
      %v959 = vpop.f32.mrb[0].mxu0
      %960 = vmatprep.mubr.f32.mxu0 0.0
      %961 = vmatmul.mubr.f32.gmra.mrb[0].mxu0 %v478
      %v962 = vpop.f32.mrb[0].mxu0
      %v963 = vadd.f32 %v738, %v962
      %v964 = vpop.f32.mrb[0].mxu0
      %965 = vmatprep.mubr.f32.mxu0 0.0
      %966 = vmatmul.mubr.f32.gmra.mrb[0].mxu0 %v479
      %v967 = vpop.f32.mrb[0].mxu0
      %v968 = vadd.f32 %v743, %v967
      %v969 = vpop.f32.mrb[0].mxu0
      %970 = vmatprep.mubr.f32.mxu0 0.0
      %971 = vmatmul.mubr.f32.gmra.mrb[0].mxu0 %v480
      %v972 = vpop.f32.mrb[0].mxu0
      %v973 = vadd.f32 %v748, %v972
      %v974 = vpop.f32.mrb[0].mxu0
      %975 = vmatprep.mubr.f32.mxu0 0.0
      %976 = vmatmul.mubr.f32.gmra.mrb[0].mxu0 %v481
      %v977 = vpop.f32.mrb[0].mxu0
      %v978 = vadd.f32 %v753, %v977
      %v979 = vpop.f32.mrb[0].mxu0
      %980 = vmatprep.mubr.f32.mxu0 0.0
      %981 = vmatmul.mubr.f32.gmra.mrb[0].mxu0 %v482
      %v982 = vpop.f32.mrb[0].mxu0
      %v983 = vadd.f32 %v758, %v982
      %v984 = vpop.f32.mrb[0].mxu0
      %985 = vmatprep.mubr.f32.mxu0 0.0
      %986 = vmatmul.mubr.f32.gmra.mrb[0].mxu0 %v483
      %v987 = vpop.f32.mrb[0].mxu0
      %v988 = vadd.f32 %v763, %v987
      %v989 = vpop.f32.mrb[0].mxu0
      %990 = vmatprep.mubr.f32.mxu0 0.0
      %991 = vmatmul.mubr.f32.gmra.mrb[0].mxu0 %v484
      %v992 = vpop.f32.mrb[0].mxu0
      %v993 = vadd.f32 %v768, %v992
      %v994 = vpop.f32.mrb[0].mxu0
      %995 = vmatprep.mubr.f32.mxu0 0.0
      %996 = vmatmul.mubr.f32.gmra.mrb[0].mxu0 %v485
      %v997 = vpop.f32.mrb[0].mxu0
      %v998 = vadd.f32 %v773, %v997
      %v999 = vpop.f32.mrb[0].mxu0
      %1000 = vdwg.mxu0
      %v1001 = vld [vmem:[#allocation2 + $0x2] sm:$0xff]
      %v1002 = vld [vmem:[#allocation2 + $0xa] sm:$0xff]
      %v1003 = vld [vmem:[#allocation2 + $0x1a] sm:$0xff]
      %v1004 = vld [vmem:[#allocation2 + $0x22] sm:$0xff]
      %v1005 = vld [vmem:[#allocation2 + $0x32] sm:$0xff]
      %v1006 = vld [vmem:[#allocation2 + $0x3a] sm:$0xff]
      %v1007 = vld [vmem:[#allocation2 + $0x4a] sm:$0xff]
      %v1008 = vld [vmem:[#allocation2 + $0x52] sm:$0xff]
      %v1009 = vld [vmem:[#allocation2 + $0x62] sm:$0xff]
      %v1010 = vld [vmem:[#allocation2 + $0x6a] sm:$0xff]
      %v1011 = vld [vmem:[#allocation2 + $0x7a] sm:$0xff]
      %v1012 = vld [vmem:[#allocation2 + $0x82] sm:$0xff]
      %v1013 = vld [vmem:[#allocation2 + $0x92] sm:$0xff]
      %v1014 = vld [vmem:[#allocation2 + $0x9a] sm:$0xff]
      %v1015 = vld [vmem:[#allocation2 + $0xaa] sm:$0xff]
      %v1016 = vld [vmem:[#allocation2 + $0xb2] sm:$0xff]
      %v1017 = vld [vmem:[#allocation2 + $0xc2] sm:$0xff]
      %v1018 = vld [vmem:[#allocation2 + $0xca] sm:$0xff]
      %v1019 = vld [vmem:[#allocation2 + $0xda] sm:$0xff]
      %v1020 = vld [vmem:[#allocation2 + $0xe2] sm:$0xff]
      %v1021 = vld [vmem:[#allocation2 + $0xf2] sm:$0xff]
      %v1022 = vld [vmem:[#allocation2 + $0xfa] sm:$0xff]
      %v1023 = vld [vmem:[#allocation2 + $0x10a] sm:$0xff]
      %v1024 = vld [vmem:[#allocation2 + $0x112] sm:$0xff]
      %v1025 = vld [vmem:[#allocation2 + $0x122] sm:$0xff]
      %v1026 = vld [vmem:[#allocation2 + $0x12a] sm:$0xff]
      %v1027 = vld [vmem:[#allocation2 + $0x13a] sm:$0xff]
      %v1028 = vld [vmem:[#allocation2 + $0x142] sm:$0xff]
      %v1029 = vld [vmem:[#allocation2 + $0x152] sm:$0xff]
      %v1030 = vld [vmem:[#allocation2 + $0x15a] sm:$0xff]
      %v1031 = vld [vmem:[#allocation2 + $0x16a] sm:$0xff]
      %v1032 = vld [vmem:[#allocation2 + $0x172] sm:$0xff]
      %s1033 = scalar_lea.vmem %s3, 256
      %v1034 = vld [vmem:[%s1033] sm:$0xff]
      %v1035 = vld [vmem:[%s1033 + $0x8] sm:$0xff]
      %v1036 = vld [vmem:[%s1033 + $0x10] sm:$0xff]
      %v1037 = vld [vmem:[%s1033 + $0x18] sm:$0xff]
      %v1038 = vld [vmem:[%s1033 + $0x20] sm:$0xff]
      %v1039 = vld [vmem:[%s1033 + $0x28] sm:$0xff]
      %v1040 = vld [vmem:[%s1033 + $0x30] sm:$0xff]
      %v1041 = vld [vmem:[%s1033 + $0x38] sm:$0xff]
      %v1042 = vld [vmem:[%s1033 + $0x40] sm:$0xff]
      %v1043 = vld [vmem:[%s1033 + $0x48] sm:$0xff]
      %v1044 = vld [vmem:[%s1033 + $0x50] sm:$0xff]
      %v1045 = vld [vmem:[%s1033 + $0x58] sm:$0xff]
      %v1046 = vld [vmem:[%s1033 + $0x60] sm:$0xff]
      %v1047 = vld [vmem:[%s1033 + $0x68] sm:$0xff]
      %v1048 = vld [vmem:[%s1033 + $0x70] sm:$0xff]
      %v1049 = vld [vmem:[%s1033 + $0x78] sm:$0xff]
      %1050 = vmatprep.subr.mxu0 0.0
      %1051 = vmatpush1.msra.mxu0 %v1034
      %1052 = vmatprep.subr.mxu0 0.0
      %1053 = vmatpush1.msra.mxu0 %v1035
      %1054 = vmatprep.subr.mxu0 0.0
      %1055 = vmatpush1.msra.mxu0 %v1036
      %1056 = vmatprep.subr.mxu0 0.0
      %1057 = vmatpush1.msra.mxu0 %v1037
      %1058 = vmatprep.subr.mxu0 0.0
      %1059 = vmatpush1.msra.mxu0 %v1038
      %1060 = vmatprep.subr.mxu0 0.0
      %1061 = vmatpush1.msra.mxu0 %v1039
      %1062 = vmatprep.subr.mxu0 0.0
      %1063 = vmatpush1.msra.mxu0 %v1040
      %1064 = vmatprep.subr.mxu0 0.0
      %1065 = vmatpush1.msra.mxu0 %v1041
      %1066 = vmatprep.subr.mxu0 0.0
      %1067 = vmatpush1.msra.mxu0 %v1042
      %1068 = vmatprep.subr.mxu0 0.0
      %1069 = vmatpush1.msra.mxu0 %v1043
      %1070 = vmatprep.subr.mxu0 0.0
      %1071 = vmatpush1.msra.mxu0 %v1044
      %1072 = vmatprep.subr.mxu0 0.0
      %1073 = vmatpush1.msra.mxu0 %v1045
      %1074 = vmatprep.subr.mxu0 0.0
      %1075 = vmatpush1.msra.mxu0 %v1046
      %1076 = vmatprep.subr.mxu0 0.0
      %1077 = vmatpush1.msra.mxu0 %v1047
      %1078 = vmatprep.subr.mxu0 0.0
      %1079 = vmatpush1.msra.mxu0 %v1048
      %1080 = vmatprep.subr.mxu0 0.0
      %1081 = vmatpush1.msra.mxu0 %v1049
      %1082 = vmatprep.subr.mxu0 0.0
      %1083 = vmatpush1.msra.mxu0 0.0
      %1084 = vmatprep.subr.mxu0 0.0
      %1085 = vmatpush1.msra.mxu0 0.0
      %1086 = vmatprep.subr.mxu0 0.0
      %1087 = vmatpush1.msra.mxu0 0.0
      %1088 = vmatprep.subr.mxu0 0.0
      %1089 = vmatpush1.msra.mxu0 0.0
      %1090 = vmatprep.subr.mxu0 0.0
      %1091 = vmatpush1.msra.mxu0 0.0
      %1092 = vmatprep.subr.mxu0 0.0
      %1093 = vmatpush1.msra.mxu0 0.0
      %1094 = vmatprep.subr.mxu0 0.0
      %1095 = vmatpush1.msra.mxu0 0.0
      %1096 = vmatprep.subr.mxu0 0.0
      %1097 = vmatpush1.msra.mxu0 0.0
      %1098 = vmatprep.subr.mxu0 0.0
      %1099 = vmatpush1.msra.mxu0 0.0
      %1100 = vmatprep.subr.mxu0 0.0
      %1101 = vmatpush1.msra.mxu0 0.0
      %1102 = vmatprep.subr.mxu0 0.0
      %1103 = vmatpush1.msra.mxu0 0.0
      %1104 = vmatprep.subr.mxu0 0.0
      %1105 = vmatpush1.msra.mxu0 0.0
      %1106 = vmatprep.subr.mxu0 0.0
      %1107 = vmatpush1.msra.mxu0 0.0
      %1108 = vmatprep.subr.mxu0 0.0
      %1109 = vmatpush1.msra.mxu0 0.0
      %1110 = vmatprep.subr.mxu0 0.0
      %1111 = vmatpush1.msra.mxu0 0.0
      %1112 = vmatprep.subr.mxu0 0.0
      %1113 = vmatpush1.msra.mxu0 0.0
      %1114 = vmatprep.mubr.f32.mxu0 0.0
      %1115 = vmatmul.mubr.f32.gmra.mrb[0].mxu0 %v1001
      %v1116 = vpop.f32.mrb[0].mxu0
      %v1117 = vadd.f32 0.0, %v1116
      %v1118 = vpop.f32.mrb[0].mxu0
      %1119 = vmatprep.mubr.f32.mxu0 0.0
      %1120 = vmatmul.mubr.f32.gmra.mrb[0].mxu0 %v1002
      %v1121 = vpop.f32.mrb[0].mxu0
      %v1122 = vadd.f32 0.0, %v1121
      %v1123 = vpop.f32.mrb[0].mxu0
      %1124 = vmatprep.mubr.f32.mxu0 0.0
      %1125 = vmatmul.mubr.f32.gmra.mrb[0].mxu0 %v1003
      %v1126 = vpop.f32.mrb[0].mxu0
      %v1127 = vadd.f32 0.0, %v1126
      %v1128 = vpop.f32.mrb[0].mxu0
      %1129 = vmatprep.mubr.f32.mxu0 0.0
      %1130 = vmatmul.mubr.f32.gmra.mrb[0].mxu0 %v1004
      %v1131 = vpop.f32.mrb[0].mxu0
      %v1132 = vadd.f32 0.0, %v1131
      %v1133 = vpop.f32.mrb[0].mxu0
      %1134 = vmatprep.mubr.f32.mxu0 0.0
      %1135 = vmatmul.mubr.f32.gmra.mrb[0].mxu0 %v1005
      %v1136 = vpop.f32.mrb[0].mxu0
      %v1137 = vadd.f32 0.0, %v1136
      %v1138 = vpop.f32.mrb[0].mxu0
      %1139 = vmatprep.mubr.f32.mxu0 0.0
      %1140 = vmatmul.mubr.f32.gmra.mrb[0].mxu0 %v1006
      %v1141 = vpop.f32.mrb[0].mxu0
      %v1142 = vadd.f32 0.0, %v1141
      %v1143 = vpop.f32.mrb[0].mxu0
      %1144 = vmatprep.mubr.f32.mxu0 0.0
      %1145 = vmatmul.mubr.f32.gmra.mrb[0].mxu0 %v1007
      %v1146 = vpop.f32.mrb[0].mxu0
      %v1147 = vadd.f32 0.0, %v1146
      %v1148 = vpop.f32.mrb[0].mxu0
      %1149 = vmatprep.mubr.f32.mxu0 0.0
      %1150 = vmatmul.mubr.f32.gmra.mrb[0].mxu0 %v1008
      %v1151 = vpop.f32.mrb[0].mxu0
      %v1152 = vadd.f32 0.0, %v1151
      %v1153 = vpop.f32.mrb[0].mxu0
      %1154 = vmatprep.mubr.f32.mxu0 0.0
      %1155 = vmatmul.mubr.f32.gmra.mrb[0].mxu0 %v1009
      %v1156 = vpop.f32.mrb[0].mxu0
      %v1157 = vadd.f32 0.0, %v1156
      %v1158 = vpop.f32.mrb[0].mxu0
      %1159 = vmatprep.mubr.f32.mxu0 0.0
      %1160 = vmatmul.mubr.f32.gmra.mrb[0].mxu0 %v1010
      %v1161 = vpop.f32.mrb[0].mxu0
      %v1162 = vadd.f32 0.0, %v1161
      %v1163 = vpop.f32.mrb[0].mxu0
      %1164 = vmatprep.mubr.f32.mxu0 0.0
      %1165 = vmatmul.mubr.f32.gmra.mrb[0].mxu0 %v1011
      %v1166 = vpop.f32.mrb[0].mxu0
      %v1167 = vadd.f32 0.0, %v1166
      %v1168 = vpop.f32.mrb[0].mxu0
      %1169 = vmatprep.mubr.f32.mxu0 0.0
      %1170 = vmatmul.mubr.f32.gmra.mrb[0].mxu0 %v1012
      %v1171 = vpop.f32.mrb[0].mxu0
      %v1172 = vadd.f32 0.0, %v1171
      %v1173 = vpop.f32.mrb[0].mxu0
      %1174 = vmatprep.mubr.f32.mxu0 0.0
      %1175 = vmatmul.mubr.f32.gmra.mrb[0].mxu0 %v1013
      %v1176 = vpop.f32.mrb[0].mxu0
      %v1177 = vadd.f32 0.0, %v1176
      %v1178 = vpop.f32.mrb[0].mxu0
      %1179 = vmatprep.mubr.f32.mxu0 0.0
      %1180 = vmatmul.mubr.f32.gmra.mrb[0].mxu0 %v1014
      %v1181 = vpop.f32.mrb[0].mxu0
      %v1182 = vadd.f32 0.0, %v1181
      %v1183 = vpop.f32.mrb[0].mxu0
      %1184 = vmatprep.mubr.f32.mxu0 0.0
      %1185 = vmatmul.mubr.f32.gmra.mrb[0].mxu0 %v1015
      %v1186 = vpop.f32.mrb[0].mxu0
      %v1187 = vadd.f32 0.0, %v1186
      %v1188 = vpop.f32.mrb[0].mxu0
      %1189 = vmatprep.mubr.f32.mxu0 0.0
      %1190 = vmatmul.mubr.f32.gmra.mrb[0].mxu0 %v1016
      %v1191 = vpop.f32.mrb[0].mxu0
      %v1192 = vadd.f32 0.0, %v1191
      %v1193 = vpop.f32.mrb[0].mxu0
      %1194 = vmatprep.mubr.f32.mxu0 0.0
      %1195 = vmatmul.mubr.f32.gmra.mrb[0].mxu0 %v1017
      %v1196 = vpop.f32.mrb[0].mxu0
      %v1197 = vadd.f32 0.0, %v1196
      %v1198 = vpop.f32.mrb[0].mxu0
      %1199 = vmatprep.mubr.f32.mxu0 0.0
      %1200 = vmatmul.mubr.f32.gmra.mrb[0].mxu0 %v1018
      %v1201 = vpop.f32.mrb[0].mxu0
      %v1202 = vadd.f32 0.0, %v1201
      %v1203 = vpop.f32.mrb[0].mxu0
      %1204 = vmatprep.mubr.f32.mxu0 0.0
      %1205 = vmatmul.mubr.f32.gmra.mrb[0].mxu0 %v1019
      %v1206 = vpop.f32.mrb[0].mxu0
      %v1207 = vadd.f32 0.0, %v1206
      %v1208 = vpop.f32.mrb[0].mxu0
      %1209 = vmatprep.mubr.f32.mxu0 0.0
      %1210 = vmatmul.mubr.f32.gmra.mrb[0].mxu0 %v1020
      %v1211 = vpop.f32.mrb[0].mxu0
      %v1212 = vadd.f32 0.0, %v1211
      %v1213 = vpop.f32.mrb[0].mxu0
      %1214 = vmatprep.mubr.f32.mxu0 0.0
      %1215 = vmatmul.mubr.f32.gmra.mrb[0].mxu0 %v1021
      %v1216 = vpop.f32.mrb[0].mxu0
      %v1217 = vadd.f32 0.0, %v1216
      %v1218 = vpop.f32.mrb[0].mxu0
      %1219 = vmatprep.mubr.f32.mxu0 0.0
      %1220 = vmatmul.mubr.f32.gmra.mrb[0].mxu0 %v1022
      %v1221 = vpop.f32.mrb[0].mxu0
      %v1222 = vadd.f32 0.0, %v1221
      %v1223 = vpop.f32.mrb[0].mxu0
      %1224 = vmatprep.mubr.f32.mxu0 0.0
      %1225 = vmatmul.mubr.f32.gmra.mrb[0].mxu0 %v1023
      %v1226 = vpop.f32.mrb[0].mxu0
      %v1227 = vadd.f32 0.0, %v1226
      %v1228 = vpop.f32.mrb[0].mxu0
      %1229 = vmatprep.mubr.f32.mxu0 0.0
      %1230 = vmatmul.mubr.f32.gmra.mrb[0].mxu0 %v1024
      %v1231 = vpop.f32.mrb[0].mxu0
      %v1232 = vadd.f32 0.0, %v1231
      %v1233 = vpop.f32.mrb[0].mxu0
      %1234 = vmatprep.mubr.f32.mxu0 0.0
      %1235 = vmatmul.mubr.f32.gmra.mrb[0].mxu0 %v1025
      %v1236 = vpop.f32.mrb[0].mxu0
      %v1237 = vadd.f32 0.0, %v1236
      %v1238 = vpop.f32.mrb[0].mxu0
      %1239 = vmatprep.mubr.f32.mxu0 0.0
      %1240 = vmatmul.mubr.f32.gmra.mrb[0].mxu0 %v1026
      %v1241 = vpop.f32.mrb[0].mxu0
      %v1242 = vadd.f32 0.0, %v1241
      %v1243 = vpop.f32.mrb[0].mxu0
      %1244 = vmatprep.mubr.f32.mxu0 0.0
      %1245 = vmatmul.mubr.f32.gmra.mrb[0].mxu0 %v1027
      %v1246 = vpop.f32.mrb[0].mxu0
      %v1247 = vadd.f32 0.0, %v1246
      %v1248 = vpop.f32.mrb[0].mxu0
      %1249 = vmatprep.mubr.f32.mxu0 0.0
      %1250 = vmatmul.mubr.f32.gmra.mrb[0].mxu0 %v1028
      %v1251 = vpop.f32.mrb[0].mxu0
      %v1252 = vadd.f32 0.0, %v1251
      %v1253 = vpop.f32.mrb[0].mxu0
      %1254 = vmatprep.mubr.f32.mxu0 0.0
      %1255 = vmatmul.mubr.f32.gmra.mrb[0].mxu0 %v1029
      %v1256 = vpop.f32.mrb[0].mxu0
      %v1257 = vadd.f32 0.0, %v1256
      %v1258 = vpop.f32.mrb[0].mxu0
      %1259 = vmatprep.mubr.f32.mxu0 0.0
      %1260 = vmatmul.mubr.f32.gmra.mrb[0].mxu0 %v1030
      %v1261 = vpop.f32.mrb[0].mxu0
      %v1262 = vadd.f32 0.0, %v1261
      %v1263 = vpop.f32.mrb[0].mxu0
      %1264 = vmatprep.mubr.f32.mxu0 0.0
      %1265 = vmatmul.mubr.f32.gmra.mrb[0].mxu0 %v1031
      %v1266 = vpop.f32.mrb[0].mxu0
      %v1267 = vadd.f32 0.0, %v1266
      %v1268 = vpop.f32.mrb[0].mxu0
      %1269 = vmatprep.mubr.f32.mxu0 0.0
      %1270 = vmatmul.mubr.f32.gmra.mrb[0].mxu0 %v1032
      %v1271 = vpop.f32.mrb[0].mxu0
      %v1272 = vadd.f32 0.0, %v1271
      %v1273 = vpop.f32.mrb[0].mxu0
      %1274 = vdwg.mxu0
      %v1275 = vadd.f32 %v843, %v1117
      %v1276 = vadd.f32 %v848, %v1122
      %v1277 = vadd.f32 %v853, %v1127
      %v1278 = vadd.f32 %v858, %v1132
      %v1279 = vadd.f32 %v863, %v1137
      %v1280 = vadd.f32 %v868, %v1142
      %v1281 = vadd.f32 %v873, %v1147
      %v1282 = vadd.f32 %v878, %v1152
      %v1283 = vadd.f32 %v883, %v1157
      %v1284 = vadd.f32 %v888, %v1162
      %v1285 = vadd.f32 %v893, %v1167
      %v1286 = vadd.f32 %v898, %v1172
      %v1287 = vadd.f32 %v903, %v1177
      %v1288 = vadd.f32 %v908, %v1182
      %v1289 = vadd.f32 %v913, %v1187
      %v1290 = vadd.f32 %v918, %v1192
      %v1291 = vadd.f32 %v923, %v1197
      %v1292 = vadd.f32 %v928, %v1202
      %v1293 = vadd.f32 %v933, %v1207
      %v1294 = vadd.f32 %v938, %v1212
      %v1295 = vadd.f32 %v943, %v1217
      %v1296 = vadd.f32 %v948, %v1222
      %v1297 = vadd.f32 %v953, %v1227
      %v1298 = vadd.f32 %v958, %v1232
      %v1299 = vadd.f32 %v963, %v1237
      %v1300 = vadd.f32 %v968, %v1242
      %v1301 = vadd.f32 %v973, %v1247
      %v1302 = vadd.f32 %v978, %v1252
      %v1303 = vadd.f32 %v983, %v1257
      %v1304 = vadd.f32 %v988, %v1262
      %v1305 = vadd.f32 %v993, %v1267
      %v1306 = vadd.f32 %v998, %v1272
      %v1307 = vld [vmem:[%s421] sm:$0xff]
      %v1308 = vld [vmem:[%s421 + $0x8] sm:$0xff]
      %v1309 = vld [vmem:[%s421 + $0x18] sm:$0xff]
      %v1310 = vld [vmem:[%s421 + $0x20] sm:$0xff]
      %v1311 = vld [vmem:[%s421 + $0x30] sm:$0xff]
      %v1312 = vld [vmem:[%s421 + $0x38] sm:$0xff]
      %v1313 = vld [vmem:[%s421 + $0x48] sm:$0xff]
      %v1314 = vld [vmem:[%s421 + $0x50] sm:$0xff]
      %v1315 = vld [vmem:[%s421 + $0x60] sm:$0xff]
      %v1316 = vld [vmem:[%s421 + $0x68] sm:$0xff]
      %v1317 = vld [vmem:[%s421 + $0x78] sm:$0xff]
      %v1318 = vld [vmem:[%s421 + $0x80] sm:$0xff]
      %v1319 = vld [vmem:[%s421 + $0x90] sm:$0xff]
      %v1320 = vld [vmem:[%s421 + $0x98] sm:$0xff]
      %v1321 = vld [vmem:[%s421 + $0xa8] sm:$0xff]
      %v1322 = vld [vmem:[%s421 + $0xb0] sm:$0xff]
      %v1323 = vld [vmem:[%s421 + $0xc0] sm:$0xff]
      %v1324 = vld [vmem:[%s421 + $0xc8] sm:$0xff]
      %v1325 = vld [vmem:[%s421 + $0xd8] sm:$0xff]
      %v1326 = vld [vmem:[%s421 + $0xe0] sm:$0xff]
      %v1327 = vld [vmem:[%s421 + $0xf0] sm:$0xff]
      %v1328 = vld [vmem:[%s421 + $0xf8] sm:$0xff]
      %v1329 = vld [vmem:[%s421 + $0x108] sm:$0xff]
      %v1330 = vld [vmem:[%s421 + $0x110] sm:$0xff]
      %v1331 = vld [vmem:[%s421 + $0x120] sm:$0xff]
      %v1332 = vld [vmem:[%s421 + $0x128] sm:$0xff]
      %v1333 = vld [vmem:[%s421 + $0x138] sm:$0xff]
      %v1334 = vld [vmem:[%s421 + $0x140] sm:$0xff]
      %v1335 = vld [vmem:[%s421 + $0x150] sm:$0xff]
      %v1336 = vld [vmem:[%s421 + $0x158] sm:$0xff]
      %v1337 = vld [vmem:[%s421 + $0x168] sm:$0xff]
      %v1338 = vld [vmem:[%s421 + $0x170] sm:$0xff]
      %s1339 = scalar_lea.vmem %s3, 384
      %v1340 = vld [vmem:[%s1339] sm:$0xff]
      %v1341 = vld [vmem:[%s1339 + $0x8] sm:$0xff]
      %v1342 = vld [vmem:[%s1339 + $0x10] sm:$0xff]
      %v1343 = vld [vmem:[%s1339 + $0x18] sm:$0xff]
      %v1344 = vld [vmem:[%s1339 + $0x20] sm:$0xff]
      %v1345 = vld [vmem:[%s1339 + $0x28] sm:$0xff]
      %v1346 = vld [vmem:[%s1339 + $0x30] sm:$0xff]
      %v1347 = vld [vmem:[%s1339 + $0x38] sm:$0xff]
      %v1348 = vld [vmem:[%s1339 + $0x40] sm:$0xff]
      %v1349 = vld [vmem:[%s1339 + $0x48] sm:$0xff]
      %v1350 = vld [vmem:[%s1339 + $0x50] sm:$0xff]
      %v1351 = vld [vmem:[%s1339 + $0x58] sm:$0xff]
      %v1352 = vld [vmem:[%s1339 + $0x60] sm:$0xff]
      %v1353 = vld [vmem:[%s1339 + $0x68] sm:$0xff]
      %v1354 = vld [vmem:[%s1339 + $0x70] sm:$0xff]
      %v1355 = vld [vmem:[%s1339 + $0x78] sm:$0xff]
      %1356 = vmatprep.subr.mxu0 0.0
      %1357 = vmatpush1.msra.mxu0 %v1340
      %1358 = vmatprep.subr.mxu0 0.0
      %1359 = vmatpush1.msra.mxu0 %v1341
      %1360 = vmatprep.subr.mxu0 0.0
      %1361 = vmatpush1.msra.mxu0 %v1342
      %1362 = vmatprep.subr.mxu0 0.0
      %1363 = vmatpush1.msra.mxu0 %v1343
      %1364 = vmatprep.subr.mxu0 0.0
      %1365 = vmatpush1.msra.mxu0 %v1344
      %1366 = vmatprep.subr.mxu0 0.0
      %1367 = vmatpush1.msra.mxu0 %v1345
      %1368 = vmatprep.subr.mxu0 0.0
      %1369 = vmatpush1.msra.mxu0 %v1346
      %1370 = vmatprep.subr.mxu0 0.0
      %1371 = vmatpush1.msra.mxu0 %v1347
      %1372 = vmatprep.subr.mxu0 0.0
      %1373 = vmatpush1.msra.mxu0 %v1348
      %1374 = vmatprep.subr.mxu0 0.0
      %1375 = vmatpush1.msra.mxu0 %v1349
      %1376 = vmatprep.subr.mxu0 0.0
      %1377 = vmatpush1.msra.mxu0 %v1350
      %1378 = vmatprep.subr.mxu0 0.0
      %1379 = vmatpush1.msra.mxu0 %v1351
      %1380 = vmatprep.subr.mxu0 0.0
      %1381 = vmatpush1.msra.mxu0 %v1352
      %1382 = vmatprep.subr.mxu0 0.0
      %1383 = vmatpush1.msra.mxu0 %v1353
      %1384 = vmatprep.subr.mxu0 0.0
      %1385 = vmatpush1.msra.mxu0 %v1354
      %1386 = vmatprep.subr.mxu0 0.0
      %1387 = vmatpush1.msra.mxu0 %v1355
      %1388 = vmatprep.subr.mxu0 0.0
      %1389 = vmatpush1.msra.mxu0 0.0
      %1390 = vmatprep.subr.mxu0 0.0
      %1391 = vmatpush1.msra.mxu0 0.0
      %1392 = vmatprep.subr.mxu0 0.0
      %1393 = vmatpush1.msra.mxu0 0.0
      %1394 = vmatprep.subr.mxu0 0.0
      %1395 = vmatpush1.msra.mxu0 0.0
      %1396 = vmatprep.subr.mxu0 0.0
      %1397 = vmatpush1.msra.mxu0 0.0
      %1398 = vmatprep.subr.mxu0 0.0
      %1399 = vmatpush1.msra.mxu0 0.0
      %1400 = vmatprep.subr.mxu0 0.0
      %1401 = vmatpush1.msra.mxu0 0.0
      %1402 = vmatprep.subr.mxu0 0.0
      %1403 = vmatpush1.msra.mxu0 0.0
      %1404 = vmatprep.subr.mxu0 0.0
      %1405 = vmatpush1.msra.mxu0 0.0
      %1406 = vmatprep.subr.mxu0 0.0
      %1407 = vmatpush1.msra.mxu0 0.0
      %1408 = vmatprep.subr.mxu0 0.0
      %1409 = vmatpush1.msra.mxu0 0.0
      %1410 = vmatprep.subr.mxu0 0.0
      %1411 = vmatpush1.msra.mxu0 0.0
      %1412 = vmatprep.subr.mxu0 0.0
      %1413 = vmatpush1.msra.mxu0 0.0
      %1414 = vmatprep.subr.mxu0 0.0
      %1415 = vmatpush1.msra.mxu0 0.0
      %1416 = vmatprep.subr.mxu0 0.0
      %1417 = vmatpush1.msra.mxu0 0.0
      %1418 = vmatprep.subr.mxu0 0.0
      %1419 = vmatpush1.msra.mxu0 0.0
      %1420 = vmatprep.mubr.f32.mxu0 0.0
      %1421 = vmatmul.mubr.f32.gmra.mrb[0].mxu0 %v1307
      %v1422 = vpop.f32.mrb[0].mxu0
      %v1423 = vadd.f32 0.0, %v1422
      %v1424 = vpop.f32.mrb[0].mxu0
      %1425 = vmatprep.mubr.f32.mxu0 0.0
      %1426 = vmatmul.mubr.f32.gmra.mrb[0].mxu0 %v1308
      %v1427 = vpop.f32.mrb[0].mxu0
      %v1428 = vadd.f32 0.0, %v1427
      %v1429 = vpop.f32.mrb[0].mxu0
      %1430 = vmatprep.mubr.f32.mxu0 0.0
      %1431 = vmatmul.mubr.f32.gmra.mrb[0].mxu0 %v1309
      %v1432 = vpop.f32.mrb[0].mxu0
      %v1433 = vadd.f32 0.0, %v1432
      %v1434 = vpop.f32.mrb[0].mxu0
      %1435 = vmatprep.mubr.f32.mxu0 0.0
      %1436 = vmatmul.mubr.f32.gmra.mrb[0].mxu0 %v1310
      %v1437 = vpop.f32.mrb[0].mxu0
      %v1438 = vadd.f32 0.0, %v1437
      %v1439 = vpop.f32.mrb[0].mxu0
      %1440 = vmatprep.mubr.f32.mxu0 0.0
      %1441 = vmatmul.mubr.f32.gmra.mrb[0].mxu0 %v1311
      %v1442 = vpop.f32.mrb[0].mxu0
      %v1443 = vadd.f32 0.0, %v1442
      %v1444 = vpop.f32.mrb[0].mxu0
      %1445 = vmatprep.mubr.f32.mxu0 0.0
      %1446 = vmatmul.mubr.f32.gmra.mrb[0].mxu0 %v1312
      %v1447 = vpop.f32.mrb[0].mxu0
      %v1448 = vadd.f32 0.0, %v1447
      %v1449 = vpop.f32.mrb[0].mxu0
      %1450 = vmatprep.mubr.f32.mxu0 0.0
      %1451 = vmatmul.mubr.f32.gmra.mrb[0].mxu0 %v1313
      %v1452 = vpop.f32.mrb[0].mxu0
      %v1453 = vadd.f32 0.0, %v1452
      %v1454 = vpop.f32.mrb[0].mxu0
      %1455 = vmatprep.mubr.f32.mxu0 0.0
      %1456 = vmatmul.mubr.f32.gmra.mrb[0].mxu0 %v1314
      %v1457 = vpop.f32.mrb[0].mxu0
      %v1458 = vadd.f32 0.0, %v1457
      %v1459 = vpop.f32.mrb[0].mxu0
      %1460 = vmatprep.mubr.f32.mxu0 0.0
      %1461 = vmatmul.mubr.f32.gmra.mrb[0].mxu0 %v1315
      %v1462 = vpop.f32.mrb[0].mxu0
      %v1463 = vadd.f32 0.0, %v1462
      %v1464 = vpop.f32.mrb[0].mxu0
      %1465 = vmatprep.mubr.f32.mxu0 0.0
      %1466 = vmatmul.mubr.f32.gmra.mrb[0].mxu0 %v1316
      %v1467 = vpop.f32.mrb[0].mxu0
      %v1468 = vadd.f32 0.0, %v1467
      %v1469 = vpop.f32.mrb[0].mxu0
      %1470 = vmatprep.mubr.f32.mxu0 0.0
      %1471 = vmatmul.mubr.f32.gmra.mrb[0].mxu0 %v1317
      %v1472 = vpop.f32.mrb[0].mxu0
      %v1473 = vadd.f32 0.0, %v1472
      %v1474 = vpop.f32.mrb[0].mxu0
      %1475 = vmatprep.mubr.f32.mxu0 0.0
      %1476 = vmatmul.mubr.f32.gmra.mrb[0].mxu0 %v1318
      %v1477 = vpop.f32.mrb[0].mxu0
      %v1478 = vadd.f32 0.0, %v1477
      %v1479 = vpop.f32.mrb[0].mxu0
      %1480 = vmatprep.mubr.f32.mxu0 0.0
      %1481 = vmatmul.mubr.f32.gmra.mrb[0].mxu0 %v1319
      %v1482 = vpop.f32.mrb[0].mxu0
      %v1483 = vadd.f32 0.0, %v1482
      %v1484 = vpop.f32.mrb[0].mxu0
      %1485 = vmatprep.mubr.f32.mxu0 0.0
      %1486 = vmatmul.mubr.f32.gmra.mrb[0].mxu0 %v1320
      %v1487 = vpop.f32.mrb[0].mxu0
      %v1488 = vadd.f32 0.0, %v1487
      %v1489 = vpop.f32.mrb[0].mxu0
      %1490 = vmatprep.mubr.f32.mxu0 0.0
      %1491 = vmatmul.mubr.f32.gmra.mrb[0].mxu0 %v1321
      %v1492 = vpop.f32.mrb[0].mxu0
      %v1493 = vadd.f32 0.0, %v1492
      %v1494 = vpop.f32.mrb[0].mxu0
      %1495 = vmatprep.mubr.f32.mxu0 0.0
      %1496 = vmatmul.mubr.f32.gmra.mrb[0].mxu0 %v1322
      %v1497 = vpop.f32.mrb[0].mxu0
      %v1498 = vadd.f32 0.0, %v1497
      %v1499 = vpop.f32.mrb[0].mxu0
      %1500 = vmatprep.mubr.f32.mxu0 0.0
      %1501 = vmatmul.mubr.f32.gmra.mrb[0].mxu0 %v1323
      %v1502 = vpop.f32.mrb[0].mxu0
      %v1503 = vadd.f32 0.0, %v1502
      %v1504 = vpop.f32.mrb[0].mxu0
      %1505 = vmatprep.mubr.f32.mxu0 0.0
      %1506 = vmatmul.mubr.f32.gmra.mrb[0].mxu0 %v1324
      %v1507 = vpop.f32.mrb[0].mxu0
      %v1508 = vadd.f32 0.0, %v1507
      %v1509 = vpop.f32.mrb[0].mxu0
      %1510 = vmatprep.mubr.f32.mxu0 0.0
      %1511 = vmatmul.mubr.f32.gmra.mrb[0].mxu0 %v1325
      %v1512 = vpop.f32.mrb[0].mxu0
      %v1513 = vadd.f32 0.0, %v1512
      %v1514 = vpop.f32.mrb[0].mxu0
      %1515 = vmatprep.mubr.f32.mxu0 0.0
      %1516 = vmatmul.mubr.f32.gmra.mrb[0].mxu0 %v1326
      %v1517 = vpop.f32.mrb[0].mxu0
      %v1518 = vadd.f32 0.0, %v1517
      %v1519 = vpop.f32.mrb[0].mxu0
      %1520 = vmatprep.mubr.f32.mxu0 0.0
      %1521 = vmatmul.mubr.f32.gmra.mrb[0].mxu0 %v1327
      %v1522 = vpop.f32.mrb[0].mxu0
      %v1523 = vadd.f32 0.0, %v1522
      %v1524 = vpop.f32.mrb[0].mxu0
      %1525 = vmatprep.mubr.f32.mxu0 0.0
      %1526 = vmatmul.mubr.f32.gmra.mrb[0].mxu0 %v1328
      %v1527 = vpop.f32.mrb[0].mxu0
      %v1528 = vadd.f32 0.0, %v1527
      %v1529 = vpop.f32.mrb[0].mxu0
      %1530 = vmatprep.mubr.f32.mxu0 0.0
      %1531 = vmatmul.mubr.f32.gmra.mrb[0].mxu0 %v1329
      %v1532 = vpop.f32.mrb[0].mxu0
      %v1533 = vadd.f32 0.0, %v1532
      %v1534 = vpop.f32.mrb[0].mxu0
      %1535 = vmatprep.mubr.f32.mxu0 0.0
      %1536 = vmatmul.mubr.f32.gmra.mrb[0].mxu0 %v1330
      %v1537 = vpop.f32.mrb[0].mxu0
      %v1538 = vadd.f32 0.0, %v1537
      %v1539 = vpop.f32.mrb[0].mxu0
      %1540 = vmatprep.mubr.f32.mxu0 0.0
      %1541 = vmatmul.mubr.f32.gmra.mrb[0].mxu0 %v1331
      %v1542 = vpop.f32.mrb[0].mxu0
      %v1543 = vadd.f32 0.0, %v1542
      %v1544 = vpop.f32.mrb[0].mxu0
      %1545 = vmatprep.mubr.f32.mxu0 0.0
      %1546 = vmatmul.mubr.f32.gmra.mrb[0].mxu0 %v1332
      %v1547 = vpop.f32.mrb[0].mxu0
      %v1548 = vadd.f32 0.0, %v1547
      %v1549 = vpop.f32.mrb[0].mxu0
      %1550 = vmatprep.mubr.f32.mxu0 0.0
      %1551 = vmatmul.mubr.f32.gmra.mrb[0].mxu0 %v1333
      %v1552 = vpop.f32.mrb[0].mxu0
      %v1553 = vadd.f32 0.0, %v1552
      %v1554 = vpop.f32.mrb[0].mxu0
      %1555 = vmatprep.mubr.f32.mxu0 0.0
      %1556 = vmatmul.mubr.f32.gmra.mrb[0].mxu0 %v1334
      %v1557 = vpop.f32.mrb[0].mxu0
      %v1558 = vadd.f32 0.0, %v1557
      %v1559 = vpop.f32.mrb[0].mxu0
      %1560 = vmatprep.mubr.f32.mxu0 0.0
      %1561 = vmatmul.mubr.f32.gmra.mrb[0].mxu0 %v1335
      %v1562 = vpop.f32.mrb[0].mxu0
      %v1563 = vadd.f32 0.0, %v1562
      %v1564 = vpop.f32.mrb[0].mxu0
      %1565 = vmatprep.mubr.f32.mxu0 0.0
      %1566 = vmatmul.mubr.f32.gmra.mrb[0].mxu0 %v1336
      %v1567 = vpop.f32.mrb[0].mxu0
      %v1568 = vadd.f32 0.0, %v1567
      %v1569 = vpop.f32.mrb[0].mxu0
      %1570 = vmatprep.mubr.f32.mxu0 0.0
      %1571 = vmatmul.mubr.f32.gmra.mrb[0].mxu0 %v1337
      %v1572 = vpop.f32.mrb[0].mxu0
      %v1573 = vadd.f32 0.0, %v1572
      %v1574 = vpop.f32.mrb[0].mxu0
      %1575 = vmatprep.mubr.f32.mxu0 0.0
      %1576 = vmatmul.mubr.f32.gmra.mrb[0].mxu0 %v1338
      %v1577 = vpop.f32.mrb[0].mxu0
      %v1578 = vadd.f32 0.0, %v1577
      %v1579 = vpop.f32.mrb[0].mxu0
      %1580 = vdwg.mxu0
      %v1581 = vadd.f32 %v1275, %v1423
      %v1582 = vadd.f32 %v1276, %v1428
      %v1583 = vadd.f32 %v1277, %v1433
      %v1584 = vadd.f32 %v1278, %v1438
      %v1585 = vadd.f32 %v1279, %v1443
      %v1586 = vadd.f32 %v1280, %v1448
      %v1587 = vadd.f32 %v1281, %v1453
      %v1588 = vadd.f32 %v1282, %v1458
      %v1589 = vadd.f32 %v1283, %v1463
      %v1590 = vadd.f32 %v1284, %v1468
      %v1591 = vadd.f32 %v1285, %v1473
      %v1592 = vadd.f32 %v1286, %v1478
      %v1593 = vadd.f32 %v1287, %v1483
      %v1594 = vadd.f32 %v1288, %v1488
      %v1595 = vadd.f32 %v1289, %v1493
      %v1596 = vadd.f32 %v1290, %v1498
      %v1597 = vadd.f32 %v1291, %v1503
      %v1598 = vadd.f32 %v1292, %v1508
      %v1599 = vadd.f32 %v1293, %v1513
      %v1600 = vadd.f32 %v1294, %v1518
      %v1601 = vadd.f32 %v1295, %v1523
      %v1602 = vadd.f32 %v1296, %v1528
      %v1603 = vadd.f32 %v1297, %v1533
      %v1604 = vadd.f32 %v1298, %v1538
      %v1605 = vadd.f32 %v1299, %v1543
      %v1606 = vadd.f32 %v1300, %v1548
      %v1607 = vadd.f32 %v1301, %v1553
      %v1608 = vadd.f32 %v1302, %v1558
      %v1609 = vadd.f32 %v1303, %v1563
      %v1610 = vadd.f32 %v1304, %v1568
      %v1611 = vadd.f32 %v1305, %v1573
      %v1612 = vadd.f32 %v1306, %v1578
      %v1613 = vld [vmem:[%s421 + $0x1] sm:$0xff]
      %v1614 = vld [vmem:[%s421 + $0x9] sm:$0xff]
      %v1615 = vld [vmem:[%s421 + $0x19] sm:$0xff]
      %v1616 = vld [vmem:[%s421 + $0x21] sm:$0xff]
      %v1617 = vld [vmem:[%s421 + $0x31] sm:$0xff]
      %v1618 = vld [vmem:[%s421 + $0x39] sm:$0xff]
      %v1619 = vld [vmem:[%s421 + $0x49] sm:$0xff]
      %v1620 = vld [vmem:[%s421 + $0x51] sm:$0xff]
      %v1621 = vld [vmem:[%s421 + $0x61] sm:$0xff]
      %v1622 = vld [vmem:[%s421 + $0x69] sm:$0xff]
      %v1623 = vld [vmem:[%s421 + $0x79] sm:$0xff]
      %v1624 = vld [vmem:[%s421 + $0x81] sm:$0xff]
      %v1625 = vld [vmem:[%s421 + $0x91] sm:$0xff]
      %v1626 = vld [vmem:[%s421 + $0x99] sm:$0xff]
      %v1627 = vld [vmem:[%s421 + $0xa9] sm:$0xff]
      %v1628 = vld [vmem:[%s421 + $0xb1] sm:$0xff]
      %v1629 = vld [vmem:[%s421 + $0xc1] sm:$0xff]
      %v1630 = vld [vmem:[%s421 + $0xc9] sm:$0xff]
      %v1631 = vld [vmem:[%s421 + $0xd9] sm:$0xff]
      %v1632 = vld [vmem:[%s421 + $0xe1] sm:$0xff]
      %v1633 = vld [vmem:[%s421 + $0xf1] sm:$0xff]
      %v1634 = vld [vmem:[%s421 + $0xf9] sm:$0xff]
      %v1635 = vld [vmem:[%s421 + $0x109] sm:$0xff]
      %v1636 = vld [vmem:[%s421 + $0x111] sm:$0xff]
      %v1637 = vld [vmem:[%s421 + $0x121] sm:$0xff]
      %v1638 = vld [vmem:[%s421 + $0x129] sm:$0xff]
      %v1639 = vld [vmem:[%s421 + $0x139] sm:$0xff]
      %v1640 = vld [vmem:[%s421 + $0x141] sm:$0xff]
      %v1641 = vld [vmem:[%s421 + $0x151] sm:$0xff]
      %v1642 = vld [vmem:[%s421 + $0x159] sm:$0xff]
      %v1643 = vld [vmem:[%s421 + $0x169] sm:$0xff]
      %v1644 = vld [vmem:[%s421 + $0x171] sm:$0xff]
      %s1645 = scalar_lea.vmem %s3, 512
      %v1646 = vld [vmem:[%s1645] sm:$0xff]
      %v1647 = vld [vmem:[%s1645 + $0x8] sm:$0xff]
      %v1648 = vld [vmem:[%s1645 + $0x10] sm:$0xff]
      %v1649 = vld [vmem:[%s1645 + $0x18] sm:$0xff]
      %v1650 = vld [vmem:[%s1645 + $0x20] sm:$0xff]
      %v1651 = vld [vmem:[%s1645 + $0x28] sm:$0xff]
      %v1652 = vld [vmem:[%s1645 + $0x30] sm:$0xff]
      %v1653 = vld [vmem:[%s1645 + $0x38] sm:$0xff]
      %v1654 = vld [vmem:[%s1645 + $0x40] sm:$0xff]
      %v1655 = vld [vmem:[%s1645 + $0x48] sm:$0xff]
      %v1656 = vld [vmem:[%s1645 + $0x50] sm:$0xff]
      %v1657 = vld [vmem:[%s1645 + $0x58] sm:$0xff]
      %v1658 = vld [vmem:[%s1645 + $0x60] sm:$0xff]
      %v1659 = vld [vmem:[%s1645 + $0x68] sm:$0xff]
      %v1660 = vld [vmem:[%s1645 + $0x70] sm:$0xff]
      %v1661 = vld [vmem:[%s1645 + $0x78] sm:$0xff]
      %1662 = vmatprep.subr.mxu0 0.0
      %1663 = vmatpush1.msra.mxu0 %v1646
      %1664 = vmatprep.subr.mxu0 0.0
      %1665 = vmatpush1.msra.mxu0 %v1647
      %1666 = vmatprep.subr.mxu0 0.0
      %1667 = vmatpush1.msra.mxu0 %v1648
      %1668 = vmatprep.subr.mxu0 0.0
      %1669 = vmatpush1.msra.mxu0 %v1649
      %1670 = vmatprep.subr.mxu0 0.0
      %1671 = vmatpush1.msra.mxu0 %v1650
      %1672 = vmatprep.subr.mxu0 0.0
      %1673 = vmatpush1.msra.mxu0 %v1651
      %1674 = vmatprep.subr.mxu0 0.0
      %1675 = vmatpush1.msra.mxu0 %v1652
      %1676 = vmatprep.subr.mxu0 0.0
      %1677 = vmatpush1.msra.mxu0 %v1653
      %1678 = vmatprep.subr.mxu0 0.0
      %1679 = vmatpush1.msra.mxu0 %v1654
      %1680 = vmatprep.subr.mxu0 0.0
      %1681 = vmatpush1.msra.mxu0 %v1655
      %1682 = vmatprep.subr.mxu0 0.0
      %1683 = vmatpush1.msra.mxu0 %v1656
      %1684 = vmatprep.subr.mxu0 0.0
      %1685 = vmatpush1.msra.mxu0 %v1657
      %1686 = vmatprep.subr.mxu0 0.0
      %1687 = vmatpush1.msra.mxu0 %v1658
      %1688 = vmatprep.subr.mxu0 0.0
      %1689 = vmatpush1.msra.mxu0 %v1659
      %1690 = vmatprep.subr.mxu0 0.0
      %1691 = vmatpush1.msra.mxu0 %v1660
      %1692 = vmatprep.subr.mxu0 0.0
      %1693 = vmatpush1.msra.mxu0 %v1661
      %1694 = vmatprep.subr.mxu0 0.0
      %1695 = vmatpush1.msra.mxu0 0.0
      %1696 = vmatprep.subr.mxu0 0.0
      %1697 = vmatpush1.msra.mxu0 0.0
      %1698 = vmatprep.subr.mxu0 0.0
      %1699 = vmatpush1.msra.mxu0 0.0
      %1700 = vmatprep.subr.mxu0 0.0
      %1701 = vmatpush1.msra.mxu0 0.0
      %1702 = vmatprep.subr.mxu0 0.0
      %1703 = vmatpush1.msra.mxu0 0.0
      %1704 = vmatprep.subr.mxu0 0.0
      %1705 = vmatpush1.msra.mxu0 0.0
      %1706 = vmatprep.subr.mxu0 0.0
      %1707 = vmatpush1.msra.mxu0 0.0
      %1708 = vmatprep.subr.mxu0 0.0
      %1709 = vmatpush1.msra.mxu0 0.0
      %1710 = vmatprep.subr.mxu0 0.0
      %1711 = vmatpush1.msra.mxu0 0.0
      %1712 = vmatprep.subr.mxu0 0.0
      %1713 = vmatpush1.msra.mxu0 0.0
      %1714 = vmatprep.subr.mxu0 0.0
      %1715 = vmatpush1.msra.mxu0 0.0
      %1716 = vmatprep.subr.mxu0 0.0
      %1717 = vmatpush1.msra.mxu0 0.0
      %1718 = vmatprep.subr.mxu0 0.0
      %1719 = vmatpush1.msra.mxu0 0.0
      %1720 = vmatprep.subr.mxu0 0.0
      %1721 = vmatpush1.msra.mxu0 0.0
      %1722 = vmatprep.subr.mxu0 0.0
      %1723 = vmatpush1.msra.mxu0 0.0
      %1724 = vmatprep.subr.mxu0 0.0
      %1725 = vmatpush1.msra.mxu0 0.0
      %1726 = vmatprep.mubr.f32.mxu0 0.0
      %1727 = vmatmul.mubr.f32.gmra.mrb[0].mxu0 %v1613
      %v1728 = vpop.f32.mrb[0].mxu0
      %v1729 = vadd.f32 0.0, %v1728
      %v1730 = vpop.f32.mrb[0].mxu0
      %1731 = vmatprep.mubr.f32.mxu0 0.0
      %1732 = vmatmul.mubr.f32.gmra.mrb[0].mxu0 %v1614
      %v1733 = vpop.f32.mrb[0].mxu0
      %v1734 = vadd.f32 0.0, %v1733
      %v1735 = vpop.f32.mrb[0].mxu0
      %1736 = vmatprep.mubr.f32.mxu0 0.0
      %1737 = vmatmul.mubr.f32.gmra.mrb[0].mxu0 %v1615
      %v1738 = vpop.f32.mrb[0].mxu0
      %v1739 = vadd.f32 0.0, %v1738
      %v1740 = vpop.f32.mrb[0].mxu0
      %1741 = vmatprep.mubr.f32.mxu0 0.0
      %1742 = vmatmul.mubr.f32.gmra.mrb[0].mxu0 %v1616
      %v1743 = vpop.f32.mrb[0].mxu0
      %v1744 = vadd.f32 0.0, %v1743
      %v1745 = vpop.f32.mrb[0].mxu0
      %1746 = vmatprep.mubr.f32.mxu0 0.0
      %1747 = vmatmul.mubr.f32.gmra.mrb[0].mxu0 %v1617
      %v1748 = vpop.f32.mrb[0].mxu0
      %v1749 = vadd.f32 0.0, %v1748
      %v1750 = vpop.f32.mrb[0].mxu0
      %1751 = vmatprep.mubr.f32.mxu0 0.0
      %1752 = vmatmul.mubr.f32.gmra.mrb[0].mxu0 %v1618
      %v1753 = vpop.f32.mrb[0].mxu0
      %v1754 = vadd.f32 0.0, %v1753
      %v1755 = vpop.f32.mrb[0].mxu0
      %1756 = vmatprep.mubr.f32.mxu0 0.0
      %1757 = vmatmul.mubr.f32.gmra.mrb[0].mxu0 %v1619
      %v1758 = vpop.f32.mrb[0].mxu0
      %v1759 = vadd.f32 0.0, %v1758
      %v1760 = vpop.f32.mrb[0].mxu0
      %1761 = vmatprep.mubr.f32.mxu0 0.0
      %1762 = vmatmul.mubr.f32.gmra.mrb[0].mxu0 %v1620
      %v1763 = vpop.f32.mrb[0].mxu0
      %v1764 = vadd.f32 0.0, %v1763
      %v1765 = vpop.f32.mrb[0].mxu0
      %1766 = vmatprep.mubr.f32.mxu0 0.0
      %1767 = vmatmul.mubr.f32.gmra.mrb[0].mxu0 %v1621
      %v1768 = vpop.f32.mrb[0].mxu0
      %v1769 = vadd.f32 0.0, %v1768
      %v1770 = vpop.f32.mrb[0].mxu0
      %1771 = vmatprep.mubr.f32.mxu0 0.0
      %1772 = vmatmul.mubr.f32.gmra.mrb[0].mxu0 %v1622
      %v1773 = vpop.f32.mrb[0].mxu0
      %v1774 = vadd.f32 0.0, %v1773
      %v1775 = vpop.f32.mrb[0].mxu0
      %1776 = vmatprep.mubr.f32.mxu0 0.0
      %1777 = vmatmul.mubr.f32.gmra.mrb[0].mxu0 %v1623
      %v1778 = vpop.f32.mrb[0].mxu0
      %v1779 = vadd.f32 0.0, %v1778
      %v1780 = vpop.f32.mrb[0].mxu0
      %1781 = vmatprep.mubr.f32.mxu0 0.0
      %1782 = vmatmul.mubr.f32.gmra.mrb[0].mxu0 %v1624
      %v1783 = vpop.f32.mrb[0].mxu0
      %v1784 = vadd.f32 0.0, %v1783
      %v1785 = vpop.f32.mrb[0].mxu0
      %1786 = vmatprep.mubr.f32.mxu0 0.0
      %1787 = vmatmul.mubr.f32.gmra.mrb[0].mxu0 %v1625
      %v1788 = vpop.f32.mrb[0].mxu0
      %v1789 = vadd.f32 0.0, %v1788
      %v1790 = vpop.f32.mrb[0].mxu0
      %1791 = vmatprep.mubr.f32.mxu0 0.0
      %1792 = vmatmul.mubr.f32.gmra.mrb[0].mxu0 %v1626
      %v1793 = vpop.f32.mrb[0].mxu0
      %v1794 = vadd.f32 0.0, %v1793
      %v1795 = vpop.f32.mrb[0].mxu0
      %1796 = vmatprep.mubr.f32.mxu0 0.0
      %1797 = vmatmul.mubr.f32.gmra.mrb[0].mxu0 %v1627
      %v1798 = vpop.f32.mrb[0].mxu0
      %v1799 = vadd.f32 0.0, %v1798
      %v1800 = vpop.f32.mrb[0].mxu0
      %1801 = vmatprep.mubr.f32.mxu0 0.0
      %1802 = vmatmul.mubr.f32.gmra.mrb[0].mxu0 %v1628
      %v1803 = vpop.f32.mrb[0].mxu0
      %v1804 = vadd.f32 0.0, %v1803
      %v1805 = vpop.f32.mrb[0].mxu0
      %1806 = vmatprep.mubr.f32.mxu0 0.0
      %1807 = vmatmul.mubr.f32.gmra.mrb[0].mxu0 %v1629
      %v1808 = vpop.f32.mrb[0].mxu0
      %v1809 = vadd.f32 0.0, %v1808
      %v1810 = vpop.f32.mrb[0].mxu0
      %1811 = vmatprep.mubr.f32.mxu0 0.0
      %1812 = vmatmul.mubr.f32.gmra.mrb[0].mxu0 %v1630
      %v1813 = vpop.f32.mrb[0].mxu0
      %v1814 = vadd.f32 0.0, %v1813
      %v1815 = vpop.f32.mrb[0].mxu0
      %1816 = vmatprep.mubr.f32.mxu0 0.0
      %1817 = vmatmul.mubr.f32.gmra.mrb[0].mxu0 %v1631
      %v1818 = vpop.f32.mrb[0].mxu0
      %v1819 = vadd.f32 0.0, %v1818
      %v1820 = vpop.f32.mrb[0].mxu0
      %1821 = vmatprep.mubr.f32.mxu0 0.0
      %1822 = vmatmul.mubr.f32.gmra.mrb[0].mxu0 %v1632
      %v1823 = vpop.f32.mrb[0].mxu0
      %v1824 = vadd.f32 0.0, %v1823
      %v1825 = vpop.f32.mrb[0].mxu0
      %1826 = vmatprep.mubr.f32.mxu0 0.0
      %1827 = vmatmul.mubr.f32.gmra.mrb[0].mxu0 %v1633
      %v1828 = vpop.f32.mrb[0].mxu0
      %v1829 = vadd.f32 0.0, %v1828
      %v1830 = vpop.f32.mrb[0].mxu0
      %1831 = vmatprep.mubr.f32.mxu0 0.0
      %1832 = vmatmul.mubr.f32.gmra.mrb[0].mxu0 %v1634
      %v1833 = vpop.f32.mrb[0].mxu0
      %v1834 = vadd.f32 0.0, %v1833
      %v1835 = vpop.f32.mrb[0].mxu0
      %1836 = vmatprep.mubr.f32.mxu0 0.0
      %1837 = vmatmul.mubr.f32.gmra.mrb[0].mxu0 %v1635
      %v1838 = vpop.f32.mrb[0].mxu0
      %v1839 = vadd.f32 0.0, %v1838
      %v1840 = vpop.f32.mrb[0].mxu0
      %1841 = vmatprep.mubr.f32.mxu0 0.0
      %1842 = vmatmul.mubr.f32.gmra.mrb[0].mxu0 %v1636
      %v1843 = vpop.f32.mrb[0].mxu0
      %v1844 = vadd.f32 0.0, %v1843
      %v1845 = vpop.f32.mrb[0].mxu0
      %1846 = vmatprep.mubr.f32.mxu0 0.0
      %1847 = vmatmul.mubr.f32.gmra.mrb[0].mxu0 %v1637
      %v1848 = vpop.f32.mrb[0].mxu0
      %v1849 = vadd.f32 0.0, %v1848
      %v1850 = vpop.f32.mrb[0].mxu0
      %1851 = vmatprep.mubr.f32.mxu0 0.0
      %1852 = vmatmul.mubr.f32.gmra.mrb[0].mxu0 %v1638
      %v1853 = vpop.f32.mrb[0].mxu0
      %v1854 = vadd.f32 0.0, %v1853
      %v1855 = vpop.f32.mrb[0].mxu0
      %1856 = vmatprep.mubr.f32.mxu0 0.0
      %1857 = vmatmul.mubr.f32.gmra.mrb[0].mxu0 %v1639
      %v1858 = vpop.f32.mrb[0].mxu0
      %v1859 = vadd.f32 0.0, %v1858
      %v1860 = vpop.f32.mrb[0].mxu0
      %1861 = vmatprep.mubr.f32.mxu0 0.0
      %1862 = vmatmul.mubr.f32.gmra.mrb[0].mxu0 %v1640
      %v1863 = vpop.f32.mrb[0].mxu0
      %v1864 = vadd.f32 0.0, %v1863
      %v1865 = vpop.f32.mrb[0].mxu0
      %1866 = vmatprep.mubr.f32.mxu0 0.0
      %1867 = vmatmul.mubr.f32.gmra.mrb[0].mxu0 %v1641
      %v1868 = vpop.f32.mrb[0].mxu0
      %v1869 = vadd.f32 0.0, %v1868
      %v1870 = vpop.f32.mrb[0].mxu0
      %1871 = vmatprep.mubr.f32.mxu0 0.0
      %1872 = vmatmul.mubr.f32.gmra.mrb[0].mxu0 %v1642
      %v1873 = vpop.f32.mrb[0].mxu0
      %v1874 = vadd.f32 0.0, %v1873
      %v1875 = vpop.f32.mrb[0].mxu0
      %1876 = vmatprep.mubr.f32.mxu0 0.0
      %1877 = vmatmul.mubr.f32.gmra.mrb[0].mxu0 %v1643
      %v1878 = vpop.f32.mrb[0].mxu0
      %v1879 = vadd.f32 0.0, %v1878
      %v1880 = vpop.f32.mrb[0].mxu0
      %1881 = vmatprep.mubr.f32.mxu0 0.0
      %1882 = vmatmul.mubr.f32.gmra.mrb[0].mxu0 %v1644
      %v1883 = vpop.f32.mrb[0].mxu0
      %v1884 = vadd.f32 0.0, %v1883
      %v1885 = vpop.f32.mrb[0].mxu0
      %1886 = vdwg.mxu0
      %v1887 = vadd.f32 %v1581, %v1729
      %v1888 = vadd.f32 %v1582, %v1734
      %v1889 = vadd.f32 %v1583, %v1739
      %v1890 = vadd.f32 %v1584, %v1744
      %v1891 = vadd.f32 %v1585, %v1749
      %v1892 = vadd.f32 %v1586, %v1754
      %v1893 = vadd.f32 %v1587, %v1759
      %v1894 = vadd.f32 %v1588, %v1764
      %v1895 = vadd.f32 %v1589, %v1769
      %v1896 = vadd.f32 %v1590, %v1774
      %v1897 = vadd.f32 %v1591, %v1779
      %v1898 = vadd.f32 %v1592, %v1784
      %v1899 = vadd.f32 %v1593, %v1789
      %v1900 = vadd.f32 %v1594, %v1794
      %v1901 = vadd.f32 %v1595, %v1799
      %v1902 = vadd.f32 %v1596, %v1804
      %v1903 = vadd.f32 %v1597, %v1809
      %v1904 = vadd.f32 %v1598, %v1814
      %v1905 = vadd.f32 %v1599, %v1819
      %v1906 = vadd.f32 %v1600, %v1824
      %v1907 = vadd.f32 %v1601, %v1829
      %v1908 = vadd.f32 %v1602, %v1834
      %v1909 = vadd.f32 %v1603, %v1839
      %v1910 = vadd.f32 %v1604, %v1844
      %v1911 = vadd.f32 %v1605, %v1849
      %v1912 = vadd.f32 %v1606, %v1854
      %v1913 = vadd.f32 %v1607, %v1859
      %v1914 = vadd.f32 %v1608, %v1864
      %v1915 = vadd.f32 %v1609, %v1869
      %v1916 = vadd.f32 %v1610, %v1874
      %v1917 = vadd.f32 %v1611, %v1879
      %v1918 = vadd.f32 %v1612, %v1884
      %v1919 = vld [vmem:[%s421 + $0x2] sm:$0xff]
      %v1920 = vld [vmem:[%s421 + $0xa] sm:$0xff]
      %v1921 = vld [vmem:[%s421 + $0x1a] sm:$0xff]
      %v1922 = vld [vmem:[%s421 + $0x22] sm:$0xff]
      %v1923 = vld [vmem:[%s421 + $0x32] sm:$0xff]
      %v1924 = vld [vmem:[%s421 + $0x3a] sm:$0xff]
      %v1925 = vld [vmem:[%s421 + $0x4a] sm:$0xff]
      %v1926 = vld [vmem:[%s421 + $0x52] sm:$0xff]
      %v1927 = vld [vmem:[%s421 + $0x62] sm:$0xff]
      %v1928 = vld [vmem:[%s421 + $0x6a] sm:$0xff]
      %v1929 = vld [vmem:[%s421 + $0x7a] sm:$0xff]
      %v1930 = vld [vmem:[%s421 + $0x82] sm:$0xff]
      %v1931 = vld [vmem:[%s421 + $0x92] sm:$0xff]
      %v1932 = vld [vmem:[%s421 + $0x9a] sm:$0xff]
      %v1933 = vld [vmem:[%s421 + $0xaa] sm:$0xff]
      %v1934 = vld [vmem:[%s421 + $0xb2] sm:$0xff]
      %v1935 = vld [vmem:[%s421 + $0xc2] sm:$0xff]
      %v1936 = vld [vmem:[%s421 + $0xca] sm:$0xff]
      %v1937 = vld [vmem:[%s421 + $0xda] sm:$0xff]
      %v1938 = vld [vmem:[%s421 + $0xe2] sm:$0xff]
      %v1939 = vld [vmem:[%s421 + $0xf2] sm:$0xff]
      %v1940 = vld [vmem:[%s421 + $0xfa] sm:$0xff]
      %v1941 = vld [vmem:[%s421 + $0x10a] sm:$0xff]
      %v1942 = vld [vmem:[%s421 + $0x112] sm:$0xff]
      %v1943 = vld [vmem:[%s421 + $0x122] sm:$0xff]
      %v1944 = vld [vmem:[%s421 + $0x12a] sm:$0xff]
      %v1945 = vld [vmem:[%s421 + $0x13a] sm:$0xff]
      %v1946 = vld [vmem:[%s421 + $0x142] sm:$0xff]
      %v1947 = vld [vmem:[%s421 + $0x152] sm:$0xff]
      %v1948 = vld [vmem:[%s421 + $0x15a] sm:$0xff]
      %v1949 = vld [vmem:[%s421 + $0x16a] sm:$0xff]
      %v1950 = vld [vmem:[%s421 + $0x172] sm:$0xff]
      %s1951 = scalar_lea.vmem %s3, 640
      %v1952 = vld [vmem:[%s1951] sm:$0xff]
      %v1953 = vld [vmem:[%s1951 + $0x8] sm:$0xff]
      %v1954 = vld [vmem:[%s1951 + $0x10] sm:$0xff]
      %v1955 = vld [vmem:[%s1951 + $0x18] sm:$0xff]
      %v1956 = vld [vmem:[%s1951 + $0x20] sm:$0xff]
      %v1957 = vld [vmem:[%s1951 + $0x28] sm:$0xff]
      %v1958 = vld [vmem:[%s1951 + $0x30] sm:$0xff]
      %v1959 = vld [vmem:[%s1951 + $0x38] sm:$0xff]
      %v1960 = vld [vmem:[%s1951 + $0x40] sm:$0xff]
      %v1961 = vld [vmem:[%s1951 + $0x48] sm:$0xff]
      %v1962 = vld [vmem:[%s1951 + $0x50] sm:$0xff]
      %v1963 = vld [vmem:[%s1951 + $0x58] sm:$0xff]
      %v1964 = vld [vmem:[%s1951 + $0x60] sm:$0xff]
      %v1965 = vld [vmem:[%s1951 + $0x68] sm:$0xff]
      %v1966 = vld [vmem:[%s1951 + $0x70] sm:$0xff]
      %v1967 = vld [vmem:[%s1951 + $0x78] sm:$0xff]
      %1968 = vmatprep.subr.mxu0 0.0
      %1969 = vmatpush1.msra.mxu0 %v1952
      %1970 = vmatprep.subr.mxu0 0.0
      %1971 = vmatpush1.msra.mxu0 %v1953
      %1972 = vmatprep.subr.mxu0 0.0
      %1973 = vmatpush1.msra.mxu0 %v1954
      %1974 = vmatprep.subr.mxu0 0.0
      %1975 = vmatpush1.msra.mxu0 %v1955
      %1976 = vmatprep.subr.mxu0 0.0
      %1977 = vmatpush1.msra.mxu0 %v1956
      %1978 = vmatprep.subr.mxu0 0.0
      %1979 = vmatpush1.msra.mxu0 %v1957
      %1980 = vmatprep.subr.mxu0 0.0
      %1981 = vmatpush1.msra.mxu0 %v1958
      %1982 = vmatprep.subr.mxu0 0.0
      %1983 = vmatpush1.msra.mxu0 %v1959
      %1984 = vmatprep.subr.mxu0 0.0
      %1985 = vmatpush1.msra.mxu0 %v1960
      %1986 = vmatprep.subr.mxu0 0.0
      %1987 = vmatpush1.msra.mxu0 %v1961
      %1988 = vmatprep.subr.mxu0 0.0
      %1989 = vmatpush1.msra.mxu0 %v1962
      %1990 = vmatprep.subr.mxu0 0.0
      %1991 = vmatpush1.msra.mxu0 %v1963
      %1992 = vmatprep.subr.mxu0 0.0
      %1993 = vmatpush1.msra.mxu0 %v1964
      %1994 = vmatprep.subr.mxu0 0.0
      %1995 = vmatpush1.msra.mxu0 %v1965
      %1996 = vmatprep.subr.mxu0 0.0
      %1997 = vmatpush1.msra.mxu0 %v1966
      %1998 = vmatprep.subr.mxu0 0.0
      %1999 = vmatpush1.msra.mxu0 %v1967
      %2000 = vmatprep.subr.mxu0 0.0
      %2001 = vmatpush1.msra.mxu0 0.0
      %2002 = vmatprep.subr.mxu0 0.0
      %2003 = vmatpush1.msra.mxu0 0.0
      %2004 = vmatprep.subr.mxu0 0.0
      %2005 = vmatpush1.msra.mxu0 0.0
      %2006 = vmatprep.subr.mxu0 0.0
      %2007 = vmatpush1.msra.mxu0 0.0
      %2008 = vmatprep.subr.mxu0 0.0
      %2009 = vmatpush1.msra.mxu0 0.0
      %2010 = vmatprep.subr.mxu0 0.0
      %2011 = vmatpush1.msra.mxu0 0.0
      %2012 = vmatprep.subr.mxu0 0.0
      %2013 = vmatpush1.msra.mxu0 0.0
      %2014 = vmatprep.subr.mxu0 0.0
      %2015 = vmatpush1.msra.mxu0 0.0
      %2016 = vmatprep.subr.mxu0 0.0
      %2017 = vmatpush1.msra.mxu0 0.0
      %2018 = vmatprep.subr.mxu0 0.0
      %2019 = vmatpush1.msra.mxu0 0.0
      %2020 = vmatprep.subr.mxu0 0.0
      %2021 = vmatpush1.msra.mxu0 0.0
      %2022 = vmatprep.subr.mxu0 0.0
      %2023 = vmatpush1.msra.mxu0 0.0
      %2024 = vmatprep.subr.mxu0 0.0
      %2025 = vmatpush1.msra.mxu0 0.0
      %2026 = vmatprep.subr.mxu0 0.0
      %2027 = vmatpush1.msra.mxu0 0.0
      %2028 = vmatprep.subr.mxu0 0.0
      %2029 = vmatpush1.msra.mxu0 0.0
      %2030 = vmatprep.subr.mxu0 0.0
      %2031 = vmatpush1.msra.mxu0 0.0
      %2032 = vmatprep.mubr.f32.mxu0 0.0
      %2033 = vmatmul.mubr.f32.gmra.mrb[0].mxu0 %v1919
      %v2034 = vpop.f32.mrb[0].mxu0
      %v2035 = vadd.f32 0.0, %v2034
      %v2036 = vpop.f32.mrb[0].mxu0
      %2037 = vmatprep.mubr.f32.mxu0 0.0
      %2038 = vmatmul.mubr.f32.gmra.mrb[0].mxu0 %v1920
      %v2039 = vpop.f32.mrb[0].mxu0
      %v2040 = vadd.f32 0.0, %v2039
      %v2041 = vpop.f32.mrb[0].mxu0
      %2042 = vmatprep.mubr.f32.mxu0 0.0
      %2043 = vmatmul.mubr.f32.gmra.mrb[0].mxu0 %v1921
      %v2044 = vpop.f32.mrb[0].mxu0
      %v2045 = vadd.f32 0.0, %v2044
      %v2046 = vpop.f32.mrb[0].mxu0
      %2047 = vmatprep.mubr.f32.mxu0 0.0
      %2048 = vmatmul.mubr.f32.gmra.mrb[0].mxu0 %v1922
      %v2049 = vpop.f32.mrb[0].mxu0
      %v2050 = vadd.f32 0.0, %v2049
      %v2051 = vpop.f32.mrb[0].mxu0
      %2052 = vmatprep.mubr.f32.mxu0 0.0
      %2053 = vmatmul.mubr.f32.gmra.mrb[0].mxu0 %v1923
      %v2054 = vpop.f32.mrb[0].mxu0
      %v2055 = vadd.f32 0.0, %v2054
      %v2056 = vpop.f32.mrb[0].mxu0
      %2057 = vmatprep.mubr.f32.mxu0 0.0
      %2058 = vmatmul.mubr.f32.gmra.mrb[0].mxu0 %v1924
      %v2059 = vpop.f32.mrb[0].mxu0
      %v2060 = vadd.f32 0.0, %v2059
      %v2061 = vpop.f32.mrb[0].mxu0
      %2062 = vmatprep.mubr.f32.mxu0 0.0
      %2063 = vmatmul.mubr.f32.gmra.mrb[0].mxu0 %v1925
      %v2064 = vpop.f32.mrb[0].mxu0
      %v2065 = vadd.f32 0.0, %v2064
      %v2066 = vpop.f32.mrb[0].mxu0
      %2067 = vmatprep.mubr.f32.mxu0 0.0
      %2068 = vmatmul.mubr.f32.gmra.mrb[0].mxu0 %v1926
      %v2069 = vpop.f32.mrb[0].mxu0
      %v2070 = vadd.f32 0.0, %v2069
      %v2071 = vpop.f32.mrb[0].mxu0
      %2072 = vmatprep.mubr.f32.mxu0 0.0
      %2073 = vmatmul.mubr.f32.gmra.mrb[0].mxu0 %v1927
      %v2074 = vpop.f32.mrb[0].mxu0
      %v2075 = vadd.f32 0.0, %v2074
      %v2076 = vpop.f32.mrb[0].mxu0
      %2077 = vmatprep.mubr.f32.mxu0 0.0
      %2078 = vmatmul.mubr.f32.gmra.mrb[0].mxu0 %v1928
      %v2079 = vpop.f32.mrb[0].mxu0
      %v2080 = vadd.f32 0.0, %v2079
      %v2081 = vpop.f32.mrb[0].mxu0
      %2082 = vmatprep.mubr.f32.mxu0 0.0
      %2083 = vmatmul.mubr.f32.gmra.mrb[0].mxu0 %v1929
      %v2084 = vpop.f32.mrb[0].mxu0
      %v2085 = vadd.f32 0.0, %v2084
      %v2086 = vpop.f32.mrb[0].mxu0
      %2087 = vmatprep.mubr.f32.mxu0 0.0
      %2088 = vmatmul.mubr.f32.gmra.mrb[0].mxu0 %v1930
      %v2089 = vpop.f32.mrb[0].mxu0
      %v2090 = vadd.f32 0.0, %v2089
      %v2091 = vpop.f32.mrb[0].mxu0
      %2092 = vmatprep.mubr.f32.mxu0 0.0
      %2093 = vmatmul.mubr.f32.gmra.mrb[0].mxu0 %v1931
      %v2094 = vpop.f32.mrb[0].mxu0
      %v2095 = vadd.f32 0.0, %v2094
      %v2096 = vpop.f32.mrb[0].mxu0
      %2097 = vmatprep.mubr.f32.mxu0 0.0
      %2098 = vmatmul.mubr.f32.gmra.mrb[0].mxu0 %v1932
      %v2099 = vpop.f32.mrb[0].mxu0
      %v2100 = vadd.f32 0.0, %v2099
      %v2101 = vpop.f32.mrb[0].mxu0
      %2102 = vmatprep.mubr.f32.mxu0 0.0
      %2103 = vmatmul.mubr.f32.gmra.mrb[0].mxu0 %v1933
      %v2104 = vpop.f32.mrb[0].mxu0
      %v2105 = vadd.f32 0.0, %v2104
      %v2106 = vpop.f32.mrb[0].mxu0
      %2107 = vmatprep.mubr.f32.mxu0 0.0
      %2108 = vmatmul.mubr.f32.gmra.mrb[0].mxu0 %v1934
      %v2109 = vpop.f32.mrb[0].mxu0
      %v2110 = vadd.f32 0.0, %v2109
      %v2111 = vpop.f32.mrb[0].mxu0
      %2112 = vmatprep.mubr.f32.mxu0 0.0
      %2113 = vmatmul.mubr.f32.gmra.mrb[0].mxu0 %v1935
      %v2114 = vpop.f32.mrb[0].mxu0
      %v2115 = vadd.f32 0.0, %v2114
      %v2116 = vpop.f32.mrb[0].mxu0
      %2117 = vmatprep.mubr.f32.mxu0 0.0
      %2118 = vmatmul.mubr.f32.gmra.mrb[0].mxu0 %v1936
      %v2119 = vpop.f32.mrb[0].mxu0
      %v2120 = vadd.f32 0.0, %v2119
      %v2121 = vpop.f32.mrb[0].mxu0
      %2122 = vmatprep.mubr.f32.mxu0 0.0
      %2123 = vmatmul.mubr.f32.gmra.mrb[0].mxu0 %v1937
      %v2124 = vpop.f32.mrb[0].mxu0
      %v2125 = vadd.f32 0.0, %v2124
      %v2126 = vpop.f32.mrb[0].mxu0
      %2127 = vmatprep.mubr.f32.mxu0 0.0
      %2128 = vmatmul.mubr.f32.gmra.mrb[0].mxu0 %v1938
      %v2129 = vpop.f32.mrb[0].mxu0
      %v2130 = vadd.f32 0.0, %v2129
      %v2131 = vpop.f32.mrb[0].mxu0
      %2132 = vmatprep.mubr.f32.mxu0 0.0
      %2133 = vmatmul.mubr.f32.gmra.mrb[0].mxu0 %v1939
      %v2134 = vpop.f32.mrb[0].mxu0
      %v2135 = vadd.f32 0.0, %v2134
      %v2136 = vpop.f32.mrb[0].mxu0
      %2137 = vmatprep.mubr.f32.mxu0 0.0
      %2138 = vmatmul.mubr.f32.gmra.mrb[0].mxu0 %v1940
      %v2139 = vpop.f32.mrb[0].mxu0
      %v2140 = vadd.f32 0.0, %v2139
      %v2141 = vpop.f32.mrb[0].mxu0
      %2142 = vmatprep.mubr.f32.mxu0 0.0
      %2143 = vmatmul.mubr.f32.gmra.mrb[0].mxu0 %v1941
      %v2144 = vpop.f32.mrb[0].mxu0
      %v2145 = vadd.f32 0.0, %v2144
      %v2146 = vpop.f32.mrb[0].mxu0
      %2147 = vmatprep.mubr.f32.mxu0 0.0
      %2148 = vmatmul.mubr.f32.gmra.mrb[0].mxu0 %v1942
      %v2149 = vpop.f32.mrb[0].mxu0
      %v2150 = vadd.f32 0.0, %v2149
      %v2151 = vpop.f32.mrb[0].mxu0
      %2152 = vmatprep.mubr.f32.mxu0 0.0
      %2153 = vmatmul.mubr.f32.gmra.mrb[0].mxu0 %v1943
      %v2154 = vpop.f32.mrb[0].mxu0
      %v2155 = vadd.f32 0.0, %v2154
      %v2156 = vpop.f32.mrb[0].mxu0
      %2157 = vmatprep.mubr.f32.mxu0 0.0
      %2158 = vmatmul.mubr.f32.gmra.mrb[0].mxu0 %v1944
      %v2159 = vpop.f32.mrb[0].mxu0
      %v2160 = vadd.f32 0.0, %v2159
      %v2161 = vpop.f32.mrb[0].mxu0
      %2162 = vmatprep.mubr.f32.mxu0 0.0
      %2163 = vmatmul.mubr.f32.gmra.mrb[0].mxu0 %v1945
      %v2164 = vpop.f32.mrb[0].mxu0
      %v2165 = vadd.f32 0.0, %v2164
      %v2166 = vpop.f32.mrb[0].mxu0
      %2167 = vmatprep.mubr.f32.mxu0 0.0
      %2168 = vmatmul.mubr.f32.gmra.mrb[0].mxu0 %v1946
      %v2169 = vpop.f32.mrb[0].mxu0
      %v2170 = vadd.f32 0.0, %v2169
      %v2171 = vpop.f32.mrb[0].mxu0
      %2172 = vmatprep.mubr.f32.mxu0 0.0
      %2173 = vmatmul.mubr.f32.gmra.mrb[0].mxu0 %v1947
      %v2174 = vpop.f32.mrb[0].mxu0
      %v2175 = vadd.f32 0.0, %v2174
      %v2176 = vpop.f32.mrb[0].mxu0
      %2177 = vmatprep.mubr.f32.mxu0 0.0
      %2178 = vmatmul.mubr.f32.gmra.mrb[0].mxu0 %v1948
      %v2179 = vpop.f32.mrb[0].mxu0
      %v2180 = vadd.f32 0.0, %v2179
      %v2181 = vpop.f32.mrb[0].mxu0
      %2182 = vmatprep.mubr.f32.mxu0 0.0
      %2183 = vmatmul.mubr.f32.gmra.mrb[0].mxu0 %v1949
      %v2184 = vpop.f32.mrb[0].mxu0
      %v2185 = vadd.f32 0.0, %v2184
      %v2186 = vpop.f32.mrb[0].mxu0
      %2187 = vmatprep.mubr.f32.mxu0 0.0
      %2188 = vmatmul.mubr.f32.gmra.mrb[0].mxu0 %v1950
      %v2189 = vpop.f32.mrb[0].mxu0
      %v2190 = vadd.f32 0.0, %v2189
      %v2191 = vpop.f32.mrb[0].mxu0
      %2192 = vdwg.mxu0
      %v2193 = vadd.f32 %v1887, %v2035
      %v2194 = vadd.f32 %v1888, %v2040
      %v2195 = vadd.f32 %v1889, %v2045
      %v2196 = vadd.f32 %v1890, %v2050
      %v2197 = vadd.f32 %v1891, %v2055
      %v2198 = vadd.f32 %v1892, %v2060
      %v2199 = vadd.f32 %v1893, %v2065
      %v2200 = vadd.f32 %v1894, %v2070
      %v2201 = vadd.f32 %v1895, %v2075
      %v2202 = vadd.f32 %v1896, %v2080
      %v2203 = vadd.f32 %v1897, %v2085
      %v2204 = vadd.f32 %v1898, %v2090
      %v2205 = vadd.f32 %v1899, %v2095
      %v2206 = vadd.f32 %v1900, %v2100
      %v2207 = vadd.f32 %v1901, %v2105
      %v2208 = vadd.f32 %v1902, %v2110
      %v2209 = vadd.f32 %v1903, %v2115
      %v2210 = vadd.f32 %v1904, %v2120
      %v2211 = vadd.f32 %v1905, %v2125
      %v2212 = vadd.f32 %v1906, %v2130
      %v2213 = vadd.f32 %v1907, %v2135
      %v2214 = vadd.f32 %v1908, %v2140
      %v2215 = vadd.f32 %v1909, %v2145
      %v2216 = vadd.f32 %v1910, %v2150
      %v2217 = vadd.f32 %v1911, %v2155
      %v2218 = vadd.f32 %v1912, %v2160
      %v2219 = vadd.f32 %v1913, %v2165
      %v2220 = vadd.f32 %v1914, %v2170
      %v2221 = vadd.f32 %v1915, %v2175
      %v2222 = vadd.f32 %v1916, %v2180
      %v2223 = vadd.f32 %v1917, %v2185
      %v2224 = vadd.f32 %v1918, %v2190
      %s2225 = scalar_lea.vmem [#allocation2], 48
      %v2226 = vld [vmem:[%s2225] sm:$0xff]
      %v2227 = vld [vmem:[%s2225 + $0x8] sm:$0xff]
      %v2228 = vld [vmem:[%s2225 + $0x18] sm:$0xff]
      %v2229 = vld [vmem:[%s2225 + $0x20] sm:$0xff]
      %v2230 = vld [vmem:[%s2225 + $0x30] sm:$0xff]
      %v2231 = vld [vmem:[%s2225 + $0x38] sm:$0xff]
      %v2232 = vld [vmem:[%s2225 + $0x48] sm:$0xff]
      %v2233 = vld [vmem:[%s2225 + $0x50] sm:$0xff]
      %v2234 = vld [vmem:[%s2225 + $0x60] sm:$0xff]
      %v2235 = vld [vmem:[%s2225 + $0x68] sm:$0xff]
      %v2236 = vld [vmem:[%s2225 + $0x78] sm:$0xff]
      %v2237 = vld [vmem:[%s2225 + $0x80] sm:$0xff]
      %v2238 = vld [vmem:[%s2225 + $0x90] sm:$0xff]
      %v2239 = vld [vmem:[%s2225 + $0x98] sm:$0xff]
      %v2240 = vld [vmem:[%s2225 + $0xa8] sm:$0xff]
      %v2241 = vld [vmem:[%s2225 + $0xb0] sm:$0xff]
      %v2242 = vld [vmem:[%s2225 + $0xc0] sm:$0xff]
      %v2243 = vld [vmem:[%s2225 + $0xc8] sm:$0xff]
      %v2244 = vld [vmem:[%s2225 + $0xd8] sm:$0xff]
      %v2245 = vld [vmem:[%s2225 + $0xe0] sm:$0xff]
      %v2246 = vld [vmem:[%s2225 + $0xf0] sm:$0xff]
      %v2247 = vld [vmem:[%s2225 + $0xf8] sm:$0xff]
      %v2248 = vld [vmem:[%s2225 + $0x108] sm:$0xff]
      %v2249 = vld [vmem:[%s2225 + $0x110] sm:$0xff]
      %v2250 = vld [vmem:[%s2225 + $0x120] sm:$0xff]
      %v2251 = vld [vmem:[%s2225 + $0x128] sm:$0xff]
      %v2252 = vld [vmem:[%s2225 + $0x138] sm:$0xff]
      %v2253 = vld [vmem:[%s2225 + $0x140] sm:$0xff]
      %v2254 = vld [vmem:[%s2225 + $0x150] sm:$0xff]
      %v2255 = vld [vmem:[%s2225 + $0x158] sm:$0xff]
      %v2256 = vld [vmem:[%s2225 + $0x168] sm:$0xff]
      %v2257 = vld [vmem:[%s2225 + $0x170] sm:$0xff]
      %s2258 = scalar_lea.vmem %s3, 768
      %v2259 = vld [vmem:[%s2258] sm:$0xff]
      %v2260 = vld [vmem:[%s2258 + $0x8] sm:$0xff]
      %v2261 = vld [vmem:[%s2258 + $0x10] sm:$0xff]
      %v2262 = vld [vmem:[%s2258 + $0x18] sm:$0xff]
      %v2263 = vld [vmem:[%s2258 + $0x20] sm:$0xff]
      %v2264 = vld [vmem:[%s2258 + $0x28] sm:$0xff]
      %v2265 = vld [vmem:[%s2258 + $0x30] sm:$0xff]
      %v2266 = vld [vmem:[%s2258 + $0x38] sm:$0xff]
      %v2267 = vld [vmem:[%s2258 + $0x40] sm:$0xff]
      %v2268 = vld [vmem:[%s2258 + $0x48] sm:$0xff]
      %v2269 = vld [vmem:[%s2258 + $0x50] sm:$0xff]
      %v2270 = vld [vmem:[%s2258 + $0x58] sm:$0xff]
      %v2271 = vld [vmem:[%s2258 + $0x60] sm:$0xff]
      %v2272 = vld [vmem:[%s2258 + $0x68] sm:$0xff]
      %v2273 = vld [vmem:[%s2258 + $0x70] sm:$0xff]
      %v2274 = vld [vmem:[%s2258 + $0x78] sm:$0xff]
      %2275 = vmatprep.subr.mxu0 0.0
      %2276 = vmatpush1.msra.mxu0 %v2259
      %2277 = vmatprep.subr.mxu0 0.0
      %2278 = vmatpush1.msra.mxu0 %v2260
      %2279 = vmatprep.subr.mxu0 0.0
      %2280 = vmatpush1.msra.mxu0 %v2261
      %2281 = vmatprep.subr.mxu0 0.0
      %2282 = vmatpush1.msra.mxu0 %v2262
      %2283 = vmatprep.subr.mxu0 0.0
      %2284 = vmatpush1.msra.mxu0 %v2263
      %2285 = vmatprep.subr.mxu0 0.0
      %2286 = vmatpush1.msra.mxu0 %v2264
      %2287 = vmatprep.subr.mxu0 0.0
      %2288 = vmatpush1.msra.mxu0 %v2265
      %2289 = vmatprep.subr.mxu0 0.0
      %2290 = vmatpush1.msra.mxu0 %v2266
      %2291 = vmatprep.subr.mxu0 0.0
      %2292 = vmatpush1.msra.mxu0 %v2267
      %2293 = vmatprep.subr.mxu0 0.0
      %2294 = vmatpush1.msra.mxu0 %v2268
      %2295 = vmatprep.subr.mxu0 0.0
      %2296 = vmatpush1.msra.mxu0 %v2269
      %2297 = vmatprep.subr.mxu0 0.0
      %2298 = vmatpush1.msra.mxu0 %v2270
      %2299 = vmatprep.subr.mxu0 0.0
      %2300 = vmatpush1.msra.mxu0 %v2271
      %2301 = vmatprep.subr.mxu0 0.0
      %2302 = vmatpush1.msra.mxu0 %v2272
      %2303 = vmatprep.subr.mxu0 0.0
      %2304 = vmatpush1.msra.mxu0 %v2273
      %2305 = vmatprep.subr.mxu0 0.0
      %2306 = vmatpush1.msra.mxu0 %v2274
      %2307 = vmatprep.subr.mxu0 0.0
      %2308 = vmatpush1.msra.mxu0 0.0
      %2309 = vmatprep.subr.mxu0 0.0
      %2310 = vmatpush1.msra.mxu0 0.0
      %2311 = vmatprep.subr.mxu0 0.0
      %2312 = vmatpush1.msra.mxu0 0.0
      %2313 = vmatprep.subr.mxu0 0.0
      %2314 = vmatpush1.msra.mxu0 0.0
      %2315 = vmatprep.subr.mxu0 0.0
      %2316 = vmatpush1.msra.mxu0 0.0
      %2317 = vmatprep.subr.mxu0 0.0
      %2318 = vmatpush1.msra.mxu0 0.0
      %2319 = vmatprep.subr.mxu0 0.0
      %2320 = vmatpush1.msra.mxu0 0.0
      %2321 = vmatprep.subr.mxu0 0.0
      %2322 = vmatpush1.msra.mxu0 0.0
      %2323 = vmatprep.subr.mxu0 0.0
      %2324 = vmatpush1.msra.mxu0 0.0
      %2325 = vmatprep.subr.mxu0 0.0
      %2326 = vmatpush1.msra.mxu0 0.0
      %2327 = vmatprep.subr.mxu0 0.0
      %2328 = vmatpush1.msra.mxu0 0.0
      %2329 = vmatprep.subr.mxu0 0.0
      %2330 = vmatpush1.msra.mxu0 0.0
      %2331 = vmatprep.subr.mxu0 0.0
      %2332 = vmatpush1.msra.mxu0 0.0
      %2333 = vmatprep.subr.mxu0 0.0
      %2334 = vmatpush1.msra.mxu0 0.0
      %2335 = vmatprep.subr.mxu0 0.0
      %2336 = vmatpush1.msra.mxu0 0.0
      %2337 = vmatprep.subr.mxu0 0.0
      %2338 = vmatpush1.msra.mxu0 0.0
      %2339 = vmatprep.mubr.f32.mxu0 0.0
      %2340 = vmatmul.mubr.f32.gmra.mrb[0].mxu0 %v2226
      %v2341 = vpop.f32.mrb[0].mxu0
      %v2342 = vadd.f32 0.0, %v2341
      %v2343 = vpop.f32.mrb[0].mxu0
      %2344 = vmatprep.mubr.f32.mxu0 0.0
      %2345 = vmatmul.mubr.f32.gmra.mrb[0].mxu0 %v2227
      %v2346 = vpop.f32.mrb[0].mxu0
      %v2347 = vadd.f32 0.0, %v2346
      %v2348 = vpop.f32.mrb[0].mxu0
      %2349 = vmatprep.mubr.f32.mxu0 0.0
      %2350 = vmatmul.mubr.f32.gmra.mrb[0].mxu0 %v2228
      %v2351 = vpop.f32.mrb[0].mxu0
      %v2352 = vadd.f32 0.0, %v2351
      %v2353 = vpop.f32.mrb[0].mxu0
      %2354 = vmatprep.mubr.f32.mxu0 0.0
      %2355 = vmatmul.mubr.f32.gmra.mrb[0].mxu0 %v2229
      %v2356 = vpop.f32.mrb[0].mxu0
      %v2357 = vadd.f32 0.0, %v2356
      %v2358 = vpop.f32.mrb[0].mxu0
      %2359 = vmatprep.mubr.f32.mxu0 0.0
      %2360 = vmatmul.mubr.f32.gmra.mrb[0].mxu0 %v2230
      %v2361 = vpop.f32.mrb[0].mxu0
      %v2362 = vadd.f32 0.0, %v2361
      %v2363 = vpop.f32.mrb[0].mxu0
      %2364 = vmatprep.mubr.f32.mxu0 0.0
      %2365 = vmatmul.mubr.f32.gmra.mrb[0].mxu0 %v2231
      %v2366 = vpop.f32.mrb[0].mxu0
      %v2367 = vadd.f32 0.0, %v2366
      %v2368 = vpop.f32.mrb[0].mxu0
      %2369 = vmatprep.mubr.f32.mxu0 0.0
      %2370 = vmatmul.mubr.f32.gmra.mrb[0].mxu0 %v2232
      %v2371 = vpop.f32.mrb[0].mxu0
      %v2372 = vadd.f32 0.0, %v2371
      %v2373 = vpop.f32.mrb[0].mxu0
      %2374 = vmatprep.mubr.f32.mxu0 0.0
      %2375 = vmatmul.mubr.f32.gmra.mrb[0].mxu0 %v2233
      %v2376 = vpop.f32.mrb[0].mxu0
      %v2377 = vadd.f32 0.0, %v2376
      %v2378 = vpop.f32.mrb[0].mxu0
      %2379 = vmatprep.mubr.f32.mxu0 0.0
      %2380 = vmatmul.mubr.f32.gmra.mrb[0].mxu0 %v2234
      %v2381 = vpop.f32.mrb[0].mxu0
      %v2382 = vadd.f32 0.0, %v2381
      %v2383 = vpop.f32.mrb[0].mxu0
      %2384 = vmatprep.mubr.f32.mxu0 0.0
      %2385 = vmatmul.mubr.f32.gmra.mrb[0].mxu0 %v2235
      %v2386 = vpop.f32.mrb[0].mxu0
      %v2387 = vadd.f32 0.0, %v2386
      %v2388 = vpop.f32.mrb[0].mxu0
      %2389 = vmatprep.mubr.f32.mxu0 0.0
      %2390 = vmatmul.mubr.f32.gmra.mrb[0].mxu0 %v2236
      %v2391 = vpop.f32.mrb[0].mxu0
      %v2392 = vadd.f32 0.0, %v2391
      %v2393 = vpop.f32.mrb[0].mxu0
      %2394 = vmatprep.mubr.f32.mxu0 0.0
      %2395 = vmatmul.mubr.f32.gmra.mrb[0].mxu0 %v2237
      %v2396 = vpop.f32.mrb[0].mxu0
      %v2397 = vadd.f32 0.0, %v2396
      %v2398 = vpop.f32.mrb[0].mxu0
      %2399 = vmatprep.mubr.f32.mxu0 0.0
      %2400 = vmatmul.mubr.f32.gmra.mrb[0].mxu0 %v2238
      %v2401 = vpop.f32.mrb[0].mxu0
      %v2402 = vadd.f32 0.0, %v2401
      %v2403 = vpop.f32.mrb[0].mxu0
      %2404 = vmatprep.mubr.f32.mxu0 0.0
      %2405 = vmatmul.mubr.f32.gmra.mrb[0].mxu0 %v2239
      %v2406 = vpop.f32.mrb[0].mxu0
      %v2407 = vadd.f32 0.0, %v2406
      %v2408 = vpop.f32.mrb[0].mxu0
      %2409 = vmatprep.mubr.f32.mxu0 0.0
      %2410 = vmatmul.mubr.f32.gmra.mrb[0].mxu0 %v2240
      %v2411 = vpop.f32.mrb[0].mxu0
      %v2412 = vadd.f32 0.0, %v2411
      %v2413 = vpop.f32.mrb[0].mxu0
      %2414 = vmatprep.mubr.f32.mxu0 0.0
      %2415 = vmatmul.mubr.f32.gmra.mrb[0].mxu0 %v2241
      %v2416 = vpop.f32.mrb[0].mxu0
      %v2417 = vadd.f32 0.0, %v2416
      %v2418 = vpop.f32.mrb[0].mxu0
      %2419 = vmatprep.mubr.f32.mxu0 0.0
      %2420 = vmatmul.mubr.f32.gmra.mrb[0].mxu0 %v2242
      %v2421 = vpop.f32.mrb[0].mxu0
      %v2422 = vadd.f32 0.0, %v2421
      %v2423 = vpop.f32.mrb[0].mxu0
      %2424 = vmatprep.mubr.f32.mxu0 0.0
      %2425 = vmatmul.mubr.f32.gmra.mrb[0].mxu0 %v2243
      %v2426 = vpop.f32.mrb[0].mxu0
      %v2427 = vadd.f32 0.0, %v2426
      %v2428 = vpop.f32.mrb[0].mxu0
      %2429 = vmatprep.mubr.f32.mxu0 0.0
      %2430 = vmatmul.mubr.f32.gmra.mrb[0].mxu0 %v2244
      %v2431 = vpop.f32.mrb[0].mxu0
      %v2432 = vadd.f32 0.0, %v2431
      %v2433 = vpop.f32.mrb[0].mxu0
      %2434 = vmatprep.mubr.f32.mxu0 0.0
      %2435 = vmatmul.mubr.f32.gmra.mrb[0].mxu0 %v2245
      %v2436 = vpop.f32.mrb[0].mxu0
      %v2437 = vadd.f32 0.0, %v2436
      %v2438 = vpop.f32.mrb[0].mxu0
      %2439 = vmatprep.mubr.f32.mxu0 0.0
      %2440 = vmatmul.mubr.f32.gmra.mrb[0].mxu0 %v2246
      %v2441 = vpop.f32.mrb[0].mxu0
      %v2442 = vadd.f32 0.0, %v2441
      %v2443 = vpop.f32.mrb[0].mxu0
      %2444 = vmatprep.mubr.f32.mxu0 0.0
      %2445 = vmatmul.mubr.f32.gmra.mrb[0].mxu0 %v2247
      %v2446 = vpop.f32.mrb[0].mxu0
      %v2447 = vadd.f32 0.0, %v2446
      %v2448 = vpop.f32.mrb[0].mxu0
      %2449 = vmatprep.mubr.f32.mxu0 0.0
      %2450 = vmatmul.mubr.f32.gmra.mrb[0].mxu0 %v2248
      %v2451 = vpop.f32.mrb[0].mxu0
      %v2452 = vadd.f32 0.0, %v2451
      %v2453 = vpop.f32.mrb[0].mxu0
      %2454 = vmatprep.mubr.f32.mxu0 0.0
      %2455 = vmatmul.mubr.f32.gmra.mrb[0].mxu0 %v2249
      %v2456 = vpop.f32.mrb[0].mxu0
      %v2457 = vadd.f32 0.0, %v2456
      %v2458 = vpop.f32.mrb[0].mxu0
      %2459 = vmatprep.mubr.f32.mxu0 0.0
      %2460 = vmatmul.mubr.f32.gmra.mrb[0].mxu0 %v2250
      %v2461 = vpop.f32.mrb[0].mxu0
      %v2462 = vadd.f32 0.0, %v2461
      %v2463 = vpop.f32.mrb[0].mxu0
      %2464 = vmatprep.mubr.f32.mxu0 0.0
      %2465 = vmatmul.mubr.f32.gmra.mrb[0].mxu0 %v2251
      %v2466 = vpop.f32.mrb[0].mxu0
      %v2467 = vadd.f32 0.0, %v2466
      %v2468 = vpop.f32.mrb[0].mxu0
      %2469 = vmatprep.mubr.f32.mxu0 0.0
      %2470 = vmatmul.mubr.f32.gmra.mrb[0].mxu0 %v2252
      %v2471 = vpop.f32.mrb[0].mxu0
      %v2472 = vadd.f32 0.0, %v2471
      %v2473 = vpop.f32.mrb[0].mxu0
      %2474 = vmatprep.mubr.f32.mxu0 0.0
      %2475 = vmatmul.mubr.f32.gmra.mrb[0].mxu0 %v2253
      %v2476 = vpop.f32.mrb[0].mxu0
      %v2477 = vadd.f32 0.0, %v2476
      %v2478 = vpop.f32.mrb[0].mxu0
      %2479 = vmatprep.mubr.f32.mxu0 0.0
      %2480 = vmatmul.mubr.f32.gmra.mrb[0].mxu0 %v2254
      %v2481 = vpop.f32.mrb[0].mxu0
      %v2482 = vadd.f32 0.0, %v2481
      %v2483 = vpop.f32.mrb[0].mxu0
      %2484 = vmatprep.mubr.f32.mxu0 0.0
      %2485 = vmatmul.mubr.f32.gmra.mrb[0].mxu0 %v2255
      %v2486 = vpop.f32.mrb[0].mxu0
      %v2487 = vadd.f32 0.0, %v2486
      %v2488 = vpop.f32.mrb[0].mxu0
      %2489 = vmatprep.mubr.f32.mxu0 0.0
      %2490 = vmatmul.mubr.f32.gmra.mrb[0].mxu0 %v2256
      %v2491 = vpop.f32.mrb[0].mxu0
      %v2492 = vadd.f32 0.0, %v2491
      %v2493 = vpop.f32.mrb[0].mxu0
      %2494 = vmatprep.mubr.f32.mxu0 0.0
      %2495 = vmatmul.mubr.f32.gmra.mrb[0].mxu0 %v2257
      %v2496 = vpop.f32.mrb[0].mxu0
      %v2497 = vadd.f32 0.0, %v2496
      %v2498 = vpop.f32.mrb[0].mxu0
      %2499 = vdwg.mxu0
      %v2500 = vadd.f32 %v2193, %v2342
      %v2501 = vadd.f32 %v2194, %v2347
      %v2502 = vadd.f32 %v2195, %v2352
      %v2503 = vadd.f32 %v2196, %v2357
      %v2504 = vadd.f32 %v2197, %v2362
      %v2505 = vadd.f32 %v2198, %v2367
      %v2506 = vadd.f32 %v2199, %v2372
      %v2507 = vadd.f32 %v2200, %v2377
      %v2508 = vadd.f32 %v2201, %v2382
      %v2509 = vadd.f32 %v2202, %v2387
      %v2510 = vadd.f32 %v2203, %v2392
      %v2511 = vadd.f32 %v2204, %v2397
      %v2512 = vadd.f32 %v2205, %v2402
      %v2513 = vadd.f32 %v2206, %v2407
      %v2514 = vadd.f32 %v2207, %v2412
      %v2515 = vadd.f32 %v2208, %v2417
      %v2516 = vadd.f32 %v2209, %v2422
      %v2517 = vadd.f32 %v2210, %v2427
      %v2518 = vadd.f32 %v2211, %v2432
      %v2519 = vadd.f32 %v2212, %v2437
      %v2520 = vadd.f32 %v2213, %v2442
      %v2521 = vadd.f32 %v2214, %v2447
      %v2522 = vadd.f32 %v2215, %v2452
      %v2523 = vadd.f32 %v2216, %v2457
      %v2524 = vadd.f32 %v2217, %v2462
      %v2525 = vadd.f32 %v2218, %v2467
      %v2526 = vadd.f32 %v2219, %v2472
      %v2527 = vadd.f32 %v2220, %v2477
      %v2528 = vadd.f32 %v2221, %v2482
      %v2529 = vadd.f32 %v2222, %v2487
      %v2530 = vadd.f32 %v2223, %v2492
      %v2531 = vadd.f32 %v2224, %v2497
      %v2532 = vld [vmem:[%s2225 + $0x1] sm:$0xff]
      %v2533 = vld [vmem:[%s2225 + $0x9] sm:$0xff]
      %v2534 = vld [vmem:[%s2225 + $0x19] sm:$0xff]
      %v2535 = vld [vmem:[%s2225 + $0x21] sm:$0xff]
      %v2536 = vld [vmem:[%s2225 + $0x31] sm:$0xff]
      %v2537 = vld [vmem:[%s2225 + $0x39] sm:$0xff]
      %v2538 = vld [vmem:[%s2225 + $0x49] sm:$0xff]
      %v2539 = vld [vmem:[%s2225 + $0x51] sm:$0xff]
      %v2540 = vld [vmem:[%s2225 + $0x61] sm:$0xff]
      %v2541 = vld [vmem:[%s2225 + $0x69] sm:$0xff]
      %v2542 = vld [vmem:[%s2225 + $0x79] sm:$0xff]
      %v2543 = vld [vmem:[%s2225 + $0x81] sm:$0xff]
      %v2544 = vld [vmem:[%s2225 + $0x91] sm:$0xff]
      %v2545 = vld [vmem:[%s2225 + $0x99] sm:$0xff]
      %v2546 = vld [vmem:[%s2225 + $0xa9] sm:$0xff]
      %v2547 = vld [vmem:[%s2225 + $0xb1] sm:$0xff]
      %v2548 = vld [vmem:[%s2225 + $0xc1] sm:$0xff]
      %v2549 = vld [vmem:[%s2225 + $0xc9] sm:$0xff]
      %v2550 = vld [vmem:[%s2225 + $0xd9] sm:$0xff]
      %v2551 = vld [vmem:[%s2225 + $0xe1] sm:$0xff]
      %v2552 = vld [vmem:[%s2225 + $0xf1] sm:$0xff]
      %v2553 = vld [vmem:[%s2225 + $0xf9] sm:$0xff]
      %v2554 = vld [vmem:[%s2225 + $0x109] sm:$0xff]
      %v2555 = vld [vmem:[%s2225 + $0x111] sm:$0xff]
      %v2556 = vld [vmem:[%s2225 + $0x121] sm:$0xff]
      %v2557 = vld [vmem:[%s2225 + $0x129] sm:$0xff]
      %v2558 = vld [vmem:[%s2225 + $0x139] sm:$0xff]
      %v2559 = vld [vmem:[%s2225 + $0x141] sm:$0xff]
      %v2560 = vld [vmem:[%s2225 + $0x151] sm:$0xff]
      %v2561 = vld [vmem:[%s2225 + $0x159] sm:$0xff]
      %v2562 = vld [vmem:[%s2225 + $0x169] sm:$0xff]
      %v2563 = vld [vmem:[%s2225 + $0x171] sm:$0xff]
      %s2564 = scalar_lea.vmem %s3, 896
      %v2565 = vld [vmem:[%s2564] sm:$0xff]
      %v2566 = vld [vmem:[%s2564 + $0x8] sm:$0xff]
      %v2567 = vld [vmem:[%s2564 + $0x10] sm:$0xff]
      %v2568 = vld [vmem:[%s2564 + $0x18] sm:$0xff]
      %v2569 = vld [vmem:[%s2564 + $0x20] sm:$0xff]
      %v2570 = vld [vmem:[%s2564 + $0x28] sm:$0xff]
      %v2571 = vld [vmem:[%s2564 + $0x30] sm:$0xff]
      %v2572 = vld [vmem:[%s2564 + $0x38] sm:$0xff]
      %v2573 = vld [vmem:[%s2564 + $0x40] sm:$0xff]
      %v2574 = vld [vmem:[%s2564 + $0x48] sm:$0xff]
      %v2575 = vld [vmem:[%s2564 + $0x50] sm:$0xff]
      %v2576 = vld [vmem:[%s2564 + $0x58] sm:$0xff]
      %v2577 = vld [vmem:[%s2564 + $0x60] sm:$0xff]
      %v2578 = vld [vmem:[%s2564 + $0x68] sm:$0xff]
      %v2579 = vld [vmem:[%s2564 + $0x70] sm:$0xff]
      %v2580 = vld [vmem:[%s2564 + $0x78] sm:$0xff]
      %2581 = vmatprep.subr.mxu0 0.0
      %2582 = vmatpush1.msra.mxu0 %v2565
      %2583 = vmatprep.subr.mxu0 0.0
      %2584 = vmatpush1.msra.mxu0 %v2566
      %2585 = vmatprep.subr.mxu0 0.0
      %2586 = vmatpush1.msra.mxu0 %v2567
      %2587 = vmatprep.subr.mxu0 0.0
      %2588 = vmatpush1.msra.mxu0 %v2568
      %2589 = vmatprep.subr.mxu0 0.0
      %2590 = vmatpush1.msra.mxu0 %v2569
      %2591 = vmatprep.subr.mxu0 0.0
      %2592 = vmatpush1.msra.mxu0 %v2570
      %2593 = vmatprep.subr.mxu0 0.0
      %2594 = vmatpush1.msra.mxu0 %v2571
      %2595 = vmatprep.subr.mxu0 0.0
      %2596 = vmatpush1.msra.mxu0 %v2572
      %2597 = vmatprep.subr.mxu0 0.0
      %2598 = vmatpush1.msra.mxu0 %v2573
      %2599 = vmatprep.subr.mxu0 0.0
      %2600 = vmatpush1.msra.mxu0 %v2574
      %2601 = vmatprep.subr.mxu0 0.0
      %2602 = vmatpush1.msra.mxu0 %v2575
      %2603 = vmatprep.subr.mxu0 0.0
      %2604 = vmatpush1.msra.mxu0 %v2576
      %2605 = vmatprep.subr.mxu0 0.0
      %2606 = vmatpush1.msra.mxu0 %v2577
      %2607 = vmatprep.subr.mxu0 0.0
      %2608 = vmatpush1.msra.mxu0 %v2578
      %2609 = vmatprep.subr.mxu0 0.0
      %2610 = vmatpush1.msra.mxu0 %v2579
      %2611 = vmatprep.subr.mxu0 0.0
      %2612 = vmatpush1.msra.mxu0 %v2580
      %2613 = vmatprep.subr.mxu0 0.0
      %2614 = vmatpush1.msra.mxu0 0.0
      %2615 = vmatprep.subr.mxu0 0.0
      %2616 = vmatpush1.msra.mxu0 0.0
      %2617 = vmatprep.subr.mxu0 0.0
      %2618 = vmatpush1.msra.mxu0 0.0
      %2619 = vmatprep.subr.mxu0 0.0
      %2620 = vmatpush1.msra.mxu0 0.0
      %2621 = vmatprep.subr.mxu0 0.0
      %2622 = vmatpush1.msra.mxu0 0.0
      %2623 = vmatprep.subr.mxu0 0.0
      %2624 = vmatpush1.msra.mxu0 0.0
      %2625 = vmatprep.subr.mxu0 0.0
      %2626 = vmatpush1.msra.mxu0 0.0
      %2627 = vmatprep.subr.mxu0 0.0
      %2628 = vmatpush1.msra.mxu0 0.0
      %2629 = vmatprep.subr.mxu0 0.0
      %2630 = vmatpush1.msra.mxu0 0.0
      %2631 = vmatprep.subr.mxu0 0.0
      %2632 = vmatpush1.msra.mxu0 0.0
      %2633 = vmatprep.subr.mxu0 0.0
      %2634 = vmatpush1.msra.mxu0 0.0
      %2635 = vmatprep.subr.mxu0 0.0
      %2636 = vmatpush1.msra.mxu0 0.0
      %2637 = vmatprep.subr.mxu0 0.0
      %2638 = vmatpush1.msra.mxu0 0.0
      %2639 = vmatprep.subr.mxu0 0.0
      %2640 = vmatpush1.msra.mxu0 0.0
      %2641 = vmatprep.subr.mxu0 0.0
      %2642 = vmatpush1.msra.mxu0 0.0
      %2643 = vmatprep.subr.mxu0 0.0
      %2644 = vmatpush1.msra.mxu0 0.0
      %2645 = vmatprep.mubr.f32.mxu0 0.0
      %2646 = vmatmul.mubr.f32.gmra.mrb[0].mxu0 %v2532
      %v2647 = vpop.f32.mrb[0].mxu0
      %v2648 = vadd.f32 0.0, %v2647
      %v2649 = vpop.f32.mrb[0].mxu0
      %2650 = vmatprep.mubr.f32.mxu0 0.0
      %2651 = vmatmul.mubr.f32.gmra.mrb[0].mxu0 %v2533
      %v2652 = vpop.f32.mrb[0].mxu0
      %v2653 = vadd.f32 0.0, %v2652
      %v2654 = vpop.f32.mrb[0].mxu0
      %2655 = vmatprep.mubr.f32.mxu0 0.0
      %2656 = vmatmul.mubr.f32.gmra.mrb[0].mxu0 %v2534
      %v2657 = vpop.f32.mrb[0].mxu0
      %v2658 = vadd.f32 0.0, %v2657
      %v2659 = vpop.f32.mrb[0].mxu0
      %2660 = vmatprep.mubr.f32.mxu0 0.0
      %2661 = vmatmul.mubr.f32.gmra.mrb[0].mxu0 %v2535
      %v2662 = vpop.f32.mrb[0].mxu0
      %v2663 = vadd.f32 0.0, %v2662
      %v2664 = vpop.f32.mrb[0].mxu0
      %2665 = vmatprep.mubr.f32.mxu0 0.0
      %2666 = vmatmul.mubr.f32.gmra.mrb[0].mxu0 %v2536
      %v2667 = vpop.f32.mrb[0].mxu0
      %v2668 = vadd.f32 0.0, %v2667
      %v2669 = vpop.f32.mrb[0].mxu0
      %2670 = vmatprep.mubr.f32.mxu0 0.0
      %2671 = vmatmul.mubr.f32.gmra.mrb[0].mxu0 %v2537
      %v2672 = vpop.f32.mrb[0].mxu0
      %v2673 = vadd.f32 0.0, %v2672
      %v2674 = vpop.f32.mrb[0].mxu0
      %2675 = vmatprep.mubr.f32.mxu0 0.0
      %2676 = vmatmul.mubr.f32.gmra.mrb[0].mxu0 %v2538
      %v2677 = vpop.f32.mrb[0].mxu0
      %v2678 = vadd.f32 0.0, %v2677
      %v2679 = vpop.f32.mrb[0].mxu0
      %2680 = vmatprep.mubr.f32.mxu0 0.0
      %2681 = vmatmul.mubr.f32.gmra.mrb[0].mxu0 %v2539
      %v2682 = vpop.f32.mrb[0].mxu0
      %v2683 = vadd.f32 0.0, %v2682
      %v2684 = vpop.f32.mrb[0].mxu0
      %2685 = vmatprep.mubr.f32.mxu0 0.0
      %2686 = vmatmul.mubr.f32.gmra.mrb[0].mxu0 %v2540
      %v2687 = vpop.f32.mrb[0].mxu0
      %v2688 = vadd.f32 0.0, %v2687
      %v2689 = vpop.f32.mrb[0].mxu0
      %2690 = vmatprep.mubr.f32.mxu0 0.0
      %2691 = vmatmul.mubr.f32.gmra.mrb[0].mxu0 %v2541
      %v2692 = vpop.f32.mrb[0].mxu0
      %v2693 = vadd.f32 0.0, %v2692
      %v2694 = vpop.f32.mrb[0].mxu0
      %2695 = vmatprep.mubr.f32.mxu0 0.0
      %2696 = vmatmul.mubr.f32.gmra.mrb[0].mxu0 %v2542
      %v2697 = vpop.f32.mrb[0].mxu0
      %v2698 = vadd.f32 0.0, %v2697
      %v2699 = vpop.f32.mrb[0].mxu0
      %2700 = vmatprep.mubr.f32.mxu0 0.0
      %2701 = vmatmul.mubr.f32.gmra.mrb[0].mxu0 %v2543
      %v2702 = vpop.f32.mrb[0].mxu0
      %v2703 = vadd.f32 0.0, %v2702
      %v2704 = vpop.f32.mrb[0].mxu0
      %2705 = vmatprep.mubr.f32.mxu0 0.0
      %2706 = vmatmul.mubr.f32.gmra.mrb[0].mxu0 %v2544
      %v2707 = vpop.f32.mrb[0].mxu0
      %v2708 = vadd.f32 0.0, %v2707
      %v2709 = vpop.f32.mrb[0].mxu0
      %2710 = vmatprep.mubr.f32.mxu0 0.0
      %2711 = vmatmul.mubr.f32.gmra.mrb[0].mxu0 %v2545
      %v2712 = vpop.f32.mrb[0].mxu0
      %v2713 = vadd.f32 0.0, %v2712
      %v2714 = vpop.f32.mrb[0].mxu0
      %2715 = vmatprep.mubr.f32.mxu0 0.0
      %2716 = vmatmul.mubr.f32.gmra.mrb[0].mxu0 %v2546
      %v2717 = vpop.f32.mrb[0].mxu0
      %v2718 = vadd.f32 0.0, %v2717
      %v2719 = vpop.f32.mrb[0].mxu0
      %2720 = vmatprep.mubr.f32.mxu0 0.0
      %2721 = vmatmul.mubr.f32.gmra.mrb[0].mxu0 %v2547
      %v2722 = vpop.f32.mrb[0].mxu0
      %v2723 = vadd.f32 0.0, %v2722
      %v2724 = vpop.f32.mrb[0].mxu0
      %2725 = vmatprep.mubr.f32.mxu0 0.0
      %2726 = vmatmul.mubr.f32.gmra.mrb[0].mxu0 %v2548
      %v2727 = vpop.f32.mrb[0].mxu0
      %v2728 = vadd.f32 0.0, %v2727
      %v2729 = vpop.f32.mrb[0].mxu0
      %2730 = vmatprep.mubr.f32.mxu0 0.0
      %2731 = vmatmul.mubr.f32.gmra.mrb[0].mxu0 %v2549
      %v2732 = vpop.f32.mrb[0].mxu0
      %v2733 = vadd.f32 0.0, %v2732
      %v2734 = vpop.f32.mrb[0].mxu0
      %2735 = vmatprep.mubr.f32.mxu0 0.0
      %2736 = vmatmul.mubr.f32.gmra.mrb[0].mxu0 %v2550
      %v2737 = vpop.f32.mrb[0].mxu0
      %v2738 = vadd.f32 0.0, %v2737
      %v2739 = vpop.f32.mrb[0].mxu0
      %2740 = vmatprep.mubr.f32.mxu0 0.0
      %2741 = vmatmul.mubr.f32.gmra.mrb[0].mxu0 %v2551
      %v2742 = vpop.f32.mrb[0].mxu0
      %v2743 = vadd.f32 0.0, %v2742
      %v2744 = vpop.f32.mrb[0].mxu0
      %2745 = vmatprep.mubr.f32.mxu0 0.0
      %2746 = vmatmul.mubr.f32.gmra.mrb[0].mxu0 %v2552
      %v2747 = vpop.f32.mrb[0].mxu0
      %v2748 = vadd.f32 0.0, %v2747
      %v2749 = vpop.f32.mrb[0].mxu0
      %2750 = vmatprep.mubr.f32.mxu0 0.0
      %2751 = vmatmul.mubr.f32.gmra.mrb[0].mxu0 %v2553
      %v2752 = vpop.f32.mrb[0].mxu0
      %v2753 = vadd.f32 0.0, %v2752
      %v2754 = vpop.f32.mrb[0].mxu0
      %2755 = vmatprep.mubr.f32.mxu0 0.0
      %2756 = vmatmul.mubr.f32.gmra.mrb[0].mxu0 %v2554
      %v2757 = vpop.f32.mrb[0].mxu0
      %v2758 = vadd.f32 0.0, %v2757
      %v2759 = vpop.f32.mrb[0].mxu0
      %2760 = vmatprep.mubr.f32.mxu0 0.0
      %2761 = vmatmul.mubr.f32.gmra.mrb[0].mxu0 %v2555
      %v2762 = vpop.f32.mrb[0].mxu0
      %v2763 = vadd.f32 0.0, %v2762
      %v2764 = vpop.f32.mrb[0].mxu0
      %2765 = vmatprep.mubr.f32.mxu0 0.0
      %2766 = vmatmul.mubr.f32.gmra.mrb[0].mxu0 %v2556
      %v2767 = vpop.f32.mrb[0].mxu0
      %v2768 = vadd.f32 0.0, %v2767
      %v2769 = vpop.f32.mrb[0].mxu0
      %2770 = vmatprep.mubr.f32.mxu0 0.0
      %2771 = vmatmul.mubr.f32.gmra.mrb[0].mxu0 %v2557
      %v2772 = vpop.f32.mrb[0].mxu0
      %v2773 = vadd.f32 0.0, %v2772
      %v2774 = vpop.f32.mrb[0].mxu0
      %2775 = vmatprep.mubr.f32.mxu0 0.0
      %2776 = vmatmul.mubr.f32.gmra.mrb[0].mxu0 %v2558
      %v2777 = vpop.f32.mrb[0].mxu0
      %v2778 = vadd.f32 0.0, %v2777
      %v2779 = vpop.f32.mrb[0].mxu0
      %2780 = vmatprep.mubr.f32.mxu0 0.0
      %2781 = vmatmul.mubr.f32.gmra.mrb[0].mxu0 %v2559
      %v2782 = vpop.f32.mrb[0].mxu0
      %v2783 = vadd.f32 0.0, %v2782
      %v2784 = vpop.f32.mrb[0].mxu0
      %2785 = vmatprep.mubr.f32.mxu0 0.0
      %2786 = vmatmul.mubr.f32.gmra.mrb[0].mxu0 %v2560
      %v2787 = vpop.f32.mrb[0].mxu0
      %v2788 = vadd.f32 0.0, %v2787
      %v2789 = vpop.f32.mrb[0].mxu0
      %2790 = vmatprep.mubr.f32.mxu0 0.0
      %2791 = vmatmul.mubr.f32.gmra.mrb[0].mxu0 %v2561
      %v2792 = vpop.f32.mrb[0].mxu0
      %v2793 = vadd.f32 0.0, %v2792
      %v2794 = vpop.f32.mrb[0].mxu0
      %2795 = vmatprep.mubr.f32.mxu0 0.0
      %2796 = vmatmul.mubr.f32.gmra.mrb[0].mxu0 %v2562
      %v2797 = vpop.f32.mrb[0].mxu0
      %v2798 = vadd.f32 0.0, %v2797
      %v2799 = vpop.f32.mrb[0].mxu0
      %2800 = vmatprep.mubr.f32.mxu0 0.0
      %2801 = vmatmul.mubr.f32.gmra.mrb[0].mxu0 %v2563
      %v2802 = vpop.f32.mrb[0].mxu0
      %v2803 = vadd.f32 0.0, %v2802
      %v2804 = vpop.f32.mrb[0].mxu0
      %2805 = vdwg.mxu0
      %v2806 = vadd.f32 %v2500, %v2648
      %v2807 = vadd.f32 %v2501, %v2653
      %v2808 = vadd.f32 %v2502, %v2658
      %v2809 = vadd.f32 %v2503, %v2663
      %v2810 = vadd.f32 %v2504, %v2668
      %v2811 = vadd.f32 %v2505, %v2673
      %v2812 = vadd.f32 %v2506, %v2678
      %v2813 = vadd.f32 %v2507, %v2683
      %v2814 = vadd.f32 %v2508, %v2688
      %v2815 = vadd.f32 %v2509, %v2693
      %v2816 = vadd.f32 %v2510, %v2698
      %v2817 = vadd.f32 %v2511, %v2703
      %v2818 = vadd.f32 %v2512, %v2708
      %v2819 = vadd.f32 %v2513, %v2713
      %v2820 = vadd.f32 %v2514, %v2718
      %v2821 = vadd.f32 %v2515, %v2723
      %v2822 = vadd.f32 %v2516, %v2728
      %v2823 = vadd.f32 %v2517, %v2733
      %v2824 = vadd.f32 %v2518, %v2738
      %v2825 = vadd.f32 %v2519, %v2743
      %v2826 = vadd.f32 %v2520, %v2748
      %v2827 = vadd.f32 %v2521, %v2753
      %v2828 = vadd.f32 %v2522, %v2758
      %v2829 = vadd.f32 %v2523, %v2763
      %v2830 = vadd.f32 %v2524, %v2768
      %v2831 = vadd.f32 %v2525, %v2773
      %v2832 = vadd.f32 %v2526, %v2778
      %v2833 = vadd.f32 %v2527, %v2783
      %v2834 = vadd.f32 %v2528, %v2788
      %v2835 = vadd.f32 %v2529, %v2793
      %v2836 = vadd.f32 %v2530, %v2798
      %v2837 = vadd.f32 %v2531, %v2803
      %v2838 = vld [vmem:[%s2225 + $0x2] sm:$0xff]
      %v2839 = vld [vmem:[%s2225 + $0xa] sm:$0xff]
      %v2840 = vld [vmem:[%s2225 + $0x1a] sm:$0xff]
      %v2841 = vld [vmem:[%s2225 + $0x22] sm:$0xff]
      %v2842 = vld [vmem:[%s2225 + $0x32] sm:$0xff]
      %v2843 = vld [vmem:[%s2225 + $0x3a] sm:$0xff]
      %v2844 = vld [vmem:[%s2225 + $0x4a] sm:$0xff]
      %v2845 = vld [vmem:[%s2225 + $0x52] sm:$0xff]
      %v2846 = vld [vmem:[%s2225 + $0x62] sm:$0xff]
      %v2847 = vld [vmem:[%s2225 + $0x6a] sm:$0xff]
      %v2848 = vld [vmem:[%s2225 + $0x7a] sm:$0xff]
      %v2849 = vld [vmem:[%s2225 + $0x82] sm:$0xff]
      %v2850 = vld [vmem:[%s2225 + $0x92] sm:$0xff]
      %v2851 = vld [vmem:[%s2225 + $0x9a] sm:$0xff]
      %v2852 = vld [vmem:[%s2225 + $0xaa] sm:$0xff]
      %v2853 = vld [vmem:[%s2225 + $0xb2] sm:$0xff]
      %v2854 = vld [vmem:[%s2225 + $0xc2] sm:$0xff]
      %v2855 = vld [vmem:[%s2225 + $0xca] sm:$0xff]
      %v2856 = vld [vmem:[%s2225 + $0xda] sm:$0xff]
      %v2857 = vld [vmem:[%s2225 + $0xe2] sm:$0xff]
      %v2858 = vld [vmem:[%s2225 + $0xf2] sm:$0xff]
      %v2859 = vld [vmem:[%s2225 + $0xfa] sm:$0xff]
      %v2860 = vld [vmem:[%s2225 + $0x10a] sm:$0xff]
      %v2861 = vld [vmem:[%s2225 + $0x112] sm:$0xff]
      %v2862 = vld [vmem:[%s2225 + $0x122] sm:$0xff]
      %v2863 = vld [vmem:[%s2225 + $0x12a] sm:$0xff]
      %v2864 = vld [vmem:[%s2225 + $0x13a] sm:$0xff]
      %v2865 = vld [vmem:[%s2225 + $0x142] sm:$0xff]
      %v2866 = vld [vmem:[%s2225 + $0x152] sm:$0xff]
      %v2867 = vld [vmem:[%s2225 + $0x15a] sm:$0xff]
      %v2868 = vld [vmem:[%s2225 + $0x16a] sm:$0xff]
      %v2869 = vld [vmem:[%s2225 + $0x172] sm:$0xff]
      %s2870 = scalar_lea.vmem %s3, 1024
      %v2871 = vld [vmem:[%s2870] sm:$0xff]
      %v2872 = vld [vmem:[%s2870 + $0x8] sm:$0xff]
      %v2873 = vld [vmem:[%s2870 + $0x10] sm:$0xff]
      %v2874 = vld [vmem:[%s2870 + $0x18] sm:$0xff]
      %v2875 = vld [vmem:[%s2870 + $0x20] sm:$0xff]
      %v2876 = vld [vmem:[%s2870 + $0x28] sm:$0xff]
      %v2877 = vld [vmem:[%s2870 + $0x30] sm:$0xff]
      %v2878 = vld [vmem:[%s2870 + $0x38] sm:$0xff]
      %v2879 = vld [vmem:[%s2870 + $0x40] sm:$0xff]
      %v2880 = vld [vmem:[%s2870 + $0x48] sm:$0xff]
      %v2881 = vld [vmem:[%s2870 + $0x50] sm:$0xff]
      %v2882 = vld [vmem:[%s2870 + $0x58] sm:$0xff]
      %v2883 = vld [vmem:[%s2870 + $0x60] sm:$0xff]
      %v2884 = vld [vmem:[%s2870 + $0x68] sm:$0xff]
      %v2885 = vld [vmem:[%s2870 + $0x70] sm:$0xff]
      %v2886 = vld [vmem:[%s2870 + $0x78] sm:$0xff]
      %2887 = vmatprep.subr.mxu0 0.0
      %2888 = vmatpush1.msra.mxu0 %v2871
      %2889 = vmatprep.subr.mxu0 0.0
      %2890 = vmatpush1.msra.mxu0 %v2872
      %2891 = vmatprep.subr.mxu0 0.0
      %2892 = vmatpush1.msra.mxu0 %v2873
      %2893 = vmatprep.subr.mxu0 0.0
      %2894 = vmatpush1.msra.mxu0 %v2874
      %2895 = vmatprep.subr.mxu0 0.0
      %2896 = vmatpush1.msra.mxu0 %v2875
      %2897 = vmatprep.subr.mxu0 0.0
      %2898 = vmatpush1.msra.mxu0 %v2876
      %2899 = vmatprep.subr.mxu0 0.0
      %2900 = vmatpush1.msra.mxu0 %v2877
      %2901 = vmatprep.subr.mxu0 0.0
      %2902 = vmatpush1.msra.mxu0 %v2878
      %2903 = vmatprep.subr.mxu0 0.0
      %2904 = vmatpush1.msra.mxu0 %v2879
      %2905 = vmatprep.subr.mxu0 0.0
      %2906 = vmatpush1.msra.mxu0 %v2880
      %2907 = vmatprep.subr.mxu0 0.0
      %2908 = vmatpush1.msra.mxu0 %v2881
      %2909 = vmatprep.subr.mxu0 0.0
      %2910 = vmatpush1.msra.mxu0 %v2882
      %2911 = vmatprep.subr.mxu0 0.0
      %2912 = vmatpush1.msra.mxu0 %v2883
      %2913 = vmatprep.subr.mxu0 0.0
      %2914 = vmatpush1.msra.mxu0 %v2884
      %2915 = vmatprep.subr.mxu0 0.0
      %2916 = vmatpush1.msra.mxu0 %v2885
      %2917 = vmatprep.subr.mxu0 0.0
      %2918 = vmatpush1.msra.mxu0 %v2886
      %2919 = vmatprep.subr.mxu0 0.0
      %2920 = vmatpush1.msra.mxu0 0.0
      %2921 = vmatprep.subr.mxu0 0.0
      %2922 = vmatpush1.msra.mxu0 0.0
      %2923 = vmatprep.subr.mxu0 0.0
      %2924 = vmatpush1.msra.mxu0 0.0
      %2925 = vmatprep.subr.mxu0 0.0
      %2926 = vmatpush1.msra.mxu0 0.0
      %2927 = vmatprep.subr.mxu0 0.0
      %2928 = vmatpush1.msra.mxu0 0.0
      %2929 = vmatprep.subr.mxu0 0.0
      %2930 = vmatpush1.msra.mxu0 0.0
      %2931 = vmatprep.subr.mxu0 0.0
      %2932 = vmatpush1.msra.mxu0 0.0
      %2933 = vmatprep.subr.mxu0 0.0
      %2934 = vmatpush1.msra.mxu0 0.0
      %2935 = vmatprep.subr.mxu0 0.0
      %2936 = vmatpush1.msra.mxu0 0.0
      %2937 = vmatprep.subr.mxu0 0.0
      %2938 = vmatpush1.msra.mxu0 0.0
      %2939 = vmatprep.subr.mxu0 0.0
      %2940 = vmatpush1.msra.mxu0 0.0
      %2941 = vmatprep.subr.mxu0 0.0
      %2942 = vmatpush1.msra.mxu0 0.0
      %2943 = vmatprep.subr.mxu0 0.0
      %2944 = vmatpush1.msra.mxu0 0.0
      %2945 = vmatprep.subr.mxu0 0.0
      %2946 = vmatpush1.msra.mxu0 0.0
      %2947 = vmatprep.subr.mxu0 0.0
      %2948 = vmatpush1.msra.mxu0 0.0
      %2949 = vmatprep.subr.mxu0 0.0
      %2950 = vmatpush1.msra.mxu0 0.0
      %2951 = vmatprep.mubr.f32.mxu0 0.0
      %2952 = vmatmul.mubr.f32.gmra.mrb[0].mxu0 %v2838
      %v2953 = vpop.f32.mrb[0].mxu0
      %v2954 = vadd.f32 0.0, %v2953
      %v2955 = vpop.f32.mrb[0].mxu0
      %2956 = vmatprep.mubr.f32.mxu0 0.0
      %2957 = vmatmul.mubr.f32.gmra.mrb[0].mxu0 %v2839
      %v2958 = vpop.f32.mrb[0].mxu0
      %v2959 = vadd.f32 0.0, %v2958
      %v2960 = vpop.f32.mrb[0].mxu0
      %2961 = vmatprep.mubr.f32.mxu0 0.0
      %2962 = vmatmul.mubr.f32.gmra.mrb[0].mxu0 %v2840
      %v2963 = vpop.f32.mrb[0].mxu0
      %v2964 = vadd.f32 0.0, %v2963
      %v2965 = vpop.f32.mrb[0].mxu0
      %2966 = vmatprep.mubr.f32.mxu0 0.0
      %2967 = vmatmul.mubr.f32.gmra.mrb[0].mxu0 %v2841
      %v2968 = vpop.f32.mrb[0].mxu0
      %v2969 = vadd.f32 0.0, %v2968
      %v2970 = vpop.f32.mrb[0].mxu0
      %2971 = vmatprep.mubr.f32.mxu0 0.0
      %2972 = vmatmul.mubr.f32.gmra.mrb[0].mxu0 %v2842
      %v2973 = vpop.f32.mrb[0].mxu0
      %v2974 = vadd.f32 0.0, %v2973
      %v2975 = vpop.f32.mrb[0].mxu0
      %2976 = vmatprep.mubr.f32.mxu0 0.0
      %2977 = vmatmul.mubr.f32.gmra.mrb[0].mxu0 %v2843
      %v2978 = vpop.f32.mrb[0].mxu0
      %v2979 = vadd.f32 0.0, %v2978
      %v2980 = vpop.f32.mrb[0].mxu0
      %2981 = vmatprep.mubr.f32.mxu0 0.0
      %2982 = vmatmul.mubr.f32.gmra.mrb[0].mxu0 %v2844
      %v2983 = vpop.f32.mrb[0].mxu0
      %v2984 = vadd.f32 0.0, %v2983
      %v2985 = vpop.f32.mrb[0].mxu0
      %2986 = vmatprep.mubr.f32.mxu0 0.0
      %2987 = vmatmul.mubr.f32.gmra.mrb[0].mxu0 %v2845
      %v2988 = vpop.f32.mrb[0].mxu0
      %v2989 = vadd.f32 0.0, %v2988
      %v2990 = vpop.f32.mrb[0].mxu0
      %2991 = vmatprep.mubr.f32.mxu0 0.0
      %2992 = vmatmul.mubr.f32.gmra.mrb[0].mxu0 %v2846
      %v2993 = vpop.f32.mrb[0].mxu0
      %v2994 = vadd.f32 0.0, %v2993
      %v2995 = vpop.f32.mrb[0].mxu0
      %2996 = vmatprep.mubr.f32.mxu0 0.0
      %2997 = vmatmul.mubr.f32.gmra.mrb[0].mxu0 %v2847
      %v2998 = vpop.f32.mrb[0].mxu0
      %v2999 = vadd.f32 0.0, %v2998
      %v3000 = vpop.f32.mrb[0].mxu0
      %3001 = vmatprep.mubr.f32.mxu0 0.0
      %3002 = vmatmul.mubr.f32.gmra.mrb[0].mxu0 %v2848
      %v3003 = vpop.f32.mrb[0].mxu0
      %v3004 = vadd.f32 0.0, %v3003
      %v3005 = vpop.f32.mrb[0].mxu0
      %3006 = vmatprep.mubr.f32.mxu0 0.0
      %3007 = vmatmul.mubr.f32.gmra.mrb[0].mxu0 %v2849
      %v3008 = vpop.f32.mrb[0].mxu0
      %v3009 = vadd.f32 0.0, %v3008
      %v3010 = vpop.f32.mrb[0].mxu0
      %3011 = vmatprep.mubr.f32.mxu0 0.0
      %3012 = vmatmul.mubr.f32.gmra.mrb[0].mxu0 %v2850
      %v3013 = vpop.f32.mrb[0].mxu0
      %v3014 = vadd.f32 0.0, %v3013
      %v3015 = vpop.f32.mrb[0].mxu0
      %3016 = vmatprep.mubr.f32.mxu0 0.0
      %3017 = vmatmul.mubr.f32.gmra.mrb[0].mxu0 %v2851
      %v3018 = vpop.f32.mrb[0].mxu0
      %v3019 = vadd.f32 0.0, %v3018
      %v3020 = vpop.f32.mrb[0].mxu0
      %3021 = vmatprep.mubr.f32.mxu0 0.0
      %3022 = vmatmul.mubr.f32.gmra.mrb[0].mxu0 %v2852
      %v3023 = vpop.f32.mrb[0].mxu0
      %v3024 = vadd.f32 0.0, %v3023
      %v3025 = vpop.f32.mrb[0].mxu0
      %3026 = vmatprep.mubr.f32.mxu0 0.0
      %3027 = vmatmul.mubr.f32.gmra.mrb[0].mxu0 %v2853
      %v3028 = vpop.f32.mrb[0].mxu0
      %v3029 = vadd.f32 0.0, %v3028
      %v3030 = vpop.f32.mrb[0].mxu0
      %3031 = vmatprep.mubr.f32.mxu0 0.0
      %3032 = vmatmul.mubr.f32.gmra.mrb[0].mxu0 %v2854
      %v3033 = vpop.f32.mrb[0].mxu0
      %v3034 = vadd.f32 0.0, %v3033
      %v3035 = vpop.f32.mrb[0].mxu0
      %3036 = vmatprep.mubr.f32.mxu0 0.0
      %3037 = vmatmul.mubr.f32.gmra.mrb[0].mxu0 %v2855
      %v3038 = vpop.f32.mrb[0].mxu0
      %v3039 = vadd.f32 0.0, %v3038
      %v3040 = vpop.f32.mrb[0].mxu0
      %3041 = vmatprep.mubr.f32.mxu0 0.0
      %3042 = vmatmul.mubr.f32.gmra.mrb[0].mxu0 %v2856
      %v3043 = vpop.f32.mrb[0].mxu0
      %v3044 = vadd.f32 0.0, %v3043
      %v3045 = vpop.f32.mrb[0].mxu0
      %3046 = vmatprep.mubr.f32.mxu0 0.0
      %3047 = vmatmul.mubr.f32.gmra.mrb[0].mxu0 %v2857
      %v3048 = vpop.f32.mrb[0].mxu0
      %v3049 = vadd.f32 0.0, %v3048
      %v3050 = vpop.f32.mrb[0].mxu0
      %3051 = vmatprep.mubr.f32.mxu0 0.0
      %3052 = vmatmul.mubr.f32.gmra.mrb[0].mxu0 %v2858
      %v3053 = vpop.f32.mrb[0].mxu0
      %v3054 = vadd.f32 0.0, %v3053
      %v3055 = vpop.f32.mrb[0].mxu0
      %3056 = vmatprep.mubr.f32.mxu0 0.0
      %3057 = vmatmul.mubr.f32.gmra.mrb[0].mxu0 %v2859
      %v3058 = vpop.f32.mrb[0].mxu0
      %v3059 = vadd.f32 0.0, %v3058
      %v3060 = vpop.f32.mrb[0].mxu0
      %3061 = vmatprep.mubr.f32.mxu0 0.0
      %3062 = vmatmul.mubr.f32.gmra.mrb[0].mxu0 %v2860
      %v3063 = vpop.f32.mrb[0].mxu0
      %v3064 = vadd.f32 0.0, %v3063
      %v3065 = vpop.f32.mrb[0].mxu0
      %3066 = vmatprep.mubr.f32.mxu0 0.0
      %3067 = vmatmul.mubr.f32.gmra.mrb[0].mxu0 %v2861
      %v3068 = vpop.f32.mrb[0].mxu0
      %v3069 = vadd.f32 0.0, %v3068
      %v3070 = vpop.f32.mrb[0].mxu0
      %3071 = vmatprep.mubr.f32.mxu0 0.0
      %3072 = vmatmul.mubr.f32.gmra.mrb[0].mxu0 %v2862
      %v3073 = vpop.f32.mrb[0].mxu0
      %v3074 = vadd.f32 0.0, %v3073
      %v3075 = vpop.f32.mrb[0].mxu0
      %3076 = vmatprep.mubr.f32.mxu0 0.0
      %3077 = vmatmul.mubr.f32.gmra.mrb[0].mxu0 %v2863
      %v3078 = vpop.f32.mrb[0].mxu0
      %v3079 = vadd.f32 0.0, %v3078
      %v3080 = vpop.f32.mrb[0].mxu0
      %3081 = vmatprep.mubr.f32.mxu0 0.0
      %3082 = vmatmul.mubr.f32.gmra.mrb[0].mxu0 %v2864
      %v3083 = vpop.f32.mrb[0].mxu0
      %v3084 = vadd.f32 0.0, %v3083
      %v3085 = vpop.f32.mrb[0].mxu0
      %3086 = vmatprep.mubr.f32.mxu0 0.0
      %3087 = vmatmul.mubr.f32.gmra.mrb[0].mxu0 %v2865
      %v3088 = vpop.f32.mrb[0].mxu0
      %v3089 = vadd.f32 0.0, %v3088
      %v3090 = vpop.f32.mrb[0].mxu0
      %3091 = vmatprep.mubr.f32.mxu0 0.0
      %3092 = vmatmul.mubr.f32.gmra.mrb[0].mxu0 %v2866
      %v3093 = vpop.f32.mrb[0].mxu0
      %v3094 = vadd.f32 0.0, %v3093
      %v3095 = vpop.f32.mrb[0].mxu0
      %3096 = vmatprep.mubr.f32.mxu0 0.0
      %3097 = vmatmul.mubr.f32.gmra.mrb[0].mxu0 %v2867
      %v3098 = vpop.f32.mrb[0].mxu0
      %v3099 = vadd.f32 0.0, %v3098
      %v3100 = vpop.f32.mrb[0].mxu0
      %3101 = vmatprep.mubr.f32.mxu0 0.0
      %3102 = vmatmul.mubr.f32.gmra.mrb[0].mxu0 %v2868
      %v3103 = vpop.f32.mrb[0].mxu0
      %v3104 = vadd.f32 0.0, %v3103
      %v3105 = vpop.f32.mrb[0].mxu0
      %3106 = vmatprep.mubr.f32.mxu0 0.0
      %3107 = vmatmul.mubr.f32.gmra.mrb[0].mxu0 %v2869
      %v3108 = vpop.f32.mrb[0].mxu0
      %v3109 = vadd.f32 0.0, %v3108
      %v3110 = vpop.f32.mrb[0].mxu0
      %3111 = vdwg.mxu0
      %v3112 = vadd.f32 %v2806, %v2954
      %v3113 = vadd.f32 %v2807, %v2959
      %v3114 = vadd.f32 %v2808, %v2964
      %v3115 = vadd.f32 %v2809, %v2969
      %v3116 = vadd.f32 %v2810, %v2974
      %v3117 = vadd.f32 %v2811, %v2979
      %v3118 = vadd.f32 %v2812, %v2984
      %v3119 = vadd.f32 %v2813, %v2989
      %v3120 = vadd.f32 %v2814, %v2994
      %v3121 = vadd.f32 %v2815, %v2999
      %v3122 = vadd.f32 %v2816, %v3004
      %v3123 = vadd.f32 %v2817, %v3009
      %v3124 = vadd.f32 %v2818, %v3014
      %v3125 = vadd.f32 %v2819, %v3019
      %v3126 = vadd.f32 %v2820, %v3024
      %v3127 = vadd.f32 %v2821, %v3029
      %v3128 = vadd.f32 %v2822, %v3034
      %v3129 = vadd.f32 %v2823, %v3039
      %v3130 = vadd.f32 %v2824, %v3044
      %v3131 = vadd.f32 %v2825, %v3049
      %v3132 = vadd.f32 %v2826, %v3054
      %v3133 = vadd.f32 %v2827, %v3059
      %v3134 = vadd.f32 %v2828, %v3064
      %v3135 = vadd.f32 %v2829, %v3069
      %v3136 = vadd.f32 %v2830, %v3074
      %v3137 = vadd.f32 %v2831, %v3079
      %v3138 = vadd.f32 %v2832, %v3084
      %v3139 = vadd.f32 %v2833, %v3089
      %v3140 = vadd.f32 %v2834, %v3094
      %v3141 = vadd.f32 %v2835, %v3099
      %v3142 = vadd.f32 %v2836, %v3104
      %v3143 = vadd.f32 %v2837, %v3109
      %3144 = vst [vmem:[%s231] sm:$0xff] %v3112
      %3145 = vst [vmem:[%s231 + $0x8] sm:$0xff] %v3113
      %3146 = vst [vmem:[%s231 + $0x10] sm:$0xff] %v3114
      %3147 = vst [vmem:[%s231 + $0x18] sm:$0xff] %v3115
      %3148 = vst [vmem:[%s231 + $0x20] sm:$0xff] %v3116
      %3149 = vst [vmem:[%s231 + $0x28] sm:$0xff] %v3117
      %3150 = vst [vmem:[%s231 + $0x30] sm:$0xff] %v3118
      %3151 = vst [vmem:[%s231 + $0x38] sm:$0xff] %v3119
      %3152 = vst [vmem:[%s231 + $0x40] sm:$0xff] %v3120
      %3153 = vst [vmem:[%s231 + $0x48] sm:$0xff] %v3121
      %3154 = vst [vmem:[%s231 + $0x50] sm:$0xff] %v3122
      %3155 = vst [vmem:[%s231 + $0x58] sm:$0xff] %v3123
      %3156 = vst [vmem:[%s231 + $0x60] sm:$0xff] %v3124
      %3157 = vst [vmem:[%s231 + $0x68] sm:$0xff] %v3125
      %3158 = vst [vmem:[%s231 + $0x70] sm:$0xff] %v3126
      %3159 = vst [vmem:[%s231 + $0x78] sm:$0xff] %v3127
      %3160 = vst [vmem:[%s231 + $0x80] sm:$0xff] %v3128
      %3161 = vst [vmem:[%s231 + $0x88] sm:$0xff] %v3129
      %3162 = vst [vmem:[%s231 + $0x90] sm:$0xff] %v3130
      %3163 = vst [vmem:[%s231 + $0x98] sm:$0xff] %v3131
      %3164 = vst [vmem:[%s231 + $0xa0] sm:$0xff] %v3132
      %3165 = vst [vmem:[%s231 + $0xa8] sm:$0xff] %v3133
      %3166 = vst [vmem:[%s231 + $0xb0] sm:$0xff] %v3134
      %3167 = vst [vmem:[%s231 + $0xb8] sm:$0xff] %v3135
      %3168 = vst [vmem:[%s231 + $0xc0] sm:$0xff] %v3136
      %3169 = vst [vmem:[%s231 + $0xc8] sm:$0xff] %v3137
      %3170 = vst [vmem:[%s231 + $0xd0] sm:$0xff] %v3138
      %3171 = vst [vmem:[%s231 + $0xd8] sm:$0xff] %v3139
      %3172 = vst [vmem:[%s231 + $0xe0] sm:$0xff] %v3140
      %3173 = vst [vmem:[%s231 + $0xe8] sm:$0xff] %v3141
      %3174 = vst [vmem:[%s231 + $0xf0] sm:$0xff] %v3142
      %3175 = vst [vmem:[%s231 + $0xf8] sm:$0xff] %v3143
      %v3176 = vadd.f32 %v3112, %v3113
      %v3177 = vadd.f32 %v3176, %v3114
      %v3178 = vadd.f32 %v3177, %v3115
      %v3179 = vadd.f32 %v3178, %v3116
      %v3180 = vadd.f32 %v3179, %v3117
      %v3181 = vadd.f32 %v3180, %v3118
      %v3182 = vadd.f32 %v3181, %v3119
      %v3183 = vadd.f32 %v3182, %v3120
      %v3184 = vadd.f32 %v3183, %v3121
      %v3185 = vadd.f32 %v3184, %v3122
      %v3186 = vadd.f32 %v3185, %v3123
      %v3187 = vadd.f32 %v3186, %v3124
      %v3188 = vadd.f32 %v3187, %v3125
      %v3189 = vadd.f32 %v3188, %v3126
      %v3190 = vadd.f32 %v3189, %v3127
      %v3191 = vadd.f32 %v3190, %v3128
      %v3192 = vadd.f32 %v3191, %v3129
      %v3193 = vadd.f32 %v3192, %v3130
      %v3194 = vadd.f32 %v3193, %v3131
      %v3195 = vadd.f32 %v3194, %v3132
      %v3196 = vadd.f32 %v3195, %v3133
      %v3197 = vadd.f32 %v3196, %v3134
      %v3198 = vadd.f32 %v3197, %v3135
      %v3199 = vadd.f32 %v3198, %v3136
      %v3200 = vadd.f32 %v3199, %v3137
      %v3201 = vadd.f32 %v3200, %v3138
      %v3202 = vadd.f32 %v3201, %v3139
      %v3203 = vadd.f32 %v3202, %v3140
      %v3204 = vadd.f32 %v3203, %v3141
      %v3205 = vadd.f32 %v3204, %v3142
      %v3206 = vadd.f32 %v3205, %v3143
      %v3207 = vrot.slane %v3206, 4
      %v3208 = vadd.f32 %v3206, %v3207
      %v3209 = vrot.slane %v3208, 2
      %v3210 = vadd.f32 %v3208, %v3209
      %v3211 = vrot.slane %v3210, 1
      %v3212 = vadd.f32 %v3210, %v3211
      %v3213 = vmul.f32 %v3112, %v3112
      %v3214 = vmul.f32 %v3113, %v3113
      %v3215 = vmul.f32 %v3114, %v3114
      %v3216 = vmul.f32 %v3115, %v3115
      %v3217 = vmul.f32 %v3116, %v3116
      %v3218 = vmul.f32 %v3117, %v3117
      %v3219 = vmul.f32 %v3118, %v3118
      %v3220 = vmul.f32 %v3119, %v3119
      %v3221 = vmul.f32 %v3120, %v3120
      %v3222 = vmul.f32 %v3121, %v3121
      %v3223 = vmul.f32 %v3122, %v3122
      %v3224 = vmul.f32 %v3123, %v3123
      %v3225 = vmul.f32 %v3124, %v3124
      %v3226 = vmul.f32 %v3125, %v3125
      %v3227 = vmul.f32 %v3126, %v3126
      %v3228 = vmul.f32 %v3127, %v3127
      %v3229 = vmul.f32 %v3128, %v3128
      %v3230 = vmul.f32 %v3129, %v3129
      %v3231 = vmul.f32 %v3130, %v3130
      %v3232 = vmul.f32 %v3131, %v3131
      %v3233 = vmul.f32 %v3132, %v3132
      %v3234 = vmul.f32 %v3133, %v3133
      %v3235 = vmul.f32 %v3134, %v3134
      %v3236 = vmul.f32 %v3135, %v3135
      %v3237 = vmul.f32 %v3136, %v3136
      %v3238 = vmul.f32 %v3137, %v3137
      %v3239 = vmul.f32 %v3138, %v3138
      %v3240 = vmul.f32 %v3139, %v3139
      %v3241 = vmul.f32 %v3140, %v3140
      %v3242 = vmul.f32 %v3141, %v3141
      %v3243 = vmul.f32 %v3142, %v3142
      %v3244 = vmul.f32 %v3143, %v3143
      %v3245 = vadd.f32 %v3213, %v3214
      %v3246 = vadd.f32 %v3245, %v3215
      %v3247 = vadd.f32 %v3246, %v3216
      %v3248 = vadd.f32 %v3247, %v3217
      %v3249 = vadd.f32 %v3248, %v3218
      %v3250 = vadd.f32 %v3249, %v3219
      %v3251 = vadd.f32 %v3250, %v3220
      %v3252 = vadd.f32 %v3251, %v3221
      %v3253 = vadd.f32 %v3252, %v3222
      %v3254 = vadd.f32 %v3253, %v3223
      %v3255 = vadd.f32 %v3254, %v3224
      %v3256 = vadd.f32 %v3255, %v3225
      %v3257 = vadd.f32 %v3256, %v3226
      %v3258 = vadd.f32 %v3257, %v3227
      %v3259 = vadd.f32 %v3258, %v3228
      %v3260 = vadd.f32 %v3259, %v3229
      %v3261 = vadd.f32 %v3260, %v3230
      %v3262 = vadd.f32 %v3261, %v3231
      %v3263 = vadd.f32 %v3262, %v3232
      %v3264 = vadd.f32 %v3263, %v3233
      %v3265 = vadd.f32 %v3264, %v3234
      %v3266 = vadd.f32 %v3265, %v3235
      %v3267 = vadd.f32 %v3266, %v3236
      %v3268 = vadd.f32 %v3267, %v3237
      %v3269 = vadd.f32 %v3268, %v3238
      %v3270 = vadd.f32 %v3269, %v3239
      %v3271 = vadd.f32 %v3270, %v3240
      %v3272 = vadd.f32 %v3271, %v3241
      %v3273 = vadd.f32 %v3272, %v3242
      %v3274 = vadd.f32 %v3273, %v3243
      %v3275 = vadd.f32 %v3274, %v3244
      %v3276 = vrot.slane %v3275, 4
      %v3277 = vadd.f32 %v3275, %v3276
      %v3278 = vrot.slane %v3277, 2
      %v3279 = vadd.f32 %v3277, %v3278
      %v3280 = vrot.slane %v3279, 1
      %v3281 = vadd.f32 %v3279, %v3280
      %vm3282 = vcmask 1040384
      %v3283 = vsel %vm3282, %v3212, %v3281
      %3284 = vst [vmem:[%s235] sm:$0x3] %v3283
      %p3285 = scmp.lt.s32.totalorder %s17, 1
      %s3286 = scalar_select %p3285, %s17, 1
      %s3287 = smul.addr %s3286, 32
      %s3288 = smul.addr %s3287, 8
      %s3289 = scalar_lea.vmem %s4, %s3288
      %p3290 = scmp.lt.s32.totalorder %s17, 1
      %s3291 = scalar_select %p3290, %s17, 1
      %s3292 = smul.addr %s3291, 2
      %s3293 = scalar_lea.vmem %s5, %s3292
      // Predicated region
      $region37: #{double_conv.4} parent=35 // pred_check
        %p3294 = pneg %p124
      $region38: #{double_conv.4} parent=35 // pred_check_branch
        %3296 = sbr.rel (%p3294) target = $region40
      $region39: #{double_conv.4} parent=35 // pred_region
        _
      $region40: #{double_conv.4} parent=35 // pred_fallthru
        _
      // Predicated region
      $region41: #{double_conv.4} parent=35 // pred_check
        %p3297 = pneg %p150
      $region42: #{double_conv.4} parent=35 // pred_check_branch
        %3299 = sbr.rel (%p3297) target = $region44
      $region43: #{double_conv.4} parent=35 // pred_region
        _
      $region44: #{double_conv.4} parent=35 // pred_fallthru
        _
    $region36: #{double_conv.4} parent=5 // pred_fallthru
      _
    %p3300 = scmp.le.s32.totalorder 2, %s12
    // Predicated region
    $region45: #{double_conv.4} parent=5 // pred_check
      %p3301 = pneg %p3300
    $region46: #{double_conv.4} parent=5 // pred_check_branch
      %3303 = sbr.rel (%p3301) target = $region48
    $region47: #{double_conv.4} parent=5 // pred_region
      %s3304 = ssub.s32 %s12, 2
      // Predicated region
      $region49: #{double_conv.4} parent=47 // pred_check
        %p3305 = pneg %p130
      $region50: #{double_conv.4} parent=47 // pred_check_branch
        %3307 = sbr.rel (%p3305) target = $region52
      $region51: #{double_conv.4} parent=47 // pred_region
        %p3308 = scmp.lt.s32.totalorder %s18, 1
        %s3309 = scalar_select %p3308, %s18, 1
        %s3310 = smul.addr %s3309, 32
        %s3311 = smul.addr %s3310, 8
        %s3312 = scalar_lea.vmem %s4, %s3311
      $region52: #{double_conv.4} parent=47 // pred_fallthru
        _
      // Predicated region
      $region53: #{double_conv.4} parent=47 // pred_check
        %p3313 = pneg %p156
      $region54: #{double_conv.4} parent=47 // pred_check_branch
        %3315 = sbr.rel (%p3313) target = $region56
      $region55: #{double_conv.4} parent=47 // pred_region
        %p3316 = scmp.lt.s32.totalorder %s18, 1
        %s3317 = scalar_select %p3316, %s18, 1
        %s3318 = smul.addr %s3317, 2
        %s3319 = scalar_lea.vmem %s5, %s3318
      $region56: #{double_conv.4} parent=47 // pred_fallthru
        _
    $region48: #{double_conv.4} parent=5 // pred_fallthru
      _
  $region6: #{double_conv.4} parent=0 // loop_footer
    %s16 = sadd.s32 1, %s12
  $region7: #{double_conv.4} parent=0 // loop_footer_branch
    %11 = sbr.rel target = $region3
  $region8: #{double_conv.4} parent=0 // loop_exit
    _

</llo_original>
